<compile_context>
chip_gen: v7x
topology: tpu7x:2x2x1
jax: 0.10.0
libtpu: 0.0.40
codegen_flags: <defaults>
</compile_context>

<pallas_src>
import functools

import jax
import jax.numpy as jnp
from jax.experimental import pallas as pl
from jax.experimental.pallas import tpu as pltpu


# --------------------------------------------------------------------------- #
# One-time parameter preparation (weight re-layout / padding, like a checkpoint load)
# --------------------------------------------------------------------------- #
def prepare_params(params, num_actions):
    f32, bf16 = jnp.float32, jnp.bfloat16

    # conv1 stays in XLA -> keep native OIHW layout.
    w1 = params["conv1_w"].astype(f32)                                    # (32, 1, 8, 8)
    b1 = params["conv1_b"].astype(f32)                                    # (32,)

    # conv2: (O,I,kh,kw) -> (kh,kw,I,O) -> (512, 64); K index = (kh*4+kw)*32 + c_in.
    w2 = jnp.transpose(params["conv2_w"], (2, 3, 1, 0)).reshape(512, 64).astype(bf16)
    b2 = params["conv2_b"].reshape(1, 64).astype(f32)

    # conv3: (O,I,kh,kw) -> (kh,kw,I,O) -> (9, 64, 64); offset index = kh*3 + kw.
    w3 = jnp.transpose(params["conv3_w"], (2, 3, 1, 0)).reshape(9, 64, 64).astype(bf16)
    b3 = params["conv3_b"].reshape(1, 64).astype(f32)

    # fc1: torch flatten of (64, 7, 7) is index c*49 + p.  Our in-kernel flatten is
    # index p*64 + c, so permute once here; pad K 3136 -> 3584 with ZERO rows.
    wf1 = jnp.transpose(params["fc1_w"].reshape(512, 64, 49), (2, 1, 0)).reshape(3136, 512)
    wf1 = jnp.pad(wf1, ((0, 3584 - 3136), (0, 0))).astype(bf16)           # (3584, 512)
    bf1 = params["fc1_b"].reshape(1, 512).astype(f32)

    # fc2: pad N (num_actions) to 128 lanes; sliced outside the kernel.
    A = num_actions
    wf2 = jnp.zeros((512, 128), f32).at[:, :A].set(params["fc2_w"].T).astype(bf16)
    bf2 = jnp.zeros((1, 128), f32).at[0, :A].set(params["fc2_b"])

    return dict(w1=w1, b1=b1, w2=w2, b2=b2, w3=w3, b3=b3,
                wf1=wf1, bf1=bf1, wf2=wf2, bf2=bf2)


# --------------------------------------------------------------------------- #
# Forward pass
# --------------------------------------------------------------------------- #
def qnet_forward(fp, x, *, num_actions):
    # x: (B, 1, 84, 84) float32
    B, C, H, W = x.shape
    assert (C, H, W) == (1, 84, 84), "fc1 = Linear(3136, 512) requires 1x84x84 inputs"
    bf16, f32 = jnp.bfloat16, jnp.float32

    BP = max(8, ((B + 7) // 8) * 8)        # fc/output rows padded to a sublane multiple
    R = 56 * B                             # rows per conv3-offset block (49 pos padded to 56)

    # ---- conv1 (real weights) + bias + ReLU in XLA, NHWC bf16 output -------------
    a1 = jax.lax.conv_general_dilated(
        x, fp["w1"], (4, 4), "VALID",
        dimension_numbers=("NCHW", "OIHW", "NHWC"))                       # (B, 20, 20, 32)
    a1 = jnp.maximum(a1 + fp["b1"], 0.0).astype(bf16)

    # ---- conv2 im2col, evaluated directly at the positions conv3 will need -------
    # patches2[b, y, x, (i*4+j)*32 + c] = a1[b, 2y+i, 2x+j, c]      (y, x in 0..8)
    slabs = [a1[:, i:i + 17:2, j:j + 17:2, :] for i in range(4) for j in range(4)]
    patches2 = jnp.concatenate(slabs, axis=-1)                            # (B, 9, 9, 512)
    # For conv3 offset (i3, j3) and output position (oh, ow in 0..6) we need the
    # conv2 patch at (oh+i3, ow+j3).  Rows ordered (offset, position, image).
    wins = [patches2[:, i3:i3 + 7, j3:j3 + 7, :] for i3 in range(3) for j3 in range(3)]
    p23 = jnp.stack(wins, axis=0).reshape(9, B, 49, 512)
    p23 = jnp.pad(p23, ((0, 0), (0, 0), (0, 7), (0, 0)))                  # 49 -> 56 positions
    p23 = jnp.transpose(p23, (0, 2, 1, 3)).reshape(9 * 56 * B, 512)       # (9*R, 512) bf16

    # ---- the fused Pallas kernel: conv2 + conv3 + fc1 + fc2 ----------------------
    def kernel(p23_ref,                    # (9*R, 512) bf16   redundant conv2 patches
               w2_ref, b2_ref,             # (512, 64) bf16, (1, 64) f32
               w3_ref, b3_ref,             # (9, 64, 64) bf16, (1, 64) f32
               wf1_ref, bf1_ref,           # (3584, 512) bf16, (1, 512) f32
               wf2_ref, bf2_ref,           # (512, 128) bf16, (1, 128) f32
               out_ref,                    # (BP, 128) f32
               flat_scr):                  # VMEM (BP, 3584) f32
        # conv2 at every (conv3-offset, conv3-position): ONE big dot, K=512.
        a2 = jnp.dot(p23_ref[...], w2_ref[...], preferred_element_type=f32)
        a2 = jnp.maximum(a2 + b2_ref[...], 0.0).astype(bf16)              # (9*R, 64)

        # conv3: 9 contiguous offset blocks, tree-reduced accumulation (no serial chain).
        parts = [jnp.dot(a2[o * R:(o + 1) * R, :], w3_ref[o],
                         preferred_element_type=f32) for o in range(9)]
        while len(parts) > 1:
            nxt = [parts[i] + parts[i + 1] for i in range(0, len(parts) - 1, 2)]
            if len(parts) % 2:
                nxt.append(parts[-1])
            parts = nxt
        a3 = jnp.maximum(parts[0] + b3_ref[...], 0.0)                     # (R, 64) f32, rows=(pos, img)

        # Flatten (pos, img, ch) -> (img, pos*64+ch): pure VMEM layout change via
        # 49 small aligned stores into a lane-dense scratch (no MXU work).
        flat_scr[...] = jnp.zeros_like(flat_scr)                          # padded rows/lanes stay 0
        for p in range(49):
            flat_scr[0:B, p * 64:(p + 1) * 64] = a3[p * B:(p + 1) * B, :]

        # fc1: single big-K dot (BP, 3584) x (3584, 512); fc2: (BP, 512) x (512, 128).
        h = jnp.dot(flat_scr[...].astype(bf16), wf1_ref[...],
                    preferred_element_type=f32)
        h = jnp.maximum(h + bf1_ref[...], 0.0).astype(bf16)               # (BP, 512)
        q = jnp.dot(h, wf2_ref[...], preferred_element_type=f32) + bf2_ref[...]
        out_ref[...] = q                                                   # aligned (BP, 128) store

    out = pl.pallas_call(
        kernel,
        out_shape=jax.ShapeDtypeStruct((BP, 128), jnp.float32),
        grid=(1,),                         # whole batch in one step (small B); chunk + 'parallel'
        in_specs=[                         # generalises this for large B on v7x's 2 TCs.
            pl.BlockSpec((9 * 56 * B, 512), lambda i: (0, 0)),
            pl.BlockSpec((512, 64), lambda i: (0, 0)),
            pl.BlockSpec((1, 64), lambda i: (0, 0)),
            pl.BlockSpec((9, 64, 64), lambda i: (0, 0, 0)),
            pl.BlockSpec((1, 64), lambda i: (0, 0)),
            pl.BlockSpec((3584, 512), lambda i: (0, 0)),
            pl.BlockSpec((1, 512), lambda i: (0, 0)),
            pl.BlockSpec((512, 128), lambda i: (0, 0)),
            pl.BlockSpec((1, 128), lambda i: (0, 0)),
        ],
        out_specs=pl.BlockSpec((BP, 128), lambda i: (0, 0)),
        scratch_shapes=[pltpu.VMEM((BP, 3584), jnp.float32)],
        compiler_params=pltpu.CompilerParams(
            dimension_semantics=("parallel",),     # no cross-step state
            vmem_limit_bytes=24 * 1024 * 1024,     # ~12 MB real footprint + headroom
        ),
    )(p23, fp["w2"], fp["b2"], fp["w3"], fp["b3"],
      fp["wf1"], fp["bf1"], fp["wf2"], fp["bf2"])

    return out[:B, :num_actions]


# --------------------------------------------------------------------------- #
# Init (PyTorch-style) and pure-JAX reference
# --------------------------------------------------------------------------- #
def init_params(key, num_actions):
    def uinit(k, fan_in, shape_w, shape_b):
        kw, kb = jax.random.split(k)
        bound = 1.0 / float(fan_in) ** 0.5
        w = jax.random.uniform(kw, shape_w, jnp.float32, -bound, bound)
        b = jax.random.uniform(kb, shape_b, jnp.float32, -bound, bound)
        return w, b

    keys = jax.random.split(key, 5)
    params = {}
    params["conv1_w"], params["conv1_b"] = uinit(keys[0], 1 * 8 * 8, (32, 1, 8, 8), (32,))
    params["conv2_w"], params["conv2_b"] = uinit(keys[1], 32 * 4 * 4, (64, 32, 4, 4), (64,))
    params["conv3_w"], params["conv3_b"] = uinit(keys[2], 64 * 3 * 3, (64, 64, 3, 3), (64,))
    params["fc1_w"], params["fc1_b"] = uinit(keys[3], 3136, (512, 3136), (512,))
    params["fc2_w"], params["fc2_b"] = uinit(keys[4], 512, (num_actions, 512), (num_actions,))
    return params


def qnet_forward_ref(params, x):
    def conv(x, w, b, s):
        y = jax.lax.conv_general_dilated(
            x, w, (s, s), "VALID", dimension_numbers=("NCHW", "OIHW", "NCHW"))
        return jax.nn.relu(y + b[None, :, None, None])

    x = conv(x, params["conv1_w"], params["conv1_b"], 4)
    x = conv(x, params["conv2_w"], params["conv2_b"], 2)
    x = conv(x, params["conv3_w"], params["conv3_b"], 1)
    B = x.shape[0]
    x = x.reshape(B, -1)
    x = jax.nn.relu(x @ params["fc1_w"].T + params["fc1_b"])
    return x @ params["fc2_w"].T + params["fc2_b"]


# TODO(synk): sample_action / sample_actions_batch epsilon-greedy host logic and
# register_hooks are not kernel concerns; only forward() is implemented.

if __name__ == "__main__":
    num_actions = 4
    key = jax.random.PRNGKey(0)
    k_params, k_x = jax.random.split(key)

    params = init_params(k_params, num_actions)
    x = jax.random.normal(k_x, (2, 1, 84, 84), dtype=jnp.float32)

    fparams = prepare_params(params, num_actions)   # one-time re-layout (outside the hot path)
    fwd = jax.jit(functools.partial(qnet_forward, num_actions=num_actions))

    out = jax.block_until_ready(fwd(fparams, x))
    assert out.shape == (2, num_actions), out.shape

    ref = jax.block_until_ready(jax.jit(qnet_forward_ref)(params, x))
    # bf16 MXU operands vs. the f32 reference -> loosened tolerance.
    err = float(jnp.max(jnp.abs(out - ref)))
    assert jnp.allclose(out, ref, rtol=2e-2, atol=2e-2), err

    print("KERNEL_OK")
</pallas_src>

<mosaic_0001>
module attributes {stable_mosaic.version = 11 : i64} {
  func.func @kernel(%arg0: i32, %arg1: memref<1008x512xbf16, #tpu.memory_space<vmem>>, %arg2: memref<512x64xbf16, #tpu.memory_space<vmem>>, %arg3: memref<1x64xf32, #tpu.memory_space<vmem>>, %arg4: memref<9x64x64xbf16, #tpu.memory_space<vmem>>, %arg5: memref<1x64xf32, #tpu.memory_space<vmem>>, %arg6: memref<3584x512xbf16, #tpu.memory_space<vmem>>, %arg7: memref<1x512xf32, #tpu.memory_space<vmem>>, %arg8: memref<512x128xbf16, #tpu.memory_space<vmem>>, %arg9: memref<1x128xf32, #tpu.memory_space<vmem>>, %arg10: memref<8x128xf32, #tpu.memory_space<vmem>>, %arg11: memref<8x3584xf32, #tpu.memory_space<vmem>>) attributes {dimension_semantics = [#tpu.dimension_semantics<parallel>], iteration_bounds = array<i64: 1>, scalar_prefetch = 0 : i64, scratch_operands = 1 : i64, tpu.core_type = #tpu.core_type<tc>, window_params = [{pipeline_mode = #tpu.pipeline_mode<synchronous>, transform_indices = @transform_0, window_bounds = array<i64: 1008, 512>}, {pipeline_mode = #tpu.pipeline_mode<synchronous>, transform_indices = @transform_1, window_bounds = array<i64: 512, 64>}, {pipeline_mode = #tpu.pipeline_mode<synchronous>, transform_indices = @transform_2, window_bounds = array<i64: 1, 64>}, {pipeline_mode = #tpu.pipeline_mode<synchronous>, transform_indices = @transform_3, window_bounds = array<i64: 9, 64, 64>}, {pipeline_mode = #tpu.pipeline_mode<synchronous>, transform_indices = @transform_4, window_bounds = array<i64: 1, 64>}, {pipeline_mode = #tpu.pipeline_mode<synchronous>, transform_indices = @transform_5, window_bounds = array<i64: 3584, 512>}, {pipeline_mode = #tpu.pipeline_mode<synchronous>, transform_indices = @transform_6, window_bounds = array<i64: 1, 512>}, {pipeline_mode = #tpu.pipeline_mode<synchronous>, transform_indices = @transform_7, window_bounds = array<i64: 512, 128>}, {pipeline_mode = #tpu.pipeline_mode<synchronous>, transform_indices = @transform_8, window_bounds = array<i64: 1, 128>}, {pipeline_mode = #tpu.pipeline_mode<synchronous>, transform_indices = @transform_9, window_bounds = array<i64: 8, 128>}]} {
    %c0 = arith.constant 0 : index
    %c0_0 = arith.constant 0 : index
    %0 = vector.load %arg1[%c0, %c0_0] : memref<1008x512xbf16, #tpu.memory_space<vmem>>, vector<1008x512xbf16>
    %c0_1 = arith.constant 0 : index
    %c0_2 = arith.constant 0 : index
    %1 = vector.load %arg2[%c0_1, %c0_2] : memref<512x64xbf16, #tpu.memory_space<vmem>>, vector<512x64xbf16>
    %cst = arith.constant dense<0.000000e+00> : vector<1008x64xf32>
    %2 = tpu.matmul %0, %1, %cst {dimension_numbers = #tpu.dot_dimension_numbers<[1], [0], [0], [1], [0, 0, 1, 1], [], []>} : vector<1008x512xbf16>, vector<512x64xbf16>, vector<1008x64xf32> -> vector<1008x64xf32>
    %c0_3 = arith.constant 0 : index
    %c0_4 = arith.constant 0 : index
    %3 = vector.load %arg3[%c0_3, %c0_4] : memref<1x64xf32, #tpu.memory_space<vmem>>, vector<1x64xf32>
    %4 = vector.broadcast %3 : vector<1x64xf32> to vector<1008x64xf32>
    %5 = arith.addf %2, %4 : vector<1008x64xf32>
    %cst_5 = arith.constant 0.000000e+00 : f32
    %6 = vector.broadcast %cst_5 : f32 to vector<1008x64xf32>
    %7 = arith.maximumf %5, %6 : vector<1008x64xf32>
    %8 = arith.truncf %7 : vector<1008x64xf32> to vector<1008x64xbf16>
    %9 = vector.extract_strided_slice %8 {offsets = [0, 0], sizes = [112, 64], strides = [1, 1]} : vector<1008x64xbf16> to vector<112x64xbf16>
    %c0_6 = arith.constant 0 : index
    %c0_7 = arith.constant 0 : index
    %c0_8 = arith.constant 0 : index
    %10 = vector.load %arg4[%c0_6, %c0_7, %c0_8] : memref<9x64x64xbf16, #tpu.memory_space<vmem>>, vector<1x64x64xbf16>
    %11 = vector.shape_cast %10 : vector<1x64x64xbf16> to vector<64x64xbf16>
    %cst_9 = arith.constant dense<0.000000e+00> : vector<112x64xf32>
    %12 = tpu.matmul %9, %11, %cst_9 {dimension_numbers = #tpu.dot_dimension_numbers<[1], [0], [0], [1], [0, 0, 1, 1], [], []>} : vector<112x64xbf16>, vector<64x64xbf16>, vector<112x64xf32> -> vector<112x64xf32>
    %13 = vector.extract_strided_slice %8 {offsets = [112, 0], sizes = [112, 64], strides = [1, 1]} : vector<1008x64xbf16> to vector<112x64xbf16>
    %c1 = arith.constant 1 : index
    %c0_10 = arith.constant 0 : index
    %c0_11 = arith.constant 0 : index
    %14 = vector.load %arg4[%c1, %c0_10, %c0_11] : memref<9x64x64xbf16, #tpu.memory_space<vmem>>, vector<1x64x64xbf16>
    %15 = vector.shape_cast %14 : vector<1x64x64xbf16> to vector<64x64xbf16>
    %cst_12 = arith.constant dense<0.000000e+00> : vector<112x64xf32>
    %16 = tpu.matmul %13, %15, %cst_12 {dimension_numbers = #tpu.dot_dimension_numbers<[1], [0], [0], [1], [0, 0, 1, 1], [], []>} : vector<112x64xbf16>, vector<64x64xbf16>, vector<112x64xf32> -> vector<112x64xf32>
    %17 = vector.extract_strided_slice %8 {offsets = [224, 0], sizes = [112, 64], strides = [1, 1]} : vector<1008x64xbf16> to vector<112x64xbf16>
    %c2 = arith.constant 2 : index
    %c0_13 = arith.constant 0 : index
    %c0_14 = arith.constant 0 : index
    %18 = vector.load %arg4[%c2, %c0_13, %c0_14] : memref<9x64x64xbf16, #tpu.memory_space<vmem>>, vector<1x64x64xbf16>
    %19 = vector.shape_cast %18 : vector<1x64x64xbf16> to vector<64x64xbf16>
    %cst_15 = arith.constant dense<0.000000e+00> : vector<112x64xf32>
    %20 = tpu.matmul %17, %19, %cst_15 {dimension_numbers = #tpu.dot_dimension_numbers<[1], [0], [0], [1], [0, 0, 1, 1], [], []>} : vector<112x64xbf16>, vector<64x64xbf16>, vector<112x64xf32> -> vector<112x64xf32>
    %21 = vector.extract_strided_slice %8 {offsets = [336, 0], sizes = [112, 64], strides = [1, 1]} : vector<1008x64xbf16> to vector<112x64xbf16>
    %c3 = arith.constant 3 : index
    %c0_16 = arith.constant 0 : index
    %c0_17 = arith.constant 0 : index
    %22 = vector.load %arg4[%c3, %c0_16, %c0_17] : memref<9x64x64xbf16, #tpu.memory_space<vmem>>, vector<1x64x64xbf16>
    %23 = vector.shape_cast %22 : vector<1x64x64xbf16> to vector<64x64xbf16>
    %cst_18 = arith.constant dense<0.000000e+00> : vector<112x64xf32>
    %24 = tpu.matmul %21, %23, %cst_18 {dimension_numbers = #tpu.dot_dimension_numbers<[1], [0], [0], [1], [0, 0, 1, 1], [], []>} : vector<112x64xbf16>, vector<64x64xbf16>, vector<112x64xf32> -> vector<112x64xf32>
    %25 = vector.extract_strided_slice %8 {offsets = [448, 0], sizes = [112, 64], strides = [1, 1]} : vector<1008x64xbf16> to vector<112x64xbf16>
    %c4 = arith.constant 4 : index
    %c0_19 = arith.constant 0 : index
    %c0_20 = arith.constant 0 : index
    %26 = vector.load %arg4[%c4, %c0_19, %c0_20] : memref<9x64x64xbf16, #tpu.memory_space<vmem>>, vector<1x64x64xbf16>
    %27 = vector.shape_cast %26 : vector<1x64x64xbf16> to vector<64x64xbf16>
    %cst_21 = arith.constant dense<0.000000e+00> : vector<112x64xf32>
    %28 = tpu.matmul %25, %27, %cst_21 {dimension_numbers = #tpu.dot_dimension_numbers<[1], [0], [0], [1], [0, 0, 1, 1], [], []>} : vector<112x64xbf16>, vector<64x64xbf16>, vector<112x64xf32> -> vector<112x64xf32>
    %29 = vector.extract_strided_slice %8 {offsets = [560, 0], sizes = [112, 64], strides = [1, 1]} : vector<1008x64xbf16> to vector<112x64xbf16>
    %c5 = arith.constant 5 : index
    %c0_22 = arith.constant 0 : index
    %c0_23 = arith.constant 0 : index
    %30 = vector.load %arg4[%c5, %c0_22, %c0_23] : memref<9x64x64xbf16, #tpu.memory_space<vmem>>, vector<1x64x64xbf16>
    %31 = vector.shape_cast %30 : vector<1x64x64xbf16> to vector<64x64xbf16>
    %cst_24 = arith.constant dense<0.000000e+00> : vector<112x64xf32>
    %32 = tpu.matmul %29, %31, %cst_24 {dimension_numbers = #tpu.dot_dimension_numbers<[1], [0], [0], [1], [0, 0, 1, 1], [], []>} : vector<112x64xbf16>, vector<64x64xbf16>, vector<112x64xf32> -> vector<112x64xf32>
    %33 = vector.extract_strided_slice %8 {offsets = [672, 0], sizes = [112, 64], strides = [1, 1]} : vector<1008x64xbf16> to vector<112x64xbf16>
    %c6 = arith.constant 6 : index
    %c0_25 = arith.constant 0 : index
    %c0_26 = arith.constant 0 : index
    %34 = vector.load %arg4[%c6, %c0_25, %c0_26] : memref<9x64x64xbf16, #tpu.memory_space<vmem>>, vector<1x64x64xbf16>
    %35 = vector.shape_cast %34 : vector<1x64x64xbf16> to vector<64x64xbf16>
    %cst_27 = arith.constant dense<0.000000e+00> : vector<112x64xf32>
    %36 = tpu.matmul %33, %35, %cst_27 {dimension_numbers = #tpu.dot_dimension_numbers<[1], [0], [0], [1], [0, 0, 1, 1], [], []>} : vector<112x64xbf16>, vector<64x64xbf16>, vector<112x64xf32> -> vector<112x64xf32>
    %37 = vector.extract_strided_slice %8 {offsets = [784, 0], sizes = [112, 64], strides = [1, 1]} : vector<1008x64xbf16> to vector<112x64xbf16>
    %c7 = arith.constant 7 : index
    %c0_28 = arith.constant 0 : index
    %c0_29 = arith.constant 0 : index
    %38 = vector.load %arg4[%c7, %c0_28, %c0_29] : memref<9x64x64xbf16, #tpu.memory_space<vmem>>, vector<1x64x64xbf16>
    %39 = vector.shape_cast %38 : vector<1x64x64xbf16> to vector<64x64xbf16>
    %cst_30 = arith.constant dense<0.000000e+00> : vector<112x64xf32>
    %40 = tpu.matmul %37, %39, %cst_30 {dimension_numbers = #tpu.dot_dimension_numbers<[1], [0], [0], [1], [0, 0, 1, 1], [], []>} : vector<112x64xbf16>, vector<64x64xbf16>, vector<112x64xf32> -> vector<112x64xf32>
    %41 = vector.extract_strided_slice %8 {offsets = [896, 0], sizes = [112, 64], strides = [1, 1]} : vector<1008x64xbf16> to vector<112x64xbf16>
    %c8 = arith.constant 8 : index
    %c0_31 = arith.constant 0 : index
    %c0_32 = arith.constant 0 : index
    %42 = vector.load %arg4[%c8, %c0_31, %c0_32] : memref<9x64x64xbf16, #tpu.memory_space<vmem>>, vector<1x64x64xbf16>
    %43 = vector.shape_cast %42 : vector<1x64x64xbf16> to vector<64x64xbf16>
    %cst_33 = arith.constant dense<0.000000e+00> : vector<112x64xf32>
    %44 = tpu.matmul %41, %43, %cst_33 {dimension_numbers = #tpu.dot_dimension_numbers<[1], [0], [0], [1], [0, 0, 1, 1], [], []>} : vector<112x64xbf16>, vector<64x64xbf16>, vector<112x64xf32> -> vector<112x64xf32>
    %45 = arith.addf %12, %16 : vector<112x64xf32>
    %46 = arith.addf %20, %24 : vector<112x64xf32>
    %47 = arith.addf %28, %32 : vector<112x64xf32>
    %48 = arith.addf %36, %40 : vector<112x64xf32>
    %49 = arith.addf %45, %46 : vector<112x64xf32>
    %50 = arith.addf %47, %48 : vector<112x64xf32>
    %51 = arith.addf %49, %50 : vector<112x64xf32>
    %52 = arith.addf %51, %44 : vector<112x64xf32>
    %c0_34 = arith.constant 0 : index
    %c0_35 = arith.constant 0 : index
    %53 = vector.load %arg5[%c0_34, %c0_35] : memref<1x64xf32, #tpu.memory_space<vmem>>, vector<1x64xf32>
    %54 = vector.broadcast %53 : vector<1x64xf32> to vector<112x64xf32>
    %55 = arith.addf %52, %54 : vector<112x64xf32>
    %cst_36 = arith.constant 0.000000e+00 : f32
    %56 = vector.broadcast %cst_36 : f32 to vector<112x64xf32>
    %57 = arith.maximumf %55, %56 : vector<112x64xf32>
    %cst_37 = arith.constant 0.000000e+00 : f32
    %58 = vector.broadcast %cst_37 : f32 to vector<8x3584xf32>
    %c0_38 = arith.constant 0 : index
    %c0_39 = arith.constant 0 : index
    %59 = vector.load %arg11[%c0_38, %c0_39] : memref<8x3584xf32, #tpu.memory_space<vmem>>, vector<8x3584xf32>
    tpu.vector_store %arg11[%c0_38, %c0_39], %58 {strides = array<i32>} : memref<8x3584xf32, #tpu.memory_space<vmem>>, vector<8x3584xf32>,
    %60 = vector.extract_strided_slice %57 {offsets = [0, 0], sizes = [2, 64], strides = [1, 1]} : vector<112x64xf32> to vector<2x64xf32>
    %c0_40 = arith.constant 0 : index
    %c0_41 = arith.constant 0 : index
    %61 = vector.load %arg11[%c0_40, %c0_41] : memref<8x3584xf32, #tpu.memory_space<vmem>>, vector<2x64xf32>
    tpu.vector_store %arg11[%c0_40, %c0_41], %60 {strides = array<i32>} : memref<8x3584xf32, #tpu.memory_space<vmem>>, vector<2x64xf32>,
    %62 = vector.extract_strided_slice %57 {offsets = [2, 0], sizes = [2, 64], strides = [1, 1]} : vector<112x64xf32> to vector<2x64xf32>
    %c0_42 = arith.constant 0 : index
    %c64 = arith.constant 64 : index
    %63 = vector.load %arg11[%c0_42, %c64] : memref<8x3584xf32, #tpu.memory_space<vmem>>, vector<2x64xf32>
    tpu.vector_store %arg11[%c0_42, %c64], %62 {strides = array<i32>} : memref<8x3584xf32, #tpu.memory_space<vmem>>, vector<2x64xf32>,
    %64 = vector.extract_strided_slice %57 {offsets = [4, 0], sizes = [2, 64], strides = [1, 1]} : vector<112x64xf32> to vector<2x64xf32>
    %c0_43 = arith.constant 0 : index
    %c128 = arith.constant 128 : index
    %65 = vector.load %arg11[%c0_43, %c128] : memref<8x3584xf32, #tpu.memory_space<vmem>>, vector<2x64xf32>
    tpu.vector_store %arg11[%c0_43, %c128], %64 {strides = array<i32>} : memref<8x3584xf32, #tpu.memory_space<vmem>>, vector<2x64xf32>,
    %66 = vector.extract_strided_slice %57 {offsets = [6, 0], sizes = [2, 64], strides = [1, 1]} : vector<112x64xf32> to vector<2x64xf32>
    %c0_44 = arith.constant 0 : index
    %c192 = arith.constant 192 : index
    %67 = vector.load %arg11[%c0_44, %c192] : memref<8x3584xf32, #tpu.memory_space<vmem>>, vector<2x64xf32>
    tpu.vector_store %arg11[%c0_44, %c192], %66 {strides = array<i32>} : memref<8x3584xf32, #tpu.memory_space<vmem>>, vector<2x64xf32>,
    %68 = vector.extract_strided_slice %57 {offsets = [8, 0], sizes = [2, 64], strides = [1, 1]} : vector<112x64xf32> to vector<2x64xf32>
    %c0_45 = arith.constant 0 : index
    %c256 = arith.constant 256 : index
    %69 = vector.load %arg11[%c0_45, %c256] : memref<8x3584xf32, #tpu.memory_space<vmem>>, vector<2x64xf32>
    tpu.vector_store %arg11[%c0_45, %c256], %68 {strides = array<i32>} : memref<8x3584xf32, #tpu.memory_space<vmem>>, vector<2x64xf32>,
    %70 = vector.extract_strided_slice %57 {offsets = [10, 0], sizes = [2, 64], strides = [1, 1]} : vector<112x64xf32> to vector<2x64xf32>
    %c0_46 = arith.constant 0 : index
    %c320 = arith.constant 320 : index
    %71 = vector.load %arg11[%c0_46, %c320] : memref<8x3584xf32, #tpu.memory_space<vmem>>, vector<2x64xf32>
    tpu.vector_store %arg11[%c0_46, %c320], %70 {strides = array<i32>} : memref<8x3584xf32, #tpu.memory_space<vmem>>, vector<2x64xf32>,
    %72 = vector.extract_strided_slice %57 {offsets = [12, 0], sizes = [2, 64], strides = [1, 1]} : vector<112x64xf32> to vector<2x64xf32>
    %c0_47 = arith.constant 0 : index
    %c384 = arith.constant 384 : index
    %73 = vector.load %arg11[%c0_47, %c384] : memref<8x3584xf32, #tpu.memory_space<vmem>>, vector<2x64xf32>
    tpu.vector_store %arg11[%c0_47, %c384], %72 {strides = array<i32>} : memref<8x3584xf32, #tpu.memory_space<vmem>>, vector<2x64xf32>,
    %74 = vector.extract_strided_slice %57 {offsets = [14, 0], sizes = [2, 64], strides = [1, 1]} : vector<112x64xf32> to vector<2x64xf32>
    %c0_48 = arith.constant 0 : index
    %c448 = arith.constant 448 : index
    %75 = vector.load %arg11[%c0_48, %c448] : memref<8x3584xf32, #tpu.memory_space<vmem>>, vector<2x64xf32>
    tpu.vector_store %arg11[%c0_48, %c448], %74 {strides = array<i32>} : memref<8x3584xf32, #tpu.memory_space<vmem>>, vector<2x64xf32>,
    %76 = vector.extract_strided_slice %57 {offsets = [16, 0], sizes = [2, 64], strides = [1, 1]} : vector<112x64xf32> to vector<2x64xf32>
    %c0_49 = arith.constant 0 : index
    %c512 = arith.constant 512 : index
    %77 = vector.load %arg11[%c0_49, %c512] : memref<8x3584xf32, #tpu.memory_space<vmem>>, vector<2x64xf32>
    tpu.vector_store %arg11[%c0_49, %c512], %76 {strides = array<i32>} : memref<8x3584xf32, #tpu.memory_space<vmem>>, vector<2x64xf32>,
    %78 = vector.extract_strided_slice %57 {offsets = [18, 0], sizes = [2, 64], strides = [1, 1]} : vector<112x64xf32> to vector<2x64xf32>
    %c0_50 = arith.constant 0 : index
    %c576 = arith.constant 576 : index
    %79 = vector.load %arg11[%c0_50, %c576] : memref<8x3584xf32, #tpu.memory_space<vmem>>, vector<2x64xf32>
    tpu.vector_store %arg11[%c0_50, %c576], %78 {strides = array<i32>} : memref<8x3584xf32, #tpu.memory_space<vmem>>, vector<2x64xf32>,
    %80 = vector.extract_strided_slice %57 {offsets = [20, 0], sizes = [2, 64], strides = [1, 1]} : vector<112x64xf32> to vector<2x64xf32>
    %c0_51 = arith.constant 0 : index
    %c640 = arith.constant 640 : index
    %81 = vector.load %arg11[%c0_51, %c640] : memref<8x3584xf32, #tpu.memory_space<vmem>>, vector<2x64xf32>
    tpu.vector_store %arg11[%c0_51, %c640], %80 {strides = array<i32>} : memref<8x3584xf32, #tpu.memory_space<vmem>>, vector<2x64xf32>,
    %82 = vector.extract_strided_slice %57 {offsets = [22, 0], sizes = [2, 64], strides = [1, 1]} : vector<112x64xf32> to vector<2x64xf32>
    %c0_52 = arith.constant 0 : index
    %c704 = arith.constant 704 : index
    %83 = vector.load %arg11[%c0_52, %c704] : memref<8x3584xf32, #tpu.memory_space<vmem>>, vector<2x64xf32>
    tpu.vector_store %arg11[%c0_52, %c704], %82 {strides = array<i32>} : memref<8x3584xf32, #tpu.memory_space<vmem>>, vector<2x64xf32>,
    %84 = vector.extract_strided_slice %57 {offsets = [24, 0], sizes = [2, 64], strides = [1, 1]} : vector<112x64xf32> to vector<2x64xf32>
    %c0_53 = arith.constant 0 : index
    %c768 = arith.constant 768 : index
    %85 = vector.load %arg11[%c0_53, %c768] : memref<8x3584xf32, #tpu.memory_space<vmem>>, vector<2x64xf32>
    tpu.vector_store %arg11[%c0_53, %c768], %84 {strides = array<i32>} : memref<8x3584xf32, #tpu.memory_space<vmem>>, vector<2x64xf32>,
    %86 = vector.extract_strided_slice %57 {offsets = [26, 0], sizes = [2, 64], strides = [1, 1]} : vector<112x64xf32> to vector<2x64xf32>
    %c0_54 = arith.constant 0 : index
    %c832 = arith.constant 832 : index
    %87 = vector.load %arg11[%c0_54, %c832] : memref<8x3584xf32, #tpu.memory_space<vmem>>, vector<2x64xf32>
    tpu.vector_store %arg11[%c0_54, %c832], %86 {strides = array<i32>} : memref<8x3584xf32, #tpu.memory_space<vmem>>, vector<2x64xf32>,
    %88 = vector.extract_strided_slice %57 {offsets = [28, 0], sizes = [2, 64], strides = [1, 1]} : vector<112x64xf32> to vector<2x64xf32>
    %c0_55 = arith.constant 0 : index
    %c896 = arith.constant 896 : index
    %89 = vector.load %arg11[%c0_55, %c896] : memref<8x3584xf32, #tpu.memory_space<vmem>>, vector<2x64xf32>
    tpu.vector_store %arg11[%c0_55, %c896], %88 {strides = array<i32>} : memref<8x3584xf32, #tpu.memory_space<vmem>>, vector<2x64xf32>,
    %90 = vector.extract_strided_slice %57 {offsets = [30, 0], sizes = [2, 64], strides = [1, 1]} : vector<112x64xf32> to vector<2x64xf32>
    %c0_56 = arith.constant 0 : index
    %c960 = arith.constant 960 : index
    %91 = vector.load %arg11[%c0_56, %c960] : memref<8x3584xf32, #tpu.memory_space<vmem>>, vector<2x64xf32>
    tpu.vector_store %arg11[%c0_56, %c960], %90 {strides = array<i32>} : memref<8x3584xf32, #tpu.memory_space<vmem>>, vector<2x64xf32>,
    %92 = vector.extract_strided_slice %57 {offsets = [32, 0], sizes = [2, 64], strides = [1, 1]} : vector<112x64xf32> to vector<2x64xf32>
    %c0_57 = arith.constant 0 : index
    %c1024 = arith.constant 1024 : index
    %93 = vector.load %arg11[%c0_57, %c1024] : memref<8x3584xf32, #tpu.memory_space<vmem>>, vector<2x64xf32>
    tpu.vector_store %arg11[%c0_57, %c1024], %92 {strides = array<i32>} : memref<8x3584xf32, #tpu.memory_space<vmem>>, vector<2x64xf32>,
    %94 = vector.extract_strided_slice %57 {offsets = [34, 0], sizes = [2, 64], strides = [1, 1]} : vector<112x64xf32> to vector<2x64xf32>
    %c0_58 = arith.constant 0 : index
    %c1088 = arith.constant 1088 : index
    %95 = vector.load %arg11[%c0_58, %c1088] : memref<8x3584xf32, #tpu.memory_space<vmem>>, vector<2x64xf32>
    tpu.vector_store %arg11[%c0_58, %c1088], %94 {strides = array<i32>} : memref<8x3584xf32, #tpu.memory_space<vmem>>, vector<2x64xf32>,
    %96 = vector.extract_strided_slice %57 {offsets = [36, 0], sizes = [2, 64], strides = [1, 1]} : vector<112x64xf32> to vector<2x64xf32>
    %c0_59 = arith.constant 0 : index
    %c1152 = arith.constant 1152 : index
    %97 = vector.load %arg11[%c0_59, %c1152] : memref<8x3584xf32, #tpu.memory_space<vmem>>, vector<2x64xf32>
    tpu.vector_store %arg11[%c0_59, %c1152], %96 {strides = array<i32>} : memref<8x3584xf32, #tpu.memory_space<vmem>>, vector<2x64xf32>,
    %98 = vector.extract_strided_slice %57 {offsets = [38, 0], sizes = [2, 64], strides = [1, 1]} : vector<112x64xf32> to vector<2x64xf32>
    %c0_60 = arith.constant 0 : index
    %c1216 = arith.constant 1216 : index
    %99 = vector.load %arg11[%c0_60, %c1216] : memref<8x3584xf32, #tpu.memory_space<vmem>>, vector<2x64xf32>
    tpu.vector_store %arg11[%c0_60, %c1216], %98 {strides = array<i32>} : memref<8x3584xf32, #tpu.memory_space<vmem>>, vector<2x64xf32>,
    %100 = vector.extract_strided_slice %57 {offsets = [40, 0], sizes = [2, 64], strides = [1, 1]} : vector<112x64xf32> to vector<2x64xf32>
    %c0_61 = arith.constant 0 : index
    %c1280 = arith.constant 1280 : index
    %101 = vector.load %arg11[%c0_61, %c1280] : memref<8x3584xf32, #tpu.memory_space<vmem>>, vector<2x64xf32>
    tpu.vector_store %arg11[%c0_61, %c1280], %100 {strides = array<i32>} : memref<8x3584xf32, #tpu.memory_space<vmem>>, vector<2x64xf32>,
    %102 = vector.extract_strided_slice %57 {offsets = [42, 0], sizes = [2, 64], strides = [1, 1]} : vector<112x64xf32> to vector<2x64xf32>
    %c0_62 = arith.constant 0 : index
    %c1344 = arith.constant 1344 : index
    %103 = vector.load %arg11[%c0_62, %c1344] : memref<8x3584xf32, #tpu.memory_space<vmem>>, vector<2x64xf32>
    tpu.vector_store %arg11[%c0_62, %c1344], %102 {strides = array<i32>} : memref<8x3584xf32, #tpu.memory_space<vmem>>, vector<2x64xf32>,
    %104 = vector.extract_strided_slice %57 {offsets = [44, 0], sizes = [2, 64], strides = [1, 1]} : vector<112x64xf32> to vector<2x64xf32>
    %c0_63 = arith.constant 0 : index
    %c1408 = arith.constant 1408 : index
    %105 = vector.load %arg11[%c0_63, %c1408] : memref<8x3584xf32, #tpu.memory_space<vmem>>, vector<2x64xf32>
    tpu.vector_store %arg11[%c0_63, %c1408], %104 {strides = array<i32>} : memref<8x3584xf32, #tpu.memory_space<vmem>>, vector<2x64xf32>,
    %106 = vector.extract_strided_slice %57 {offsets = [46, 0], sizes = [2, 64], strides = [1, 1]} : vector<112x64xf32> to vector<2x64xf32>
    %c0_64 = arith.constant 0 : index
    %c1472 = arith.constant 1472 : index
    %107 = vector.load %arg11[%c0_64, %c1472] : memref<8x3584xf32, #tpu.memory_space<vmem>>, vector<2x64xf32>
    tpu.vector_store %arg11[%c0_64, %c1472], %106 {strides = array<i32>} : memref<8x3584xf32, #tpu.memory_space<vmem>>, vector<2x64xf32>,
    %108 = vector.extract_strided_slice %57 {offsets = [48, 0], sizes = [2, 64], strides = [1, 1]} : vector<112x64xf32> to vector<2x64xf32>
    %c0_65 = arith.constant 0 : index
    %c1536 = arith.constant 1536 : index
    %109 = vector.load %arg11[%c0_65, %c1536] : memref<8x3584xf32, #tpu.memory_space<vmem>>, vector<2x64xf32>
    tpu.vector_store %arg11[%c0_65, %c1536], %108 {strides = array<i32>} : memref<8x3584xf32, #tpu.memory_space<vmem>>, vector<2x64xf32>,
    %110 = vector.extract_strided_slice %57 {offsets = [50, 0], sizes = [2, 64], strides = [1, 1]} : vector<112x64xf32> to vector<2x64xf32>
    %c0_66 = arith.constant 0 : index
    %c1600 = arith.constant 1600 : index
    %111 = vector.load %arg11[%c0_66, %c1600] : memref<8x3584xf32, #tpu.memory_space<vmem>>, vector<2x64xf32>
    tpu.vector_store %arg11[%c0_66, %c1600], %110 {strides = array<i32>} : memref<8x3584xf32, #tpu.memory_space<vmem>>, vector<2x64xf32>,
    %112 = vector.extract_strided_slice %57 {offsets = [52, 0], sizes = [2, 64], strides = [1, 1]} : vector<112x64xf32> to vector<2x64xf32>
    %c0_67 = arith.constant 0 : index
    %c1664 = arith.constant 1664 : index
    %113 = vector.load %arg11[%c0_67, %c1664] : memref<8x3584xf32, #tpu.memory_space<vmem>>, vector<2x64xf32>
    tpu.vector_store %arg11[%c0_67, %c1664], %112 {strides = array<i32>} : memref<8x3584xf32, #tpu.memory_space<vmem>>, vector<2x64xf32>,
    %114 = vector.extract_strided_slice %57 {offsets = [54, 0], sizes = [2, 64], strides = [1, 1]} : vector<112x64xf32> to vector<2x64xf32>
    %c0_68 = arith.constant 0 : index
    %c1728 = arith.constant 1728 : index
    %115 = vector.load %arg11[%c0_68, %c1728] : memref<8x3584xf32, #tpu.memory_space<vmem>>, vector<2x64xf32>
    tpu.vector_store %arg11[%c0_68, %c1728], %114 {strides = array<i32>} : memref<8x3584xf32, #tpu.memory_space<vmem>>, vector<2x64xf32>,
    %116 = vector.extract_strided_slice %57 {offsets = [56, 0], sizes = [2, 64], strides = [1, 1]} : vector<112x64xf32> to vector<2x64xf32>
    %c0_69 = arith.constant 0 : index
    %c1792 = arith.constant 1792 : index
    %117 = vector.load %arg11[%c0_69, %c1792] : memref<8x3584xf32, #tpu.memory_space<vmem>>, vector<2x64xf32>
    tpu.vector_store %arg11[%c0_69, %c1792], %116 {strides = array<i32>} : memref<8x3584xf32, #tpu.memory_space<vmem>>, vector<2x64xf32>,
    %118 = vector.extract_strided_slice %57 {offsets = [58, 0], sizes = [2, 64], strides = [1, 1]} : vector<112x64xf32> to vector<2x64xf32>
    %c0_70 = arith.constant 0 : index
    %c1856 = arith.constant 1856 : index
    %119 = vector.load %arg11[%c0_70, %c1856] : memref<8x3584xf32, #tpu.memory_space<vmem>>, vector<2x64xf32>
    tpu.vector_store %arg11[%c0_70, %c1856], %118 {strides = array<i32>} : memref<8x3584xf32, #tpu.memory_space<vmem>>, vector<2x64xf32>,
    %120 = vector.extract_strided_slice %57 {offsets = [60, 0], sizes = [2, 64], strides = [1, 1]} : vector<112x64xf32> to vector<2x64xf32>
    %c0_71 = arith.constant 0 : index
    %c1920 = arith.constant 1920 : index
    %121 = vector.load %arg11[%c0_71, %c1920] : memref<8x3584xf32, #tpu.memory_space<vmem>>, vector<2x64xf32>
    tpu.vector_store %arg11[%c0_71, %c1920], %120 {strides = array<i32>} : memref<8x3584xf32, #tpu.memory_space<vmem>>, vector<2x64xf32>,
    %122 = vector.extract_strided_slice %57 {offsets = [62, 0], sizes = [2, 64], strides = [1, 1]} : vector<112x64xf32> to vector<2x64xf32>
    %c0_72 = arith.constant 0 : index
    %c1984 = arith.constant 1984 : index
    %123 = vector.load %arg11[%c0_72, %c1984] : memref<8x3584xf32, #tpu.memory_space<vmem>>, vector<2x64xf32>
    tpu.vector_store %arg11[%c0_72, %c1984], %122 {strides = array<i32>} : memref<8x3584xf32, #tpu.memory_space<vmem>>, vector<2x64xf32>,
    %124 = vector.extract_strided_slice %57 {offsets = [64, 0], sizes = [2, 64], strides = [1, 1]} : vector<112x64xf32> to vector<2x64xf32>
    %c0_73 = arith.constant 0 : index
    %c2048 = arith.constant 2048 : index
    %125 = vector.load %arg11[%c0_73, %c2048] : memref<8x3584xf32, #tpu.memory_space<vmem>>, vector<2x64xf32>
    tpu.vector_store %arg11[%c0_73, %c2048], %124 {strides = array<i32>} : memref<8x3584xf32, #tpu.memory_space<vmem>>, vector<2x64xf32>,
    %126 = vector.extract_strided_slice %57 {offsets = [66, 0], sizes = [2, 64], strides = [1, 1]} : vector<112x64xf32> to vector<2x64xf32>
    %c0_74 = arith.constant 0 : index
    %c2112 = arith.constant 2112 : index
    %127 = vector.load %arg11[%c0_74, %c2112] : memref<8x3584xf32, #tpu.memory_space<vmem>>, vector<2x64xf32>
    tpu.vector_store %arg11[%c0_74, %c2112], %126 {strides = array<i32>} : memref<8x3584xf32, #tpu.memory_space<vmem>>, vector<2x64xf32>,
    %128 = vector.extract_strided_slice %57 {offsets = [68, 0], sizes = [2, 64], strides = [1, 1]} : vector<112x64xf32> to vector<2x64xf32>
    %c0_75 = arith.constant 0 : index
    %c2176 = arith.constant 2176 : index
    %129 = vector.load %arg11[%c0_75, %c2176] : memref<8x3584xf32, #tpu.memory_space<vmem>>, vector<2x64xf32>
    tpu.vector_store %arg11[%c0_75, %c2176], %128 {strides = array<i32>} : memref<8x3584xf32, #tpu.memory_space<vmem>>, vector<2x64xf32>,
    %130 = vector.extract_strided_slice %57 {offsets = [70, 0], sizes = [2, 64], strides = [1, 1]} : vector<112x64xf32> to vector<2x64xf32>
    %c0_76 = arith.constant 0 : index
    %c2240 = arith.constant 2240 : index
    %131 = vector.load %arg11[%c0_76, %c2240] : memref<8x3584xf32, #tpu.memory_space<vmem>>, vector<2x64xf32>
    tpu.vector_store %arg11[%c0_76, %c2240], %130 {strides = array<i32>} : memref<8x3584xf32, #tpu.memory_space<vmem>>, vector<2x64xf32>,
    %132 = vector.extract_strided_slice %57 {offsets = [72, 0], sizes = [2, 64], strides = [1, 1]} : vector<112x64xf32> to vector<2x64xf32>
    %c0_77 = arith.constant 0 : index
    %c2304 = arith.constant 2304 : index
    %133 = vector.load %arg11[%c0_77, %c2304] : memref<8x3584xf32, #tpu.memory_space<vmem>>, vector<2x64xf32>
    tpu.vector_store %arg11[%c0_77, %c2304], %132 {strides = array<i32>} : memref<8x3584xf32, #tpu.memory_space<vmem>>, vector<2x64xf32>,
    %134 = vector.extract_strided_slice %57 {offsets = [74, 0], sizes = [2, 64], strides = [1, 1]} : vector<112x64xf32> to vector<2x64xf32>
    %c0_78 = arith.constant 0 : index
    %c2368 = arith.constant 2368 : index
    %135 = vector.load %arg11[%c0_78, %c2368] : memref<8x3584xf32, #tpu.memory_space<vmem>>, vector<2x64xf32>
    tpu.vector_store %arg11[%c0_78, %c2368], %134 {strides = array<i32>} : memref<8x3584xf32, #tpu.memory_space<vmem>>, vector<2x64xf32>,
    %136 = vector.extract_strided_slice %57 {offsets = [76, 0], sizes = [2, 64], strides = [1, 1]} : vector<112x64xf32> to vector<2x64xf32>
    %c0_79 = arith.constant 0 : index
    %c2432 = arith.constant 2432 : index
    %137 = vector.load %arg11[%c0_79, %c2432] : memref<8x3584xf32, #tpu.memory_space<vmem>>, vector<2x64xf32>
    tpu.vector_store %arg11[%c0_79, %c2432], %136 {strides = array<i32>} : memref<8x3584xf32, #tpu.memory_space<vmem>>, vector<2x64xf32>,
    %138 = vector.extract_strided_slice %57 {offsets = [78, 0], sizes = [2, 64], strides = [1, 1]} : vector<112x64xf32> to vector<2x64xf32>
    %c0_80 = arith.constant 0 : index
    %c2496 = arith.constant 2496 : index
    %139 = vector.load %arg11[%c0_80, %c2496] : memref<8x3584xf32, #tpu.memory_space<vmem>>, vector<2x64xf32>
    tpu.vector_store %arg11[%c0_80, %c2496], %138 {strides = array<i32>} : memref<8x3584xf32, #tpu.memory_space<vmem>>, vector<2x64xf32>,
    %140 = vector.extract_strided_slice %57 {offsets = [80, 0], sizes = [2, 64], strides = [1, 1]} : vector<112x64xf32> to vector<2x64xf32>
    %c0_81 = arith.constant 0 : index
    %c2560 = arith.constant 2560 : index
    %141 = vector.load %arg11[%c0_81, %c2560] : memref<8x3584xf32, #tpu.memory_space<vmem>>, vector<2x64xf32>
    tpu.vector_store %arg11[%c0_81, %c2560], %140 {strides = array<i32>} : memref<8x3584xf32, #tpu.memory_space<vmem>>, vector<2x64xf32>,
    %142 = vector.extract_strided_slice %57 {offsets = [82, 0], sizes = [2, 64], strides = [1, 1]} : vector<112x64xf32> to vector<2x64xf32>
    %c0_82 = arith.constant 0 : index
    %c2624 = arith.constant 2624 : index
    %143 = vector.load %arg11[%c0_82, %c2624] : memref<8x3584xf32, #tpu.memory_space<vmem>>, vector<2x64xf32>
    tpu.vector_store %arg11[%c0_82, %c2624], %142 {strides = array<i32>} : memref<8x3584xf32, #tpu.memory_space<vmem>>, vector<2x64xf32>,
    %144 = vector.extract_strided_slice %57 {offsets = [84, 0], sizes = [2, 64], strides = [1, 1]} : vector<112x64xf32> to vector<2x64xf32>
    %c0_83 = arith.constant 0 : index
    %c2688 = arith.constant 2688 : index
    %145 = vector.load %arg11[%c0_83, %c2688] : memref<8x3584xf32, #tpu.memory_space<vmem>>, vector<2x64xf32>
    tpu.vector_store %arg11[%c0_83, %c2688], %144 {strides = array<i32>} : memref<8x3584xf32, #tpu.memory_space<vmem>>, vector<2x64xf32>,
    %146 = vector.extract_strided_slice %57 {offsets = [86, 0], sizes = [2, 64], strides = [1, 1]} : vector<112x64xf32> to vector<2x64xf32>
    %c0_84 = arith.constant 0 : index
    %c2752 = arith.constant 2752 : index
    %147 = vector.load %arg11[%c0_84, %c2752] : memref<8x3584xf32, #tpu.memory_space<vmem>>, vector<2x64xf32>
    tpu.vector_store %arg11[%c0_84, %c2752], %146 {strides = array<i32>} : memref<8x3584xf32, #tpu.memory_space<vmem>>, vector<2x64xf32>,
    %148 = vector.extract_strided_slice %57 {offsets = [88, 0], sizes = [2, 64], strides = [1, 1]} : vector<112x64xf32> to vector<2x64xf32>
    %c0_85 = arith.constant 0 : index
    %c2816 = arith.constant 2816 : index
    %149 = vector.load %arg11[%c0_85, %c2816] : memref<8x3584xf32, #tpu.memory_space<vmem>>, vector<2x64xf32>
    tpu.vector_store %arg11[%c0_85, %c2816], %148 {strides = array<i32>} : memref<8x3584xf32, #tpu.memory_space<vmem>>, vector<2x64xf32>,
    %150 = vector.extract_strided_slice %57 {offsets = [90, 0], sizes = [2, 64], strides = [1, 1]} : vector<112x64xf32> to vector<2x64xf32>
    %c0_86 = arith.constant 0 : index
    %c2880 = arith.constant 2880 : index
    %151 = vector.load %arg11[%c0_86, %c2880] : memref<8x3584xf32, #tpu.memory_space<vmem>>, vector<2x64xf32>
    tpu.vector_store %arg11[%c0_86, %c2880], %150 {strides = array<i32>} : memref<8x3584xf32, #tpu.memory_space<vmem>>, vector<2x64xf32>,
    %152 = vector.extract_strided_slice %57 {offsets = [92, 0], sizes = [2, 64], strides = [1, 1]} : vector<112x64xf32> to vector<2x64xf32>
    %c0_87 = arith.constant 0 : index
    %c2944 = arith.constant 2944 : index
    %153 = vector.load %arg11[%c0_87, %c2944] : memref<8x3584xf32, #tpu.memory_space<vmem>>, vector<2x64xf32>
    tpu.vector_store %arg11[%c0_87, %c2944], %152 {strides = array<i32>} : memref<8x3584xf32, #tpu.memory_space<vmem>>, vector<2x64xf32>,
    %154 = vector.extract_strided_slice %57 {offsets = [94, 0], sizes = [2, 64], strides = [1, 1]} : vector<112x64xf32> to vector<2x64xf32>
    %c0_88 = arith.constant 0 : index
    %c3008 = arith.constant 3008 : index
    %155 = vector.load %arg11[%c0_88, %c3008] : memref<8x3584xf32, #tpu.memory_space<vmem>>, vector<2x64xf32>
    tpu.vector_store %arg11[%c0_88, %c3008], %154 {strides = array<i32>} : memref<8x3584xf32, #tpu.memory_space<vmem>>, vector<2x64xf32>,
    %156 = vector.extract_strided_slice %57 {offsets = [96, 0], sizes = [2, 64], strides = [1, 1]} : vector<112x64xf32> to vector<2x64xf32>
    %c0_89 = arith.constant 0 : index
    %c3072 = arith.constant 3072 : index
    %157 = vector.load %arg11[%c0_89, %c3072] : memref<8x3584xf32, #tpu.memory_space<vmem>>, vector<2x64xf32>
    tpu.vector_store %arg11[%c0_89, %c3072], %156 {strides = array<i32>} : memref<8x3584xf32, #tpu.memory_space<vmem>>, vector<2x64xf32>,
    %c0_90 = arith.constant 0 : index
    %c0_91 = arith.constant 0 : index
    %158 = vector.load %arg11[%c0_90, %c0_91] : memref<8x3584xf32, #tpu.memory_space<vmem>>, vector<8x3584xf32>
    %159 = arith.truncf %158 : vector<8x3584xf32> to vector<8x3584xbf16>
    %c0_92 = arith.constant 0 : index
    %c0_93 = arith.constant 0 : index
    %160 = vector.load %arg6[%c0_92, %c0_93] : memref<3584x512xbf16, #tpu.memory_space<vmem>>, vector<3584x512xbf16>
    %cst_94 = arith.constant dense<0.000000e+00> : vector<8x512xf32>
    %161 = tpu.matmul %159, %160, %cst_94 {dimension_numbers = #tpu.dot_dimension_numbers<[1], [0], [0], [1], [0, 0, 1, 1], [], []>} : vector<8x3584xbf16>, vector<3584x512xbf16>, vector<8x512xf32> -> vector<8x512xf32>
    %c0_95 = arith.constant 0 : index
    %c0_96 = arith.constant 0 : index
    %162 = vector.load %arg7[%c0_95, %c0_96] : memref<1x512xf32, #tpu.memory_space<vmem>>, vector<1x512xf32>
    %163 = vector.broadcast %162 : vector<1x512xf32> to vector<8x512xf32>
    %164 = arith.addf %161, %163 : vector<8x512xf32>
    %cst_97 = arith.constant 0.000000e+00 : f32
    %165 = vector.broadcast %cst_97 : f32 to vector<8x512xf32>
    %166 = arith.maximumf %164, %165 : vector<8x512xf32>
    %167 = arith.truncf %166 : vector<8x512xf32> to vector<8x512xbf16>
    %c0_98 = arith.constant 0 : index
    %c0_99 = arith.constant 0 : index
    %168 = vector.load %arg8[%c0_98, %c0_99] : memref<512x128xbf16, #tpu.memory_space<vmem>>, vector<512x128xbf16>
    %cst_100 = arith.constant dense<0.000000e+00> : vector<8x128xf32>
    %169 = tpu.matmul %167, %168, %cst_100 {dimension_numbers = #tpu.dot_dimension_numbers<[1], [0], [0], [1], [0, 0, 1, 1], [], []>} : vector<8x512xbf16>, vector<512x128xbf16>, vector<8x128xf32> -> vector<8x128xf32>
    %c0_101 = arith.constant 0 : index
    %c0_102 = arith.constant 0 : index
    %170 = vector.load %arg9[%c0_101, %c0_102] : memref<1x128xf32, #tpu.memory_space<vmem>>, vector<1x128xf32>
    %171 = vector.broadcast %170 : vector<1x128xf32> to vector<8x128xf32>
    %172 = arith.addf %169, %171 : vector<8x128xf32>
    %c0_103 = arith.constant 0 : index
    %c0_104 = arith.constant 0 : index
    %173 = vector.load %arg10[%c0_103, %c0_104] : memref<8x128xf32, #tpu.memory_space<vmem>>, vector<8x128xf32>
    tpu.vector_store %arg10[%c0_103, %c0_104], %172 {strides = array<i32>} : memref<8x128xf32, #tpu.memory_space<vmem>>, vector<8x128xf32>,
    return
  }
  func.func @transform_0(%arg0: i32) -> (i32, i32) {
    %c0_i32 = arith.constant 0 : i32
    %c0_i32_0 = arith.constant 0 : i32
    %c0_i32_1 = arith.constant 0 : i32
    return %c0_i32, %c0_i32_0 : i32, i32
  }
  func.func @transform_1(%arg0: i32) -> (i32, i32) {
    %c0_i32 = arith.constant 0 : i32
    %c0_i32_0 = arith.constant 0 : i32
    %c0_i32_1 = arith.constant 0 : i32
    return %c0_i32, %c0_i32_0 : i32, i32
  }
  func.func @transform_2(%arg0: i32) -> (i32, i32) {
    %c0_i32 = arith.constant 0 : i32
    %c0_i32_0 = arith.constant 0 : i32
    %c0_i32_1 = arith.constant 0 : i32
    return %c0_i32, %c0_i32_0 : i32, i32
  }
  func.func @transform_3(%arg0: i32) -> (i32, i32, i32) {
    %c0_i32 = arith.constant 0 : i32
    %c0_i32_0 = arith.constant 0 : i32
    %c0_i32_1 = arith.constant 0 : i32
    %c0_i32_2 = arith.constant 0 : i32
    return %c0_i32, %c0_i32_0, %c0_i32_1 : i32, i32, i32
  }
  func.func @transform_4(%arg0: i32) -> (i32, i32) {
    %c0_i32 = arith.constant 0 : i32
    %c0_i32_0 = arith.constant 0 : i32
    %c0_i32_1 = arith.constant 0 : i32
    return %c0_i32, %c0_i32_0 : i32, i32
  }
  func.func @transform_5(%arg0: i32) -> (i32, i32) {
    %c0_i32 = arith.constant 0 : i32
    %c0_i32_0 = arith.constant 0 : i32
    %c0_i32_1 = arith.constant 0 : i32
    return %c0_i32, %c0_i32_0 : i32, i32
  }
  func.func @transform_6(%arg0: i32) -> (i32, i32) {
    %c0_i32 = arith.constant 0 : i32
    %c0_i32_0 = arith.constant 0 : i32
    %c0_i32_1 = arith.constant 0 : i32
    return %c0_i32, %c0_i32_0 : i32, i32
  }
  func.func @transform_7(%arg0: i32) -> (i32, i32) {
    %c0_i32 = arith.constant 0 : i32
    %c0_i32_0 = arith.constant 0 : i32
    %c0_i32_1 = arith.constant 0 : i32
    return %c0_i32, %c0_i32_0 : i32, i32
  }
  func.func @transform_8(%arg0: i32) -> (i32, i32) {
    %c0_i32 = arith.constant 0 : i32
    %c0_i32_0 = arith.constant 0 : i32
    %c0_i32_1 = arith.constant 0 : i32
    return %c0_i32, %c0_i32_0 : i32, i32
  }
  func.func @transform_9(%arg0: i32) -> (i32, i32) {
    %c0_i32 = arith.constant 0 : i32
    %c0_i32_0 = arith.constant 0 : i32
    %c0_i32_1 = arith.constant 0 : i32
    return %c0_i32, %c0_i32_0 : i32, i32
  }
}

</mosaic_0001>

<llo_original>
// kernel: qnet_forward.1
$region0: #{qnet_forward.1}
  #allocation0 [shape = 'u32[]', space=smem, size = 0x4, offset = 0x4, fixed_abs, tag = 'smem constant byte address 0x4 - core index']
  #allocation1 [shape = 'u32[144,128]{1,0:T(1,128)}', space=vmem, size = 0x12000, scoped, tag = 'internal scratch']
  #allocation2 [shape = 'f32[8,3584]{1,0:T(8,128)}', space=vmem, size = 0x1c000, scoped, tag = 'scratch operand']
  %s0 = inlined_call_operand.vmem [shape: bf16[1008,512], index: 0, kind: input, shape index: {}]
  %s1 = inlined_call_operand.vmem [shape: bf16[512,64], index: 1, kind: input, shape index: {}]
  %s2 = inlined_call_operand.vmem [shape: f32[1,64], index: 2, kind: input, shape index: {}]
  %s3 = inlined_call_operand.vmem [shape: bf16[9,64,64], index: 3, kind: input, shape index: {}]
  %s4 = inlined_call_operand.vmem [shape: f32[1,64], index: 4, kind: input, shape index: {}]
  %s5 = inlined_call_operand.vmem [shape: bf16[3584,512], index: 5, kind: input, shape index: {}]
  %s6 = inlined_call_operand.vmem [shape: f32[1,512], index: 6, kind: input, shape index: {}]
  %s7 = inlined_call_operand.vmem [shape: bf16[512,128], index: 7, kind: input, shape index: {}]
  %s8 = inlined_call_operand.vmem [shape: f32[1,128], index: 8, kind: input, shape index: {}]
  %s9 = inlined_call_operand.vmem [shape: f32[8,128], index: 9, kind: output, shape index: {}]
  %s10 = sld [smem:[#allocation0]]
  $region46: #{qnet_forward.1} parent=0
    _
  %s12 = ssub.s32 1, %s10
  %s13 = scalar_select 0, %s12, %s10
  // Predicated region
  $region2: #{qnet_forward.1} parent=0 // pred_check
    _
  $region3: #{qnet_forward.1} parent=0 // pred_check_branch
    %15 = sbr.rel (0) target = $region5
  $region4: #{qnet_forward.1} parent=0 // pred_region
    _
  $region5: #{qnet_forward.1} parent=0 // pred_fallthru
    _
  // Predicated region
  $region6: #{qnet_forward.1} parent=0 // pred_check
    _
  $region7: #{qnet_forward.1} parent=0 // pred_check_branch
    %17 = sbr.rel (0) target = $region9
  $region8: #{qnet_forward.1} parent=0 // pred_region
    _
  $region9: #{qnet_forward.1} parent=0 // pred_fallthru
    _
  // Predicated region
  $region10: #{qnet_forward.1} parent=0 // pred_check
    _
  $region11: #{qnet_forward.1} parent=0 // pred_check_branch
    %19 = sbr.rel (0) target = $region13
  $region12: #{qnet_forward.1} parent=0 // pred_region
    _
  $region13: #{qnet_forward.1} parent=0 // pred_fallthru
    _
  // Predicated region
  $region14: #{qnet_forward.1} parent=0 // pred_check
    _
  $region15: #{qnet_forward.1} parent=0 // pred_check_branch
    %21 = sbr.rel (0) target = $region17
  $region16: #{qnet_forward.1} parent=0 // pred_region
    _
  $region17: #{qnet_forward.1} parent=0 // pred_fallthru
    _
  // Predicated region
  $region18: #{qnet_forward.1} parent=0 // pred_check
    _
  $region19: #{qnet_forward.1} parent=0 // pred_check_branch
    %23 = sbr.rel (0) target = $region21
  $region20: #{qnet_forward.1} parent=0 // pred_region
    _
  $region21: #{qnet_forward.1} parent=0 // pred_fallthru
    _
  // Predicated region
  $region22: #{qnet_forward.1} parent=0 // pred_check
    _
  $region23: #{qnet_forward.1} parent=0 // pred_check_branch
    %25 = sbr.rel (0) target = $region25
  $region24: #{qnet_forward.1} parent=0 // pred_region
    _
  $region25: #{qnet_forward.1} parent=0 // pred_fallthru
    _
  // Predicated region
  $region26: #{qnet_forward.1} parent=0 // pred_check
    _
  $region27: #{qnet_forward.1} parent=0 // pred_check_branch
    %27 = sbr.rel (0) target = $region29
  $region28: #{qnet_forward.1} parent=0 // pred_region
    _
  $region29: #{qnet_forward.1} parent=0 // pred_fallthru
    _
  // Predicated region
  $region30: #{qnet_forward.1} parent=0 // pred_check
    _
  $region31: #{qnet_forward.1} parent=0 // pred_check_branch
    %29 = sbr.rel (0) target = $region33
  $region32: #{qnet_forward.1} parent=0 // pred_region
    _
  $region33: #{qnet_forward.1} parent=0 // pred_fallthru
    _
  // Predicated region
  $region34: #{qnet_forward.1} parent=0 // pred_check
    _
  $region35: #{qnet_forward.1} parent=0 // pred_check_branch
    %31 = sbr.rel (0) target = $region37
  $region36: #{qnet_forward.1} parent=0 // pred_region
    _
  $region37: #{qnet_forward.1} parent=0 // pred_fallthru
    _
  %v33 = vld [vmem:[%s0] sm:$0xff]
  %v34 = vld [vmem:[%s0 + $0x8] sm:$0xff]
  %v35 = vld [vmem:[%s0 + $0x10] sm:$0xff]
  %v36 = vld [vmem:[%s0 + $0x18] sm:$0xff]
  %v37 = vld [vmem:[%s0 + $0x20] sm:$0xff]
  %v38 = vld [vmem:[%s0 + $0x28] sm:$0xff]
  %v39 = vld [vmem:[%s0 + $0x30] sm:$0xff]
  %v40 = vld [vmem:[%s0 + $0x38] sm:$0xff]
  %v41 = vld [vmem:[%s0 + $0x40] sm:$0xff]
  %v42 = vld [vmem:[%s0 + $0x48] sm:$0xff]
  %v43 = vld [vmem:[%s0 + $0x50] sm:$0xff]
  %v44 = vld [vmem:[%s0 + $0x58] sm:$0xff]
  %v45 = vld [vmem:[%s0 + $0x60] sm:$0xff]
  %v46 = vld [vmem:[%s0 + $0x68] sm:$0xff]
  %v47 = vld [vmem:[%s0 + $0x70] sm:$0xff]
  %v48 = vld [vmem:[%s0 + $0x78] sm:$0xff]
  %v49 = vld [vmem:[%s0 + $0x80] sm:$0xff]
  %v50 = vld [vmem:[%s0 + $0x88] sm:$0xff]
  %v51 = vld [vmem:[%s0 + $0x90] sm:$0xff]
  %v52 = vld [vmem:[%s0 + $0x98] sm:$0xff]
  %v53 = vld [vmem:[%s0 + $0xa0] sm:$0xff]
  %v54 = vld [vmem:[%s0 + $0xa8] sm:$0xff]
  %v55 = vld [vmem:[%s0 + $0xb0] sm:$0xff]
  %v56 = vld [vmem:[%s0 + $0xb8] sm:$0xff]
  %v57 = vld [vmem:[%s0 + $0xc0] sm:$0xff]
  %v58 = vld [vmem:[%s0 + $0xc8] sm:$0xff]
  %v59 = vld [vmem:[%s0 + $0xd0] sm:$0xff]
  %v60 = vld [vmem:[%s0 + $0xd8] sm:$0xff]
  %v61 = vld [vmem:[%s0 + $0xe0] sm:$0xff]
  %v62 = vld [vmem:[%s0 + $0xe8] sm:$0xff]
  %v63 = vld [vmem:[%s0 + $0xf0] sm:$0xff]
  %v64 = vld [vmem:[%s0 + $0xf8] sm:$0xff]
  %v65 = vld [vmem:[%s0 + $0x100] sm:$0xff]
  %v66 = vld [vmem:[%s0 + $0x108] sm:$0xff]
  %v67 = vld [vmem:[%s0 + $0x110] sm:$0xff]
  %v68 = vld [vmem:[%s0 + $0x118] sm:$0xff]
  %v69 = vld [vmem:[%s0 + $0x120] sm:$0xff]
  %v70 = vld [vmem:[%s0 + $0x128] sm:$0xff]
  %v71 = vld [vmem:[%s0 + $0x130] sm:$0xff]
  %v72 = vld [vmem:[%s0 + $0x138] sm:$0xff]
  %v73 = vld [vmem:[%s0 + $0x140] sm:$0xff]
  %v74 = vld [vmem:[%s0 + $0x148] sm:$0xff]
  %v75 = vld [vmem:[%s0 + $0x150] sm:$0xff]
  %v76 = vld [vmem:[%s0 + $0x158] sm:$0xff]
  %v77 = vld [vmem:[%s0 + $0x160] sm:$0xff]
  %v78 = vld [vmem:[%s0 + $0x168] sm:$0xff]
  %v79 = vld [vmem:[%s0 + $0x170] sm:$0xff]
  %v80 = vld [vmem:[%s0 + $0x178] sm:$0xff]
  %v81 = vld [vmem:[%s0 + $0x180] sm:$0xff]
  %v82 = vld [vmem:[%s0 + $0x188] sm:$0xff]
  %v83 = vld [vmem:[%s0 + $0x190] sm:$0xff]
  %v84 = vld [vmem:[%s0 + $0x198] sm:$0xff]
  %v85 = vld [vmem:[%s0 + $0x1a0] sm:$0xff]
  %v86 = vld [vmem:[%s0 + $0x1a8] sm:$0xff]
  %v87 = vld [vmem:[%s0 + $0x1b0] sm:$0xff]
  %v88 = vld [vmem:[%s0 + $0x1b8] sm:$0xff]
  %v89 = vld [vmem:[%s0 + $0x1c0] sm:$0xff]
  %v90 = vld [vmem:[%s0 + $0x1c8] sm:$0xff]
  %v91 = vld [vmem:[%s0 + $0x1d0] sm:$0xff]
  %v92 = vld [vmem:[%s0 + $0x1d8] sm:$0xff]
  %v93 = vld [vmem:[%s0 + $0x1e0] sm:$0xff]
  %v94 = vld [vmem:[%s0 + $0x1e8] sm:$0xff]
  %v95 = vld [vmem:[%s0 + $0x1f0] sm:$0xff]
  %v96 = vld [vmem:[%s0 + $0x1f8] sm:$0xff]
  %v97 = vld [vmem:[%s0 + $0x200] sm:$0xff]
  %v98 = vld [vmem:[%s0 + $0x208] sm:$0xff]
  %v99 = vld [vmem:[%s0 + $0x210] sm:$0xff]
  %v100 = vld [vmem:[%s0 + $0x218] sm:$0xff]
  %v101 = vld [vmem:[%s0 + $0x220] sm:$0xff]
  %v102 = vld [vmem:[%s0 + $0x228] sm:$0xff]
  %v103 = vld [vmem:[%s0 + $0x230] sm:$0xff]
  %v104 = vld [vmem:[%s0 + $0x238] sm:$0xff]
  %v105 = vld [vmem:[%s0 + $0x240] sm:$0xff]
  %v106 = vld [vmem:[%s0 + $0x248] sm:$0xff]
  %v107 = vld [vmem:[%s0 + $0x250] sm:$0xff]
  %v108 = vld [vmem:[%s0 + $0x258] sm:$0xff]
  %v109 = vld [vmem:[%s0 + $0x260] sm:$0xff]
  %v110 = vld [vmem:[%s0 + $0x268] sm:$0xff]
  %v111 = vld [vmem:[%s0 + $0x270] sm:$0xff]
  %v112 = vld [vmem:[%s0 + $0x278] sm:$0xff]
  %v113 = vld [vmem:[%s0 + $0x280] sm:$0xff]
  %v114 = vld [vmem:[%s0 + $0x288] sm:$0xff]
  %v115 = vld [vmem:[%s0 + $0x290] sm:$0xff]
  %v116 = vld [vmem:[%s0 + $0x298] sm:$0xff]
  %v117 = vld [vmem:[%s0 + $0x2a0] sm:$0xff]
  %v118 = vld [vmem:[%s0 + $0x2a8] sm:$0xff]
  %v119 = vld [vmem:[%s0 + $0x2b0] sm:$0xff]
  %v120 = vld [vmem:[%s0 + $0x2b8] sm:$0xff]
  %v121 = vld [vmem:[%s0 + $0x2c0] sm:$0xff]
  %v122 = vld [vmem:[%s0 + $0x2c8] sm:$0xff]
  %v123 = vld [vmem:[%s0 + $0x2d0] sm:$0xff]
  %v124 = vld [vmem:[%s0 + $0x2d8] sm:$0xff]
  %v125 = vld [vmem:[%s0 + $0x2e0] sm:$0xff]
  %v126 = vld [vmem:[%s0 + $0x2e8] sm:$0xff]
  %v127 = vld [vmem:[%s0 + $0x2f0] sm:$0xff]
  %v128 = vld [vmem:[%s0 + $0x2f8] sm:$0xff]
  %v129 = vld [vmem:[%s0 + $0x300] sm:$0xff]
  %v130 = vld [vmem:[%s0 + $0x308] sm:$0xff]
  %v131 = vld [vmem:[%s0 + $0x310] sm:$0xff]
  %v132 = vld [vmem:[%s0 + $0x318] sm:$0xff]
  %v133 = vld [vmem:[%s0 + $0x320] sm:$0xff]
  %v134 = vld [vmem:[%s0 + $0x328] sm:$0xff]
  %v135 = vld [vmem:[%s0 + $0x330] sm:$0xff]
  %v136 = vld [vmem:[%s0 + $0x338] sm:$0xff]
  %v137 = vld [vmem:[%s0 + $0x340] sm:$0xff]
  %v138 = vld [vmem:[%s0 + $0x348] sm:$0xff]
  %v139 = vld [vmem:[%s0 + $0x350] sm:$0xff]
  %v140 = vld [vmem:[%s0 + $0x358] sm:$0xff]
  %v141 = vld [vmem:[%s0 + $0x360] sm:$0xff]
  %v142 = vld [vmem:[%s0 + $0x368] sm:$0xff]
  %v143 = vld [vmem:[%s0 + $0x370] sm:$0xff]
  %v144 = vld [vmem:[%s0 + $0x378] sm:$0xff]
  %v145 = vld [vmem:[%s0 + $0x380] sm:$0xff]
  %v146 = vld [vmem:[%s0 + $0x388] sm:$0xff]
  %v147 = vld [vmem:[%s0 + $0x390] sm:$0xff]
  %v148 = vld [vmem:[%s0 + $0x398] sm:$0xff]
  %v149 = vld [vmem:[%s0 + $0x3a0] sm:$0xff]
  %v150 = vld [vmem:[%s0 + $0x3a8] sm:$0xff]
  %v151 = vld [vmem:[%s0 + $0x3b0] sm:$0xff]
  %v152 = vld [vmem:[%s0 + $0x3b8] sm:$0xff]
  %v153 = vld [vmem:[%s0 + $0x3c0] sm:$0xff]
  %v154 = vld [vmem:[%s0 + $0x3c8] sm:$0xff]
  %v155 = vld [vmem:[%s0 + $0x3d0] sm:$0xff]
  %v156 = vld [vmem:[%s0 + $0x3d8] sm:$0xff]
  %v157 = vld [vmem:[%s0 + $0x3e0] sm:$0xff]
  %v158 = vld [vmem:[%s0 + $0x3e8] sm:$0xff]
  %v159 = vld [vmem:[%s0 + $0x3f0] sm:$0xff]
  %v160 = vld [vmem:[%s0 + $0x3f8] sm:$0xff]
  %v161 = vld [vmem:[%s0 + $0x400] sm:$0xff]
  %v162 = vld [vmem:[%s0 + $0x408] sm:$0xff]
  %v163 = vld [vmem:[%s0 + $0x410] sm:$0xff]
  %v164 = vld [vmem:[%s0 + $0x418] sm:$0xff]
  %v165 = vld [vmem:[%s0 + $0x420] sm:$0xff]
  %v166 = vld [vmem:[%s0 + $0x428] sm:$0xff]
  %v167 = vld [vmem:[%s0 + $0x430] sm:$0xff]
  %v168 = vld [vmem:[%s0 + $0x438] sm:$0xff]
  %v169 = vld [vmem:[%s0 + $0x440] sm:$0xff]
  %v170 = vld [vmem:[%s0 + $0x448] sm:$0xff]
  %v171 = vld [vmem:[%s0 + $0x450] sm:$0xff]
  %v172 = vld [vmem:[%s0 + $0x458] sm:$0xff]
  %v173 = vld [vmem:[%s0 + $0x460] sm:$0xff]
  %v174 = vld [vmem:[%s0 + $0x468] sm:$0xff]
  %v175 = vld [vmem:[%s0 + $0x470] sm:$0xff]
  %v176 = vld [vmem:[%s0 + $0x478] sm:$0xff]
  %v177 = vld [vmem:[%s0 + $0x480] sm:$0xff]
  %v178 = vld [vmem:[%s0 + $0x488] sm:$0xff]
  %v179 = vld [vmem:[%s0 + $0x490] sm:$0xff]
  %v180 = vld [vmem:[%s0 + $0x498] sm:$0xff]
  %v181 = vld [vmem:[%s0 + $0x4a0] sm:$0xff]
  %v182 = vld [vmem:[%s0 + $0x4a8] sm:$0xff]
  %v183 = vld [vmem:[%s0 + $0x4b0] sm:$0xff]
  %v184 = vld [vmem:[%s0 + $0x4b8] sm:$0xff]
  %v185 = vld [vmem:[%s0 + $0x4c0] sm:$0xff]
  %v186 = vld [vmem:[%s0 + $0x4c8] sm:$0xff]
  %v187 = vld [vmem:[%s0 + $0x4d0] sm:$0xff]
  %v188 = vld [vmem:[%s0 + $0x4d8] sm:$0xff]
  %v189 = vld [vmem:[%s0 + $0x4e0] sm:$0xff]
  %v190 = vld [vmem:[%s0 + $0x4e8] sm:$0xff]
  %v191 = vld [vmem:[%s0 + $0x4f0] sm:$0xff]
  %v192 = vld [vmem:[%s0 + $0x4f8] sm:$0xff]
  %v193 = vld [vmem:[%s0 + $0x500] sm:$0xff]
  %v194 = vld [vmem:[%s0 + $0x508] sm:$0xff]
  %v195 = vld [vmem:[%s0 + $0x510] sm:$0xff]
  %v196 = vld [vmem:[%s0 + $0x518] sm:$0xff]
  %v197 = vld [vmem:[%s0 + $0x520] sm:$0xff]
  %v198 = vld [vmem:[%s0 + $0x528] sm:$0xff]
  %v199 = vld [vmem:[%s0 + $0x530] sm:$0xff]
  %v200 = vld [vmem:[%s0 + $0x538] sm:$0xff]
  %v201 = vld [vmem:[%s0 + $0x540] sm:$0xff]
  %v202 = vld [vmem:[%s0 + $0x548] sm:$0xff]
  %v203 = vld [vmem:[%s0 + $0x550] sm:$0xff]
  %v204 = vld [vmem:[%s0 + $0x558] sm:$0xff]
  %v205 = vld [vmem:[%s0 + $0x560] sm:$0xff]
  %v206 = vld [vmem:[%s0 + $0x568] sm:$0xff]
  %v207 = vld [vmem:[%s0 + $0x570] sm:$0xff]
  %v208 = vld [vmem:[%s0 + $0x578] sm:$0xff]
  %v209 = vld [vmem:[%s0 + $0x580] sm:$0xff]
  %v210 = vld [vmem:[%s0 + $0x588] sm:$0xff]
  %v211 = vld [vmem:[%s0 + $0x590] sm:$0xff]
  %v212 = vld [vmem:[%s0 + $0x598] sm:$0xff]
  %v213 = vld [vmem:[%s0 + $0x5a0] sm:$0xff]
  %v214 = vld [vmem:[%s0 + $0x5a8] sm:$0xff]
  %v215 = vld [vmem:[%s0 + $0x5b0] sm:$0xff]
  %v216 = vld [vmem:[%s0 + $0x5b8] sm:$0xff]
  %v217 = vld [vmem:[%s0 + $0x5c0] sm:$0xff]
  %v218 = vld [vmem:[%s0 + $0x5c8] sm:$0xff]
  %v219 = vld [vmem:[%s0 + $0x5d0] sm:$0xff]
  %v220 = vld [vmem:[%s0 + $0x5d8] sm:$0xff]
  %v221 = vld [vmem:[%s0 + $0x5e0] sm:$0xff]
  %v222 = vld [vmem:[%s0 + $0x5e8] sm:$0xff]
  %v223 = vld [vmem:[%s0 + $0x5f0] sm:$0xff]
  %v224 = vld [vmem:[%s0 + $0x5f8] sm:$0xff]
  %v225 = vld [vmem:[%s0 + $0x600] sm:$0xff]
  %v226 = vld [vmem:[%s0 + $0x608] sm:$0xff]
  %v227 = vld [vmem:[%s0 + $0x610] sm:$0xff]
  %v228 = vld [vmem:[%s0 + $0x618] sm:$0xff]
  %v229 = vld [vmem:[%s0 + $0x620] sm:$0xff]
  %v230 = vld [vmem:[%s0 + $0x628] sm:$0xff]
  %v231 = vld [vmem:[%s0 + $0x630] sm:$0xff]
  %v232 = vld [vmem:[%s0 + $0x638] sm:$0xff]
  %v233 = vld [vmem:[%s0 + $0x640] sm:$0xff]
  %v234 = vld [vmem:[%s0 + $0x648] sm:$0xff]
  %v235 = vld [vmem:[%s0 + $0x650] sm:$0xff]
  %v236 = vld [vmem:[%s0 + $0x658] sm:$0xff]
  %v237 = vld [vmem:[%s0 + $0x660] sm:$0xff]
  %v238 = vld [vmem:[%s0 + $0x668] sm:$0xff]
  %v239 = vld [vmem:[%s0 + $0x670] sm:$0xff]
  %v240 = vld [vmem:[%s0 + $0x678] sm:$0xff]
  %v241 = vld [vmem:[%s0 + $0x680] sm:$0xff]
  %v242 = vld [vmem:[%s0 + $0x688] sm:$0xff]
  %v243 = vld [vmem:[%s0 + $0x690] sm:$0xff]
  %v244 = vld [vmem:[%s0 + $0x698] sm:$0xff]
  %v245 = vld [vmem:[%s0 + $0x6a0] sm:$0xff]
  %v246 = vld [vmem:[%s0 + $0x6a8] sm:$0xff]
  %v247 = vld [vmem:[%s0 + $0x6b0] sm:$0xff]
  %v248 = vld [vmem:[%s0 + $0x6b8] sm:$0xff]
  %v249 = vld [vmem:[%s0 + $0x6c0] sm:$0xff]
  %v250 = vld [vmem:[%s0 + $0x6c8] sm:$0xff]
  %v251 = vld [vmem:[%s0 + $0x6d0] sm:$0xff]
  %v252 = vld [vmem:[%s0 + $0x6d8] sm:$0xff]
  %v253 = vld [vmem:[%s0 + $0x6e0] sm:$0xff]
  %v254 = vld [vmem:[%s0 + $0x6e8] sm:$0xff]
  %v255 = vld [vmem:[%s0 + $0x6f0] sm:$0xff]
  %v256 = vld [vmem:[%s0 + $0x6f8] sm:$0xff]
  %v257 = vld [vmem:[%s0 + $0x700] sm:$0xff]
  %v258 = vld [vmem:[%s0 + $0x708] sm:$0xff]
  %v259 = vld [vmem:[%s0 + $0x710] sm:$0xff]
  %v260 = vld [vmem:[%s0 + $0x718] sm:$0xff]
  %v261 = vld [vmem:[%s0 + $0x720] sm:$0xff]
  %v262 = vld [vmem:[%s0 + $0x728] sm:$0xff]
  %v263 = vld [vmem:[%s0 + $0x730] sm:$0xff]
  %v264 = vld [vmem:[%s0 + $0x738] sm:$0xff]
  %v265 = vld [vmem:[%s0 + $0x740] sm:$0xff]
  %v266 = vld [vmem:[%s0 + $0x748] sm:$0xff]
  %v267 = vld [vmem:[%s0 + $0x750] sm:$0xff]
  %v268 = vld [vmem:[%s0 + $0x758] sm:$0xff]
  %v269 = vld [vmem:[%s0 + $0x760] sm:$0xff]
  %v270 = vld [vmem:[%s0 + $0x768] sm:$0xff]
  %v271 = vld [vmem:[%s0 + $0x770] sm:$0xff]
  %v272 = vld [vmem:[%s0 + $0x778] sm:$0xff]
  %v273 = vld [vmem:[%s0 + $0x780] sm:$0xff]
  %v274 = vld [vmem:[%s0 + $0x788] sm:$0xff]
  %v275 = vld [vmem:[%s0 + $0x790] sm:$0xff]
  %v276 = vld [vmem:[%s0 + $0x798] sm:$0xff]
  %v277 = vld [vmem:[%s0 + $0x7a0] sm:$0xff]
  %v278 = vld [vmem:[%s0 + $0x7a8] sm:$0xff]
  %v279 = vld [vmem:[%s0 + $0x7b0] sm:$0xff]
  %v280 = vld [vmem:[%s0 + $0x7b8] sm:$0xff]
  %v281 = vld [vmem:[%s0 + $0x7c0] sm:$0xff]
  %v282 = vld [vmem:[%s0 + $0x7c8] sm:$0xff]
  %v283 = vld [vmem:[%s0 + $0x7d0] sm:$0xff]
  %v284 = vld [vmem:[%s0 + $0x7d8] sm:$0xff]
  %v285 = vld [vmem:[%s1] sm:$0xf]
  %v286 = vld [vmem:[%s1 + $0x4] sm:$0xf]
  %v287 = vld [vmem:[%s1 + $0x8] sm:$0xf]
  %v288 = vld [vmem:[%s1 + $0xc] sm:$0xf]
  %v289 = vld [vmem:[%s1 + $0x10] sm:$0xf]
  %v290 = vld [vmem:[%s1 + $0x14] sm:$0xf]
  %v291 = vld [vmem:[%s1 + $0x18] sm:$0xf]
  %v292 = vld [vmem:[%s1 + $0x1c] sm:$0xf]
  %v293 = vld [vmem:[%s1 + $0x20] sm:$0xf]
  %v294 = vld [vmem:[%s1 + $0x24] sm:$0xf]
  %v295 = vld [vmem:[%s1 + $0x28] sm:$0xf]
  %v296 = vld [vmem:[%s1 + $0x2c] sm:$0xf]
  %v297 = vld [vmem:[%s1 + $0x30] sm:$0xf]
  %v298 = vld [vmem:[%s1 + $0x34] sm:$0xf]
  %v299 = vld [vmem:[%s1 + $0x38] sm:$0xf]
  %v300 = vld [vmem:[%s1 + $0x3c] sm:$0xf]
  %v301 = vld [vmem:[%s1 + $0x40] sm:$0xf]
  %v302 = vld [vmem:[%s1 + $0x44] sm:$0xf]
  %v303 = vld [vmem:[%s1 + $0x48] sm:$0xf]
  %v304 = vld [vmem:[%s1 + $0x4c] sm:$0xf]
  %v305 = vld [vmem:[%s1 + $0x50] sm:$0xf]
  %v306 = vld [vmem:[%s1 + $0x54] sm:$0xf]
  %v307 = vld [vmem:[%s1 + $0x58] sm:$0xf]
  %v308 = vld [vmem:[%s1 + $0x5c] sm:$0xf]
  %v309 = vld [vmem:[%s1 + $0x60] sm:$0xf]
  %v310 = vld [vmem:[%s1 + $0x64] sm:$0xf]
  %v311 = vld [vmem:[%s1 + $0x68] sm:$0xf]
  %v312 = vld [vmem:[%s1 + $0x6c] sm:$0xf]
  %v313 = vld [vmem:[%s1 + $0x70] sm:$0xf]
  %v314 = vld [vmem:[%s1 + $0x74] sm:$0xf]
  %v315 = vld [vmem:[%s1 + $0x78] sm:$0xf]
  %v316 = vld [vmem:[%s1 + $0x7c] sm:$0xf]
  %v317 = vld [vmem:[%s1 + $0x80] sm:$0xf]
  %v318 = vld [vmem:[%s1 + $0x84] sm:$0xf]
  %v319 = vld [vmem:[%s1 + $0x88] sm:$0xf]
  %v320 = vld [vmem:[%s1 + $0x8c] sm:$0xf]
  %v321 = vld [vmem:[%s1 + $0x90] sm:$0xf]
  %v322 = vld [vmem:[%s1 + $0x94] sm:$0xf]
  %v323 = vld [vmem:[%s1 + $0x98] sm:$0xf]
  %v324 = vld [vmem:[%s1 + $0x9c] sm:$0xf]
  %v325 = vld [vmem:[%s1 + $0xa0] sm:$0xf]
  %v326 = vld [vmem:[%s1 + $0xa4] sm:$0xf]
  %v327 = vld [vmem:[%s1 + $0xa8] sm:$0xf]
  %v328 = vld [vmem:[%s1 + $0xac] sm:$0xf]
  %v329 = vld [vmem:[%s1 + $0xb0] sm:$0xf]
  %v330 = vld [vmem:[%s1 + $0xb4] sm:$0xf]
  %v331 = vld [vmem:[%s1 + $0xb8] sm:$0xf]
  %v332 = vld [vmem:[%s1 + $0xbc] sm:$0xf]
  %v333 = vld [vmem:[%s1 + $0xc0] sm:$0xf]
  %v334 = vld [vmem:[%s1 + $0xc4] sm:$0xf]
  %v335 = vld [vmem:[%s1 + $0xc8] sm:$0xf]
  %v336 = vld [vmem:[%s1 + $0xcc] sm:$0xf]
  %v337 = vld [vmem:[%s1 + $0xd0] sm:$0xf]
  %v338 = vld [vmem:[%s1 + $0xd4] sm:$0xf]
  %v339 = vld [vmem:[%s1 + $0xd8] sm:$0xf]
  %v340 = vld [vmem:[%s1 + $0xdc] sm:$0xf]
  %v341 = vld [vmem:[%s1 + $0xe0] sm:$0xf]
  %v342 = vld [vmem:[%s1 + $0xe4] sm:$0xf]
  %v343 = vld [vmem:[%s1 + $0xe8] sm:$0xf]
  %v344 = vld [vmem:[%s1 + $0xec] sm:$0xf]
  %v345 = vld [vmem:[%s1 + $0xf0] sm:$0xf]
  %v346 = vld [vmem:[%s1 + $0xf4] sm:$0xf]
  %v347 = vld [vmem:[%s1 + $0xf8] sm:$0xf]
  %v348 = vld [vmem:[%s1 + $0xfc] sm:$0xf]
  %v349 = vld [vmem:[%s2] sm:$0x1]
  %v351 = vlaneseq
  %v352 = vshrl.u32 %v351, 7
  %v353 = vsub.s32 0, %v352
  %v354 = vrot.slane %v349, %v353
  %v608 = vunpack.c.l.b16 %v33
  %v609 = vunpack.c.h.b16 %v33
  %v610 = vunpack.c.l.b16 %v34
  %v611 = vunpack.c.h.b16 %v34
  %v612 = vunpack.c.l.b16 %v35
  %v613 = vunpack.c.h.b16 %v35
  %v614 = vunpack.c.l.b16 %v36
  %v615 = vunpack.c.h.b16 %v36
  %v616 = vunpack.c.l.b16 %v37
  %v617 = vunpack.c.h.b16 %v37
  %v618 = vunpack.c.l.b16 %v38
  %v619 = vunpack.c.h.b16 %v38
  %v620 = vunpack.c.l.b16 %v39
  %v621 = vunpack.c.h.b16 %v39
  %v622 = vunpack.c.l.b16 %v40
  %v623 = vunpack.c.h.b16 %v40
  %v624 = vunpack.c.l.b16 %v41
  %v625 = vunpack.c.h.b16 %v41
  %v626 = vunpack.c.l.b16 %v42
  %v627 = vunpack.c.h.b16 %v42
  %v628 = vunpack.c.l.b16 %v43
  %v629 = vunpack.c.h.b16 %v43
  %v630 = vunpack.c.l.b16 %v44
  %v631 = vunpack.c.h.b16 %v44
  %v632 = vunpack.c.l.b16 %v45
  %v633 = vunpack.c.h.b16 %v45
  %v634 = vunpack.c.l.b16 %v46
  %v635 = vunpack.c.h.b16 %v46
  %v636 = vunpack.c.l.b16 %v47
  %v637 = vunpack.c.h.b16 %v47
  %v638 = vunpack.c.l.b16 %v48
  %v639 = vunpack.c.h.b16 %v48
  %v640 = vunpack.c.l.b16 %v49
  %v641 = vunpack.c.h.b16 %v49
  %v642 = vunpack.c.l.b16 %v50
  %v643 = vunpack.c.h.b16 %v50
  %v644 = vunpack.c.l.b16 %v51
  %v645 = vunpack.c.h.b16 %v51
  %v646 = vunpack.c.l.b16 %v52
  %v647 = vunpack.c.h.b16 %v52
  %v648 = vunpack.c.l.b16 %v53
  %v649 = vunpack.c.h.b16 %v53
  %v650 = vunpack.c.l.b16 %v54
  %v651 = vunpack.c.h.b16 %v54
  %v652 = vunpack.c.l.b16 %v55
  %v653 = vunpack.c.h.b16 %v55
  %v654 = vunpack.c.l.b16 %v56
  %v655 = vunpack.c.h.b16 %v56
  %v656 = vunpack.c.l.b16 %v57
  %v657 = vunpack.c.h.b16 %v57
  %v658 = vunpack.c.l.b16 %v58
  %v659 = vunpack.c.h.b16 %v58
  %v660 = vunpack.c.l.b16 %v59
  %v661 = vunpack.c.h.b16 %v59
  %v662 = vunpack.c.l.b16 %v60
  %v663 = vunpack.c.h.b16 %v60
  %v664 = vunpack.c.l.b16 %v61
  %v665 = vunpack.c.h.b16 %v61
  %v666 = vunpack.c.l.b16 %v62
  %v667 = vunpack.c.h.b16 %v62
  %v668 = vunpack.c.l.b16 %v63
  %v669 = vunpack.c.h.b16 %v63
  %v670 = vunpack.c.l.b16 %v64
  %v671 = vunpack.c.h.b16 %v64
  %v672 = vunpack.c.l.b16 %v65
  %v673 = vunpack.c.h.b16 %v65
  %v674 = vunpack.c.l.b16 %v66
  %v675 = vunpack.c.h.b16 %v66
  %v676 = vunpack.c.l.b16 %v67
  %v677 = vunpack.c.h.b16 %v67
  %v678 = vunpack.c.l.b16 %v68
  %v679 = vunpack.c.h.b16 %v68
  %v680 = vunpack.c.l.b16 %v69
  %v681 = vunpack.c.h.b16 %v69
  %v682 = vunpack.c.l.b16 %v70
  %v683 = vunpack.c.h.b16 %v70
  %v684 = vunpack.c.l.b16 %v71
  %v685 = vunpack.c.h.b16 %v71
  %v686 = vunpack.c.l.b16 %v72
  %v687 = vunpack.c.h.b16 %v72
  %v688 = vunpack.c.l.b16 %v73
  %v689 = vunpack.c.h.b16 %v73
  %v690 = vunpack.c.l.b16 %v74
  %v691 = vunpack.c.h.b16 %v74
  %v692 = vunpack.c.l.b16 %v75
  %v693 = vunpack.c.h.b16 %v75
  %v694 = vunpack.c.l.b16 %v76
  %v695 = vunpack.c.h.b16 %v76
  %v696 = vunpack.c.l.b16 %v77
  %v697 = vunpack.c.h.b16 %v77
  %v698 = vunpack.c.l.b16 %v78
  %v699 = vunpack.c.h.b16 %v78
  %v700 = vunpack.c.l.b16 %v79
  %v701 = vunpack.c.h.b16 %v79
  %v702 = vunpack.c.l.b16 %v80
  %v703 = vunpack.c.h.b16 %v80
  %v704 = vunpack.c.l.b16 %v81
  %v705 = vunpack.c.h.b16 %v81
  %v706 = vunpack.c.l.b16 %v82
  %v707 = vunpack.c.h.b16 %v82
  %v708 = vunpack.c.l.b16 %v83
  %v709 = vunpack.c.h.b16 %v83
  %v710 = vunpack.c.l.b16 %v84
  %v711 = vunpack.c.h.b16 %v84
  %v712 = vunpack.c.l.b16 %v85
  %v713 = vunpack.c.h.b16 %v85
  %v714 = vunpack.c.l.b16 %v86
  %v715 = vunpack.c.h.b16 %v86
  %v716 = vunpack.c.l.b16 %v87
  %v717 = vunpack.c.h.b16 %v87
  %v718 = vunpack.c.l.b16 %v88
  %v719 = vunpack.c.h.b16 %v88
  %v720 = vunpack.c.l.b16 %v89
  %v721 = vunpack.c.h.b16 %v89
  %v722 = vunpack.c.l.b16 %v90
  %v723 = vunpack.c.h.b16 %v90
  %v724 = vunpack.c.l.b16 %v91
  %v725 = vunpack.c.h.b16 %v91
  %v726 = vunpack.c.l.b16 %v92
  %v727 = vunpack.c.h.b16 %v92
  %v728 = vunpack.c.l.b16 %v93
  %v729 = vunpack.c.h.b16 %v93
  %v730 = vunpack.c.l.b16 %v94
  %v731 = vunpack.c.h.b16 %v94
  %v732 = vunpack.c.l.b16 %v95
  %v733 = vunpack.c.h.b16 %v95
  %v734 = vunpack.c.l.b16 %v96
  %v735 = vunpack.c.h.b16 %v96
  %v736 = vunpack.c.l.b16 %v97
  %v737 = vunpack.c.h.b16 %v97
  %v738 = vunpack.c.l.b16 %v98
  %v739 = vunpack.c.h.b16 %v98
  %v740 = vunpack.c.l.b16 %v99
  %v741 = vunpack.c.h.b16 %v99
  %v742 = vunpack.c.l.b16 %v100
  %v743 = vunpack.c.h.b16 %v100
  %v744 = vunpack.c.l.b16 %v101
  %v745 = vunpack.c.h.b16 %v101
  %v746 = vunpack.c.l.b16 %v102
  %v747 = vunpack.c.h.b16 %v102
  %v748 = vunpack.c.l.b16 %v103
  %v749 = vunpack.c.h.b16 %v103
  %v750 = vunpack.c.l.b16 %v104
  %v751 = vunpack.c.h.b16 %v104
  %v752 = vunpack.c.l.b16 %v105
  %v753 = vunpack.c.h.b16 %v105
  %v754 = vunpack.c.l.b16 %v106
  %v755 = vunpack.c.h.b16 %v106
  %v756 = vunpack.c.l.b16 %v107
  %v757 = vunpack.c.h.b16 %v107
  %v758 = vunpack.c.l.b16 %v108
  %v759 = vunpack.c.h.b16 %v108
  %v760 = vunpack.c.l.b16 %v109
  %v761 = vunpack.c.h.b16 %v109
  %v762 = vunpack.c.l.b16 %v110
  %v763 = vunpack.c.h.b16 %v110
  %v764 = vunpack.c.l.b16 %v111
  %v765 = vunpack.c.h.b16 %v111
  %v766 = vunpack.c.l.b16 %v112
  %v767 = vunpack.c.h.b16 %v112
  %v768 = vunpack.c.l.b16 %v113
  %v769 = vunpack.c.h.b16 %v113
  %v770 = vunpack.c.l.b16 %v114
  %v771 = vunpack.c.h.b16 %v114
  %v772 = vunpack.c.l.b16 %v115
  %v773 = vunpack.c.h.b16 %v115
  %v774 = vunpack.c.l.b16 %v116
  %v775 = vunpack.c.h.b16 %v116
  %v776 = vunpack.c.l.b16 %v117
  %v777 = vunpack.c.h.b16 %v117
  %v778 = vunpack.c.l.b16 %v118
  %v779 = vunpack.c.h.b16 %v118
  %v780 = vunpack.c.l.b16 %v119
  %v781 = vunpack.c.h.b16 %v119
  %v782 = vunpack.c.l.b16 %v120
  %v783 = vunpack.c.h.b16 %v120
  %v784 = vunpack.c.l.b16 %v121
  %v785 = vunpack.c.h.b16 %v121
  %v786 = vunpack.c.l.b16 %v122
  %v787 = vunpack.c.h.b16 %v122
  %v788 = vunpack.c.l.b16 %v123
  %v789 = vunpack.c.h.b16 %v123
  %v790 = vunpack.c.l.b16 %v124
  %v791 = vunpack.c.h.b16 %v124
  %v792 = vunpack.c.l.b16 %v125
  %v793 = vunpack.c.h.b16 %v125
  %v794 = vunpack.c.l.b16 %v126
  %v795 = vunpack.c.h.b16 %v126
  %v796 = vunpack.c.l.b16 %v127
  %v797 = vunpack.c.h.b16 %v127
  %v798 = vunpack.c.l.b16 %v128
  %v799 = vunpack.c.h.b16 %v128
  %v800 = vunpack.c.l.b16 %v129
  %v801 = vunpack.c.h.b16 %v129
  %v802 = vunpack.c.l.b16 %v130
  %v803 = vunpack.c.h.b16 %v130
  %v804 = vunpack.c.l.b16 %v131
  %v805 = vunpack.c.h.b16 %v131
  %v806 = vunpack.c.l.b16 %v132
  %v807 = vunpack.c.h.b16 %v132
  %v808 = vunpack.c.l.b16 %v133
  %v809 = vunpack.c.h.b16 %v133
  %v810 = vunpack.c.l.b16 %v134
  %v811 = vunpack.c.h.b16 %v134
  %v812 = vunpack.c.l.b16 %v135
  %v813 = vunpack.c.h.b16 %v135
  %v814 = vunpack.c.l.b16 %v136
  %v815 = vunpack.c.h.b16 %v136
  %v816 = vunpack.c.l.b16 %v137
  %v817 = vunpack.c.h.b16 %v137
  %v818 = vunpack.c.l.b16 %v138
  %v819 = vunpack.c.h.b16 %v138
  %v820 = vunpack.c.l.b16 %v139
  %v821 = vunpack.c.h.b16 %v139
  %v822 = vunpack.c.l.b16 %v140
  %v823 = vunpack.c.h.b16 %v140
  %v824 = vunpack.c.l.b16 %v141
  %v825 = vunpack.c.h.b16 %v141
  %v826 = vunpack.c.l.b16 %v142
  %v827 = vunpack.c.h.b16 %v142
  %v828 = vunpack.c.l.b16 %v143
  %v829 = vunpack.c.h.b16 %v143
  %v830 = vunpack.c.l.b16 %v144
  %v831 = vunpack.c.h.b16 %v144
  %v832 = vunpack.c.l.b16 %v145
  %v833 = vunpack.c.h.b16 %v145
  %v834 = vunpack.c.l.b16 %v146
  %v835 = vunpack.c.h.b16 %v146
  %v836 = vunpack.c.l.b16 %v147
  %v837 = vunpack.c.h.b16 %v147
  %v838 = vunpack.c.l.b16 %v148
  %v839 = vunpack.c.h.b16 %v148
  %v840 = vunpack.c.l.b16 %v149
  %v841 = vunpack.c.h.b16 %v149
  %v842 = vunpack.c.l.b16 %v150
  %v843 = vunpack.c.h.b16 %v150
  %v844 = vunpack.c.l.b16 %v151
  %v845 = vunpack.c.h.b16 %v151
  %v846 = vunpack.c.l.b16 %v152
  %v847 = vunpack.c.h.b16 %v152
  %v848 = vunpack.c.l.b16 %v153
  %v849 = vunpack.c.h.b16 %v153
  %v850 = vunpack.c.l.b16 %v154
  %v851 = vunpack.c.h.b16 %v154
  %v852 = vunpack.c.l.b16 %v155
  %v853 = vunpack.c.h.b16 %v155
  %v854 = vunpack.c.l.b16 %v156
  %v855 = vunpack.c.h.b16 %v156
  %v856 = vunpack.c.l.b16 %v157
  %v857 = vunpack.c.h.b16 %v157
  %v858 = vunpack.c.l.b16 %v158
  %v859 = vunpack.c.h.b16 %v158
  %v860 = vunpack.c.l.b16 %v159
  %v861 = vunpack.c.h.b16 %v159
  %v862 = vunpack.c.l.b16 %v160
  %v863 = vunpack.c.h.b16 %v160
  %v864 = vunpack.c.l.b16 %v161
  %v865 = vunpack.c.h.b16 %v161
  %v866 = vunpack.c.l.b16 %v162
  %v867 = vunpack.c.h.b16 %v162
  %v868 = vunpack.c.l.b16 %v163
  %v869 = vunpack.c.h.b16 %v163
  %v870 = vunpack.c.l.b16 %v164
  %v871 = vunpack.c.h.b16 %v164
  %v872 = vunpack.c.l.b16 %v165
  %v873 = vunpack.c.h.b16 %v165
  %v874 = vunpack.c.l.b16 %v166
  %v875 = vunpack.c.h.b16 %v166
  %v876 = vunpack.c.l.b16 %v167
  %v877 = vunpack.c.h.b16 %v167
  %v878 = vunpack.c.l.b16 %v168
  %v879 = vunpack.c.h.b16 %v168
  %v880 = vunpack.c.l.b16 %v169
  %v881 = vunpack.c.h.b16 %v169
  %v882 = vunpack.c.l.b16 %v170
  %v883 = vunpack.c.h.b16 %v170
  %v884 = vunpack.c.l.b16 %v171
  %v885 = vunpack.c.h.b16 %v171
  %v886 = vunpack.c.l.b16 %v172
  %v887 = vunpack.c.h.b16 %v172
  %v888 = vunpack.c.l.b16 %v173
  %v889 = vunpack.c.h.b16 %v173
  %v890 = vunpack.c.l.b16 %v174
  %v891 = vunpack.c.h.b16 %v174
  %v892 = vunpack.c.l.b16 %v175
  %v893 = vunpack.c.h.b16 %v175
  %v894 = vunpack.c.l.b16 %v176
  %v895 = vunpack.c.h.b16 %v176
  %v896 = vunpack.c.l.b16 %v177
  %v897 = vunpack.c.h.b16 %v177
  %v898 = vunpack.c.l.b16 %v178
  %v899 = vunpack.c.h.b16 %v178
  %v900 = vunpack.c.l.b16 %v179
  %v901 = vunpack.c.h.b16 %v179
  %v902 = vunpack.c.l.b16 %v180
  %v903 = vunpack.c.h.b16 %v180
  %v904 = vunpack.c.l.b16 %v181
  %v905 = vunpack.c.h.b16 %v181
  %v906 = vunpack.c.l.b16 %v182
  %v907 = vunpack.c.h.b16 %v182
  %v908 = vunpack.c.l.b16 %v183
  %v909 = vunpack.c.h.b16 %v183
  %v910 = vunpack.c.l.b16 %v184
  %v911 = vunpack.c.h.b16 %v184
  %v912 = vunpack.c.l.b16 %v185
  %v913 = vunpack.c.h.b16 %v185
  %v914 = vunpack.c.l.b16 %v186
  %v915 = vunpack.c.h.b16 %v186
  %v916 = vunpack.c.l.b16 %v187
  %v917 = vunpack.c.h.b16 %v187
  %v918 = vunpack.c.l.b16 %v188
  %v919 = vunpack.c.h.b16 %v188
  %v920 = vunpack.c.l.b16 %v189
  %v921 = vunpack.c.h.b16 %v189
  %v922 = vunpack.c.l.b16 %v190
  %v923 = vunpack.c.h.b16 %v190
  %v924 = vunpack.c.l.b16 %v191
  %v925 = vunpack.c.h.b16 %v191
  %v926 = vunpack.c.l.b16 %v192
  %v927 = vunpack.c.h.b16 %v192
  %v928 = vunpack.c.l.b16 %v193
  %v929 = vunpack.c.h.b16 %v193
  %v930 = vunpack.c.l.b16 %v194
  %v931 = vunpack.c.h.b16 %v194
  %v932 = vunpack.c.l.b16 %v195
  %v933 = vunpack.c.h.b16 %v195
  %v934 = vunpack.c.l.b16 %v196
  %v935 = vunpack.c.h.b16 %v196
  %v936 = vunpack.c.l.b16 %v197
  %v937 = vunpack.c.h.b16 %v197
  %v938 = vunpack.c.l.b16 %v198
  %v939 = vunpack.c.h.b16 %v198
  %v940 = vunpack.c.l.b16 %v199
  %v941 = vunpack.c.h.b16 %v199
  %v942 = vunpack.c.l.b16 %v200
  %v943 = vunpack.c.h.b16 %v200
  %v944 = vunpack.c.l.b16 %v201
  %v945 = vunpack.c.h.b16 %v201
  %v946 = vunpack.c.l.b16 %v202
  %v947 = vunpack.c.h.b16 %v202
  %v948 = vunpack.c.l.b16 %v203
  %v949 = vunpack.c.h.b16 %v203
  %v950 = vunpack.c.l.b16 %v204
  %v951 = vunpack.c.h.b16 %v204
  %v952 = vunpack.c.l.b16 %v205
  %v953 = vunpack.c.h.b16 %v205
  %v954 = vunpack.c.l.b16 %v206
  %v955 = vunpack.c.h.b16 %v206
  %v956 = vunpack.c.l.b16 %v207
  %v957 = vunpack.c.h.b16 %v207
  %v958 = vunpack.c.l.b16 %v208
  %v959 = vunpack.c.h.b16 %v208
  %v960 = vunpack.c.l.b16 %v209
  %v961 = vunpack.c.h.b16 %v209
  %v962 = vunpack.c.l.b16 %v210
  %v963 = vunpack.c.h.b16 %v210
  %v964 = vunpack.c.l.b16 %v211
  %v965 = vunpack.c.h.b16 %v211
  %v966 = vunpack.c.l.b16 %v212
  %v967 = vunpack.c.h.b16 %v212
  %v968 = vunpack.c.l.b16 %v213
  %v969 = vunpack.c.h.b16 %v213
  %v970 = vunpack.c.l.b16 %v214
  %v971 = vunpack.c.h.b16 %v214
  %v972 = vunpack.c.l.b16 %v215
  %v973 = vunpack.c.h.b16 %v215
  %v974 = vunpack.c.l.b16 %v216
  %v975 = vunpack.c.h.b16 %v216
  %v976 = vunpack.c.l.b16 %v217
  %v977 = vunpack.c.h.b16 %v217
  %v978 = vunpack.c.l.b16 %v218
  %v979 = vunpack.c.h.b16 %v218
  %v980 = vunpack.c.l.b16 %v219
  %v981 = vunpack.c.h.b16 %v219
  %v982 = vunpack.c.l.b16 %v220
  %v983 = vunpack.c.h.b16 %v220
  %v984 = vunpack.c.l.b16 %v221
  %v985 = vunpack.c.h.b16 %v221
  %v986 = vunpack.c.l.b16 %v222
  %v987 = vunpack.c.h.b16 %v222
  %v988 = vunpack.c.l.b16 %v223
  %v989 = vunpack.c.h.b16 %v223
  %v990 = vunpack.c.l.b16 %v224
  %v991 = vunpack.c.h.b16 %v224
  %v992 = vunpack.c.l.b16 %v225
  %v993 = vunpack.c.h.b16 %v225
  %v994 = vunpack.c.l.b16 %v226
  %v995 = vunpack.c.h.b16 %v226
  %v996 = vunpack.c.l.b16 %v227
  %v997 = vunpack.c.h.b16 %v227
  %v998 = vunpack.c.l.b16 %v228
  %v999 = vunpack.c.h.b16 %v228
  %v1000 = vunpack.c.l.b16 %v229
  %v1001 = vunpack.c.h.b16 %v229
  %v1002 = vunpack.c.l.b16 %v230
  %v1003 = vunpack.c.h.b16 %v230
  %v1004 = vunpack.c.l.b16 %v231
  %v1005 = vunpack.c.h.b16 %v231
  %v1006 = vunpack.c.l.b16 %v232
  %v1007 = vunpack.c.h.b16 %v232
  %v1008 = vunpack.c.l.b16 %v233
  %v1009 = vunpack.c.h.b16 %v233
  %v1010 = vunpack.c.l.b16 %v234
  %v1011 = vunpack.c.h.b16 %v234
  %v1012 = vunpack.c.l.b16 %v235
  %v1013 = vunpack.c.h.b16 %v235
  %v1014 = vunpack.c.l.b16 %v236
  %v1015 = vunpack.c.h.b16 %v236
  %v1016 = vunpack.c.l.b16 %v237
  %v1017 = vunpack.c.h.b16 %v237
  %v1018 = vunpack.c.l.b16 %v238
  %v1019 = vunpack.c.h.b16 %v238
  %v1020 = vunpack.c.l.b16 %v239
  %v1021 = vunpack.c.h.b16 %v239
  %v1022 = vunpack.c.l.b16 %v240
  %v1023 = vunpack.c.h.b16 %v240
  %v1024 = vunpack.c.l.b16 %v241
  %v1025 = vunpack.c.h.b16 %v241
  %v1026 = vunpack.c.l.b16 %v242
  %v1027 = vunpack.c.h.b16 %v242
  %v1028 = vunpack.c.l.b16 %v243
  %v1029 = vunpack.c.h.b16 %v243
  %v1030 = vunpack.c.l.b16 %v244
  %v1031 = vunpack.c.h.b16 %v244
  %v1032 = vunpack.c.l.b16 %v245
  %v1033 = vunpack.c.h.b16 %v245
  %v1034 = vunpack.c.l.b16 %v246
  %v1035 = vunpack.c.h.b16 %v246
  %v1036 = vunpack.c.l.b16 %v247
  %v1037 = vunpack.c.h.b16 %v247
  %v1038 = vunpack.c.l.b16 %v248
  %v1039 = vunpack.c.h.b16 %v248
  %v1040 = vunpack.c.l.b16 %v249
  %v1041 = vunpack.c.h.b16 %v249
  %v1042 = vunpack.c.l.b16 %v250
  %v1043 = vunpack.c.h.b16 %v250
  %v1044 = vunpack.c.l.b16 %v251
  %v1045 = vunpack.c.h.b16 %v251
  %v1046 = vunpack.c.l.b16 %v252
  %v1047 = vunpack.c.h.b16 %v252
  %v1048 = vunpack.c.l.b16 %v253
  %v1049 = vunpack.c.h.b16 %v253
  %v1050 = vunpack.c.l.b16 %v254
  %v1051 = vunpack.c.h.b16 %v254
  %v1052 = vunpack.c.l.b16 %v255
  %v1053 = vunpack.c.h.b16 %v255
  %v1054 = vunpack.c.l.b16 %v256
  %v1055 = vunpack.c.h.b16 %v256
  %v1056 = vunpack.c.l.b16 %v257
  %v1057 = vunpack.c.h.b16 %v257
  %v1058 = vunpack.c.l.b16 %v258
  %v1059 = vunpack.c.h.b16 %v258
  %v1060 = vunpack.c.l.b16 %v259
  %v1061 = vunpack.c.h.b16 %v259
  %v1062 = vunpack.c.l.b16 %v260
  %v1063 = vunpack.c.h.b16 %v260
  %v1064 = vunpack.c.l.b16 %v261
  %v1065 = vunpack.c.h.b16 %v261
  %v1066 = vunpack.c.l.b16 %v262
  %v1067 = vunpack.c.h.b16 %v262
  %v1068 = vunpack.c.l.b16 %v263
  %v1069 = vunpack.c.h.b16 %v263
  %v1070 = vunpack.c.l.b16 %v264
  %v1071 = vunpack.c.h.b16 %v264
  %v1072 = vunpack.c.l.b16 %v265
  %v1073 = vunpack.c.h.b16 %v265
  %v1074 = vunpack.c.l.b16 %v266
  %v1075 = vunpack.c.h.b16 %v266
  %v1076 = vunpack.c.l.b16 %v267
  %v1077 = vunpack.c.h.b16 %v267
  %v1078 = vunpack.c.l.b16 %v268
  %v1079 = vunpack.c.h.b16 %v268
  %v1080 = vunpack.c.l.b16 %v269
  %v1081 = vunpack.c.h.b16 %v269
  %v1082 = vunpack.c.l.b16 %v270
  %v1083 = vunpack.c.h.b16 %v270
  %v1084 = vunpack.c.l.b16 %v271
  %v1085 = vunpack.c.h.b16 %v271
  %v1086 = vunpack.c.l.b16 %v272
  %v1087 = vunpack.c.h.b16 %v272
  %v1088 = vunpack.c.l.b16 %v273
  %v1089 = vunpack.c.h.b16 %v273
  %v1090 = vunpack.c.l.b16 %v274
  %v1091 = vunpack.c.h.b16 %v274
  %v1092 = vunpack.c.l.b16 %v275
  %v1093 = vunpack.c.h.b16 %v275
  %v1094 = vunpack.c.l.b16 %v276
  %v1095 = vunpack.c.h.b16 %v276
  %v1096 = vunpack.c.l.b16 %v277
  %v1097 = vunpack.c.h.b16 %v277
  %v1098 = vunpack.c.l.b16 %v278
  %v1099 = vunpack.c.h.b16 %v278
  %v1100 = vunpack.c.l.b16 %v279
  %v1101 = vunpack.c.h.b16 %v279
  %v1102 = vunpack.c.l.b16 %v280
  %v1103 = vunpack.c.h.b16 %v280
  %v1104 = vunpack.c.l.b16 %v281
  %v1105 = vunpack.c.h.b16 %v281
  %v1106 = vunpack.c.l.b16 %v282
  %v1107 = vunpack.c.h.b16 %v282
  %v1108 = vunpack.c.l.b16 %v283
  %v1109 = vunpack.c.h.b16 %v283
  %v1110 = vunpack.c.l.b16 %v284
  %v1111 = vunpack.c.h.b16 %v284
  %v1112 = vpack.c.b16 %v612, %v608
  %v1113 = vpack.c.b16 %v613, %v609
  %v1114 = vpack.c.b16 %v614, %v610
  %v1115 = vpack.c.b16 %v615, %v611
  %v1116 = vpack.c.b16 %v620, %v616
  %v1117 = vpack.c.b16 %v621, %v617
  %v1118 = vpack.c.b16 %v622, %v618
  %v1119 = vpack.c.b16 %v623, %v619
  %v1120 = vpack.c.b16 %v628, %v624
  %v1121 = vpack.c.b16 %v629, %v625
  %v1122 = vpack.c.b16 %v630, %v626
  %v1123 = vpack.c.b16 %v631, %v627
  %v1124 = vpack.c.b16 %v636, %v632
  %v1125 = vpack.c.b16 %v637, %v633
  %v1126 = vpack.c.b16 %v638, %v634
  %v1127 = vpack.c.b16 %v639, %v635
  %v1128 = vpack.c.b16 %v644, %v640
  %v1129 = vpack.c.b16 %v645, %v641
  %v1130 = vpack.c.b16 %v646, %v642
  %v1131 = vpack.c.b16 %v647, %v643
  %v1132 = vpack.c.b16 %v652, %v648
  %v1133 = vpack.c.b16 %v653, %v649
  %v1134 = vpack.c.b16 %v654, %v650
  %v1135 = vpack.c.b16 %v655, %v651
  %v1136 = vpack.c.b16 %v660, %v656
  %v1137 = vpack.c.b16 %v661, %v657
  %v1138 = vpack.c.b16 %v662, %v658
  %v1139 = vpack.c.b16 %v663, %v659
  %v1140 = vpack.c.b16 %v668, %v664
  %v1141 = vpack.c.b16 %v669, %v665
  %v1142 = vpack.c.b16 %v670, %v666
  %v1143 = vpack.c.b16 %v671, %v667
  %v1144 = vpack.c.b16 %v676, %v672
  %v1145 = vpack.c.b16 %v677, %v673
  %v1146 = vpack.c.b16 %v678, %v674
  %v1147 = vpack.c.b16 %v679, %v675
  %v1148 = vpack.c.b16 %v684, %v680
  %v1149 = vpack.c.b16 %v685, %v681
  %v1150 = vpack.c.b16 %v686, %v682
  %v1151 = vpack.c.b16 %v687, %v683
  %v1152 = vpack.c.b16 %v692, %v688
  %v1153 = vpack.c.b16 %v693, %v689
  %v1154 = vpack.c.b16 %v694, %v690
  %v1155 = vpack.c.b16 %v695, %v691
  %v1156 = vpack.c.b16 %v700, %v696
  %v1157 = vpack.c.b16 %v701, %v697
  %v1158 = vpack.c.b16 %v702, %v698
  %v1159 = vpack.c.b16 %v703, %v699
  %v1160 = vpack.c.b16 %v708, %v704
  %v1161 = vpack.c.b16 %v709, %v705
  %v1162 = vpack.c.b16 %v710, %v706
  %v1163 = vpack.c.b16 %v711, %v707
  %v1164 = vpack.c.b16 %v716, %v712
  %v1165 = vpack.c.b16 %v717, %v713
  %v1166 = vpack.c.b16 %v718, %v714
  %v1167 = vpack.c.b16 %v719, %v715
  %v1168 = vpack.c.b16 %v724, %v720
  %v1169 = vpack.c.b16 %v725, %v721
  %v1170 = vpack.c.b16 %v726, %v722
  %v1171 = vpack.c.b16 %v727, %v723
  %v1172 = vpack.c.b16 %v732, %v728
  %v1173 = vpack.c.b16 %v733, %v729
  %v1174 = vpack.c.b16 %v734, %v730
  %v1175 = vpack.c.b16 %v735, %v731
  %v1176 = vpack.c.b16 %v740, %v736
  %v1177 = vpack.c.b16 %v741, %v737
  %v1178 = vpack.c.b16 %v742, %v738
  %v1179 = vpack.c.b16 %v743, %v739
  %v1180 = vpack.c.b16 %v748, %v744
  %v1181 = vpack.c.b16 %v749, %v745
  %v1182 = vpack.c.b16 %v750, %v746
  %v1183 = vpack.c.b16 %v751, %v747
  %v1184 = vpack.c.b16 %v756, %v752
  %v1185 = vpack.c.b16 %v757, %v753
  %v1186 = vpack.c.b16 %v758, %v754
  %v1187 = vpack.c.b16 %v759, %v755
  %v1188 = vpack.c.b16 %v764, %v760
  %v1189 = vpack.c.b16 %v765, %v761
  %v1190 = vpack.c.b16 %v766, %v762
  %v1191 = vpack.c.b16 %v767, %v763
  %v1192 = vpack.c.b16 %v772, %v768
  %v1193 = vpack.c.b16 %v773, %v769
  %v1194 = vpack.c.b16 %v774, %v770
  %v1195 = vpack.c.b16 %v775, %v771
  %v1196 = vpack.c.b16 %v780, %v776
  %v1197 = vpack.c.b16 %v781, %v777
  %v1198 = vpack.c.b16 %v782, %v778
  %v1199 = vpack.c.b16 %v783, %v779
  %v1200 = vpack.c.b16 %v788, %v784
  %v1201 = vpack.c.b16 %v789, %v785
  %v1202 = vpack.c.b16 %v790, %v786
  %v1203 = vpack.c.b16 %v791, %v787
  %v1204 = vpack.c.b16 %v796, %v792
  %v1205 = vpack.c.b16 %v797, %v793
  %v1206 = vpack.c.b16 %v798, %v794
  %v1207 = vpack.c.b16 %v799, %v795
  %v1208 = vpack.c.b16 %v804, %v800
  %v1209 = vpack.c.b16 %v805, %v801
  %v1210 = vpack.c.b16 %v806, %v802
  %v1211 = vpack.c.b16 %v807, %v803
  %v1212 = vpack.c.b16 %v812, %v808
  %v1213 = vpack.c.b16 %v813, %v809
  %v1214 = vpack.c.b16 %v814, %v810
  %v1215 = vpack.c.b16 %v815, %v811
  %v1216 = vpack.c.b16 %v820, %v816
  %v1217 = vpack.c.b16 %v821, %v817
  %v1218 = vpack.c.b16 %v822, %v818
  %v1219 = vpack.c.b16 %v823, %v819
  %v1220 = vpack.c.b16 %v828, %v824
  %v1221 = vpack.c.b16 %v829, %v825
  %v1222 = vpack.c.b16 %v830, %v826
  %v1223 = vpack.c.b16 %v831, %v827
  %v1224 = vpack.c.b16 %v836, %v832
  %v1225 = vpack.c.b16 %v837, %v833
  %v1226 = vpack.c.b16 %v838, %v834
  %v1227 = vpack.c.b16 %v839, %v835
  %v1228 = vpack.c.b16 %v844, %v840
  %v1229 = vpack.c.b16 %v845, %v841
  %v1230 = vpack.c.b16 %v846, %v842
  %v1231 = vpack.c.b16 %v847, %v843
  %v1232 = vpack.c.b16 %v852, %v848
  %v1233 = vpack.c.b16 %v853, %v849
  %v1234 = vpack.c.b16 %v854, %v850
  %v1235 = vpack.c.b16 %v855, %v851
  %v1236 = vpack.c.b16 %v860, %v856
  %v1237 = vpack.c.b16 %v861, %v857
  %v1238 = vpack.c.b16 %v862, %v858
  %v1239 = vpack.c.b16 %v863, %v859
  %v1240 = vpack.c.b16 %v868, %v864
  %v1241 = vpack.c.b16 %v869, %v865
  %v1242 = vpack.c.b16 %v870, %v866
  %v1243 = vpack.c.b16 %v871, %v867
  %v1244 = vpack.c.b16 %v876, %v872
  %v1245 = vpack.c.b16 %v877, %v873
  %v1246 = vpack.c.b16 %v878, %v874
  %v1247 = vpack.c.b16 %v879, %v875
  %v1248 = vpack.c.b16 %v884, %v880
  %v1249 = vpack.c.b16 %v885, %v881
  %v1250 = vpack.c.b16 %v886, %v882
  %v1251 = vpack.c.b16 %v887, %v883
  %v1252 = vpack.c.b16 %v892, %v888
  %v1253 = vpack.c.b16 %v893, %v889
  %v1254 = vpack.c.b16 %v894, %v890
  %v1255 = vpack.c.b16 %v895, %v891
  %v1256 = vpack.c.b16 %v900, %v896
  %v1257 = vpack.c.b16 %v901, %v897
  %v1258 = vpack.c.b16 %v902, %v898
  %v1259 = vpack.c.b16 %v903, %v899
  %v1260 = vpack.c.b16 %v908, %v904
  %v1261 = vpack.c.b16 %v909, %v905
  %v1262 = vpack.c.b16 %v910, %v906
  %v1263 = vpack.c.b16 %v911, %v907
  %v1264 = vpack.c.b16 %v916, %v912
  %v1265 = vpack.c.b16 %v917, %v913
  %v1266 = vpack.c.b16 %v918, %v914
  %v1267 = vpack.c.b16 %v919, %v915
  %v1268 = vpack.c.b16 %v924, %v920
  %v1269 = vpack.c.b16 %v925, %v921
  %v1270 = vpack.c.b16 %v926, %v922
  %v1271 = vpack.c.b16 %v927, %v923
  %v1272 = vpack.c.b16 %v932, %v928
  %v1273 = vpack.c.b16 %v933, %v929
  %v1274 = vpack.c.b16 %v934, %v930
  %v1275 = vpack.c.b16 %v935, %v931
  %v1276 = vpack.c.b16 %v940, %v936
  %v1277 = vpack.c.b16 %v941, %v937
  %v1278 = vpack.c.b16 %v942, %v938
  %v1279 = vpack.c.b16 %v943, %v939
  %v1280 = vpack.c.b16 %v948, %v944
  %v1281 = vpack.c.b16 %v949, %v945
  %v1282 = vpack.c.b16 %v950, %v946
  %v1283 = vpack.c.b16 %v951, %v947
  %v1284 = vpack.c.b16 %v956, %v952
  %v1285 = vpack.c.b16 %v957, %v953
  %v1286 = vpack.c.b16 %v958, %v954
  %v1287 = vpack.c.b16 %v959, %v955
  %v1288 = vpack.c.b16 %v964, %v960
  %v1289 = vpack.c.b16 %v965, %v961
  %v1290 = vpack.c.b16 %v966, %v962
  %v1291 = vpack.c.b16 %v967, %v963
  %v1292 = vpack.c.b16 %v972, %v968
  %v1293 = vpack.c.b16 %v973, %v969
  %v1294 = vpack.c.b16 %v974, %v970
  %v1295 = vpack.c.b16 %v975, %v971
  %v1296 = vpack.c.b16 %v980, %v976
  %v1297 = vpack.c.b16 %v981, %v977
  %v1298 = vpack.c.b16 %v982, %v978
  %v1299 = vpack.c.b16 %v983, %v979
  %v1300 = vpack.c.b16 %v988, %v984
  %v1301 = vpack.c.b16 %v989, %v985
  %v1302 = vpack.c.b16 %v990, %v986
  %v1303 = vpack.c.b16 %v991, %v987
  %v1304 = vpack.c.b16 %v996, %v992
  %v1305 = vpack.c.b16 %v997, %v993
  %v1306 = vpack.c.b16 %v998, %v994
  %v1307 = vpack.c.b16 %v999, %v995
  %v1308 = vpack.c.b16 %v1004, %v1000
  %v1309 = vpack.c.b16 %v1005, %v1001
  %v1310 = vpack.c.b16 %v1006, %v1002
  %v1311 = vpack.c.b16 %v1007, %v1003
  %v1312 = vpack.c.b16 %v1012, %v1008
  %v1313 = vpack.c.b16 %v1013, %v1009
  %v1314 = vpack.c.b16 %v1014, %v1010
  %v1315 = vpack.c.b16 %v1015, %v1011
  %v1316 = vpack.c.b16 %v1020, %v1016
  %v1317 = vpack.c.b16 %v1021, %v1017
  %v1318 = vpack.c.b16 %v1022, %v1018
  %v1319 = vpack.c.b16 %v1023, %v1019
  %v1320 = vpack.c.b16 %v1028, %v1024
  %v1321 = vpack.c.b16 %v1029, %v1025
  %v1322 = vpack.c.b16 %v1030, %v1026
  %v1323 = vpack.c.b16 %v1031, %v1027
  %v1324 = vpack.c.b16 %v1036, %v1032
  %v1325 = vpack.c.b16 %v1037, %v1033
  %v1326 = vpack.c.b16 %v1038, %v1034
  %v1327 = vpack.c.b16 %v1039, %v1035
  %v1328 = vpack.c.b16 %v1044, %v1040
  %v1329 = vpack.c.b16 %v1045, %v1041
  %v1330 = vpack.c.b16 %v1046, %v1042
  %v1331 = vpack.c.b16 %v1047, %v1043
  %v1332 = vpack.c.b16 %v1052, %v1048
  %v1333 = vpack.c.b16 %v1053, %v1049
  %v1334 = vpack.c.b16 %v1054, %v1050
  %v1335 = vpack.c.b16 %v1055, %v1051
  %v1336 = vpack.c.b16 %v1060, %v1056
  %v1337 = vpack.c.b16 %v1061, %v1057
  %v1338 = vpack.c.b16 %v1062, %v1058
  %v1339 = vpack.c.b16 %v1063, %v1059
  %v1340 = vpack.c.b16 %v1068, %v1064
  %v1341 = vpack.c.b16 %v1069, %v1065
  %v1342 = vpack.c.b16 %v1070, %v1066
  %v1343 = vpack.c.b16 %v1071, %v1067
  %v1344 = vpack.c.b16 %v1076, %v1072
  %v1345 = vpack.c.b16 %v1077, %v1073
  %v1346 = vpack.c.b16 %v1078, %v1074
  %v1347 = vpack.c.b16 %v1079, %v1075
  %v1348 = vpack.c.b16 %v1084, %v1080
  %v1349 = vpack.c.b16 %v1085, %v1081
  %v1350 = vpack.c.b16 %v1086, %v1082
  %v1351 = vpack.c.b16 %v1087, %v1083
  %v1352 = vpack.c.b16 %v1092, %v1088
  %v1353 = vpack.c.b16 %v1093, %v1089
  %v1354 = vpack.c.b16 %v1094, %v1090
  %v1355 = vpack.c.b16 %v1095, %v1091
  %v1356 = vpack.c.b16 %v1100, %v1096
  %v1357 = vpack.c.b16 %v1101, %v1097
  %v1358 = vpack.c.b16 %v1102, %v1098
  %v1359 = vpack.c.b16 %v1103, %v1099
  %v1360 = vpack.c.b16 %v1108, %v1104
  %v1361 = vpack.c.b16 %v1109, %v1105
  %v1362 = vpack.c.b16 %v1110, %v1106
  %v1363 = vpack.c.b16 %v1111, %v1107
  %v1680 = vunpack.c.l.b16 %v285
  %v1681 = vunpack.c.l.b16 %v286
  %v1682 = vunpack.c.l.b16 %v287
  %v1683 = vunpack.c.l.b16 %v288
  %v1684 = vunpack.c.l.b16 %v289
  %v1685 = vunpack.c.l.b16 %v290
  %v1686 = vunpack.c.l.b16 %v291
  %v1687 = vunpack.c.l.b16 %v292
  %v1688 = vunpack.c.l.b16 %v293
  %v1689 = vunpack.c.l.b16 %v294
  %v1690 = vunpack.c.l.b16 %v295
  %v1691 = vunpack.c.l.b16 %v296
  %v1692 = vunpack.c.l.b16 %v297
  %v1693 = vunpack.c.l.b16 %v298
  %v1694 = vunpack.c.l.b16 %v299
  %v1695 = vunpack.c.l.b16 %v300
  %v1696 = vunpack.c.l.b16 %v301
  %v1697 = vunpack.c.l.b16 %v302
  %v1698 = vunpack.c.l.b16 %v303
  %v1699 = vunpack.c.l.b16 %v304
  %v1700 = vunpack.c.l.b16 %v305
  %v1701 = vunpack.c.l.b16 %v306
  %v1702 = vunpack.c.l.b16 %v307
  %v1703 = vunpack.c.l.b16 %v308
  %v1704 = vunpack.c.l.b16 %v309
  %v1705 = vunpack.c.l.b16 %v310
  %v1706 = vunpack.c.l.b16 %v311
  %v1707 = vunpack.c.l.b16 %v312
  %v1708 = vunpack.c.l.b16 %v313
  %v1709 = vunpack.c.l.b16 %v314
  %v1710 = vunpack.c.l.b16 %v315
  %v1711 = vunpack.c.l.b16 %v316
  %v1712 = vunpack.c.l.b16 %v317
  %v1713 = vunpack.c.l.b16 %v318
  %v1714 = vunpack.c.l.b16 %v319
  %v1715 = vunpack.c.l.b16 %v320
  %v1716 = vunpack.c.l.b16 %v321
  %v1717 = vunpack.c.l.b16 %v322
  %v1718 = vunpack.c.l.b16 %v323
  %v1719 = vunpack.c.l.b16 %v324
  %v1720 = vunpack.c.l.b16 %v325
  %v1721 = vunpack.c.l.b16 %v326
  %v1722 = vunpack.c.l.b16 %v327
  %v1723 = vunpack.c.l.b16 %v328
  %v1724 = vunpack.c.l.b16 %v329
  %v1725 = vunpack.c.l.b16 %v330
  %v1726 = vunpack.c.l.b16 %v331
  %v1727 = vunpack.c.l.b16 %v332
  %v1728 = vunpack.c.l.b16 %v333
  %v1729 = vunpack.c.l.b16 %v334
  %v1730 = vunpack.c.l.b16 %v335
  %v1731 = vunpack.c.l.b16 %v336
  %v1732 = vunpack.c.l.b16 %v337
  %v1733 = vunpack.c.l.b16 %v338
  %v1734 = vunpack.c.l.b16 %v339
  %v1735 = vunpack.c.l.b16 %v340
  %v1736 = vunpack.c.l.b16 %v341
  %v1737 = vunpack.c.l.b16 %v342
  %v1738 = vunpack.c.l.b16 %v343
  %v1739 = vunpack.c.l.b16 %v344
  %v1740 = vunpack.c.l.b16 %v345
  %v1741 = vunpack.c.l.b16 %v346
  %v1742 = vunpack.c.l.b16 %v347
  %v1743 = vunpack.c.l.b16 %v348
  %v1744 = vpack.c.b16 %v1681, %v1680
  %v1745 = vpack.c.b16 %v1683, %v1682
  %v1746 = vpack.c.b16 %v1685, %v1684
  %v1747 = vpack.c.b16 %v1687, %v1686
  %v1748 = vpack.c.b16 %v1689, %v1688
  %v1749 = vpack.c.b16 %v1691, %v1690
  %v1750 = vpack.c.b16 %v1693, %v1692
  %v1751 = vpack.c.b16 %v1695, %v1694
  %v1752 = vpack.c.b16 %v1697, %v1696
  %v1753 = vpack.c.b16 %v1699, %v1698
  %v1754 = vpack.c.b16 %v1701, %v1700
  %v1755 = vpack.c.b16 %v1703, %v1702
  %v1756 = vpack.c.b16 %v1705, %v1704
  %v1757 = vpack.c.b16 %v1707, %v1706
  %v1758 = vpack.c.b16 %v1709, %v1708
  %v1759 = vpack.c.b16 %v1711, %v1710
  %v1760 = vpack.c.b16 %v1713, %v1712
  %v1761 = vpack.c.b16 %v1715, %v1714
  %v1762 = vpack.c.b16 %v1717, %v1716
  %v1763 = vpack.c.b16 %v1719, %v1718
  %v1764 = vpack.c.b16 %v1721, %v1720
  %v1765 = vpack.c.b16 %v1723, %v1722
  %v1766 = vpack.c.b16 %v1725, %v1724
  %v1767 = vpack.c.b16 %v1727, %v1726
  %v1768 = vpack.c.b16 %v1729, %v1728
  %v1769 = vpack.c.b16 %v1731, %v1730
  %v1770 = vpack.c.b16 %v1733, %v1732
  %v1771 = vpack.c.b16 %v1735, %v1734
  %v1772 = vpack.c.b16 %v1737, %v1736
  %v1773 = vpack.c.b16 %v1739, %v1738
  %v1774 = vpack.c.b16 %v1741, %v1740
  %v1775 = vpack.c.b16 %v1743, %v1742
  %1808 = vmatprep.subr.bf16.mxu0 0
  %1809 = vmatpush1.bf16.msra.mxu0 %v1744
  %1810 = vmatprep.subr.bf16.mxu0 0
  %1811 = vmatpush1.bf16.msra.mxu0 %v1745
  %1812 = vmatprep.subr.bf16.mxu0 0
  %1813 = vmatpush1.bf16.msra.mxu0 %v1746
  %1814 = vmatprep.subr.bf16.mxu0 0
  %1815 = vmatpush1.bf16.msra.mxu0 %v1747
  %1816 = vmatprep.subr.bf16.mxu0 0
  %1817 = vmatpush1.bf16.msra.mxu0 %v1748
  %1818 = vmatprep.subr.bf16.mxu0 0
  %1819 = vmatpush1.bf16.msra.mxu0 %v1749
  %1820 = vmatprep.subr.bf16.mxu0 0
  %1821 = vmatpush1.bf16.msra.mxu0 %v1750
  %1822 = vmatprep.subr.bf16.mxu0 0
  %1823 = vmatpush1.bf16.msra.mxu0 %v1751
  %1824 = vmatprep.subr.bf16.mxu0 0
  %1825 = vmatpush1.bf16.msra.mxu0 %v1752
  %1826 = vmatprep.subr.bf16.mxu0 0
  %1827 = vmatpush1.bf16.msra.mxu0 %v1753
  %1828 = vmatprep.subr.bf16.mxu0 0
  %1829 = vmatpush1.bf16.msra.mxu0 %v1754
  %1830 = vmatprep.subr.bf16.mxu0 0
  %1831 = vmatpush1.bf16.msra.mxu0 %v1755
  %1832 = vmatprep.subr.bf16.mxu0 0
  %1833 = vmatpush1.bf16.msra.mxu0 %v1756
  %1834 = vmatprep.subr.bf16.mxu0 0
  %1835 = vmatpush1.bf16.msra.mxu0 %v1757
  %1836 = vmatprep.subr.bf16.mxu0 0
  %1837 = vmatpush1.bf16.msra.mxu0 %v1758
  %1838 = vmatprep.subr.bf16.mxu0 0
  %1839 = vmatpush1.bf16.msra.mxu0 %v1759
  %1840 = vmatprep.mubr.bf16.mxu0 %v1113
  %1841 = vmatmul.mubr.bf16.gmra.mrb[0].mxu0 %v1112
  %v1842 = vpop.f32.mrb[0].mxu0
  %v1843 = vadd.f32 %v354, %v1842
  %v1844 = vpop.f32.mrb[0].mxu0
  %v1845 = vpop.f32.mrb[0].mxu0
  %v1846 = vadd.f32 %v354, %v1845
  %v1847 = vpop.f32.mrb[0].mxu0
  %1848 = vmatprep.mubr.bf16.mxu0 %v1117
  %1849 = vmatmul.mubr.bf16.gmra.mrb[0].mxu0 %v1116
  %v1850 = vpop.f32.mrb[0].mxu0
  %v1851 = vadd.f32 %v354, %v1850
  %v1852 = vpop.f32.mrb[0].mxu0
  %v1853 = vpop.f32.mrb[0].mxu0
  %v1854 = vadd.f32 %v354, %v1853
  %v1855 = vpop.f32.mrb[0].mxu0
  %1856 = vmatprep.mubr.bf16.mxu0 %v1121
  %1857 = vmatmul.mubr.bf16.gmra.mrb[0].mxu0 %v1120
  %v1858 = vpop.f32.mrb[0].mxu0
  %v1859 = vadd.f32 %v354, %v1858
  %v1860 = vpop.f32.mrb[0].mxu0
  %v1861 = vpop.f32.mrb[0].mxu0
  %v1862 = vadd.f32 %v354, %v1861
  %v1863 = vpop.f32.mrb[0].mxu0
  %1864 = vmatprep.mubr.bf16.mxu0 %v1125
  %1865 = vmatmul.mubr.bf16.gmra.mrb[0].mxu0 %v1124
  %v1866 = vpop.f32.mrb[0].mxu0
  %v1867 = vadd.f32 %v354, %v1866
  %v1868 = vpop.f32.mrb[0].mxu0
  %v1869 = vpop.f32.mrb[0].mxu0
  %v1870 = vadd.f32 %v354, %v1869
  %v1871 = vpop.f32.mrb[0].mxu0
  %1872 = vmatprep.mubr.bf16.mxu0 %v1129
  %1873 = vmatmul.mubr.bf16.gmra.mrb[0].mxu0 %v1128
  %v1874 = vpop.f32.mrb[0].mxu0
  %v1875 = vadd.f32 %v354, %v1874
  %v1876 = vpop.f32.mrb[0].mxu0
  %v1877 = vpop.f32.mrb[0].mxu0
  %v1878 = vadd.f32 %v354, %v1877
  %v1879 = vpop.f32.mrb[0].mxu0
  %1880 = vmatprep.mubr.bf16.mxu0 %v1133
  %1881 = vmatmul.mubr.bf16.gmra.mrb[0].mxu0 %v1132
  %v1882 = vpop.f32.mrb[0].mxu0
  %v1883 = vadd.f32 %v354, %v1882
  %v1884 = vpop.f32.mrb[0].mxu0
  %v1885 = vpop.f32.mrb[0].mxu0
  %v1886 = vadd.f32 %v354, %v1885
  %v1887 = vpop.f32.mrb[0].mxu0
  %1888 = vmatprep.mubr.bf16.mxu0 %v1137
  %1889 = vmatmul.mubr.bf16.gmra.mrb[0].mxu0 %v1136
  %v1890 = vpop.f32.mrb[0].mxu0
  %v1891 = vadd.f32 %v354, %v1890
  %v1892 = vpop.f32.mrb[0].mxu0
  %v1893 = vpop.f32.mrb[0].mxu0
  %v1894 = vadd.f32 %v354, %v1893
  %v1895 = vpop.f32.mrb[0].mxu0
  %1896 = vmatprep.mubr.bf16.mxu0 %v1141
  %1897 = vmatmul.mubr.bf16.gmra.mrb[0].mxu0 %v1140
  %v1898 = vpop.f32.mrb[0].mxu0
  %v1899 = vadd.f32 %v354, %v1898
  %v1900 = vpop.f32.mrb[0].mxu0
  %v1901 = vpop.f32.mrb[0].mxu0
  %v1902 = vadd.f32 %v354, %v1901
  %v1903 = vpop.f32.mrb[0].mxu0
  %1904 = vmatprep.mubr.bf16.mxu0 %v1145
  %1905 = vmatmul.mubr.bf16.gmra.mrb[0].mxu0 %v1144
  %v1906 = vpop.f32.mrb[0].mxu0
  %v1907 = vadd.f32 %v354, %v1906
  %v1908 = vpop.f32.mrb[0].mxu0
  %v1909 = vpop.f32.mrb[0].mxu0
  %v1910 = vadd.f32 %v354, %v1909
  %v1911 = vpop.f32.mrb[0].mxu0
  %1912 = vmatprep.mubr.bf16.mxu0 %v1149
  %1913 = vmatmul.mubr.bf16.gmra.mrb[0].mxu0 %v1148
  %v1914 = vpop.f32.mrb[0].mxu0
  %v1915 = vadd.f32 %v354, %v1914
  %v1916 = vpop.f32.mrb[0].mxu0
  %v1917 = vpop.f32.mrb[0].mxu0
  %v1918 = vadd.f32 %v354, %v1917
  %v1919 = vpop.f32.mrb[0].mxu0
  %1920 = vmatprep.mubr.bf16.mxu0 %v1153
  %1921 = vmatmul.mubr.bf16.gmra.mrb[0].mxu0 %v1152
  %v1922 = vpop.f32.mrb[0].mxu0
  %v1923 = vadd.f32 %v354, %v1922
  %v1924 = vpop.f32.mrb[0].mxu0
  %v1925 = vpop.f32.mrb[0].mxu0
  %v1926 = vadd.f32 %v354, %v1925
  %v1927 = vpop.f32.mrb[0].mxu0
  %1928 = vmatprep.mubr.bf16.mxu0 %v1157
  %1929 = vmatmul.mubr.bf16.gmra.mrb[0].mxu0 %v1156
  %v1930 = vpop.f32.mrb[0].mxu0
  %v1931 = vadd.f32 %v354, %v1930
  %v1932 = vpop.f32.mrb[0].mxu0
  %v1933 = vpop.f32.mrb[0].mxu0
  %v1934 = vadd.f32 %v354, %v1933
  %v1935 = vpop.f32.mrb[0].mxu0
  %1936 = vmatprep.mubr.bf16.mxu0 %v1161
  %1937 = vmatmul.mubr.bf16.gmra.mrb[0].mxu0 %v1160
  %v1938 = vpop.f32.mrb[0].mxu0
  %v1939 = vadd.f32 %v354, %v1938
  %v1940 = vpop.f32.mrb[0].mxu0
  %v1941 = vpop.f32.mrb[0].mxu0
  %v1942 = vadd.f32 %v354, %v1941
  %v1943 = vpop.f32.mrb[0].mxu0
  %1944 = vmatprep.mubr.bf16.mxu0 %v1165
  %1945 = vmatmul.mubr.bf16.gmra.mrb[0].mxu0 %v1164
  %v1946 = vpop.f32.mrb[0].mxu0
  %v1947 = vadd.f32 %v354, %v1946
  %v1948 = vpop.f32.mrb[0].mxu0
  %v1949 = vpop.f32.mrb[0].mxu0
  %v1950 = vadd.f32 %v354, %v1949
  %v1951 = vpop.f32.mrb[0].mxu0
  %1952 = vmatprep.mubr.bf16.mxu0 %v1169
  %1953 = vmatmul.mubr.bf16.gmra.mrb[0].mxu0 %v1168
  %v1954 = vpop.f32.mrb[0].mxu0
  %v1955 = vadd.f32 %v354, %v1954
  %v1956 = vpop.f32.mrb[0].mxu0
  %v1957 = vpop.f32.mrb[0].mxu0
  %v1958 = vadd.f32 %v354, %v1957
  %v1959 = vpop.f32.mrb[0].mxu0
  %1960 = vmatprep.mubr.bf16.mxu0 %v1173
  %1961 = vmatmul.mubr.bf16.gmra.mrb[0].mxu0 %v1172
  %v1962 = vpop.f32.mrb[0].mxu0
  %v1963 = vadd.f32 %v354, %v1962
  %v1964 = vpop.f32.mrb[0].mxu0
  %v1965 = vpop.f32.mrb[0].mxu0
  %v1966 = vadd.f32 %v354, %v1965
  %v1967 = vpop.f32.mrb[0].mxu0
  %1968 = vmatprep.mubr.bf16.mxu0 %v1177
  %1969 = vmatmul.mubr.bf16.gmra.mrb[0].mxu0 %v1176
  %v1970 = vpop.f32.mrb[0].mxu0
  %v1971 = vadd.f32 %v354, %v1970
  %v1972 = vpop.f32.mrb[0].mxu0
  %v1973 = vpop.f32.mrb[0].mxu0
  %v1974 = vadd.f32 %v354, %v1973
  %v1975 = vpop.f32.mrb[0].mxu0
  %1976 = vmatprep.mubr.bf16.mxu0 %v1181
  %1977 = vmatmul.mubr.bf16.gmra.mrb[0].mxu0 %v1180
  %v1978 = vpop.f32.mrb[0].mxu0
  %v1979 = vadd.f32 %v354, %v1978
  %v1980 = vpop.f32.mrb[0].mxu0
  %v1981 = vpop.f32.mrb[0].mxu0
  %v1982 = vadd.f32 %v354, %v1981
  %v1983 = vpop.f32.mrb[0].mxu0
  %1984 = vmatprep.mubr.bf16.mxu0 %v1185
  %1985 = vmatmul.mubr.bf16.gmra.mrb[0].mxu0 %v1184
  %v1986 = vpop.f32.mrb[0].mxu0
  %v1987 = vadd.f32 %v354, %v1986
  %v1988 = vpop.f32.mrb[0].mxu0
  %v1989 = vpop.f32.mrb[0].mxu0
  %v1990 = vadd.f32 %v354, %v1989
  %v1991 = vpop.f32.mrb[0].mxu0
  %1992 = vmatprep.mubr.bf16.mxu0 %v1189
  %1993 = vmatmul.mubr.bf16.gmra.mrb[0].mxu0 %v1188
  %v1994 = vpop.f32.mrb[0].mxu0
  %v1995 = vadd.f32 %v354, %v1994
  %v1996 = vpop.f32.mrb[0].mxu0
  %v1997 = vpop.f32.mrb[0].mxu0
  %v1998 = vadd.f32 %v354, %v1997
  %v1999 = vpop.f32.mrb[0].mxu0
  %2000 = vmatprep.mubr.bf16.mxu0 %v1193
  %2001 = vmatmul.mubr.bf16.gmra.mrb[0].mxu0 %v1192
  %v2002 = vpop.f32.mrb[0].mxu0
  %v2003 = vadd.f32 %v354, %v2002
  %v2004 = vpop.f32.mrb[0].mxu0
  %v2005 = vpop.f32.mrb[0].mxu0
  %v2006 = vadd.f32 %v354, %v2005
  %v2007 = vpop.f32.mrb[0].mxu0
  %2008 = vmatprep.mubr.bf16.mxu0 %v1197
  %2009 = vmatmul.mubr.bf16.gmra.mrb[0].mxu0 %v1196
  %v2010 = vpop.f32.mrb[0].mxu0
  %v2011 = vadd.f32 %v354, %v2010
  %v2012 = vpop.f32.mrb[0].mxu0
  %v2013 = vpop.f32.mrb[0].mxu0
  %v2014 = vadd.f32 %v354, %v2013
  %v2015 = vpop.f32.mrb[0].mxu0
  %2016 = vmatprep.mubr.bf16.mxu0 %v1201
  %2017 = vmatmul.mubr.bf16.gmra.mrb[0].mxu0 %v1200
  %v2018 = vpop.f32.mrb[0].mxu0
  %v2019 = vadd.f32 %v354, %v2018
  %v2020 = vpop.f32.mrb[0].mxu0
  %v2021 = vpop.f32.mrb[0].mxu0
  %v2022 = vadd.f32 %v354, %v2021
  %v2023 = vpop.f32.mrb[0].mxu0
  %2024 = vmatprep.mubr.bf16.mxu0 %v1205
  %2025 = vmatmul.mubr.bf16.gmra.mrb[0].mxu0 %v1204
  %v2026 = vpop.f32.mrb[0].mxu0
  %v2027 = vadd.f32 %v354, %v2026
  %v2028 = vpop.f32.mrb[0].mxu0
  %v2029 = vpop.f32.mrb[0].mxu0
  %v2030 = vadd.f32 %v354, %v2029
  %v2031 = vpop.f32.mrb[0].mxu0
  %2032 = vmatprep.mubr.bf16.mxu0 %v1209
  %2033 = vmatmul.mubr.bf16.gmra.mrb[0].mxu0 %v1208
  %v2034 = vpop.f32.mrb[0].mxu0
  %v2035 = vadd.f32 %v354, %v2034
  %v2036 = vpop.f32.mrb[0].mxu0
  %v2037 = vpop.f32.mrb[0].mxu0
  %v2038 = vadd.f32 %v354, %v2037
  %v2039 = vpop.f32.mrb[0].mxu0
  %2040 = vmatprep.mubr.bf16.mxu0 %v1213
  %2041 = vmatmul.mubr.bf16.gmra.mrb[0].mxu0 %v1212
  %v2042 = vpop.f32.mrb[0].mxu0
  %v2043 = vadd.f32 %v354, %v2042
  %v2044 = vpop.f32.mrb[0].mxu0
  %v2045 = vpop.f32.mrb[0].mxu0
  %v2046 = vadd.f32 %v354, %v2045
  %v2047 = vpop.f32.mrb[0].mxu0
  %2048 = vmatprep.mubr.bf16.mxu0 %v1217
  %2049 = vmatmul.mubr.bf16.gmra.mrb[0].mxu0 %v1216
  %v2050 = vpop.f32.mrb[0].mxu0
  %v2051 = vadd.f32 %v354, %v2050
  %v2052 = vpop.f32.mrb[0].mxu0
  %v2053 = vpop.f32.mrb[0].mxu0
  %v2054 = vadd.f32 %v354, %v2053
  %v2055 = vpop.f32.mrb[0].mxu0
  %2056 = vmatprep.mubr.bf16.mxu0 %v1221
  %2057 = vmatmul.mubr.bf16.gmra.mrb[0].mxu0 %v1220
  %v2058 = vpop.f32.mrb[0].mxu0
  %v2059 = vadd.f32 %v354, %v2058
  %v2060 = vpop.f32.mrb[0].mxu0
  %v2061 = vpop.f32.mrb[0].mxu0
  %v2062 = vadd.f32 %v354, %v2061
  %v2063 = vpop.f32.mrb[0].mxu0
  %2064 = vmatprep.mubr.bf16.mxu0 %v1225
  %2065 = vmatmul.mubr.bf16.gmra.mrb[0].mxu0 %v1224
  %v2066 = vpop.f32.mrb[0].mxu0
  %v2067 = vadd.f32 %v354, %v2066
  %v2068 = vpop.f32.mrb[0].mxu0
  %v2069 = vpop.f32.mrb[0].mxu0
  %v2070 = vadd.f32 %v354, %v2069
  %v2071 = vpop.f32.mrb[0].mxu0
  %2072 = vmatprep.mubr.bf16.mxu0 %v1229
  %2073 = vmatmul.mubr.bf16.gmra.mrb[0].mxu0 %v1228
  %v2074 = vpop.f32.mrb[0].mxu0
  %v2075 = vadd.f32 %v354, %v2074
  %v2076 = vpop.f32.mrb[0].mxu0
  %v2077 = vpop.f32.mrb[0].mxu0
  %v2078 = vadd.f32 %v354, %v2077
  %v2079 = vpop.f32.mrb[0].mxu0
  %2080 = vmatprep.mubr.bf16.mxu0 %v1233
  %2081 = vmatmul.mubr.bf16.gmra.mrb[0].mxu0 %v1232
  %v2082 = vpop.f32.mrb[0].mxu0
  %v2083 = vadd.f32 %v354, %v2082
  %v2084 = vpop.f32.mrb[0].mxu0
  %v2085 = vpop.f32.mrb[0].mxu0
  %v2086 = vadd.f32 %v354, %v2085
  %v2087 = vpop.f32.mrb[0].mxu0
  %2088 = vmatprep.mubr.bf16.mxu0 %v1237
  %2089 = vmatmul.mubr.bf16.gmra.mrb[0].mxu0 %v1236
  %v2090 = vpop.f32.mrb[0].mxu0
  %v2091 = vadd.f32 %v354, %v2090
  %v2092 = vpop.f32.mrb[0].mxu0
  %v2093 = vpop.f32.mrb[0].mxu0
  %v2094 = vadd.f32 %v354, %v2093
  %v2095 = vpop.f32.mrb[0].mxu0
  %2096 = vmatprep.mubr.bf16.mxu0 %v1241
  %2097 = vmatmul.mubr.bf16.gmra.mrb[0].mxu0 %v1240
  %v2098 = vpop.f32.mrb[0].mxu0
  %v2099 = vadd.f32 %v354, %v2098
  %v2100 = vpop.f32.mrb[0].mxu0
  %v2101 = vpop.f32.mrb[0].mxu0
  %v2102 = vadd.f32 %v354, %v2101
  %v2103 = vpop.f32.mrb[0].mxu0
  %2104 = vmatprep.mubr.bf16.mxu0 %v1245
  %2105 = vmatmul.mubr.bf16.gmra.mrb[0].mxu0 %v1244
  %v2106 = vpop.f32.mrb[0].mxu0
  %v2107 = vadd.f32 %v354, %v2106
  %v2108 = vpop.f32.mrb[0].mxu0
  %v2109 = vpop.f32.mrb[0].mxu0
  %v2110 = vadd.f32 %v354, %v2109
  %v2111 = vpop.f32.mrb[0].mxu0
  %2112 = vmatprep.mubr.bf16.mxu0 %v1249
  %2113 = vmatmul.mubr.bf16.gmra.mrb[0].mxu0 %v1248
  %v2114 = vpop.f32.mrb[0].mxu0
  %v2115 = vadd.f32 %v354, %v2114
  %v2116 = vpop.f32.mrb[0].mxu0
  %v2117 = vpop.f32.mrb[0].mxu0
  %v2118 = vadd.f32 %v354, %v2117
  %v2119 = vpop.f32.mrb[0].mxu0
  %2120 = vmatprep.mubr.bf16.mxu0 %v1253
  %2121 = vmatmul.mubr.bf16.gmra.mrb[0].mxu0 %v1252
  %v2122 = vpop.f32.mrb[0].mxu0
  %v2123 = vadd.f32 %v354, %v2122
  %v2124 = vpop.f32.mrb[0].mxu0
  %v2125 = vpop.f32.mrb[0].mxu0
  %v2126 = vadd.f32 %v354, %v2125
  %v2127 = vpop.f32.mrb[0].mxu0
  %2128 = vmatprep.mubr.bf16.mxu0 %v1257
  %2129 = vmatmul.mubr.bf16.gmra.mrb[0].mxu0 %v1256
  %v2130 = vpop.f32.mrb[0].mxu0
  %v2131 = vadd.f32 %v354, %v2130
  %v2132 = vpop.f32.mrb[0].mxu0
  %v2133 = vpop.f32.mrb[0].mxu0
  %v2134 = vadd.f32 %v354, %v2133
  %v2135 = vpop.f32.mrb[0].mxu0
  %2136 = vmatprep.mubr.bf16.mxu0 %v1261
  %2137 = vmatmul.mubr.bf16.gmra.mrb[0].mxu0 %v1260
  %v2138 = vpop.f32.mrb[0].mxu0
  %v2139 = vadd.f32 %v354, %v2138
  %v2140 = vpop.f32.mrb[0].mxu0
  %v2141 = vpop.f32.mrb[0].mxu0
  %v2142 = vadd.f32 %v354, %v2141
  %v2143 = vpop.f32.mrb[0].mxu0
  %2144 = vmatprep.mubr.bf16.mxu0 %v1265
  %2145 = vmatmul.mubr.bf16.gmra.mrb[0].mxu0 %v1264
  %v2146 = vpop.f32.mrb[0].mxu0
  %v2147 = vadd.f32 %v354, %v2146
  %v2148 = vpop.f32.mrb[0].mxu0
  %v2149 = vpop.f32.mrb[0].mxu0
  %v2150 = vadd.f32 %v354, %v2149
  %v2151 = vpop.f32.mrb[0].mxu0
  %2152 = vmatprep.mubr.bf16.mxu0 %v1269
  %2153 = vmatmul.mubr.bf16.gmra.mrb[0].mxu0 %v1268
  %v2154 = vpop.f32.mrb[0].mxu0
  %v2155 = vadd.f32 %v354, %v2154
  %v2156 = vpop.f32.mrb[0].mxu0
  %v2157 = vpop.f32.mrb[0].mxu0
  %v2158 = vadd.f32 %v354, %v2157
  %v2159 = vpop.f32.mrb[0].mxu0
  %2160 = vmatprep.mubr.bf16.mxu0 %v1273
  %2161 = vmatmul.mubr.bf16.gmra.mrb[0].mxu0 %v1272
  %v2162 = vpop.f32.mrb[0].mxu0
  %v2163 = vadd.f32 %v354, %v2162
  %v2164 = vpop.f32.mrb[0].mxu0
  %v2165 = vpop.f32.mrb[0].mxu0
  %v2166 = vadd.f32 %v354, %v2165
  %v2167 = vpop.f32.mrb[0].mxu0
  %2168 = vmatprep.mubr.bf16.mxu0 %v1277
  %2169 = vmatmul.mubr.bf16.gmra.mrb[0].mxu0 %v1276
  %v2170 = vpop.f32.mrb[0].mxu0
  %v2171 = vadd.f32 %v354, %v2170
  %v2172 = vpop.f32.mrb[0].mxu0
  %v2173 = vpop.f32.mrb[0].mxu0
  %v2174 = vadd.f32 %v354, %v2173
  %v2175 = vpop.f32.mrb[0].mxu0
  %2176 = vmatprep.mubr.bf16.mxu0 %v1281
  %2177 = vmatmul.mubr.bf16.gmra.mrb[0].mxu0 %v1280
  %v2178 = vpop.f32.mrb[0].mxu0
  %v2179 = vadd.f32 %v354, %v2178
  %v2180 = vpop.f32.mrb[0].mxu0
  %v2181 = vpop.f32.mrb[0].mxu0
  %v2182 = vadd.f32 %v354, %v2181
  %v2183 = vpop.f32.mrb[0].mxu0
  %2184 = vmatprep.mubr.bf16.mxu0 %v1285
  %2185 = vmatmul.mubr.bf16.gmra.mrb[0].mxu0 %v1284
  %v2186 = vpop.f32.mrb[0].mxu0
  %v2187 = vadd.f32 %v354, %v2186
  %v2188 = vpop.f32.mrb[0].mxu0
  %v2189 = vpop.f32.mrb[0].mxu0
  %v2190 = vadd.f32 %v354, %v2189
  %v2191 = vpop.f32.mrb[0].mxu0
  %2192 = vmatprep.mubr.bf16.mxu0 %v1289
  %2193 = vmatmul.mubr.bf16.gmra.mrb[0].mxu0 %v1288
  %v2194 = vpop.f32.mrb[0].mxu0
  %v2195 = vadd.f32 %v354, %v2194
  %v2196 = vpop.f32.mrb[0].mxu0
  %v2197 = vpop.f32.mrb[0].mxu0
  %v2198 = vadd.f32 %v354, %v2197
  %v2199 = vpop.f32.mrb[0].mxu0
  %2200 = vmatprep.mubr.bf16.mxu0 %v1293
  %2201 = vmatmul.mubr.bf16.gmra.mrb[0].mxu0 %v1292
  %v2202 = vpop.f32.mrb[0].mxu0
  %v2203 = vadd.f32 %v354, %v2202
  %v2204 = vpop.f32.mrb[0].mxu0
  %v2205 = vpop.f32.mrb[0].mxu0
  %v2206 = vadd.f32 %v354, %v2205
  %v2207 = vpop.f32.mrb[0].mxu0
  %2208 = vmatprep.mubr.bf16.mxu0 %v1297
  %2209 = vmatmul.mubr.bf16.gmra.mrb[0].mxu0 %v1296
  %v2210 = vpop.f32.mrb[0].mxu0
  %v2211 = vadd.f32 %v354, %v2210
  %v2212 = vpop.f32.mrb[0].mxu0
  %v2213 = vpop.f32.mrb[0].mxu0
  %v2214 = vadd.f32 %v354, %v2213
  %v2215 = vpop.f32.mrb[0].mxu0
  %2216 = vmatprep.mubr.bf16.mxu0 %v1301
  %2217 = vmatmul.mubr.bf16.gmra.mrb[0].mxu0 %v1300
  %v2218 = vpop.f32.mrb[0].mxu0
  %v2219 = vadd.f32 %v354, %v2218
  %v2220 = vpop.f32.mrb[0].mxu0
  %v2221 = vpop.f32.mrb[0].mxu0
  %v2222 = vadd.f32 %v354, %v2221
  %v2223 = vpop.f32.mrb[0].mxu0
  %2224 = vmatprep.mubr.bf16.mxu0 %v1305
  %2225 = vmatmul.mubr.bf16.gmra.mrb[0].mxu0 %v1304
  %v2226 = vpop.f32.mrb[0].mxu0
  %v2227 = vadd.f32 %v354, %v2226
  %v2228 = vpop.f32.mrb[0].mxu0
  %v2229 = vpop.f32.mrb[0].mxu0
  %v2230 = vadd.f32 %v354, %v2229
  %v2231 = vpop.f32.mrb[0].mxu0
  %2232 = vmatprep.mubr.bf16.mxu0 %v1309
  %2233 = vmatmul.mubr.bf16.gmra.mrb[0].mxu0 %v1308
  %v2234 = vpop.f32.mrb[0].mxu0
  %v2235 = vadd.f32 %v354, %v2234
  %v2236 = vpop.f32.mrb[0].mxu0
  %v2237 = vpop.f32.mrb[0].mxu0
  %v2238 = vadd.f32 %v354, %v2237
  %v2239 = vpop.f32.mrb[0].mxu0
  %2240 = vmatprep.mubr.bf16.mxu0 %v1313
  %2241 = vmatmul.mubr.bf16.gmra.mrb[0].mxu0 %v1312
  %v2242 = vpop.f32.mrb[0].mxu0
  %v2243 = vadd.f32 %v354, %v2242
  %v2244 = vpop.f32.mrb[0].mxu0
  %v2245 = vpop.f32.mrb[0].mxu0
  %v2246 = vadd.f32 %v354, %v2245
  %v2247 = vpop.f32.mrb[0].mxu0
  %2248 = vmatprep.mubr.bf16.mxu0 %v1317
  %2249 = vmatmul.mubr.bf16.gmra.mrb[0].mxu0 %v1316
  %v2250 = vpop.f32.mrb[0].mxu0
  %v2251 = vadd.f32 %v354, %v2250
  %v2252 = vpop.f32.mrb[0].mxu0
  %v2253 = vpop.f32.mrb[0].mxu0
  %v2254 = vadd.f32 %v354, %v2253
  %v2255 = vpop.f32.mrb[0].mxu0
  %2256 = vmatprep.mubr.bf16.mxu0 %v1321
  %2257 = vmatmul.mubr.bf16.gmra.mrb[0].mxu0 %v1320
  %v2258 = vpop.f32.mrb[0].mxu0
  %v2259 = vadd.f32 %v354, %v2258
  %v2260 = vpop.f32.mrb[0].mxu0
  %v2261 = vpop.f32.mrb[0].mxu0
  %v2262 = vadd.f32 %v354, %v2261
  %v2263 = vpop.f32.mrb[0].mxu0
  %2264 = vmatprep.mubr.bf16.mxu0 %v1325
  %2265 = vmatmul.mubr.bf16.gmra.mrb[0].mxu0 %v1324
  %v2266 = vpop.f32.mrb[0].mxu0
  %v2267 = vadd.f32 %v354, %v2266
  %v2268 = vpop.f32.mrb[0].mxu0
  %v2269 = vpop.f32.mrb[0].mxu0
  %v2270 = vadd.f32 %v354, %v2269
  %v2271 = vpop.f32.mrb[0].mxu0
  %2272 = vmatprep.mubr.bf16.mxu0 %v1329
  %2273 = vmatmul.mubr.bf16.gmra.mrb[0].mxu0 %v1328
  %v2274 = vpop.f32.mrb[0].mxu0
  %v2275 = vadd.f32 %v354, %v2274
  %v2276 = vpop.f32.mrb[0].mxu0
  %v2277 = vpop.f32.mrb[0].mxu0
  %v2278 = vadd.f32 %v354, %v2277
  %v2279 = vpop.f32.mrb[0].mxu0
  %2280 = vmatprep.mubr.bf16.mxu0 %v1333
  %2281 = vmatmul.mubr.bf16.gmra.mrb[0].mxu0 %v1332
  %v2282 = vpop.f32.mrb[0].mxu0
  %v2283 = vadd.f32 %v354, %v2282
  %v2284 = vpop.f32.mrb[0].mxu0
  %v2285 = vpop.f32.mrb[0].mxu0
  %v2286 = vadd.f32 %v354, %v2285
  %v2287 = vpop.f32.mrb[0].mxu0
  %2288 = vmatprep.mubr.bf16.mxu0 %v1337
  %2289 = vmatmul.mubr.bf16.gmra.mrb[0].mxu0 %v1336
  %v2290 = vpop.f32.mrb[0].mxu0
  %v2291 = vadd.f32 %v354, %v2290
  %v2292 = vpop.f32.mrb[0].mxu0
  %v2293 = vpop.f32.mrb[0].mxu0
  %v2294 = vadd.f32 %v354, %v2293
  %v2295 = vpop.f32.mrb[0].mxu0
  %2296 = vmatprep.mubr.bf16.mxu0 %v1341
  %2297 = vmatmul.mubr.bf16.gmra.mrb[0].mxu0 %v1340
  %v2298 = vpop.f32.mrb[0].mxu0
  %v2299 = vadd.f32 %v354, %v2298
  %v2300 = vpop.f32.mrb[0].mxu0
  %v2301 = vpop.f32.mrb[0].mxu0
  %v2302 = vadd.f32 %v354, %v2301
  %v2303 = vpop.f32.mrb[0].mxu0
  %2304 = vmatprep.mubr.bf16.mxu0 %v1345
  %2305 = vmatmul.mubr.bf16.gmra.mrb[0].mxu0 %v1344
  %v2306 = vpop.f32.mrb[0].mxu0
  %v2307 = vadd.f32 %v354, %v2306
  %v2308 = vpop.f32.mrb[0].mxu0
  %v2309 = vpop.f32.mrb[0].mxu0
  %v2310 = vadd.f32 %v354, %v2309
  %v2311 = vpop.f32.mrb[0].mxu0
  %2312 = vmatprep.mubr.bf16.mxu0 %v1349
  %2313 = vmatmul.mubr.bf16.gmra.mrb[0].mxu0 %v1348
  %v2314 = vpop.f32.mrb[0].mxu0
  %v2315 = vadd.f32 %v354, %v2314
  %v2316 = vpop.f32.mrb[0].mxu0
  %v2317 = vpop.f32.mrb[0].mxu0
  %v2318 = vadd.f32 %v354, %v2317
  %v2319 = vpop.f32.mrb[0].mxu0
  %2320 = vmatprep.mubr.bf16.mxu0 %v1353
  %2321 = vmatmul.mubr.bf16.gmra.mrb[0].mxu0 %v1352
  %v2322 = vpop.f32.mrb[0].mxu0
  %v2323 = vadd.f32 %v354, %v2322
  %v2324 = vpop.f32.mrb[0].mxu0
  %v2325 = vpop.f32.mrb[0].mxu0
  %v2326 = vadd.f32 %v354, %v2325
  %v2327 = vpop.f32.mrb[0].mxu0
  %2328 = vmatprep.mubr.bf16.mxu0 %v1357
  %2329 = vmatmul.mubr.bf16.gmra.mrb[0].mxu0 %v1356
  %v2330 = vpop.f32.mrb[0].mxu0
  %v2331 = vadd.f32 %v354, %v2330
  %v2332 = vpop.f32.mrb[0].mxu0
  %v2333 = vpop.f32.mrb[0].mxu0
  %v2334 = vadd.f32 %v354, %v2333
  %v2335 = vpop.f32.mrb[0].mxu0
  %2336 = vmatprep.mubr.bf16.mxu0 %v1361
  %2337 = vmatmul.mubr.bf16.gmra.mrb[0].mxu0 %v1360
  %v2338 = vpop.f32.mrb[0].mxu0
  %v2339 = vadd.f32 %v354, %v2338
  %v2340 = vpop.f32.mrb[0].mxu0
  %v2341 = vpop.f32.mrb[0].mxu0
  %v2342 = vadd.f32 %v354, %v2341
  %v2343 = vpop.f32.mrb[0].mxu0
  %2344 = vdwg.mxu0
  %2345 = vmatprep.subr.bf16.mxu0 0
  %2346 = vmatpush1.bf16.msra.mxu0 %v1760
  %2347 = vmatprep.subr.bf16.mxu0 0
  %2348 = vmatpush1.bf16.msra.mxu0 %v1761
  %2349 = vmatprep.subr.bf16.mxu0 0
  %2350 = vmatpush1.bf16.msra.mxu0 %v1762
  %2351 = vmatprep.subr.bf16.mxu0 0
  %2352 = vmatpush1.bf16.msra.mxu0 %v1763
  %2353 = vmatprep.subr.bf16.mxu0 0
  %2354 = vmatpush1.bf16.msra.mxu0 %v1764
  %2355 = vmatprep.subr.bf16.mxu0 0
  %2356 = vmatpush1.bf16.msra.mxu0 %v1765
  %2357 = vmatprep.subr.bf16.mxu0 0
  %2358 = vmatpush1.bf16.msra.mxu0 %v1766
  %2359 = vmatprep.subr.bf16.mxu0 0
  %2360 = vmatpush1.bf16.msra.mxu0 %v1767
  %2361 = vmatprep.subr.bf16.mxu0 0
  %2362 = vmatpush1.bf16.msra.mxu0 %v1768
  %2363 = vmatprep.subr.bf16.mxu0 0
  %2364 = vmatpush1.bf16.msra.mxu0 %v1769
  %2365 = vmatprep.subr.bf16.mxu0 0
  %2366 = vmatpush1.bf16.msra.mxu0 %v1770
  %2367 = vmatprep.subr.bf16.mxu0 0
  %2368 = vmatpush1.bf16.msra.mxu0 %v1771
  %2369 = vmatprep.subr.bf16.mxu0 0
  %2370 = vmatpush1.bf16.msra.mxu0 %v1772
  %2371 = vmatprep.subr.bf16.mxu0 0
  %2372 = vmatpush1.bf16.msra.mxu0 %v1773
  %2373 = vmatprep.subr.bf16.mxu0 0
  %2374 = vmatpush1.bf16.msra.mxu0 %v1774
  %2375 = vmatprep.subr.bf16.mxu0 0
  %2376 = vmatpush1.bf16.msra.mxu0 %v1775
  %2377 = vmatprep.mubr.bf16.mxu0 %v1115
  %2378 = vmatmul.mubr.bf16.gmra.mrb[0].mxu0 %v1114
  %v2379 = vpop.f32.mrb[0].mxu0
  %v2380 = vadd.f32 %v1843, %v2379
  %v2381 = vpop.f32.mrb[0].mxu0
  %v2382 = vpop.f32.mrb[0].mxu0
  %v2383 = vadd.f32 %v1846, %v2382
  %v2384 = vpop.f32.mrb[0].mxu0
  %2385 = vmatprep.mubr.bf16.mxu0 %v1119
  %2386 = vmatmul.mubr.bf16.gmra.mrb[0].mxu0 %v1118
  %v2387 = vpop.f32.mrb[0].mxu0
  %v2388 = vadd.f32 %v1851, %v2387
  %v2389 = vpop.f32.mrb[0].mxu0
  %v2390 = vpop.f32.mrb[0].mxu0
  %v2391 = vadd.f32 %v1854, %v2390
  %v2392 = vpop.f32.mrb[0].mxu0
  %2393 = vmatprep.mubr.bf16.mxu0 %v1123
  %2394 = vmatmul.mubr.bf16.gmra.mrb[0].mxu0 %v1122
  %v2395 = vpop.f32.mrb[0].mxu0
  %v2396 = vadd.f32 %v1859, %v2395
  %v2397 = vpop.f32.mrb[0].mxu0
  %v2398 = vpop.f32.mrb[0].mxu0
  %v2399 = vadd.f32 %v1862, %v2398
  %v2400 = vpop.f32.mrb[0].mxu0
  %2401 = vmatprep.mubr.bf16.mxu0 %v1127
  %2402 = vmatmul.mubr.bf16.gmra.mrb[0].mxu0 %v1126
  %v2403 = vpop.f32.mrb[0].mxu0
  %v2404 = vadd.f32 %v1867, %v2403
  %v2405 = vpop.f32.mrb[0].mxu0
  %v2406 = vpop.f32.mrb[0].mxu0
  %v2407 = vadd.f32 %v1870, %v2406
  %v2408 = vpop.f32.mrb[0].mxu0
  %2409 = vmatprep.mubr.bf16.mxu0 %v1131
  %2410 = vmatmul.mubr.bf16.gmra.mrb[0].mxu0 %v1130
  %v2411 = vpop.f32.mrb[0].mxu0
  %v2412 = vadd.f32 %v1875, %v2411
  %v2413 = vpop.f32.mrb[0].mxu0
  %v2414 = vpop.f32.mrb[0].mxu0
  %v2415 = vadd.f32 %v1878, %v2414
  %v2416 = vpop.f32.mrb[0].mxu0
  %2417 = vmatprep.mubr.bf16.mxu0 %v1135
  %2418 = vmatmul.mubr.bf16.gmra.mrb[0].mxu0 %v1134
  %v2419 = vpop.f32.mrb[0].mxu0
  %v2420 = vadd.f32 %v1883, %v2419
  %v2421 = vpop.f32.mrb[0].mxu0
  %v2422 = vpop.f32.mrb[0].mxu0
  %v2423 = vadd.f32 %v1886, %v2422
  %v2424 = vpop.f32.mrb[0].mxu0
  %2425 = vmatprep.mubr.bf16.mxu0 %v1139
  %2426 = vmatmul.mubr.bf16.gmra.mrb[0].mxu0 %v1138
  %v2427 = vpop.f32.mrb[0].mxu0
  %v2428 = vadd.f32 %v1891, %v2427
  %v2429 = vpop.f32.mrb[0].mxu0
  %v2430 = vpop.f32.mrb[0].mxu0
  %v2431 = vadd.f32 %v1894, %v2430
  %v2432 = vpop.f32.mrb[0].mxu0
  %2433 = vmatprep.mubr.bf16.mxu0 %v1143
  %2434 = vmatmul.mubr.bf16.gmra.mrb[0].mxu0 %v1142
  %v2435 = vpop.f32.mrb[0].mxu0
  %v2436 = vadd.f32 %v1899, %v2435
  %v2437 = vpop.f32.mrb[0].mxu0
  %v2438 = vpop.f32.mrb[0].mxu0
  %v2439 = vadd.f32 %v1902, %v2438
  %v2440 = vpop.f32.mrb[0].mxu0
  %2441 = vmatprep.mubr.bf16.mxu0 %v1147
  %2442 = vmatmul.mubr.bf16.gmra.mrb[0].mxu0 %v1146
  %v2443 = vpop.f32.mrb[0].mxu0
  %v2444 = vadd.f32 %v1907, %v2443
  %v2445 = vpop.f32.mrb[0].mxu0
  %v2446 = vpop.f32.mrb[0].mxu0
  %v2447 = vadd.f32 %v1910, %v2446
  %v2448 = vpop.f32.mrb[0].mxu0
  %2449 = vmatprep.mubr.bf16.mxu0 %v1151
  %2450 = vmatmul.mubr.bf16.gmra.mrb[0].mxu0 %v1150
  %v2451 = vpop.f32.mrb[0].mxu0
  %v2452 = vadd.f32 %v1915, %v2451
  %v2453 = vpop.f32.mrb[0].mxu0
  %v2454 = vpop.f32.mrb[0].mxu0
  %v2455 = vadd.f32 %v1918, %v2454
  %v2456 = vpop.f32.mrb[0].mxu0
  %2457 = vmatprep.mubr.bf16.mxu0 %v1155
  %2458 = vmatmul.mubr.bf16.gmra.mrb[0].mxu0 %v1154
  %v2459 = vpop.f32.mrb[0].mxu0
  %v2460 = vadd.f32 %v1923, %v2459
  %v2461 = vpop.f32.mrb[0].mxu0
  %v2462 = vpop.f32.mrb[0].mxu0
  %v2463 = vadd.f32 %v1926, %v2462
  %v2464 = vpop.f32.mrb[0].mxu0
  %2465 = vmatprep.mubr.bf16.mxu0 %v1159
  %2466 = vmatmul.mubr.bf16.gmra.mrb[0].mxu0 %v1158
  %v2467 = vpop.f32.mrb[0].mxu0
  %v2468 = vadd.f32 %v1931, %v2467
  %v2469 = vpop.f32.mrb[0].mxu0
  %v2470 = vpop.f32.mrb[0].mxu0
  %v2471 = vadd.f32 %v1934, %v2470
  %v2472 = vpop.f32.mrb[0].mxu0
  %2473 = vmatprep.mubr.bf16.mxu0 %v1163
  %2474 = vmatmul.mubr.bf16.gmra.mrb[0].mxu0 %v1162
  %v2475 = vpop.f32.mrb[0].mxu0
  %v2476 = vadd.f32 %v1939, %v2475
  %v2477 = vpop.f32.mrb[0].mxu0
  %v2478 = vpop.f32.mrb[0].mxu0
  %v2479 = vadd.f32 %v1942, %v2478
  %v2480 = vpop.f32.mrb[0].mxu0
  %2481 = vmatprep.mubr.bf16.mxu0 %v1167
  %2482 = vmatmul.mubr.bf16.gmra.mrb[0].mxu0 %v1166
  %v2483 = vpop.f32.mrb[0].mxu0
  %v2484 = vadd.f32 %v1947, %v2483
  %v2485 = vpop.f32.mrb[0].mxu0
  %v2486 = vpop.f32.mrb[0].mxu0
  %v2487 = vadd.f32 %v1950, %v2486
  %v2488 = vpop.f32.mrb[0].mxu0
  %2489 = vmatprep.mubr.bf16.mxu0 %v1171
  %2490 = vmatmul.mubr.bf16.gmra.mrb[0].mxu0 %v1170
  %v2491 = vpop.f32.mrb[0].mxu0
  %v2492 = vadd.f32 %v1955, %v2491
  %v2493 = vpop.f32.mrb[0].mxu0
  %v2494 = vpop.f32.mrb[0].mxu0
  %v2495 = vadd.f32 %v1958, %v2494
  %v2496 = vpop.f32.mrb[0].mxu0
  %2497 = vmatprep.mubr.bf16.mxu0 %v1175
  %2498 = vmatmul.mubr.bf16.gmra.mrb[0].mxu0 %v1174
  %v2499 = vpop.f32.mrb[0].mxu0
  %v2500 = vadd.f32 %v1963, %v2499
  %v2501 = vpop.f32.mrb[0].mxu0
  %v2502 = vpop.f32.mrb[0].mxu0
  %v2503 = vadd.f32 %v1966, %v2502
  %v2504 = vpop.f32.mrb[0].mxu0
  %2505 = vmatprep.mubr.bf16.mxu0 %v1179
  %2506 = vmatmul.mubr.bf16.gmra.mrb[0].mxu0 %v1178
  %v2507 = vpop.f32.mrb[0].mxu0
  %v2508 = vadd.f32 %v1971, %v2507
  %v2509 = vpop.f32.mrb[0].mxu0
  %v2510 = vpop.f32.mrb[0].mxu0
  %v2511 = vadd.f32 %v1974, %v2510
  %v2512 = vpop.f32.mrb[0].mxu0
  %2513 = vmatprep.mubr.bf16.mxu0 %v1183
  %2514 = vmatmul.mubr.bf16.gmra.mrb[0].mxu0 %v1182
  %v2515 = vpop.f32.mrb[0].mxu0
  %v2516 = vadd.f32 %v1979, %v2515
  %v2517 = vpop.f32.mrb[0].mxu0
  %v2518 = vpop.f32.mrb[0].mxu0
  %v2519 = vadd.f32 %v1982, %v2518
  %v2520 = vpop.f32.mrb[0].mxu0
  %2521 = vmatprep.mubr.bf16.mxu0 %v1187
  %2522 = vmatmul.mubr.bf16.gmra.mrb[0].mxu0 %v1186
  %v2523 = vpop.f32.mrb[0].mxu0
  %v2524 = vadd.f32 %v1987, %v2523
  %v2525 = vpop.f32.mrb[0].mxu0
  %v2526 = vpop.f32.mrb[0].mxu0
  %v2527 = vadd.f32 %v1990, %v2526
  %v2528 = vpop.f32.mrb[0].mxu0
  %2529 = vmatprep.mubr.bf16.mxu0 %v1191
  %2530 = vmatmul.mubr.bf16.gmra.mrb[0].mxu0 %v1190
  %v2531 = vpop.f32.mrb[0].mxu0
  %v2532 = vadd.f32 %v1995, %v2531
  %v2533 = vpop.f32.mrb[0].mxu0
  %v2534 = vpop.f32.mrb[0].mxu0
  %v2535 = vadd.f32 %v1998, %v2534
  %v2536 = vpop.f32.mrb[0].mxu0
  %2537 = vmatprep.mubr.bf16.mxu0 %v1195
  %2538 = vmatmul.mubr.bf16.gmra.mrb[0].mxu0 %v1194
  %v2539 = vpop.f32.mrb[0].mxu0
  %v2540 = vadd.f32 %v2003, %v2539
  %v2541 = vpop.f32.mrb[0].mxu0
  %v2542 = vpop.f32.mrb[0].mxu0
  %v2543 = vadd.f32 %v2006, %v2542
  %v2544 = vpop.f32.mrb[0].mxu0
  %2545 = vmatprep.mubr.bf16.mxu0 %v1199
  %2546 = vmatmul.mubr.bf16.gmra.mrb[0].mxu0 %v1198
  %v2547 = vpop.f32.mrb[0].mxu0
  %v2548 = vadd.f32 %v2011, %v2547
  %v2549 = vpop.f32.mrb[0].mxu0
  %v2550 = vpop.f32.mrb[0].mxu0
  %v2551 = vadd.f32 %v2014, %v2550
  %v2552 = vpop.f32.mrb[0].mxu0
  %2553 = vmatprep.mubr.bf16.mxu0 %v1203
  %2554 = vmatmul.mubr.bf16.gmra.mrb[0].mxu0 %v1202
  %v2555 = vpop.f32.mrb[0].mxu0
  %v2556 = vadd.f32 %v2019, %v2555
  %v2557 = vpop.f32.mrb[0].mxu0
  %v2558 = vpop.f32.mrb[0].mxu0
  %v2559 = vadd.f32 %v2022, %v2558
  %v2560 = vpop.f32.mrb[0].mxu0
  %2561 = vmatprep.mubr.bf16.mxu0 %v1207
  %2562 = vmatmul.mubr.bf16.gmra.mrb[0].mxu0 %v1206
  %v2563 = vpop.f32.mrb[0].mxu0
  %v2564 = vadd.f32 %v2027, %v2563
  %v2565 = vpop.f32.mrb[0].mxu0
  %v2566 = vpop.f32.mrb[0].mxu0
  %v2567 = vadd.f32 %v2030, %v2566
  %v2568 = vpop.f32.mrb[0].mxu0
  %2569 = vmatprep.mubr.bf16.mxu0 %v1211
  %2570 = vmatmul.mubr.bf16.gmra.mrb[0].mxu0 %v1210
  %v2571 = vpop.f32.mrb[0].mxu0
  %v2572 = vadd.f32 %v2035, %v2571
  %v2573 = vpop.f32.mrb[0].mxu0
  %v2574 = vpop.f32.mrb[0].mxu0
  %v2575 = vadd.f32 %v2038, %v2574
  %v2576 = vpop.f32.mrb[0].mxu0
  %2577 = vmatprep.mubr.bf16.mxu0 %v1215
  %2578 = vmatmul.mubr.bf16.gmra.mrb[0].mxu0 %v1214
  %v2579 = vpop.f32.mrb[0].mxu0
  %v2580 = vadd.f32 %v2043, %v2579
  %v2581 = vpop.f32.mrb[0].mxu0
  %v2582 = vpop.f32.mrb[0].mxu0
  %v2583 = vadd.f32 %v2046, %v2582
  %v2584 = vpop.f32.mrb[0].mxu0
  %2585 = vmatprep.mubr.bf16.mxu0 %v1219
  %2586 = vmatmul.mubr.bf16.gmra.mrb[0].mxu0 %v1218
  %v2587 = vpop.f32.mrb[0].mxu0
  %v2588 = vadd.f32 %v2051, %v2587
  %v2589 = vpop.f32.mrb[0].mxu0
  %v2590 = vpop.f32.mrb[0].mxu0
  %v2591 = vadd.f32 %v2054, %v2590
  %v2592 = vpop.f32.mrb[0].mxu0
  %2593 = vmatprep.mubr.bf16.mxu0 %v1223
  %2594 = vmatmul.mubr.bf16.gmra.mrb[0].mxu0 %v1222
  %v2595 = vpop.f32.mrb[0].mxu0
  %v2596 = vadd.f32 %v2059, %v2595
  %v2597 = vpop.f32.mrb[0].mxu0
  %v2598 = vpop.f32.mrb[0].mxu0
  %v2599 = vadd.f32 %v2062, %v2598
  %v2600 = vpop.f32.mrb[0].mxu0
  %2601 = vmatprep.mubr.bf16.mxu0 %v1227
  %2602 = vmatmul.mubr.bf16.gmra.mrb[0].mxu0 %v1226
  %v2603 = vpop.f32.mrb[0].mxu0
  %v2604 = vadd.f32 %v2067, %v2603
  %v2605 = vpop.f32.mrb[0].mxu0
  %v2606 = vpop.f32.mrb[0].mxu0
  %v2607 = vadd.f32 %v2070, %v2606
  %v2608 = vpop.f32.mrb[0].mxu0
  %2609 = vmatprep.mubr.bf16.mxu0 %v1231
  %2610 = vmatmul.mubr.bf16.gmra.mrb[0].mxu0 %v1230
  %v2611 = vpop.f32.mrb[0].mxu0
  %v2612 = vadd.f32 %v2075, %v2611
  %v2613 = vpop.f32.mrb[0].mxu0
  %v2614 = vpop.f32.mrb[0].mxu0
  %v2615 = vadd.f32 %v2078, %v2614
  %v2616 = vpop.f32.mrb[0].mxu0
  %2617 = vmatprep.mubr.bf16.mxu0 %v1235
  %2618 = vmatmul.mubr.bf16.gmra.mrb[0].mxu0 %v1234
  %v2619 = vpop.f32.mrb[0].mxu0
  %v2620 = vadd.f32 %v2083, %v2619
  %v2621 = vpop.f32.mrb[0].mxu0
  %v2622 = vpop.f32.mrb[0].mxu0
  %v2623 = vadd.f32 %v2086, %v2622
  %v2624 = vpop.f32.mrb[0].mxu0
  %2625 = vmatprep.mubr.bf16.mxu0 %v1239
  %2626 = vmatmul.mubr.bf16.gmra.mrb[0].mxu0 %v1238
  %v2627 = vpop.f32.mrb[0].mxu0
  %v2628 = vadd.f32 %v2091, %v2627
  %v2629 = vpop.f32.mrb[0].mxu0
  %v2630 = vpop.f32.mrb[0].mxu0
  %v2631 = vadd.f32 %v2094, %v2630
  %v2632 = vpop.f32.mrb[0].mxu0
  %2633 = vmatprep.mubr.bf16.mxu0 %v1243
  %2634 = vmatmul.mubr.bf16.gmra.mrb[0].mxu0 %v1242
  %v2635 = vpop.f32.mrb[0].mxu0
  %v2636 = vadd.f32 %v2099, %v2635
  %v2637 = vpop.f32.mrb[0].mxu0
  %v2638 = vpop.f32.mrb[0].mxu0
  %v2639 = vadd.f32 %v2102, %v2638
  %v2640 = vpop.f32.mrb[0].mxu0
  %2641 = vmatprep.mubr.bf16.mxu0 %v1247
  %2642 = vmatmul.mubr.bf16.gmra.mrb[0].mxu0 %v1246
  %v2643 = vpop.f32.mrb[0].mxu0
  %v2644 = vadd.f32 %v2107, %v2643
  %v2645 = vpop.f32.mrb[0].mxu0
  %v2646 = vpop.f32.mrb[0].mxu0
  %v2647 = vadd.f32 %v2110, %v2646
  %v2648 = vpop.f32.mrb[0].mxu0
  %2649 = vmatprep.mubr.bf16.mxu0 %v1251
  %2650 = vmatmul.mubr.bf16.gmra.mrb[0].mxu0 %v1250
  %v2651 = vpop.f32.mrb[0].mxu0
  %v2652 = vadd.f32 %v2115, %v2651
  %v2653 = vpop.f32.mrb[0].mxu0
  %v2654 = vpop.f32.mrb[0].mxu0
  %v2655 = vadd.f32 %v2118, %v2654
  %v2656 = vpop.f32.mrb[0].mxu0
  %2657 = vmatprep.mubr.bf16.mxu0 %v1255
  %2658 = vmatmul.mubr.bf16.gmra.mrb[0].mxu0 %v1254
  %v2659 = vpop.f32.mrb[0].mxu0
  %v2660 = vadd.f32 %v2123, %v2659
  %v2661 = vpop.f32.mrb[0].mxu0
  %v2662 = vpop.f32.mrb[0].mxu0
  %v2663 = vadd.f32 %v2126, %v2662
  %v2664 = vpop.f32.mrb[0].mxu0
  %2665 = vmatprep.mubr.bf16.mxu0 %v1259
  %2666 = vmatmul.mubr.bf16.gmra.mrb[0].mxu0 %v1258
  %v2667 = vpop.f32.mrb[0].mxu0
  %v2668 = vadd.f32 %v2131, %v2667
  %v2669 = vpop.f32.mrb[0].mxu0
  %v2670 = vpop.f32.mrb[0].mxu0
  %v2671 = vadd.f32 %v2134, %v2670
  %v2672 = vpop.f32.mrb[0].mxu0
  %2673 = vmatprep.mubr.bf16.mxu0 %v1263
  %2674 = vmatmul.mubr.bf16.gmra.mrb[0].mxu0 %v1262
  %v2675 = vpop.f32.mrb[0].mxu0
  %v2676 = vadd.f32 %v2139, %v2675
  %v2677 = vpop.f32.mrb[0].mxu0
  %v2678 = vpop.f32.mrb[0].mxu0
  %v2679 = vadd.f32 %v2142, %v2678
  %v2680 = vpop.f32.mrb[0].mxu0
  %2681 = vmatprep.mubr.bf16.mxu0 %v1267
  %2682 = vmatmul.mubr.bf16.gmra.mrb[0].mxu0 %v1266
  %v2683 = vpop.f32.mrb[0].mxu0
  %v2684 = vadd.f32 %v2147, %v2683
  %v2685 = vpop.f32.mrb[0].mxu0
  %v2686 = vpop.f32.mrb[0].mxu0
  %v2687 = vadd.f32 %v2150, %v2686
  %v2688 = vpop.f32.mrb[0].mxu0
  %2689 = vmatprep.mubr.bf16.mxu0 %v1271
  %2690 = vmatmul.mubr.bf16.gmra.mrb[0].mxu0 %v1270
  %v2691 = vpop.f32.mrb[0].mxu0
  %v2692 = vadd.f32 %v2155, %v2691
  %v2693 = vpop.f32.mrb[0].mxu0
  %v2694 = vpop.f32.mrb[0].mxu0
  %v2695 = vadd.f32 %v2158, %v2694
  %v2696 = vpop.f32.mrb[0].mxu0
  %2697 = vmatprep.mubr.bf16.mxu0 %v1275
  %2698 = vmatmul.mubr.bf16.gmra.mrb[0].mxu0 %v1274
  %v2699 = vpop.f32.mrb[0].mxu0
  %v2700 = vadd.f32 %v2163, %v2699
  %v2701 = vpop.f32.mrb[0].mxu0
  %v2702 = vpop.f32.mrb[0].mxu0
  %v2703 = vadd.f32 %v2166, %v2702
  %v2704 = vpop.f32.mrb[0].mxu0
  %2705 = vmatprep.mubr.bf16.mxu0 %v1279
  %2706 = vmatmul.mubr.bf16.gmra.mrb[0].mxu0 %v1278
  %v2707 = vpop.f32.mrb[0].mxu0
  %v2708 = vadd.f32 %v2171, %v2707
  %v2709 = vpop.f32.mrb[0].mxu0
  %v2710 = vpop.f32.mrb[0].mxu0
  %v2711 = vadd.f32 %v2174, %v2710
  %v2712 = vpop.f32.mrb[0].mxu0
  %2713 = vmatprep.mubr.bf16.mxu0 %v1283
  %2714 = vmatmul.mubr.bf16.gmra.mrb[0].mxu0 %v1282
  %v2715 = vpop.f32.mrb[0].mxu0
  %v2716 = vadd.f32 %v2179, %v2715
  %v2717 = vpop.f32.mrb[0].mxu0
  %v2718 = vpop.f32.mrb[0].mxu0
  %v2719 = vadd.f32 %v2182, %v2718
  %v2720 = vpop.f32.mrb[0].mxu0
  %2721 = vmatprep.mubr.bf16.mxu0 %v1287
  %2722 = vmatmul.mubr.bf16.gmra.mrb[0].mxu0 %v1286
  %v2723 = vpop.f32.mrb[0].mxu0
  %v2724 = vadd.f32 %v2187, %v2723
  %v2725 = vpop.f32.mrb[0].mxu0
  %v2726 = vpop.f32.mrb[0].mxu0
  %v2727 = vadd.f32 %v2190, %v2726
  %v2728 = vpop.f32.mrb[0].mxu0
  %2729 = vmatprep.mubr.bf16.mxu0 %v1291
  %2730 = vmatmul.mubr.bf16.gmra.mrb[0].mxu0 %v1290
  %v2731 = vpop.f32.mrb[0].mxu0
  %v2732 = vadd.f32 %v2195, %v2731
  %v2733 = vpop.f32.mrb[0].mxu0
  %v2734 = vpop.f32.mrb[0].mxu0
  %v2735 = vadd.f32 %v2198, %v2734
  %v2736 = vpop.f32.mrb[0].mxu0
  %2737 = vmatprep.mubr.bf16.mxu0 %v1295
  %2738 = vmatmul.mubr.bf16.gmra.mrb[0].mxu0 %v1294
  %v2739 = vpop.f32.mrb[0].mxu0
  %v2740 = vadd.f32 %v2203, %v2739
  %v2741 = vpop.f32.mrb[0].mxu0
  %v2742 = vpop.f32.mrb[0].mxu0
  %v2743 = vadd.f32 %v2206, %v2742
  %v2744 = vpop.f32.mrb[0].mxu0
  %2745 = vmatprep.mubr.bf16.mxu0 %v1299
  %2746 = vmatmul.mubr.bf16.gmra.mrb[0].mxu0 %v1298
  %v2747 = vpop.f32.mrb[0].mxu0
  %v2748 = vadd.f32 %v2211, %v2747
  %v2749 = vpop.f32.mrb[0].mxu0
  %v2750 = vpop.f32.mrb[0].mxu0
  %v2751 = vadd.f32 %v2214, %v2750
  %v2752 = vpop.f32.mrb[0].mxu0
  %2753 = vmatprep.mubr.bf16.mxu0 %v1303
  %2754 = vmatmul.mubr.bf16.gmra.mrb[0].mxu0 %v1302
  %v2755 = vpop.f32.mrb[0].mxu0
  %v2756 = vadd.f32 %v2219, %v2755
  %v2757 = vpop.f32.mrb[0].mxu0
  %v2758 = vpop.f32.mrb[0].mxu0
  %v2759 = vadd.f32 %v2222, %v2758
  %v2760 = vpop.f32.mrb[0].mxu0
  %2761 = vmatprep.mubr.bf16.mxu0 %v1307
  %2762 = vmatmul.mubr.bf16.gmra.mrb[0].mxu0 %v1306
  %v2763 = vpop.f32.mrb[0].mxu0
  %v2764 = vadd.f32 %v2227, %v2763
  %v2765 = vpop.f32.mrb[0].mxu0
  %v2766 = vpop.f32.mrb[0].mxu0
  %v2767 = vadd.f32 %v2230, %v2766
  %v2768 = vpop.f32.mrb[0].mxu0
  %2769 = vmatprep.mubr.bf16.mxu0 %v1311
  %2770 = vmatmul.mubr.bf16.gmra.mrb[0].mxu0 %v1310
  %v2771 = vpop.f32.mrb[0].mxu0
  %v2772 = vadd.f32 %v2235, %v2771
  %v2773 = vpop.f32.mrb[0].mxu0
  %v2774 = vpop.f32.mrb[0].mxu0
  %v2775 = vadd.f32 %v2238, %v2774
  %v2776 = vpop.f32.mrb[0].mxu0
  %2777 = vmatprep.mubr.bf16.mxu0 %v1315
  %2778 = vmatmul.mubr.bf16.gmra.mrb[0].mxu0 %v1314
  %v2779 = vpop.f32.mrb[0].mxu0
  %v2780 = vadd.f32 %v2243, %v2779
  %v2781 = vpop.f32.mrb[0].mxu0
  %v2782 = vpop.f32.mrb[0].mxu0
  %v2783 = vadd.f32 %v2246, %v2782
  %v2784 = vpop.f32.mrb[0].mxu0
  %2785 = vmatprep.mubr.bf16.mxu0 %v1319
  %2786 = vmatmul.mubr.bf16.gmra.mrb[0].mxu0 %v1318
  %v2787 = vpop.f32.mrb[0].mxu0
  %v2788 = vadd.f32 %v2251, %v2787
  %v2789 = vpop.f32.mrb[0].mxu0
  %v2790 = vpop.f32.mrb[0].mxu0
  %v2791 = vadd.f32 %v2254, %v2790
  %v2792 = vpop.f32.mrb[0].mxu0
  %2793 = vmatprep.mubr.bf16.mxu0 %v1323
  %2794 = vmatmul.mubr.bf16.gmra.mrb[0].mxu0 %v1322
  %v2795 = vpop.f32.mrb[0].mxu0
  %v2796 = vadd.f32 %v2259, %v2795
  %v2797 = vpop.f32.mrb[0].mxu0
  %v2798 = vpop.f32.mrb[0].mxu0
  %v2799 = vadd.f32 %v2262, %v2798
  %v2800 = vpop.f32.mrb[0].mxu0
  %2801 = vmatprep.mubr.bf16.mxu0 %v1327
  %2802 = vmatmul.mubr.bf16.gmra.mrb[0].mxu0 %v1326
  %v2803 = vpop.f32.mrb[0].mxu0
  %v2804 = vadd.f32 %v2267, %v2803
  %v2805 = vpop.f32.mrb[0].mxu0
  %v2806 = vpop.f32.mrb[0].mxu0
  %v2807 = vadd.f32 %v2270, %v2806
  %v2808 = vpop.f32.mrb[0].mxu0
  %2809 = vmatprep.mubr.bf16.mxu0 %v1331
  %2810 = vmatmul.mubr.bf16.gmra.mrb[0].mxu0 %v1330
  %v2811 = vpop.f32.mrb[0].mxu0
  %v2812 = vadd.f32 %v2275, %v2811
  %v2813 = vpop.f32.mrb[0].mxu0
  %v2814 = vpop.f32.mrb[0].mxu0
  %v2815 = vadd.f32 %v2278, %v2814
  %v2816 = vpop.f32.mrb[0].mxu0
  %2817 = vmatprep.mubr.bf16.mxu0 %v1335
  %2818 = vmatmul.mubr.bf16.gmra.mrb[0].mxu0 %v1334
  %v2819 = vpop.f32.mrb[0].mxu0
  %v2820 = vadd.f32 %v2283, %v2819
  %v2821 = vpop.f32.mrb[0].mxu0
  %v2822 = vpop.f32.mrb[0].mxu0
  %v2823 = vadd.f32 %v2286, %v2822
  %v2824 = vpop.f32.mrb[0].mxu0
  %2825 = vmatprep.mubr.bf16.mxu0 %v1339
  %2826 = vmatmul.mubr.bf16.gmra.mrb[0].mxu0 %v1338
  %v2827 = vpop.f32.mrb[0].mxu0
  %v2828 = vadd.f32 %v2291, %v2827
  %v2829 = vpop.f32.mrb[0].mxu0
  %v2830 = vpop.f32.mrb[0].mxu0
  %v2831 = vadd.f32 %v2294, %v2830
  %v2832 = vpop.f32.mrb[0].mxu0
  %2833 = vmatprep.mubr.bf16.mxu0 %v1343
  %2834 = vmatmul.mubr.bf16.gmra.mrb[0].mxu0 %v1342
  %v2835 = vpop.f32.mrb[0].mxu0
  %v2836 = vadd.f32 %v2299, %v2835
  %v2837 = vpop.f32.mrb[0].mxu0
  %v2838 = vpop.f32.mrb[0].mxu0
  %v2839 = vadd.f32 %v2302, %v2838
  %v2840 = vpop.f32.mrb[0].mxu0
  %2841 = vmatprep.mubr.bf16.mxu0 %v1347
  %2842 = vmatmul.mubr.bf16.gmra.mrb[0].mxu0 %v1346
  %v2843 = vpop.f32.mrb[0].mxu0
  %v2844 = vadd.f32 %v2307, %v2843
  %v2845 = vpop.f32.mrb[0].mxu0
  %v2846 = vpop.f32.mrb[0].mxu0
  %v2847 = vadd.f32 %v2310, %v2846
  %v2848 = vpop.f32.mrb[0].mxu0
  %2849 = vmatprep.mubr.bf16.mxu0 %v1351
  %2850 = vmatmul.mubr.bf16.gmra.mrb[0].mxu0 %v1350
  %v2851 = vpop.f32.mrb[0].mxu0
  %v2852 = vadd.f32 %v2315, %v2851
  %v2853 = vpop.f32.mrb[0].mxu0
  %v2854 = vpop.f32.mrb[0].mxu0
  %v2855 = vadd.f32 %v2318, %v2854
  %v2856 = vpop.f32.mrb[0].mxu0
  %2857 = vmatprep.mubr.bf16.mxu0 %v1355
  %2858 = vmatmul.mubr.bf16.gmra.mrb[0].mxu0 %v1354
  %v2859 = vpop.f32.mrb[0].mxu0
  %v2860 = vadd.f32 %v2323, %v2859
  %v2861 = vpop.f32.mrb[0].mxu0
  %v2862 = vpop.f32.mrb[0].mxu0
  %v2863 = vadd.f32 %v2326, %v2862
  %v2864 = vpop.f32.mrb[0].mxu0
  %2865 = vmatprep.mubr.bf16.mxu0 %v1359
  %2866 = vmatmul.mubr.bf16.gmra.mrb[0].mxu0 %v1358
  %v2867 = vpop.f32.mrb[0].mxu0
  %v2868 = vadd.f32 %v2331, %v2867
  %v2869 = vpop.f32.mrb[0].mxu0
  %v2870 = vpop.f32.mrb[0].mxu0
  %v2871 = vadd.f32 %v2334, %v2870
  %v2872 = vpop.f32.mrb[0].mxu0
  %2873 = vmatprep.mubr.bf16.mxu0 %v1363
  %2874 = vmatmul.mubr.bf16.gmra.mrb[0].mxu0 %v1362
  %v2875 = vpop.f32.mrb[0].mxu0
  %v2876 = vadd.f32 %v2339, %v2875
  %v2877 = vpop.f32.mrb[0].mxu0
  %v2878 = vpop.f32.mrb[0].mxu0
  %v2879 = vadd.f32 %v2342, %v2878
  %v2880 = vpop.f32.mrb[0].mxu0
  %2881 = vdwg.mxu0
  %v2882 = vmax.f32 %v2380, 0.0
  %v2883 = vmax.f32 %v2383, 0.0
  %v2884 = vmax.f32 %v2388, 0.0
  %v2885 = vmax.f32 %v2391, 0.0
  %v2886 = vmax.f32 %v2396, 0.0
  %v2887 = vmax.f32 %v2399, 0.0
  %v2888 = vmax.f32 %v2404, 0.0
  %v2889 = vmax.f32 %v2407, 0.0
  %v2890 = vmax.f32 %v2412, 0.0
  %v2891 = vmax.f32 %v2415, 0.0
  %v2892 = vmax.f32 %v2420, 0.0
  %v2893 = vmax.f32 %v2423, 0.0
  %v2894 = vmax.f32 %v2428, 0.0
  %v2895 = vmax.f32 %v2431, 0.0
  %v2896 = vmax.f32 %v2436, 0.0
  %v2897 = vmax.f32 %v2439, 0.0
  %v2898 = vmax.f32 %v2444, 0.0
  %v2899 = vmax.f32 %v2447, 0.0
  %v2900 = vmax.f32 %v2452, 0.0
  %v2901 = vmax.f32 %v2455, 0.0
  %v2902 = vmax.f32 %v2460, 0.0
  %v2903 = vmax.f32 %v2463, 0.0
  %v2904 = vmax.f32 %v2468, 0.0
  %v2905 = vmax.f32 %v2471, 0.0
  %v2906 = vmax.f32 %v2476, 0.0
  %v2907 = vmax.f32 %v2479, 0.0
  %v2908 = vmax.f32 %v2484, 0.0
  %v2909 = vmax.f32 %v2487, 0.0
  %v2910 = vmax.f32 %v2492, 0.0
  %v2911 = vmax.f32 %v2495, 0.0
  %v2912 = vmax.f32 %v2500, 0.0
  %v2913 = vmax.f32 %v2503, 0.0
  %v2914 = vmax.f32 %v2508, 0.0
  %v2915 = vmax.f32 %v2511, 0.0
  %v2916 = vmax.f32 %v2516, 0.0
  %v2917 = vmax.f32 %v2519, 0.0
  %v2918 = vmax.f32 %v2524, 0.0
  %v2919 = vmax.f32 %v2527, 0.0
  %v2920 = vmax.f32 %v2532, 0.0
  %v2921 = vmax.f32 %v2535, 0.0
  %v2922 = vmax.f32 %v2540, 0.0
  %v2923 = vmax.f32 %v2543, 0.0
  %v2924 = vmax.f32 %v2548, 0.0
  %v2925 = vmax.f32 %v2551, 0.0
  %v2926 = vmax.f32 %v2556, 0.0
  %v2927 = vmax.f32 %v2559, 0.0
  %v2928 = vmax.f32 %v2564, 0.0
  %v2929 = vmax.f32 %v2567, 0.0
  %v2930 = vmax.f32 %v2572, 0.0
  %v2931 = vmax.f32 %v2575, 0.0
  %v2932 = vmax.f32 %v2580, 0.0
  %v2933 = vmax.f32 %v2583, 0.0
  %v2934 = vmax.f32 %v2588, 0.0
  %v2935 = vmax.f32 %v2591, 0.0
  %v2936 = vmax.f32 %v2596, 0.0
  %v2937 = vmax.f32 %v2599, 0.0
  %v2938 = vmax.f32 %v2604, 0.0
  %v2939 = vmax.f32 %v2607, 0.0
  %v2940 = vmax.f32 %v2612, 0.0
  %v2941 = vmax.f32 %v2615, 0.0
  %v2942 = vmax.f32 %v2620, 0.0
  %v2943 = vmax.f32 %v2623, 0.0
  %v2944 = vmax.f32 %v2628, 0.0
  %v2945 = vmax.f32 %v2631, 0.0
  %v2946 = vmax.f32 %v2636, 0.0
  %v2947 = vmax.f32 %v2639, 0.0
  %v2948 = vmax.f32 %v2644, 0.0
  %v2949 = vmax.f32 %v2647, 0.0
  %v2950 = vmax.f32 %v2652, 0.0
  %v2951 = vmax.f32 %v2655, 0.0
  %v2952 = vmax.f32 %v2660, 0.0
  %v2953 = vmax.f32 %v2663, 0.0
  %v2954 = vmax.f32 %v2668, 0.0
  %v2955 = vmax.f32 %v2671, 0.0
  %v2956 = vmax.f32 %v2676, 0.0
  %v2957 = vmax.f32 %v2679, 0.0
  %v2958 = vmax.f32 %v2684, 0.0
  %v2959 = vmax.f32 %v2687, 0.0
  %v2960 = vmax.f32 %v2692, 0.0
  %v2961 = vmax.f32 %v2695, 0.0
  %v2962 = vmax.f32 %v2700, 0.0
  %v2963 = vmax.f32 %v2703, 0.0
  %v2964 = vmax.f32 %v2708, 0.0
  %v2965 = vmax.f32 %v2711, 0.0
  %v2966 = vmax.f32 %v2716, 0.0
  %v2967 = vmax.f32 %v2719, 0.0
  %v2968 = vmax.f32 %v2724, 0.0
  %v2969 = vmax.f32 %v2727, 0.0
  %v2970 = vmax.f32 %v2732, 0.0
  %v2971 = vmax.f32 %v2735, 0.0
  %v2972 = vmax.f32 %v2740, 0.0
  %v2973 = vmax.f32 %v2743, 0.0
  %v2974 = vmax.f32 %v2748, 0.0
  %v2975 = vmax.f32 %v2751, 0.0
  %v2976 = vmax.f32 %v2756, 0.0
  %v2977 = vmax.f32 %v2759, 0.0
  %v2978 = vmax.f32 %v2764, 0.0
  %v2979 = vmax.f32 %v2767, 0.0
  %v2980 = vmax.f32 %v2772, 0.0
  %v2981 = vmax.f32 %v2775, 0.0
  %v2982 = vmax.f32 %v2780, 0.0
  %v2983 = vmax.f32 %v2783, 0.0
  %v2984 = vmax.f32 %v2788, 0.0
  %v2985 = vmax.f32 %v2791, 0.0
  %v2986 = vmax.f32 %v2796, 0.0
  %v2987 = vmax.f32 %v2799, 0.0
  %v2988 = vmax.f32 %v2804, 0.0
  %v2989 = vmax.f32 %v2807, 0.0
  %v2990 = vmax.f32 %v2812, 0.0
  %v2991 = vmax.f32 %v2815, 0.0
  %v2992 = vmax.f32 %v2820, 0.0
  %v2993 = vmax.f32 %v2823, 0.0
  %v2994 = vmax.f32 %v2828, 0.0
  %v2995 = vmax.f32 %v2831, 0.0
  %v2996 = vmax.f32 %v2836, 0.0
  %v2997 = vmax.f32 %v2839, 0.0
  %v2998 = vmax.f32 %v2844, 0.0
  %v2999 = vmax.f32 %v2847, 0.0
  %v3000 = vmax.f32 %v2852, 0.0
  %v3001 = vmax.f32 %v2855, 0.0
  %v3002 = vmax.f32 %v2860, 0.0
  %v3003 = vmax.f32 %v2863, 0.0
  %v3004 = vmax.f32 %v2868, 0.0
  %v3005 = vmax.f32 %v2871, 0.0
  %v3006 = vmax.f32 %v2876, 0.0
  %v3007 = vmax.f32 %v2879, 0.0
  %v3008 = vpack.c.bf16 %v2883, %v2882
  %v3009 = vpack.c.bf16 %v2885, %v2884
  %v3010 = vpack.c.bf16 %v2887, %v2886
  %v3011 = vpack.c.bf16 %v2889, %v2888
  %v3012 = vpack.c.bf16 %v2891, %v2890
  %v3013 = vpack.c.bf16 %v2893, %v2892
  %v3014 = vpack.c.bf16 %v2895, %v2894
  %v3015 = vpack.c.bf16 %v2897, %v2896
  %v3016 = vpack.c.bf16 %v2899, %v2898
  %v3017 = vpack.c.bf16 %v2901, %v2900
  %v3018 = vpack.c.bf16 %v2903, %v2902
  %v3019 = vpack.c.bf16 %v2905, %v2904
  %v3020 = vpack.c.bf16 %v2907, %v2906
  %v3021 = vpack.c.bf16 %v2909, %v2908
  %v3022 = vpack.c.bf16 %v2911, %v2910
  %v3023 = vpack.c.bf16 %v2913, %v2912
  %v3024 = vpack.c.bf16 %v2915, %v2914
  %v3025 = vpack.c.bf16 %v2917, %v2916
  %v3026 = vpack.c.bf16 %v2919, %v2918
  %v3027 = vpack.c.bf16 %v2921, %v2920
  %v3028 = vpack.c.bf16 %v2923, %v2922
  %v3029 = vpack.c.bf16 %v2925, %v2924
  %v3030 = vpack.c.bf16 %v2927, %v2926
  %v3031 = vpack.c.bf16 %v2929, %v2928
  %v3032 = vpack.c.bf16 %v2931, %v2930
  %v3033 = vpack.c.bf16 %v2933, %v2932
  %v3034 = vpack.c.bf16 %v2935, %v2934
  %v3035 = vpack.c.bf16 %v2937, %v2936
  %v3036 = vpack.c.bf16 %v2939, %v2938
  %v3037 = vpack.c.bf16 %v2941, %v2940
  %v3038 = vpack.c.bf16 %v2943, %v2942
  %v3039 = vpack.c.bf16 %v2945, %v2944
  %v3040 = vpack.c.bf16 %v2947, %v2946
  %v3041 = vpack.c.bf16 %v2949, %v2948
  %v3042 = vpack.c.bf16 %v2951, %v2950
  %v3043 = vpack.c.bf16 %v2953, %v2952
  %v3044 = vpack.c.bf16 %v2955, %v2954
  %v3045 = vpack.c.bf16 %v2957, %v2956
  %v3046 = vpack.c.bf16 %v2959, %v2958
  %v3047 = vpack.c.bf16 %v2961, %v2960
  %v3048 = vpack.c.bf16 %v2963, %v2962
  %v3049 = vpack.c.bf16 %v2965, %v2964
  %v3050 = vpack.c.bf16 %v2967, %v2966
  %v3051 = vpack.c.bf16 %v2969, %v2968
  %v3052 = vpack.c.bf16 %v2971, %v2970
  %v3053 = vpack.c.bf16 %v2973, %v2972
  %v3054 = vpack.c.bf16 %v2975, %v2974
  %v3055 = vpack.c.bf16 %v2977, %v2976
  %v3056 = vpack.c.bf16 %v2979, %v2978
  %v3057 = vpack.c.bf16 %v2981, %v2980
  %v3058 = vpack.c.bf16 %v2983, %v2982
  %v3059 = vpack.c.bf16 %v2985, %v2984
  %v3060 = vpack.c.bf16 %v2987, %v2986
  %v3061 = vpack.c.bf16 %v2989, %v2988
  %v3062 = vpack.c.bf16 %v2991, %v2990
  %v3063 = vpack.c.bf16 %v2993, %v2992
  %v3064 = vpack.c.bf16 %v2995, %v2994
  %v3065 = vpack.c.bf16 %v2997, %v2996
  %v3066 = vpack.c.bf16 %v2999, %v2998
  %v3067 = vpack.c.bf16 %v3001, %v3000
  %v3068 = vpack.c.bf16 %v3003, %v3002
  %v3069 = vpack.c.bf16 %v3005, %v3004
  %v3070 = vpack.c.bf16 %v3007, %v3006
  %v3071 = vld [vmem:[%s3] sm:$0xf]
  %v3072 = vld [vmem:[%s3 + $0x4] sm:$0xf]
  %v3073 = vld [vmem:[%s3 + $0x8] sm:$0xf]
  %v3074 = vld [vmem:[%s3 + $0xc] sm:$0xf]
  %v3075 = vld [vmem:[%s3 + $0x10] sm:$0xf]
  %v3076 = vld [vmem:[%s3 + $0x14] sm:$0xf]
  %v3077 = vld [vmem:[%s3 + $0x18] sm:$0xf]
  %v3078 = vld [vmem:[%s3 + $0x1c] sm:$0xf]
  %s3079 = scalar_lea.vmem %s3, 32
  %v3080 = vld [vmem:[%s3079] sm:$0xf]
  %v3081 = vld [vmem:[%s3079 + $0x4] sm:$0xf]
  %v3082 = vld [vmem:[%s3079 + $0x8] sm:$0xf]
  %v3083 = vld [vmem:[%s3079 + $0xc] sm:$0xf]
  %v3084 = vld [vmem:[%s3079 + $0x10] sm:$0xf]
  %v3085 = vld [vmem:[%s3079 + $0x14] sm:$0xf]
  %v3086 = vld [vmem:[%s3079 + $0x18] sm:$0xf]
  %v3087 = vld [vmem:[%s3079 + $0x1c] sm:$0xf]
  %v3096 = vunpack.c.l.b16 %v3080
  %v3097 = vunpack.c.l.b16 %v3081
  %v3098 = vunpack.c.l.b16 %v3082
  %v3099 = vunpack.c.l.b16 %v3083
  %v3100 = vunpack.c.l.b16 %v3084
  %v3101 = vunpack.c.l.b16 %v3085
  %v3102 = vunpack.c.l.b16 %v3086
  %v3103 = vunpack.c.l.b16 %v3087
  %v3104 = vpack.c.b16 %v3097, %v3096
  %v3105 = vpack.c.b16 %v3099, %v3098
  %v3106 = vpack.c.b16 %v3101, %v3100
  %v3107 = vpack.c.b16 %v3103, %v3102
  %vm3112 = vcmask 523264
  %v3114 = vsel %vm3112, %v3015, 0
  %v3117 = vsel %vm3112, %v3016, 0
  %v3120 = vsel %vm3112, %v3017, 0
  %v3123 = vsel %vm3112, %v3018, 0
  %v3126 = vsel %vm3112, %v3019, 0
  %v3129 = vsel %vm3112, %v3020, 0
  %v3132 = vsel %vm3112, %v3021, 0
  %3134 = vmatprep.subr.bf16.mxu0 0
  %3135 = vmatpush1.bf16.msra.mxu0 %v3104
  %3136 = vmatprep.subr.bf16.mxu0 0
  %3137 = vmatpush1.bf16.msra.mxu0 %v3105
  %3138 = vmatprep.subr.bf16.mxu0 0
  %3139 = vmatpush1.bf16.msra.mxu0 %v3106
  %3140 = vmatprep.subr.bf16.mxu0 0
  %3141 = vmatpush1.bf16.msra.mxu0 %v3107
  %3142 = vmatprep.subr.bf16.mxu0 0
  %3143 = vmatpush1.bf16.msra.mxu0 0
  %3144 = vmatprep.subr.bf16.mxu0 0
  %3145 = vmatpush1.bf16.msra.mxu0 0
  %3146 = vmatprep.subr.bf16.mxu0 0
  %3147 = vmatpush1.bf16.msra.mxu0 0
  %3148 = vmatprep.subr.bf16.mxu0 0
  %3149 = vmatpush1.bf16.msra.mxu0 0
  %3150 = vmatprep.subr.bf16.mxu0 0
  %3151 = vmatpush1.bf16.msra.mxu0 0
  %3152 = vmatprep.subr.bf16.mxu0 0
  %3153 = vmatpush1.bf16.msra.mxu0 0
  %3154 = vmatprep.subr.bf16.mxu0 0
  %3155 = vmatpush1.bf16.msra.mxu0 0
  %3156 = vmatprep.subr.bf16.mxu0 0
  %3157 = vmatpush1.bf16.msra.mxu0 0
  %3158 = vmatprep.subr.bf16.mxu0 0
  %3159 = vmatpush1.bf16.msra.mxu0 0
  %3160 = vmatprep.subr.bf16.mxu0 0
  %3161 = vmatpush1.bf16.msra.mxu0 0
  %3162 = vmatprep.subr.bf16.mxu0 0
  %3163 = vmatpush1.bf16.msra.mxu0 0
  %3164 = vmatprep.subr.bf16.mxu0 0
  %3165 = vmatpush1.bf16.msra.mxu0 0
  %3166 = vmatprep.mubr.bf16.mxu0 0
  %3167 = vmatmul.mubr.bf16.gmra.mrb[0].mxu0 %v3114
  %v3168 = vpop.f32.mrb[0].mxu0
  %v3169 = vadd.f32 0.0, %v3168
  %v3170 = vpop.f32.mrb[0].mxu0
  %v3171 = vpop.f32.mrb[0].mxu0
  %v3172 = vadd.f32 0.0, %v3171
  %v3173 = vpop.f32.mrb[0].mxu0
  %3174 = vmatprep.mubr.bf16.mxu0 0
  %3175 = vmatmul.mubr.bf16.gmra.mrb[0].mxu0 %v3117
  %v3176 = vpop.f32.mrb[0].mxu0
  %v3177 = vadd.f32 0.0, %v3176
  %v3178 = vpop.f32.mrb[0].mxu0
  %v3179 = vpop.f32.mrb[0].mxu0
  %v3180 = vadd.f32 0.0, %v3179
  %v3181 = vpop.f32.mrb[0].mxu0
  %3182 = vmatprep.mubr.bf16.mxu0 0
  %3183 = vmatmul.mubr.bf16.gmra.mrb[0].mxu0 %v3120
  %v3184 = vpop.f32.mrb[0].mxu0
  %v3185 = vadd.f32 0.0, %v3184
  %v3186 = vpop.f32.mrb[0].mxu0
  %v3187 = vpop.f32.mrb[0].mxu0
  %v3188 = vadd.f32 0.0, %v3187
  %v3189 = vpop.f32.mrb[0].mxu0
  %3190 = vmatprep.mubr.bf16.mxu0 0
  %3191 = vmatmul.mubr.bf16.gmra.mrb[0].mxu0 %v3123
  %v3192 = vpop.f32.mrb[0].mxu0
  %v3193 = vadd.f32 0.0, %v3192
  %v3194 = vpop.f32.mrb[0].mxu0
  %v3195 = vpop.f32.mrb[0].mxu0
  %v3196 = vadd.f32 0.0, %v3195
  %v3197 = vpop.f32.mrb[0].mxu0
  %3198 = vmatprep.mubr.bf16.mxu0 0
  %3199 = vmatmul.mubr.bf16.gmra.mrb[0].mxu0 %v3126
  %v3200 = vpop.f32.mrb[0].mxu0
  %v3201 = vadd.f32 0.0, %v3200
  %v3202 = vpop.f32.mrb[0].mxu0
  %v3203 = vpop.f32.mrb[0].mxu0
  %v3204 = vadd.f32 0.0, %v3203
  %v3205 = vpop.f32.mrb[0].mxu0
  %3206 = vmatprep.mubr.bf16.mxu0 0
  %3207 = vmatmul.mubr.bf16.gmra.mrb[0].mxu0 %v3129
  %v3208 = vpop.f32.mrb[0].mxu0
  %v3209 = vadd.f32 0.0, %v3208
  %v3210 = vpop.f32.mrb[0].mxu0
  %v3211 = vpop.f32.mrb[0].mxu0
  %v3212 = vadd.f32 0.0, %v3211
  %v3213 = vpop.f32.mrb[0].mxu0
  %3214 = vmatprep.mubr.bf16.mxu0 0
  %3215 = vmatmul.mubr.bf16.gmra.mrb[0].mxu0 %v3132
  %v3216 = vpop.f32.mrb[0].mxu0
  %v3217 = vadd.f32 0.0, %v3216
  %v3218 = vpop.f32.mrb[0].mxu0
  %v3219 = vpop.f32.mrb[0].mxu0
  %v3220 = vpop.f32.mrb[0].mxu0
  %3221 = vdwg.mxu0
  %s3222 = scalar_lea.vmem %s3, 64
  %v3223 = vld [vmem:[%s3222] sm:$0xf]
  %v3224 = vld [vmem:[%s3222 + $0x4] sm:$0xf]
  %v3225 = vld [vmem:[%s3222 + $0x8] sm:$0xf]
  %v3226 = vld [vmem:[%s3222 + $0xc] sm:$0xf]
  %v3227 = vld [vmem:[%s3222 + $0x10] sm:$0xf]
  %v3228 = vld [vmem:[%s3222 + $0x14] sm:$0xf]
  %v3229 = vld [vmem:[%s3222 + $0x18] sm:$0xf]
  %v3230 = vld [vmem:[%s3222 + $0x1c] sm:$0xf]
  %s3231 = scalar_lea.vmem %s3, 96
  %v3232 = vld [vmem:[%s3231] sm:$0xf]
  %v3233 = vld [vmem:[%s3231 + $0x4] sm:$0xf]
  %v3234 = vld [vmem:[%s3231 + $0x8] sm:$0xf]
  %v3235 = vld [vmem:[%s3231 + $0xc] sm:$0xf]
  %v3236 = vld [vmem:[%s3231 + $0x10] sm:$0xf]
  %v3237 = vld [vmem:[%s3231 + $0x14] sm:$0xf]
  %v3238 = vld [vmem:[%s3231 + $0x18] sm:$0xf]
  %v3239 = vld [vmem:[%s3231 + $0x1c] sm:$0xf]
  %v3248 = vunpack.c.l.b16 %v3232
  %v3249 = vunpack.c.l.b16 %v3233
  %v3250 = vunpack.c.l.b16 %v3234
  %v3251 = vunpack.c.l.b16 %v3235
  %v3252 = vunpack.c.l.b16 %v3236
  %v3253 = vunpack.c.l.b16 %v3237
  %v3254 = vunpack.c.l.b16 %v3238
  %v3255 = vunpack.c.l.b16 %v3239
  %v3256 = vpack.c.b16 %v3249, %v3248
  %v3257 = vpack.c.b16 %v3251, %v3250
  %v3258 = vpack.c.b16 %v3253, %v3252
  %v3259 = vpack.c.b16 %v3255, %v3254
  %v3265 = vsel %vm3112, %v3029, 0
  %v3268 = vsel %vm3112, %v3030, 0
  %v3271 = vsel %vm3112, %v3031, 0
  %v3274 = vsel %vm3112, %v3032, 0
  %v3277 = vsel %vm3112, %v3033, 0
  %v3280 = vsel %vm3112, %v3034, 0
  %v3283 = vsel %vm3112, %v3035, 0
  %3285 = vmatprep.subr.bf16.mxu0 0
  %3286 = vmatpush1.bf16.msra.mxu0 %v3256
  %3287 = vmatprep.subr.bf16.mxu0 0
  %3288 = vmatpush1.bf16.msra.mxu0 %v3257
  %3289 = vmatprep.subr.bf16.mxu0 0
  %3290 = vmatpush1.bf16.msra.mxu0 %v3258
  %3291 = vmatprep.subr.bf16.mxu0 0
  %3292 = vmatpush1.bf16.msra.mxu0 %v3259
  %3293 = vmatprep.subr.bf16.mxu0 0
  %3294 = vmatpush1.bf16.msra.mxu0 0
  %3295 = vmatprep.subr.bf16.mxu0 0
  %3296 = vmatpush1.bf16.msra.mxu0 0
  %3297 = vmatprep.subr.bf16.mxu0 0
  %3298 = vmatpush1.bf16.msra.mxu0 0
  %3299 = vmatprep.subr.bf16.mxu0 0
  %3300 = vmatpush1.bf16.msra.mxu0 0
  %3301 = vmatprep.subr.bf16.mxu0 0
  %3302 = vmatpush1.bf16.msra.mxu0 0
  %3303 = vmatprep.subr.bf16.mxu0 0
  %3304 = vmatpush1.bf16.msra.mxu0 0
  %3305 = vmatprep.subr.bf16.mxu0 0
  %3306 = vmatpush1.bf16.msra.mxu0 0
  %3307 = vmatprep.subr.bf16.mxu0 0
  %3308 = vmatpush1.bf16.msra.mxu0 0
  %3309 = vmatprep.subr.bf16.mxu0 0
  %3310 = vmatpush1.bf16.msra.mxu0 0
  %3311 = vmatprep.subr.bf16.mxu0 0
  %3312 = vmatpush1.bf16.msra.mxu0 0
  %3313 = vmatprep.subr.bf16.mxu0 0
  %3314 = vmatpush1.bf16.msra.mxu0 0
  %3315 = vmatprep.subr.bf16.mxu0 0
  %3316 = vmatpush1.bf16.msra.mxu0 0
  %3317 = vmatprep.mubr.bf16.mxu0 0
  %3318 = vmatmul.mubr.bf16.gmra.mrb[0].mxu0 %v3265
  %v3319 = vpop.f32.mrb[0].mxu0
  %v3320 = vadd.f32 0.0, %v3319
  %v3321 = vpop.f32.mrb[0].mxu0
  %v3322 = vpop.f32.mrb[0].mxu0
  %v3323 = vadd.f32 0.0, %v3322
  %v3324 = vpop.f32.mrb[0].mxu0
  %3325 = vmatprep.mubr.bf16.mxu0 0
  %3326 = vmatmul.mubr.bf16.gmra.mrb[0].mxu0 %v3268
  %v3327 = vpop.f32.mrb[0].mxu0
  %v3328 = vadd.f32 0.0, %v3327
  %v3329 = vpop.f32.mrb[0].mxu0
  %v3330 = vpop.f32.mrb[0].mxu0
  %v3331 = vadd.f32 0.0, %v3330
  %v3332 = vpop.f32.mrb[0].mxu0
  %3333 = vmatprep.mubr.bf16.mxu0 0
  %3334 = vmatmul.mubr.bf16.gmra.mrb[0].mxu0 %v3271
  %v3335 = vpop.f32.mrb[0].mxu0
  %v3336 = vadd.f32 0.0, %v3335
  %v3337 = vpop.f32.mrb[0].mxu0
  %v3338 = vpop.f32.mrb[0].mxu0
  %v3339 = vadd.f32 0.0, %v3338
  %v3340 = vpop.f32.mrb[0].mxu0
  %3341 = vmatprep.mubr.bf16.mxu0 0
  %3342 = vmatmul.mubr.bf16.gmra.mrb[0].mxu0 %v3274
  %v3343 = vpop.f32.mrb[0].mxu0
  %v3344 = vadd.f32 0.0, %v3343
  %v3345 = vpop.f32.mrb[0].mxu0
  %v3346 = vpop.f32.mrb[0].mxu0
  %v3347 = vadd.f32 0.0, %v3346
  %v3348 = vpop.f32.mrb[0].mxu0
  %3349 = vmatprep.mubr.bf16.mxu0 0
  %3350 = vmatmul.mubr.bf16.gmra.mrb[0].mxu0 %v3277
  %v3351 = vpop.f32.mrb[0].mxu0
  %v3352 = vadd.f32 0.0, %v3351
  %v3353 = vpop.f32.mrb[0].mxu0
  %v3354 = vpop.f32.mrb[0].mxu0
  %v3355 = vadd.f32 0.0, %v3354
  %v3356 = vpop.f32.mrb[0].mxu0
  %3357 = vmatprep.mubr.bf16.mxu0 0
  %3358 = vmatmul.mubr.bf16.gmra.mrb[0].mxu0 %v3280
  %v3359 = vpop.f32.mrb[0].mxu0
  %v3360 = vadd.f32 0.0, %v3359
  %v3361 = vpop.f32.mrb[0].mxu0
  %v3362 = vpop.f32.mrb[0].mxu0
  %v3363 = vadd.f32 0.0, %v3362
  %v3364 = vpop.f32.mrb[0].mxu0
  %3365 = vmatprep.mubr.bf16.mxu0 0
  %3366 = vmatmul.mubr.bf16.gmra.mrb[0].mxu0 %v3283
  %v3367 = vpop.f32.mrb[0].mxu0
  %v3368 = vadd.f32 0.0, %v3367
  %v3369 = vpop.f32.mrb[0].mxu0
  %v3370 = vpop.f32.mrb[0].mxu0
  %v3371 = vpop.f32.mrb[0].mxu0
  %3372 = vdwg.mxu0
  %s3373 = scalar_lea.vmem %s3, 128
  %v3374 = vld [vmem:[%s3373] sm:$0xf]
  %v3375 = vld [vmem:[%s3373 + $0x4] sm:$0xf]
  %v3376 = vld [vmem:[%s3373 + $0x8] sm:$0xf]
  %v3377 = vld [vmem:[%s3373 + $0xc] sm:$0xf]
  %v3378 = vld [vmem:[%s3373 + $0x10] sm:$0xf]
  %v3379 = vld [vmem:[%s3373 + $0x14] sm:$0xf]
  %v3380 = vld [vmem:[%s3373 + $0x18] sm:$0xf]
  %v3381 = vld [vmem:[%s3373 + $0x1c] sm:$0xf]
  %s3382 = scalar_lea.vmem %s3, 160
  %v3383 = vld [vmem:[%s3382] sm:$0xf]
  %v3384 = vld [vmem:[%s3382 + $0x4] sm:$0xf]
  %v3385 = vld [vmem:[%s3382 + $0x8] sm:$0xf]
  %v3386 = vld [vmem:[%s3382 + $0xc] sm:$0xf]
  %v3387 = vld [vmem:[%s3382 + $0x10] sm:$0xf]
  %v3388 = vld [vmem:[%s3382 + $0x14] sm:$0xf]
  %v3389 = vld [vmem:[%s3382 + $0x18] sm:$0xf]
  %v3390 = vld [vmem:[%s3382 + $0x1c] sm:$0xf]
  %v3399 = vunpack.c.l.b16 %v3383
  %v3400 = vunpack.c.l.b16 %v3384
  %v3401 = vunpack.c.l.b16 %v3385
  %v3402 = vunpack.c.l.b16 %v3386
  %v3403 = vunpack.c.l.b16 %v3387
  %v3404 = vunpack.c.l.b16 %v3388
  %v3405 = vunpack.c.l.b16 %v3389
  %v3406 = vunpack.c.l.b16 %v3390
  %v3407 = vpack.c.b16 %v3400, %v3399
  %v3408 = vpack.c.b16 %v3402, %v3401
  %v3409 = vpack.c.b16 %v3404, %v3403
  %v3410 = vpack.c.b16 %v3406, %v3405
  %v3416 = vsel %vm3112, %v3043, 0
  %v3419 = vsel %vm3112, %v3044, 0
  %v3422 = vsel %vm3112, %v3045, 0
  %v3425 = vsel %vm3112, %v3046, 0
  %v3428 = vsel %vm3112, %v3047, 0
  %v3431 = vsel %vm3112, %v3048, 0
  %v3434 = vsel %vm3112, %v3049, 0
  %3436 = vmatprep.subr.bf16.mxu0 0
  %3437 = vmatpush1.bf16.msra.mxu0 %v3407
  %3438 = vmatprep.subr.bf16.mxu0 0
  %3439 = vmatpush1.bf16.msra.mxu0 %v3408
  %3440 = vmatprep.subr.bf16.mxu0 0
  %3441 = vmatpush1.bf16.msra.mxu0 %v3409
  %3442 = vmatprep.subr.bf16.mxu0 0
  %3443 = vmatpush1.bf16.msra.mxu0 %v3410
  %3444 = vmatprep.subr.bf16.mxu0 0
  %3445 = vmatpush1.bf16.msra.mxu0 0
  %3446 = vmatprep.subr.bf16.mxu0 0
  %3447 = vmatpush1.bf16.msra.mxu0 0
  %3448 = vmatprep.subr.bf16.mxu0 0
  %3449 = vmatpush1.bf16.msra.mxu0 0
  %3450 = vmatprep.subr.bf16.mxu0 0
  %3451 = vmatpush1.bf16.msra.mxu0 0
  %3452 = vmatprep.subr.bf16.mxu0 0
  %3453 = vmatpush1.bf16.msra.mxu0 0
  %3454 = vmatprep.subr.bf16.mxu0 0
  %3455 = vmatpush1.bf16.msra.mxu0 0
  %3456 = vmatprep.subr.bf16.mxu0 0
  %3457 = vmatpush1.bf16.msra.mxu0 0
  %3458 = vmatprep.subr.bf16.mxu0 0
  %3459 = vmatpush1.bf16.msra.mxu0 0
  %3460 = vmatprep.subr.bf16.mxu0 0
  %3461 = vmatpush1.bf16.msra.mxu0 0
  %3462 = vmatprep.subr.bf16.mxu0 0
  %3463 = vmatpush1.bf16.msra.mxu0 0
  %3464 = vmatprep.subr.bf16.mxu0 0
  %3465 = vmatpush1.bf16.msra.mxu0 0
  %3466 = vmatprep.subr.bf16.mxu0 0
  %3467 = vmatpush1.bf16.msra.mxu0 0
  %3468 = vmatprep.mubr.bf16.mxu0 0
  %3469 = vmatmul.mubr.bf16.gmra.mrb[0].mxu0 %v3416
  %v3470 = vpop.f32.mrb[0].mxu0
  %v3471 = vadd.f32 0.0, %v3470
  %v3472 = vpop.f32.mrb[0].mxu0
  %v3473 = vpop.f32.mrb[0].mxu0
  %v3474 = vadd.f32 0.0, %v3473
  %v3475 = vpop.f32.mrb[0].mxu0
  %3476 = vmatprep.mubr.bf16.mxu0 0
  %3477 = vmatmul.mubr.bf16.gmra.mrb[0].mxu0 %v3419
  %v3478 = vpop.f32.mrb[0].mxu0
  %v3479 = vadd.f32 0.0, %v3478
  %v3480 = vpop.f32.mrb[0].mxu0
  %v3481 = vpop.f32.mrb[0].mxu0
  %v3482 = vadd.f32 0.0, %v3481
  %v3483 = vpop.f32.mrb[0].mxu0
  %3484 = vmatprep.mubr.bf16.mxu0 0
  %3485 = vmatmul.mubr.bf16.gmra.mrb[0].mxu0 %v3422
  %v3486 = vpop.f32.mrb[0].mxu0
  %v3487 = vadd.f32 0.0, %v3486
  %v3488 = vpop.f32.mrb[0].mxu0
  %v3489 = vpop.f32.mrb[0].mxu0
  %v3490 = vadd.f32 0.0, %v3489
  %v3491 = vpop.f32.mrb[0].mxu0
  %3492 = vmatprep.mubr.bf16.mxu0 0
  %3493 = vmatmul.mubr.bf16.gmra.mrb[0].mxu0 %v3425
  %v3494 = vpop.f32.mrb[0].mxu0
  %v3495 = vadd.f32 0.0, %v3494
  %v3496 = vpop.f32.mrb[0].mxu0
  %v3497 = vpop.f32.mrb[0].mxu0
  %v3498 = vadd.f32 0.0, %v3497
  %v3499 = vpop.f32.mrb[0].mxu0
  %3500 = vmatprep.mubr.bf16.mxu0 0
  %3501 = vmatmul.mubr.bf16.gmra.mrb[0].mxu0 %v3428
  %v3502 = vpop.f32.mrb[0].mxu0
  %v3503 = vadd.f32 0.0, %v3502
  %v3504 = vpop.f32.mrb[0].mxu0
  %v3505 = vpop.f32.mrb[0].mxu0
  %v3506 = vadd.f32 0.0, %v3505
  %v3507 = vpop.f32.mrb[0].mxu0
  %3508 = vmatprep.mubr.bf16.mxu0 0
  %3509 = vmatmul.mubr.bf16.gmra.mrb[0].mxu0 %v3431
  %v3510 = vpop.f32.mrb[0].mxu0
  %v3511 = vadd.f32 0.0, %v3510
  %v3512 = vpop.f32.mrb[0].mxu0
  %v3513 = vpop.f32.mrb[0].mxu0
  %v3514 = vadd.f32 0.0, %v3513
  %v3515 = vpop.f32.mrb[0].mxu0
  %3516 = vmatprep.mubr.bf16.mxu0 0
  %3517 = vmatmul.mubr.bf16.gmra.mrb[0].mxu0 %v3434
  %v3518 = vpop.f32.mrb[0].mxu0
  %v3519 = vadd.f32 0.0, %v3518
  %v3520 = vpop.f32.mrb[0].mxu0
  %v3521 = vpop.f32.mrb[0].mxu0
  %v3522 = vpop.f32.mrb[0].mxu0
  %3523 = vdwg.mxu0
  %s3524 = scalar_lea.vmem %s3, 192
  %v3525 = vld [vmem:[%s3524] sm:$0xf]
  %v3526 = vld [vmem:[%s3524 + $0x4] sm:$0xf]
  %v3527 = vld [vmem:[%s3524 + $0x8] sm:$0xf]
  %v3528 = vld [vmem:[%s3524 + $0xc] sm:$0xf]
  %v3529 = vld [vmem:[%s3524 + $0x10] sm:$0xf]
  %v3530 = vld [vmem:[%s3524 + $0x14] sm:$0xf]
  %v3531 = vld [vmem:[%s3524 + $0x18] sm:$0xf]
  %v3532 = vld [vmem:[%s3524 + $0x1c] sm:$0xf]
  %s3533 = scalar_lea.vmem %s3, 224
  %v3534 = vld [vmem:[%s3533] sm:$0xf]
  %v3535 = vld [vmem:[%s3533 + $0x4] sm:$0xf]
  %v3536 = vld [vmem:[%s3533 + $0x8] sm:$0xf]
  %v3537 = vld [vmem:[%s3533 + $0xc] sm:$0xf]
  %v3538 = vld [vmem:[%s3533 + $0x10] sm:$0xf]
  %v3539 = vld [vmem:[%s3533 + $0x14] sm:$0xf]
  %v3540 = vld [vmem:[%s3533 + $0x18] sm:$0xf]
  %v3541 = vld [vmem:[%s3533 + $0x1c] sm:$0xf]
  %v3550 = vunpack.c.l.b16 %v3534
  %v3551 = vunpack.c.l.b16 %v3535
  %v3552 = vunpack.c.l.b16 %v3536
  %v3553 = vunpack.c.l.b16 %v3537
  %v3554 = vunpack.c.l.b16 %v3538
  %v3555 = vunpack.c.l.b16 %v3539
  %v3556 = vunpack.c.l.b16 %v3540
  %v3557 = vunpack.c.l.b16 %v3541
  %v3558 = vpack.c.b16 %v3551, %v3550
  %v3559 = vpack.c.b16 %v3553, %v3552
  %v3560 = vpack.c.b16 %v3555, %v3554
  %v3561 = vpack.c.b16 %v3557, %v3556
  %v3567 = vsel %vm3112, %v3057, 0
  %v3570 = vsel %vm3112, %v3058, 0
  %v3573 = vsel %vm3112, %v3059, 0
  %v3576 = vsel %vm3112, %v3060, 0
  %v3579 = vsel %vm3112, %v3061, 0
  %v3582 = vsel %vm3112, %v3062, 0
  %v3585 = vsel %vm3112, %v3063, 0
  %3587 = vmatprep.subr.bf16.mxu0 0
  %3588 = vmatpush1.bf16.msra.mxu0 %v3558
  %3589 = vmatprep.subr.bf16.mxu0 0
  %3590 = vmatpush1.bf16.msra.mxu0 %v3559
  %3591 = vmatprep.subr.bf16.mxu0 0
  %3592 = vmatpush1.bf16.msra.mxu0 %v3560
  %3593 = vmatprep.subr.bf16.mxu0 0
  %3594 = vmatpush1.bf16.msra.mxu0 %v3561
  %3595 = vmatprep.subr.bf16.mxu0 0
  %3596 = vmatpush1.bf16.msra.mxu0 0
  %3597 = vmatprep.subr.bf16.mxu0 0
  %3598 = vmatpush1.bf16.msra.mxu0 0
  %3599 = vmatprep.subr.bf16.mxu0 0
  %3600 = vmatpush1.bf16.msra.mxu0 0
  %3601 = vmatprep.subr.bf16.mxu0 0
  %3602 = vmatpush1.bf16.msra.mxu0 0
  %3603 = vmatprep.subr.bf16.mxu0 0
  %3604 = vmatpush1.bf16.msra.mxu0 0
  %3605 = vmatprep.subr.bf16.mxu0 0
  %3606 = vmatpush1.bf16.msra.mxu0 0
  %3607 = vmatprep.subr.bf16.mxu0 0
  %3608 = vmatpush1.bf16.msra.mxu0 0
  %3609 = vmatprep.subr.bf16.mxu0 0
  %3610 = vmatpush1.bf16.msra.mxu0 0
  %3611 = vmatprep.subr.bf16.mxu0 0
  %3612 = vmatpush1.bf16.msra.mxu0 0
  %3613 = vmatprep.subr.bf16.mxu0 0
  %3614 = vmatpush1.bf16.msra.mxu0 0
  %3615 = vmatprep.subr.bf16.mxu0 0
  %3616 = vmatpush1.bf16.msra.mxu0 0
  %3617 = vmatprep.subr.bf16.mxu0 0
  %3618 = vmatpush1.bf16.msra.mxu0 0
  %3619 = vmatprep.mubr.bf16.mxu0 0
  %3620 = vmatmul.mubr.bf16.gmra.mrb[0].mxu0 %v3567
  %v3621 = vpop.f32.mrb[0].mxu0
  %v3622 = vadd.f32 0.0, %v3621
  %v3623 = vpop.f32.mrb[0].mxu0
  %v3624 = vpop.f32.mrb[0].mxu0
  %v3625 = vadd.f32 0.0, %v3624
  %v3626 = vpop.f32.mrb[0].mxu0
  %3627 = vmatprep.mubr.bf16.mxu0 0
  %3628 = vmatmul.mubr.bf16.gmra.mrb[0].mxu0 %v3570
  %v3629 = vpop.f32.mrb[0].mxu0
  %v3630 = vadd.f32 0.0, %v3629
  %v3631 = vpop.f32.mrb[0].mxu0
  %v3632 = vpop.f32.mrb[0].mxu0
  %v3633 = vadd.f32 0.0, %v3632
  %v3634 = vpop.f32.mrb[0].mxu0
  %3635 = vmatprep.mubr.bf16.mxu0 0
  %3636 = vmatmul.mubr.bf16.gmra.mrb[0].mxu0 %v3573
  %v3637 = vpop.f32.mrb[0].mxu0
  %v3638 = vadd.f32 0.0, %v3637
  %v3639 = vpop.f32.mrb[0].mxu0
  %v3640 = vpop.f32.mrb[0].mxu0
  %v3641 = vadd.f32 0.0, %v3640
  %v3642 = vpop.f32.mrb[0].mxu0
  %3643 = vmatprep.mubr.bf16.mxu0 0
  %3644 = vmatmul.mubr.bf16.gmra.mrb[0].mxu0 %v3576
  %v3645 = vpop.f32.mrb[0].mxu0
  %v3646 = vadd.f32 0.0, %v3645
  %v3647 = vpop.f32.mrb[0].mxu0
  %v3648 = vpop.f32.mrb[0].mxu0
  %v3649 = vadd.f32 0.0, %v3648
  %v3650 = vpop.f32.mrb[0].mxu0
  %3651 = vmatprep.mubr.bf16.mxu0 0
  %3652 = vmatmul.mubr.bf16.gmra.mrb[0].mxu0 %v3579
  %v3653 = vpop.f32.mrb[0].mxu0
  %v3654 = vadd.f32 0.0, %v3653
  %v3655 = vpop.f32.mrb[0].mxu0
  %v3656 = vpop.f32.mrb[0].mxu0
  %v3657 = vadd.f32 0.0, %v3656
  %v3658 = vpop.f32.mrb[0].mxu0
  %3659 = vmatprep.mubr.bf16.mxu0 0
  %3660 = vmatmul.mubr.bf16.gmra.mrb[0].mxu0 %v3582
  %v3661 = vpop.f32.mrb[0].mxu0
  %v3662 = vadd.f32 0.0, %v3661
  %v3663 = vpop.f32.mrb[0].mxu0
  %v3664 = vpop.f32.mrb[0].mxu0
  %v3665 = vadd.f32 0.0, %v3664
  %v3666 = vpop.f32.mrb[0].mxu0
  %3667 = vmatprep.mubr.bf16.mxu0 0
  %3668 = vmatmul.mubr.bf16.gmra.mrb[0].mxu0 %v3585
  %v3669 = vpop.f32.mrb[0].mxu0
  %v3670 = vadd.f32 0.0, %v3669
  %v3671 = vpop.f32.mrb[0].mxu0
  %v3672 = vpop.f32.mrb[0].mxu0
  %v3673 = vpop.f32.mrb[0].mxu0
  %3674 = vdwg.mxu0
  %s3675 = scalar_lea.vmem %s3, 256
  %v3676 = vld [vmem:[%s3675] sm:$0xf]
  %v3677 = vld [vmem:[%s3675 + $0x4] sm:$0xf]
  %v3678 = vld [vmem:[%s3675 + $0x8] sm:$0xf]
  %v3679 = vld [vmem:[%s3675 + $0xc] sm:$0xf]
  %v3680 = vld [vmem:[%s3675 + $0x10] sm:$0xf]
  %v3681 = vld [vmem:[%s3675 + $0x14] sm:$0xf]
  %v3682 = vld [vmem:[%s3675 + $0x18] sm:$0xf]
  %v3683 = vld [vmem:[%s3675 + $0x1c] sm:$0xf]
  %v3692 = vunpack.c.l.b16 %v3676
  %v3693 = vunpack.c.l.b16 %v3677
  %v3694 = vunpack.c.l.b16 %v3678
  %v3695 = vunpack.c.l.b16 %v3679
  %v3696 = vunpack.c.l.b16 %v3680
  %v3697 = vunpack.c.l.b16 %v3681
  %v3698 = vunpack.c.l.b16 %v3682
  %v3699 = vunpack.c.l.b16 %v3683
  %v3700 = vpack.c.b16 %v3693, %v3692
  %v3701 = vpack.c.b16 %v3695, %v3694
  %v3702 = vpack.c.b16 %v3697, %v3696
  %v3703 = vpack.c.b16 %v3699, %v3698
  %v3709 = vsel %vm3112, %v3064, 0
  %v3712 = vsel %vm3112, %v3065, 0
  %v3715 = vsel %vm3112, %v3066, 0
  %v3718 = vsel %vm3112, %v3067, 0
  %v3721 = vsel %vm3112, %v3068, 0
  %v3724 = vsel %vm3112, %v3069, 0
  %v3727 = vsel %vm3112, %v3070, 0
  %3729 = vmatprep.subr.bf16.mxu0 0
  %3730 = vmatpush1.bf16.msra.mxu0 %v3700
  %3731 = vmatprep.subr.bf16.mxu0 0
  %3732 = vmatpush1.bf16.msra.mxu0 %v3701
  %3733 = vmatprep.subr.bf16.mxu0 0
  %3734 = vmatpush1.bf16.msra.mxu0 %v3702
  %3735 = vmatprep.subr.bf16.mxu0 0
  %3736 = vmatpush1.bf16.msra.mxu0 %v3703
  %3737 = vmatprep.subr.bf16.mxu0 0
  %3738 = vmatpush1.bf16.msra.mxu0 0
  %3739 = vmatprep.subr.bf16.mxu0 0
  %3740 = vmatpush1.bf16.msra.mxu0 0
  %3741 = vmatprep.subr.bf16.mxu0 0
  %3742 = vmatpush1.bf16.msra.mxu0 0
  %3743 = vmatprep.subr.bf16.mxu0 0
  %3744 = vmatpush1.bf16.msra.mxu0 0
  %3745 = vmatprep.subr.bf16.mxu0 0
  %3746 = vmatpush1.bf16.msra.mxu0 0
  %3747 = vmatprep.subr.bf16.mxu0 0
  %3748 = vmatpush1.bf16.msra.mxu0 0
  %3749 = vmatprep.subr.bf16.mxu0 0
  %3750 = vmatpush1.bf16.msra.mxu0 0
  %3751 = vmatprep.subr.bf16.mxu0 0
  %3752 = vmatpush1.bf16.msra.mxu0 0
  %3753 = vmatprep.subr.bf16.mxu0 0
  %3754 = vmatpush1.bf16.msra.mxu0 0
  %3755 = vmatprep.subr.bf16.mxu0 0
  %3756 = vmatpush1.bf16.msra.mxu0 0
  %3757 = vmatprep.subr.bf16.mxu0 0
  %3758 = vmatpush1.bf16.msra.mxu0 0
  %3759 = vmatprep.subr.bf16.mxu0 0
  %3760 = vmatpush1.bf16.msra.mxu0 0
  %3761 = vmatprep.mubr.bf16.mxu0 0
  %3762 = vmatmul.mubr.bf16.gmra.mrb[0].mxu0 %v3709
  %v3763 = vpop.f32.mrb[0].mxu0
  %v3764 = vadd.f32 0.0, %v3763
  %v3765 = vpop.f32.mrb[0].mxu0
  %v3766 = vpop.f32.mrb[0].mxu0
  %v3767 = vadd.f32 0.0, %v3766
  %v3768 = vpop.f32.mrb[0].mxu0
  %3769 = vmatprep.mubr.bf16.mxu0 0
  %3770 = vmatmul.mubr.bf16.gmra.mrb[0].mxu0 %v3712
  %v3771 = vpop.f32.mrb[0].mxu0
  %v3772 = vadd.f32 0.0, %v3771
  %v3773 = vpop.f32.mrb[0].mxu0
  %v3774 = vpop.f32.mrb[0].mxu0
  %v3775 = vadd.f32 0.0, %v3774
  %v3776 = vpop.f32.mrb[0].mxu0
  %3777 = vmatprep.mubr.bf16.mxu0 0
  %3778 = vmatmul.mubr.bf16.gmra.mrb[0].mxu0 %v3715
  %v3779 = vpop.f32.mrb[0].mxu0
  %v3780 = vadd.f32 0.0, %v3779
  %v3781 = vpop.f32.mrb[0].mxu0
  %v3782 = vpop.f32.mrb[0].mxu0
  %v3783 = vadd.f32 0.0, %v3782
  %v3784 = vpop.f32.mrb[0].mxu0
  %3785 = vmatprep.mubr.bf16.mxu0 0
  %3786 = vmatmul.mubr.bf16.gmra.mrb[0].mxu0 %v3718
  %v3787 = vpop.f32.mrb[0].mxu0
  %v3788 = vadd.f32 0.0, %v3787
  %v3789 = vpop.f32.mrb[0].mxu0
  %v3790 = vpop.f32.mrb[0].mxu0
  %v3791 = vadd.f32 0.0, %v3790
  %v3792 = vpop.f32.mrb[0].mxu0
  %3793 = vmatprep.mubr.bf16.mxu0 0
  %3794 = vmatmul.mubr.bf16.gmra.mrb[0].mxu0 %v3721
  %v3795 = vpop.f32.mrb[0].mxu0
  %v3796 = vadd.f32 0.0, %v3795
  %v3797 = vpop.f32.mrb[0].mxu0
  %v3798 = vpop.f32.mrb[0].mxu0
  %v3799 = vadd.f32 0.0, %v3798
  %v3800 = vpop.f32.mrb[0].mxu0
  %3801 = vmatprep.mubr.bf16.mxu0 0
  %3802 = vmatmul.mubr.bf16.gmra.mrb[0].mxu0 %v3724
  %v3803 = vpop.f32.mrb[0].mxu0
  %v3804 = vadd.f32 0.0, %v3803
  %v3805 = vpop.f32.mrb[0].mxu0
  %v3806 = vpop.f32.mrb[0].mxu0
  %v3807 = vadd.f32 0.0, %v3806
  %v3808 = vpop.f32.mrb[0].mxu0
  %3809 = vmatprep.mubr.bf16.mxu0 0
  %3810 = vmatmul.mubr.bf16.gmra.mrb[0].mxu0 %v3727
  %v3811 = vpop.f32.mrb[0].mxu0
  %v3812 = vadd.f32 0.0, %v3811
  %v3813 = vpop.f32.mrb[0].mxu0
  %v3814 = vpop.f32.mrb[0].mxu0
  %v3815 = vpop.f32.mrb[0].mxu0
  %3816 = vdwg.mxu0
  %v3825 = vunpack.c.l.b16 %v3071
  %v3826 = vunpack.c.l.b16 %v3072
  %v3827 = vunpack.c.l.b16 %v3073
  %v3828 = vunpack.c.l.b16 %v3074
  %v3829 = vunpack.c.l.b16 %v3075
  %v3830 = vunpack.c.l.b16 %v3076
  %v3831 = vunpack.c.l.b16 %v3077
  %v3832 = vunpack.c.l.b16 %v3078
  %v3833 = vpack.c.b16 %v3826, %v3825
  %v3834 = vpack.c.b16 %v3828, %v3827
  %v3835 = vpack.c.b16 %v3830, %v3829
  %v3836 = vpack.c.b16 %v3832, %v3831
  %v3842 = vsel %vm3112, %v3008, 0
  %v3845 = vsel %vm3112, %v3009, 0
  %v3848 = vsel %vm3112, %v3010, 0
  %v3851 = vsel %vm3112, %v3011, 0
  %v3854 = vsel %vm3112, %v3012, 0
  %v3857 = vsel %vm3112, %v3013, 0
  %v3860 = vsel %vm3112, %v3014, 0
  %3862 = vmatprep.subr.bf16.mxu0 0
  %3863 = vmatpush1.bf16.msra.mxu0 %v3833
  %3864 = vmatprep.subr.bf16.mxu0 0
  %3865 = vmatpush1.bf16.msra.mxu0 %v3834
  %3866 = vmatprep.subr.bf16.mxu0 0
  %3867 = vmatpush1.bf16.msra.mxu0 %v3835
  %3868 = vmatprep.subr.bf16.mxu0 0
  %3869 = vmatpush1.bf16.msra.mxu0 %v3836
  %3870 = vmatprep.subr.bf16.mxu0 0
  %3871 = vmatpush1.bf16.msra.mxu0 0
  %3872 = vmatprep.subr.bf16.mxu0 0
  %3873 = vmatpush1.bf16.msra.mxu0 0
  %3874 = vmatprep.subr.bf16.mxu0 0
  %3875 = vmatpush1.bf16.msra.mxu0 0
  %3876 = vmatprep.subr.bf16.mxu0 0
  %3877 = vmatpush1.bf16.msra.mxu0 0
  %3878 = vmatprep.subr.bf16.mxu0 0
  %3879 = vmatpush1.bf16.msra.mxu0 0
  %3880 = vmatprep.subr.bf16.mxu0 0
  %3881 = vmatpush1.bf16.msra.mxu0 0
  %3882 = vmatprep.subr.bf16.mxu0 0
  %3883 = vmatpush1.bf16.msra.mxu0 0
  %3884 = vmatprep.subr.bf16.mxu0 0
  %3885 = vmatpush1.bf16.msra.mxu0 0
  %3886 = vmatprep.subr.bf16.mxu0 0
  %3887 = vmatpush1.bf16.msra.mxu0 0
  %3888 = vmatprep.subr.bf16.mxu0 0
  %3889 = vmatpush1.bf16.msra.mxu0 0
  %3890 = vmatprep.subr.bf16.mxu0 0
  %3891 = vmatpush1.bf16.msra.mxu0 0
  %3892 = vmatprep.subr.bf16.mxu0 0
  %3893 = vmatpush1.bf16.msra.mxu0 0
  %3894 = vmatprep.mubr.bf16.mxu0 0
  %3895 = vmatmul.mubr.bf16.gmra.mrb[0].mxu0 %v3842
  %v3896 = vpop.f32.mrb[0].mxu0
  %v3897 = vadd.f32 %v3169, %v3896
  %v3898 = vpop.f32.mrb[0].mxu0
  %v3899 = vpop.f32.mrb[0].mxu0
  %v3900 = vadd.f32 %v3172, %v3899
  %v3901 = vpop.f32.mrb[0].mxu0
  %3902 = vmatprep.mubr.bf16.mxu0 0
  %3903 = vmatmul.mubr.bf16.gmra.mrb[0].mxu0 %v3845
  %v3904 = vpop.f32.mrb[0].mxu0
  %v3905 = vadd.f32 %v3177, %v3904
  %v3906 = vpop.f32.mrb[0].mxu0
  %v3907 = vpop.f32.mrb[0].mxu0
  %v3908 = vadd.f32 %v3180, %v3907
  %v3909 = vpop.f32.mrb[0].mxu0
  %3910 = vmatprep.mubr.bf16.mxu0 0
  %3911 = vmatmul.mubr.bf16.gmra.mrb[0].mxu0 %v3848
  %v3912 = vpop.f32.mrb[0].mxu0
  %v3913 = vadd.f32 %v3185, %v3912
  %v3914 = vpop.f32.mrb[0].mxu0
  %v3915 = vpop.f32.mrb[0].mxu0
  %v3916 = vadd.f32 %v3188, %v3915
  %v3917 = vpop.f32.mrb[0].mxu0
  %3918 = vmatprep.mubr.bf16.mxu0 0
  %3919 = vmatmul.mubr.bf16.gmra.mrb[0].mxu0 %v3851
  %v3920 = vpop.f32.mrb[0].mxu0
  %v3921 = vadd.f32 %v3193, %v3920
  %v3922 = vpop.f32.mrb[0].mxu0
  %v3923 = vpop.f32.mrb[0].mxu0
  %v3924 = vadd.f32 %v3196, %v3923
  %v3925 = vpop.f32.mrb[0].mxu0
  %3926 = vmatprep.mubr.bf16.mxu0 0
  %3927 = vmatmul.mubr.bf16.gmra.mrb[0].mxu0 %v3854
  %v3928 = vpop.f32.mrb[0].mxu0
  %v3929 = vadd.f32 %v3201, %v3928
  %v3930 = vpop.f32.mrb[0].mxu0
  %v3931 = vpop.f32.mrb[0].mxu0
  %v3932 = vadd.f32 %v3204, %v3931
  %v3933 = vpop.f32.mrb[0].mxu0
  %3934 = vmatprep.mubr.bf16.mxu0 0
  %3935 = vmatmul.mubr.bf16.gmra.mrb[0].mxu0 %v3857
  %v3936 = vpop.f32.mrb[0].mxu0
  %v3937 = vadd.f32 %v3209, %v3936
  %v3938 = vpop.f32.mrb[0].mxu0
  %v3939 = vpop.f32.mrb[0].mxu0
  %v3940 = vadd.f32 %v3212, %v3939
  %v3941 = vpop.f32.mrb[0].mxu0
  %3942 = vmatprep.mubr.bf16.mxu0 0
  %3943 = vmatmul.mubr.bf16.gmra.mrb[0].mxu0 %v3860
  %v3944 = vpop.f32.mrb[0].mxu0
  %v3945 = vadd.f32 %v3217, %v3944
  %v3946 = vpop.f32.mrb[0].mxu0
  %v3947 = vpop.f32.mrb[0].mxu0
  %v3948 = vpop.f32.mrb[0].mxu0
  %3949 = vdwg.mxu0
  %v3958 = vunpack.c.l.b16 %v3223
  %v3959 = vunpack.c.l.b16 %v3224
  %v3960 = vunpack.c.l.b16 %v3225
  %v3961 = vunpack.c.l.b16 %v3226
  %v3962 = vunpack.c.l.b16 %v3227
  %v3963 = vunpack.c.l.b16 %v3228
  %v3964 = vunpack.c.l.b16 %v3229
  %v3965 = vunpack.c.l.b16 %v3230
  %v3966 = vpack.c.b16 %v3959, %v3958
  %v3967 = vpack.c.b16 %v3961, %v3960
  %v3968 = vpack.c.b16 %v3963, %v3962
  %v3969 = vpack.c.b16 %v3965, %v3964
  %v3975 = vsel %vm3112, %v3022, 0
  %v3978 = vsel %vm3112, %v3023, 0
  %v3981 = vsel %vm3112, %v3024, 0
  %v3984 = vsel %vm3112, %v3025, 0
  %v3987 = vsel %vm3112, %v3026, 0
  %v3990 = vsel %vm3112, %v3027, 0
  %v3993 = vsel %vm3112, %v3028, 0
  %3995 = vmatprep.subr.bf16.mxu0 0
  %3996 = vmatpush1.bf16.msra.mxu0 %v3966
  %3997 = vmatprep.subr.bf16.mxu0 0
  %3998 = vmatpush1.bf16.msra.mxu0 %v3967
  %3999 = vmatprep.subr.bf16.mxu0 0
  %4000 = vmatpush1.bf16.msra.mxu0 %v3968
  %4001 = vmatprep.subr.bf16.mxu0 0
  %4002 = vmatpush1.bf16.msra.mxu0 %v3969
  %4003 = vmatprep.subr.bf16.mxu0 0
  %4004 = vmatpush1.bf16.msra.mxu0 0
  %4005 = vmatprep.subr.bf16.mxu0 0
  %4006 = vmatpush1.bf16.msra.mxu0 0
  %4007 = vmatprep.subr.bf16.mxu0 0
  %4008 = vmatpush1.bf16.msra.mxu0 0
  %4009 = vmatprep.subr.bf16.mxu0 0
  %4010 = vmatpush1.bf16.msra.mxu0 0
  %4011 = vmatprep.subr.bf16.mxu0 0
  %4012 = vmatpush1.bf16.msra.mxu0 0
  %4013 = vmatprep.subr.bf16.mxu0 0
  %4014 = vmatpush1.bf16.msra.mxu0 0
  %4015 = vmatprep.subr.bf16.mxu0 0
  %4016 = vmatpush1.bf16.msra.mxu0 0
  %4017 = vmatprep.subr.bf16.mxu0 0
  %4018 = vmatpush1.bf16.msra.mxu0 0
  %4019 = vmatprep.subr.bf16.mxu0 0
  %4020 = vmatpush1.bf16.msra.mxu0 0
  %4021 = vmatprep.subr.bf16.mxu0 0
  %4022 = vmatpush1.bf16.msra.mxu0 0
  %4023 = vmatprep.subr.bf16.mxu0 0
  %4024 = vmatpush1.bf16.msra.mxu0 0
  %4025 = vmatprep.subr.bf16.mxu0 0
  %4026 = vmatpush1.bf16.msra.mxu0 0
  %4027 = vmatprep.mubr.bf16.mxu0 0
  %4028 = vmatmul.mubr.bf16.gmra.mrb[0].mxu0 %v3975
  %v4029 = vpop.f32.mrb[0].mxu0
  %v4030 = vadd.f32 %v3320, %v4029
  %v4031 = vpop.f32.mrb[0].mxu0
  %v4032 = vpop.f32.mrb[0].mxu0
  %v4033 = vadd.f32 %v3323, %v4032
  %v4034 = vpop.f32.mrb[0].mxu0
  %4035 = vmatprep.mubr.bf16.mxu0 0
  %4036 = vmatmul.mubr.bf16.gmra.mrb[0].mxu0 %v3978
  %v4037 = vpop.f32.mrb[0].mxu0
  %v4038 = vadd.f32 %v3328, %v4037
  %v4039 = vpop.f32.mrb[0].mxu0
  %v4040 = vpop.f32.mrb[0].mxu0
  %v4041 = vadd.f32 %v3331, %v4040
  %v4042 = vpop.f32.mrb[0].mxu0
  %4043 = vmatprep.mubr.bf16.mxu0 0
  %4044 = vmatmul.mubr.bf16.gmra.mrb[0].mxu0 %v3981
  %v4045 = vpop.f32.mrb[0].mxu0
  %v4046 = vadd.f32 %v3336, %v4045
  %v4047 = vpop.f32.mrb[0].mxu0
  %v4048 = vpop.f32.mrb[0].mxu0
  %v4049 = vadd.f32 %v3339, %v4048
  %v4050 = vpop.f32.mrb[0].mxu0
  %4051 = vmatprep.mubr.bf16.mxu0 0
  %4052 = vmatmul.mubr.bf16.gmra.mrb[0].mxu0 %v3984
  %v4053 = vpop.f32.mrb[0].mxu0
  %v4054 = vadd.f32 %v3344, %v4053
  %v4055 = vpop.f32.mrb[0].mxu0
  %v4056 = vpop.f32.mrb[0].mxu0
  %v4057 = vadd.f32 %v3347, %v4056
  %v4058 = vpop.f32.mrb[0].mxu0
  %4059 = vmatprep.mubr.bf16.mxu0 0
  %4060 = vmatmul.mubr.bf16.gmra.mrb[0].mxu0 %v3987
  %v4061 = vpop.f32.mrb[0].mxu0
  %v4062 = vadd.f32 %v3352, %v4061
  %v4063 = vpop.f32.mrb[0].mxu0
  %v4064 = vpop.f32.mrb[0].mxu0
  %v4065 = vadd.f32 %v3355, %v4064
  %v4066 = vpop.f32.mrb[0].mxu0
  %4067 = vmatprep.mubr.bf16.mxu0 0
  %4068 = vmatmul.mubr.bf16.gmra.mrb[0].mxu0 %v3990
  %v4069 = vpop.f32.mrb[0].mxu0
  %v4070 = vadd.f32 %v3360, %v4069
  %v4071 = vpop.f32.mrb[0].mxu0
  %v4072 = vpop.f32.mrb[0].mxu0
  %v4073 = vadd.f32 %v3363, %v4072
  %v4074 = vpop.f32.mrb[0].mxu0
  %4075 = vmatprep.mubr.bf16.mxu0 0
  %4076 = vmatmul.mubr.bf16.gmra.mrb[0].mxu0 %v3993
  %v4077 = vpop.f32.mrb[0].mxu0
  %v4078 = vadd.f32 %v3368, %v4077
  %v4079 = vpop.f32.mrb[0].mxu0
  %v4080 = vpop.f32.mrb[0].mxu0
  %v4081 = vpop.f32.mrb[0].mxu0
  %4082 = vdwg.mxu0
  %v4091 = vunpack.c.l.b16 %v3374
  %v4092 = vunpack.c.l.b16 %v3375
  %v4093 = vunpack.c.l.b16 %v3376
  %v4094 = vunpack.c.l.b16 %v3377
  %v4095 = vunpack.c.l.b16 %v3378
  %v4096 = vunpack.c.l.b16 %v3379
  %v4097 = vunpack.c.l.b16 %v3380
  %v4098 = vunpack.c.l.b16 %v3381
  %v4099 = vpack.c.b16 %v4092, %v4091
  %v4100 = vpack.c.b16 %v4094, %v4093
  %v4101 = vpack.c.b16 %v4096, %v4095
  %v4102 = vpack.c.b16 %v4098, %v4097
  %v4108 = vsel %vm3112, %v3036, 0
  %v4111 = vsel %vm3112, %v3037, 0
  %v4114 = vsel %vm3112, %v3038, 0
  %v4117 = vsel %vm3112, %v3039, 0
  %v4120 = vsel %vm3112, %v3040, 0
  %v4123 = vsel %vm3112, %v3041, 0
  %v4126 = vsel %vm3112, %v3042, 0
  %4128 = vmatprep.subr.bf16.mxu0 0
  %4129 = vmatpush1.bf16.msra.mxu0 %v4099
  %4130 = vmatprep.subr.bf16.mxu0 0
  %4131 = vmatpush1.bf16.msra.mxu0 %v4100
  %4132 = vmatprep.subr.bf16.mxu0 0
  %4133 = vmatpush1.bf16.msra.mxu0 %v4101
  %4134 = vmatprep.subr.bf16.mxu0 0
  %4135 = vmatpush1.bf16.msra.mxu0 %v4102
  %4136 = vmatprep.subr.bf16.mxu0 0
  %4137 = vmatpush1.bf16.msra.mxu0 0
  %4138 = vmatprep.subr.bf16.mxu0 0
  %4139 = vmatpush1.bf16.msra.mxu0 0
  %4140 = vmatprep.subr.bf16.mxu0 0
  %4141 = vmatpush1.bf16.msra.mxu0 0
  %4142 = vmatprep.subr.bf16.mxu0 0
  %4143 = vmatpush1.bf16.msra.mxu0 0
  %4144 = vmatprep.subr.bf16.mxu0 0
  %4145 = vmatpush1.bf16.msra.mxu0 0
  %4146 = vmatprep.subr.bf16.mxu0 0
  %4147 = vmatpush1.bf16.msra.mxu0 0
  %4148 = vmatprep.subr.bf16.mxu0 0
  %4149 = vmatpush1.bf16.msra.mxu0 0
  %4150 = vmatprep.subr.bf16.mxu0 0
  %4151 = vmatpush1.bf16.msra.mxu0 0
  %4152 = vmatprep.subr.bf16.mxu0 0
  %4153 = vmatpush1.bf16.msra.mxu0 0
  %4154 = vmatprep.subr.bf16.mxu0 0
  %4155 = vmatpush1.bf16.msra.mxu0 0
  %4156 = vmatprep.subr.bf16.mxu0 0
  %4157 = vmatpush1.bf16.msra.mxu0 0
  %4158 = vmatprep.subr.bf16.mxu0 0
  %4159 = vmatpush1.bf16.msra.mxu0 0
  %4160 = vmatprep.mubr.bf16.mxu0 0
  %4161 = vmatmul.mubr.bf16.gmra.mrb[0].mxu0 %v4108
  %v4162 = vpop.f32.mrb[0].mxu0
  %v4163 = vadd.f32 %v3471, %v4162
  %v4164 = vpop.f32.mrb[0].mxu0
  %v4165 = vpop.f32.mrb[0].mxu0
  %v4166 = vadd.f32 %v3474, %v4165
  %v4167 = vpop.f32.mrb[0].mxu0
  %4168 = vmatprep.mubr.bf16.mxu0 0
  %4169 = vmatmul.mubr.bf16.gmra.mrb[0].mxu0 %v4111
  %v4170 = vpop.f32.mrb[0].mxu0
  %v4171 = vadd.f32 %v3479, %v4170
  %v4172 = vpop.f32.mrb[0].mxu0
  %v4173 = vpop.f32.mrb[0].mxu0
  %v4174 = vadd.f32 %v3482, %v4173
  %v4175 = vpop.f32.mrb[0].mxu0
  %4176 = vmatprep.mubr.bf16.mxu0 0
  %4177 = vmatmul.mubr.bf16.gmra.mrb[0].mxu0 %v4114
  %v4178 = vpop.f32.mrb[0].mxu0
  %v4179 = vadd.f32 %v3487, %v4178
  %v4180 = vpop.f32.mrb[0].mxu0
  %v4181 = vpop.f32.mrb[0].mxu0
  %v4182 = vadd.f32 %v3490, %v4181
  %v4183 = vpop.f32.mrb[0].mxu0
  %4184 = vmatprep.mubr.bf16.mxu0 0
  %4185 = vmatmul.mubr.bf16.gmra.mrb[0].mxu0 %v4117
  %v4186 = vpop.f32.mrb[0].mxu0
  %v4187 = vadd.f32 %v3495, %v4186
  %v4188 = vpop.f32.mrb[0].mxu0
  %v4189 = vpop.f32.mrb[0].mxu0
  %v4190 = vadd.f32 %v3498, %v4189
  %v4191 = vpop.f32.mrb[0].mxu0
  %4192 = vmatprep.mubr.bf16.mxu0 0
  %4193 = vmatmul.mubr.bf16.gmra.mrb[0].mxu0 %v4120
  %v4194 = vpop.f32.mrb[0].mxu0
  %v4195 = vadd.f32 %v3503, %v4194
  %v4196 = vpop.f32.mrb[0].mxu0
  %v4197 = vpop.f32.mrb[0].mxu0
  %v4198 = vadd.f32 %v3506, %v4197
  %v4199 = vpop.f32.mrb[0].mxu0
  %4200 = vmatprep.mubr.bf16.mxu0 0
  %4201 = vmatmul.mubr.bf16.gmra.mrb[0].mxu0 %v4123
  %v4202 = vpop.f32.mrb[0].mxu0
  %v4203 = vadd.f32 %v3511, %v4202
  %v4204 = vpop.f32.mrb[0].mxu0
  %v4205 = vpop.f32.mrb[0].mxu0
  %v4206 = vadd.f32 %v3514, %v4205
  %v4207 = vpop.f32.mrb[0].mxu0
  %4208 = vmatprep.mubr.bf16.mxu0 0
  %4209 = vmatmul.mubr.bf16.gmra.mrb[0].mxu0 %v4126
  %v4210 = vpop.f32.mrb[0].mxu0
  %v4211 = vadd.f32 %v3519, %v4210
  %v4212 = vpop.f32.mrb[0].mxu0
  %v4213 = vpop.f32.mrb[0].mxu0
  %v4214 = vpop.f32.mrb[0].mxu0
  %4215 = vdwg.mxu0
  %v4224 = vunpack.c.l.b16 %v3525
  %v4225 = vunpack.c.l.b16 %v3526
  %v4226 = vunpack.c.l.b16 %v3527
  %v4227 = vunpack.c.l.b16 %v3528
  %v4228 = vunpack.c.l.b16 %v3529
  %v4229 = vunpack.c.l.b16 %v3530
  %v4230 = vunpack.c.l.b16 %v3531
  %v4231 = vunpack.c.l.b16 %v3532
  %v4232 = vpack.c.b16 %v4225, %v4224
  %v4233 = vpack.c.b16 %v4227, %v4226
  %v4234 = vpack.c.b16 %v4229, %v4228
  %v4235 = vpack.c.b16 %v4231, %v4230
  %v4241 = vsel %vm3112, %v3050, 0
  %v4244 = vsel %vm3112, %v3051, 0
  %v4247 = vsel %vm3112, %v3052, 0
  %v4250 = vsel %vm3112, %v3053, 0
  %v4253 = vsel %vm3112, %v3054, 0
  %v4256 = vsel %vm3112, %v3055, 0
  %v4259 = vsel %vm3112, %v3056, 0
  %4261 = vmatprep.subr.bf16.mxu0 0
  %4262 = vmatpush1.bf16.msra.mxu0 %v4232
  %4263 = vmatprep.subr.bf16.mxu0 0
  %4264 = vmatpush1.bf16.msra.mxu0 %v4233
  %4265 = vmatprep.subr.bf16.mxu0 0
  %4266 = vmatpush1.bf16.msra.mxu0 %v4234
  %4267 = vmatprep.subr.bf16.mxu0 0
  %4268 = vmatpush1.bf16.msra.mxu0 %v4235
  %4269 = vmatprep.subr.bf16.mxu0 0
  %4270 = vmatpush1.bf16.msra.mxu0 0
  %4271 = vmatprep.subr.bf16.mxu0 0
  %4272 = vmatpush1.bf16.msra.mxu0 0
  %4273 = vmatprep.subr.bf16.mxu0 0
  %4274 = vmatpush1.bf16.msra.mxu0 0
  %4275 = vmatprep.subr.bf16.mxu0 0
  %4276 = vmatpush1.bf16.msra.mxu0 0
  %4277 = vmatprep.subr.bf16.mxu0 0
  %4278 = vmatpush1.bf16.msra.mxu0 0
  %4279 = vmatprep.subr.bf16.mxu0 0
  %4280 = vmatpush1.bf16.msra.mxu0 0
  %4281 = vmatprep.subr.bf16.mxu0 0
  %4282 = vmatpush1.bf16.msra.mxu0 0
  %4283 = vmatprep.subr.bf16.mxu0 0
  %4284 = vmatpush1.bf16.msra.mxu0 0
  %4285 = vmatprep.subr.bf16.mxu0 0
  %4286 = vmatpush1.bf16.msra.mxu0 0
  %4287 = vmatprep.subr.bf16.mxu0 0
  %4288 = vmatpush1.bf16.msra.mxu0 0
  %4289 = vmatprep.subr.bf16.mxu0 0
  %4290 = vmatpush1.bf16.msra.mxu0 0
  %4291 = vmatprep.subr.bf16.mxu0 0
  %4292 = vmatpush1.bf16.msra.mxu0 0
  %4293 = vmatprep.mubr.bf16.mxu0 0
  %4294 = vmatmul.mubr.bf16.gmra.mrb[0].mxu0 %v4241
  %v4295 = vpop.f32.mrb[0].mxu0
  %v4296 = vadd.f32 %v3622, %v4295
  %v4297 = vpop.f32.mrb[0].mxu0
  %v4298 = vpop.f32.mrb[0].mxu0
  %v4299 = vadd.f32 %v3625, %v4298
  %v4300 = vpop.f32.mrb[0].mxu0
  %4301 = vmatprep.mubr.bf16.mxu0 0
  %4302 = vmatmul.mubr.bf16.gmra.mrb[0].mxu0 %v4244
  %v4303 = vpop.f32.mrb[0].mxu0
  %v4304 = vadd.f32 %v3630, %v4303
  %v4305 = vpop.f32.mrb[0].mxu0
  %v4306 = vpop.f32.mrb[0].mxu0
  %v4307 = vadd.f32 %v3633, %v4306
  %v4308 = vpop.f32.mrb[0].mxu0
  %4309 = vmatprep.mubr.bf16.mxu0 0
  %4310 = vmatmul.mubr.bf16.gmra.mrb[0].mxu0 %v4247
  %v4311 = vpop.f32.mrb[0].mxu0
  %v4312 = vadd.f32 %v3638, %v4311
  %v4313 = vpop.f32.mrb[0].mxu0
  %v4314 = vpop.f32.mrb[0].mxu0
  %v4315 = vadd.f32 %v3641, %v4314
  %v4316 = vpop.f32.mrb[0].mxu0
  %4317 = vmatprep.mubr.bf16.mxu0 0
  %4318 = vmatmul.mubr.bf16.gmra.mrb[0].mxu0 %v4250
  %v4319 = vpop.f32.mrb[0].mxu0
  %v4320 = vadd.f32 %v3646, %v4319
  %v4321 = vpop.f32.mrb[0].mxu0
  %v4322 = vpop.f32.mrb[0].mxu0
  %v4323 = vadd.f32 %v3649, %v4322
  %v4324 = vpop.f32.mrb[0].mxu0
  %4325 = vmatprep.mubr.bf16.mxu0 0
  %4326 = vmatmul.mubr.bf16.gmra.mrb[0].mxu0 %v4253
  %v4327 = vpop.f32.mrb[0].mxu0
  %v4328 = vadd.f32 %v3654, %v4327
  %v4329 = vpop.f32.mrb[0].mxu0
  %v4330 = vpop.f32.mrb[0].mxu0
  %v4331 = vadd.f32 %v3657, %v4330
  %v4332 = vpop.f32.mrb[0].mxu0
  %4333 = vmatprep.mubr.bf16.mxu0 0
  %4334 = vmatmul.mubr.bf16.gmra.mrb[0].mxu0 %v4256
  %v4335 = vpop.f32.mrb[0].mxu0
  %v4336 = vadd.f32 %v3662, %v4335
  %v4337 = vpop.f32.mrb[0].mxu0
  %v4338 = vpop.f32.mrb[0].mxu0
  %v4339 = vadd.f32 %v3665, %v4338
  %v4340 = vpop.f32.mrb[0].mxu0
  %4341 = vmatprep.mubr.bf16.mxu0 0
  %4342 = vmatmul.mubr.bf16.gmra.mrb[0].mxu0 %v4259
  %v4343 = vpop.f32.mrb[0].mxu0
  %v4344 = vadd.f32 %v3670, %v4343
  %v4345 = vpop.f32.mrb[0].mxu0
  %v4346 = vpop.f32.mrb[0].mxu0
  %v4347 = vpop.f32.mrb[0].mxu0
  %4348 = vdwg.mxu0
  %v4349 = vadd.f32 %v3897, %v4030
  %v4350 = vadd.f32 %v3900, %v4033
  %v4351 = vadd.f32 %v3905, %v4038
  %v4352 = vadd.f32 %v3908, %v4041
  %v4353 = vadd.f32 %v3913, %v4046
  %v4354 = vadd.f32 %v3916, %v4049
  %v4355 = vadd.f32 %v3921, %v4054
  %v4356 = vadd.f32 %v3924, %v4057
  %v4357 = vadd.f32 %v3929, %v4062
  %v4358 = vadd.f32 %v3932, %v4065
  %v4359 = vadd.f32 %v3937, %v4070
  %v4360 = vadd.f32 %v3940, %v4073
  %v4361 = vadd.f32 %v3945, %v4078
  %v4362 = vadd.f32 %v4163, %v4296
  %v4363 = vadd.f32 %v4166, %v4299
  %v4364 = vadd.f32 %v4171, %v4304
  %v4365 = vadd.f32 %v4174, %v4307
  %v4366 = vadd.f32 %v4179, %v4312
  %v4367 = vadd.f32 %v4182, %v4315
  %v4368 = vadd.f32 %v4187, %v4320
  %v4369 = vadd.f32 %v4190, %v4323
  %v4370 = vadd.f32 %v4195, %v4328
  %v4371 = vadd.f32 %v4198, %v4331
  %v4372 = vadd.f32 %v4203, %v4336
  %v4373 = vadd.f32 %v4206, %v4339
  %v4374 = vadd.f32 %v4211, %v4344
  %v4375 = vadd.f32 %v4349, %v4362
  %v4376 = vadd.f32 %v4350, %v4363
  %v4377 = vadd.f32 %v4351, %v4364
  %v4378 = vadd.f32 %v4352, %v4365
  %v4379 = vadd.f32 %v4353, %v4366
  %v4380 = vadd.f32 %v4354, %v4367
  %v4381 = vadd.f32 %v4355, %v4368
  %v4382 = vadd.f32 %v4356, %v4369
  %v4383 = vadd.f32 %v4357, %v4370
  %v4384 = vadd.f32 %v4358, %v4371
  %v4385 = vadd.f32 %v4359, %v4372
  %v4386 = vadd.f32 %v4360, %v4373
  %v4387 = vadd.f32 %v4361, %v4374
  %v4388 = vadd.f32 %v4375, %v3764
  %v4389 = vadd.f32 %v4376, %v3767
  %v4390 = vadd.f32 %v4377, %v3772
  %v4391 = vadd.f32 %v4378, %v3775
  %v4392 = vadd.f32 %v4379, %v3780
  %v4393 = vadd.f32 %v4380, %v3783
  %v4394 = vadd.f32 %v4381, %v3788
  %v4395 = vadd.f32 %v4382, %v3791
  %v4396 = vadd.f32 %v4383, %v3796
  %v4397 = vadd.f32 %v4384, %v3799
  %v4398 = vadd.f32 %v4385, %v3804
  %v4399 = vadd.f32 %v4386, %v3807
  %v4400 = vadd.f32 %v4387, %v3812
  %v4401 = vld [vmem:[%s4] sm:$0x1]
  %v4403 = vlaneseq
  %v4404 = vshrl.u32 %v4403, 7
  %v4405 = vsub.s32 0, %v4404
  %v4406 = vrot.slane %v4401, %v4405
  %v4408 = vadd.f32 %v4388, %v4406
  %v4409 = vadd.f32 %v4389, %v4406
  %v4410 = vadd.f32 %v4390, %v4406
  %v4411 = vadd.f32 %v4391, %v4406
  %v4412 = vadd.f32 %v4392, %v4406
  %v4413 = vadd.f32 %v4393, %v4406
  %v4414 = vadd.f32 %v4394, %v4406
  %v4415 = vadd.f32 %v4395, %v4406
  %v4416 = vadd.f32 %v4396, %v4406
  %v4417 = vadd.f32 %v4397, %v4406
  %v4418 = vadd.f32 %v4398, %v4406
  %v4419 = vadd.f32 %v4399, %v4406
  %v4420 = vadd.f32 %v4400, %v4406
  %v4421 = vmax.f32 %v4408, 0.0
  %v4422 = vmax.f32 %v4409, 0.0
  %v4423 = vmax.f32 %v4410, 0.0
  %v4424 = vmax.f32 %v4411, 0.0
  %v4425 = vmax.f32 %v4412, 0.0
  %v4426 = vmax.f32 %v4413, 0.0
  %v4427 = vmax.f32 %v4414, 0.0
  %v4428 = vmax.f32 %v4415, 0.0
  %v4429 = vmax.f32 %v4416, 0.0
  %v4430 = vmax.f32 %v4417, 0.0
  %v4431 = vmax.f32 %v4418, 0.0
  %v4432 = vmax.f32 %v4419, 0.0
  %v4433 = vmax.f32 %v4420, 0.0
  %4434 = vst [vmem:[#allocation2] sm:$0xff] 0.0
  %4435 = vst [vmem:[#allocation2 + $0x8] sm:$0xff] 0.0
  %4436 = vst [vmem:[#allocation2 + $0x10] sm:$0xff] 0.0
  %4437 = vst [vmem:[#allocation2 + $0x18] sm:$0xff] 0.0
  %4438 = vst [vmem:[#allocation2 + $0x20] sm:$0xff] 0.0
  %4439 = vst [vmem:[#allocation2 + $0x28] sm:$0xff] 0.0
  %4440 = vst [vmem:[#allocation2 + $0x30] sm:$0xff] 0.0
  %4441 = vst [vmem:[#allocation2 + $0x38] sm:$0xff] 0.0
  %4442 = vst [vmem:[#allocation2 + $0x40] sm:$0xff] 0.0
  %4443 = vst [vmem:[#allocation2 + $0x48] sm:$0xff] 0.0
  %4444 = vst [vmem:[#allocation2 + $0x50] sm:$0xff] 0.0
  %4445 = vst [vmem:[#allocation2 + $0x58] sm:$0xff] 0.0
  %4446 = vst [vmem:[#allocation2 + $0x60] sm:$0xff] 0.0
  %4447 = vst [vmem:[#allocation2 + $0x68] sm:$0xff] 0.0
  %4448 = vst [vmem:[#allocation2 + $0x70] sm:$0xff] 0.0
  %4449 = vst [vmem:[#allocation2 + $0x78] sm:$0xff] 0.0
  %4450 = vst [vmem:[#allocation2 + $0x80] sm:$0xff] 0.0
  %4451 = vst [vmem:[#allocation2 + $0x88] sm:$0xff] 0.0
  %4452 = vst [vmem:[#allocation2 + $0x90] sm:$0xff] 0.0
  %4453 = vst [vmem:[#allocation2 + $0x98] sm:$0xff] 0.0
  %4454 = vst [vmem:[#allocation2 + $0xa0] sm:$0xff] 0.0
  %4455 = vst [vmem:[#allocation2 + $0xa8] sm:$0xff] 0.0
  %4456 = vst [vmem:[#allocation2 + $0xb0] sm:$0xff] 0.0
  %4457 = vst [vmem:[#allocation2 + $0xb8] sm:$0xff] 0.0
  %4458 = vst [vmem:[#allocation2 + $0xc0] sm:$0xff] 0.0
  %4459 = vst [vmem:[#allocation2 + $0xc8] sm:$0xff] 0.0
  %4460 = vst [vmem:[#allocation2 + $0xd0] sm:$0xff] 0.0
  %4461 = vst [vmem:[#allocation2 + $0xd8] sm:$0xff] 0.0
  %vm4462 = vcmask 517120
  %4463 = vst.msk [vmem:[#allocation2] sm:$0x3] %vm4462, %v4421
  %v4465 = vrot.slane %v4421, 2
  %4466 = vrot.lane.b32.xlu0 %v4465, 64
  %v4467 = vpop.permute.xlu0 %4466
  %vm4469 = vcmask 1041920
  %4470 = vst.msk [vmem:[#allocation2] sm:$0x3] %vm4469, %v4467
  %v4471 = vrot.slane %v4421, 4
  %4473 = vst.msk [vmem:[#allocation2 + $0x8] sm:$0x3] %vm4462, %v4471
  %v4474 = vrot.slane %v4421, 6
  %4475 = vrot.lane.b32.xlu0 %v4474, 64
  %v4476 = vpop.permute.xlu0 %4475
  %4478 = vst.msk [vmem:[#allocation2 + $0x8] sm:$0x3] %vm4469, %v4476
  %4479 = vst.msk [vmem:[#allocation2 + $0x10] sm:$0x3] %vm4462, %v4422
  %v4481 = vrot.slane %v4422, 2
  %4482 = vrot.lane.b32.xlu0 %v4481, 64
  %v4483 = vpop.permute.xlu0 %4482
  %4485 = vst.msk [vmem:[#allocation2 + $0x10] sm:$0x3] %vm4469, %v4483
  %v4486 = vrot.slane %v4422, 4
  %4488 = vst.msk [vmem:[#allocation2 + $0x18] sm:$0x3] %vm4462, %v4486
  %v4489 = vrot.slane %v4422, 6
  %4490 = vrot.lane.b32.xlu0 %v4489, 64
  %v4491 = vpop.permute.xlu0 %4490
  %4493 = vst.msk [vmem:[#allocation2 + $0x18] sm:$0x3] %vm4469, %v4491
  %4494 = vst.msk [vmem:[#allocation2 + $0x20] sm:$0x3] %vm4462, %v4423
  %v4496 = vrot.slane %v4423, 2
  %4497 = vrot.lane.b32.xlu0 %v4496, 64
  %v4498 = vpop.permute.xlu0 %4497
  %4500 = vst.msk [vmem:[#allocation2 + $0x20] sm:$0x3] %vm4469, %v4498
  %v4501 = vrot.slane %v4423, 4
  %4503 = vst.msk [vmem:[#allocation2 + $0x28] sm:$0x3] %vm4462, %v4501
  %v4504 = vrot.slane %v4423, 6
  %4505 = vrot.lane.b32.xlu0 %v4504, 64
  %v4506 = vpop.permute.xlu0 %4505
  %4508 = vst.msk [vmem:[#allocation2 + $0x28] sm:$0x3] %vm4469, %v4506
  %4509 = vst.msk [vmem:[#allocation2 + $0x30] sm:$0x3] %vm4462, %v4424
  %v4511 = vrot.slane %v4424, 2
  %4512 = vrot.lane.b32.xlu0 %v4511, 64
  %v4513 = vpop.permute.xlu0 %4512
  %4515 = vst.msk [vmem:[#allocation2 + $0x30] sm:$0x3] %vm4469, %v4513
  %v4516 = vrot.slane %v4424, 4
  %4518 = vst.msk [vmem:[#allocation2 + $0x38] sm:$0x3] %vm4462, %v4516
  %v4519 = vrot.slane %v4424, 6
  %4520 = vrot.lane.b32.xlu0 %v4519, 64
  %v4521 = vpop.permute.xlu0 %4520
  %4523 = vst.msk [vmem:[#allocation2 + $0x38] sm:$0x3] %vm4469, %v4521
  %4524 = vst.msk [vmem:[#allocation2 + $0x40] sm:$0x3] %vm4462, %v4425
  %v4526 = vrot.slane %v4425, 2
  %4527 = vrot.lane.b32.xlu0 %v4526, 64
  %v4528 = vpop.permute.xlu0 %4527
  %4530 = vst.msk [vmem:[#allocation2 + $0x40] sm:$0x3] %vm4469, %v4528
  %v4531 = vrot.slane %v4425, 4
  %4533 = vst.msk [vmem:[#allocation2 + $0x48] sm:$0x3] %vm4462, %v4531
  %v4534 = vrot.slane %v4425, 6
  %4535 = vrot.lane.b32.xlu0 %v4534, 64
  %v4536 = vpop.permute.xlu0 %4535
  %4538 = vst.msk [vmem:[#allocation2 + $0x48] sm:$0x3] %vm4469, %v4536
  %4539 = vst.msk [vmem:[#allocation2 + $0x50] sm:$0x3] %vm4462, %v4426
  %v4541 = vrot.slane %v4426, 2
  %4542 = vrot.lane.b32.xlu0 %v4541, 64
  %v4543 = vpop.permute.xlu0 %4542
  %4545 = vst.msk [vmem:[#allocation2 + $0x50] sm:$0x3] %vm4469, %v4543
  %v4546 = vrot.slane %v4426, 4
  %4548 = vst.msk [vmem:[#allocation2 + $0x58] sm:$0x3] %vm4462, %v4546
  %v4549 = vrot.slane %v4426, 6
  %4550 = vrot.lane.b32.xlu0 %v4549, 64
  %v4551 = vpop.permute.xlu0 %4550
  %4553 = vst.msk [vmem:[#allocation2 + $0x58] sm:$0x3] %vm4469, %v4551
  %4554 = vst.msk [vmem:[#allocation2 + $0x60] sm:$0x3] %vm4462, %v4427
  %v4556 = vrot.slane %v4427, 2
  %4557 = vrot.lane.b32.xlu0 %v4556, 64
  %v4558 = vpop.permute.xlu0 %4557
  %4560 = vst.msk [vmem:[#allocation2 + $0x60] sm:$0x3] %vm4469, %v4558
  %v4561 = vrot.slane %v4427, 4
  %4563 = vst.msk [vmem:[#allocation2 + $0x68] sm:$0x3] %vm4462, %v4561
  %v4564 = vrot.slane %v4427, 6
  %4565 = vrot.lane.b32.xlu0 %v4564, 64
  %v4566 = vpop.permute.xlu0 %4565
  %4568 = vst.msk [vmem:[#allocation2 + $0x68] sm:$0x3] %vm4469, %v4566
  %4569 = vst.msk [vmem:[#allocation2 + $0x70] sm:$0x3] %vm4462, %v4428
  %v4571 = vrot.slane %v4428, 2
  %4572 = vrot.lane.b32.xlu0 %v4571, 64
  %v4573 = vpop.permute.xlu0 %4572
  %4575 = vst.msk [vmem:[#allocation2 + $0x70] sm:$0x3] %vm4469, %v4573
  %v4576 = vrot.slane %v4428, 4
  %4578 = vst.msk [vmem:[#allocation2 + $0x78] sm:$0x3] %vm4462, %v4576
  %v4579 = vrot.slane %v4428, 6
  %4580 = vrot.lane.b32.xlu0 %v4579, 64
  %v4581 = vpop.permute.xlu0 %4580
  %4583 = vst.msk [vmem:[#allocation2 + $0x78] sm:$0x3] %vm4469, %v4581
  %4584 = vst.msk [vmem:[#allocation2 + $0x80] sm:$0x3] %vm4462, %v4429
  %v4586 = vrot.slane %v4429, 2
  %4587 = vrot.lane.b32.xlu0 %v4586, 64
  %v4588 = vpop.permute.xlu0 %4587
  %4590 = vst.msk [vmem:[#allocation2 + $0x80] sm:$0x3] %vm4469, %v4588
  %v4591 = vrot.slane %v4429, 4
  %4593 = vst.msk [vmem:[#allocation2 + $0x88] sm:$0x3] %vm4462, %v4591
  %v4594 = vrot.slane %v4429, 6
  %4595 = vrot.lane.b32.xlu0 %v4594, 64
  %v4596 = vpop.permute.xlu0 %4595
  %4598 = vst.msk [vmem:[#allocation2 + $0x88] sm:$0x3] %vm4469, %v4596
  %4599 = vst.msk [vmem:[#allocation2 + $0x90] sm:$0x3] %vm4462, %v4430
  %v4601 = vrot.slane %v4430, 2
  %4602 = vrot.lane.b32.xlu0 %v4601, 64
  %v4603 = vpop.permute.xlu0 %4602
  %4605 = vst.msk [vmem:[#allocation2 + $0x90] sm:$0x3] %vm4469, %v4603
  %v4606 = vrot.slane %v4430, 4
  %4608 = vst.msk [vmem:[#allocation2 + $0x98] sm:$0x3] %vm4462, %v4606
  %v4609 = vrot.slane %v4430, 6
  %4610 = vrot.lane.b32.xlu0 %v4609, 64
  %v4611 = vpop.permute.xlu0 %4610
  %4613 = vst.msk [vmem:[#allocation2 + $0x98] sm:$0x3] %vm4469, %v4611
  %4614 = vst.msk [vmem:[#allocation2 + $0xa0] sm:$0x3] %vm4462, %v4431
  %v4616 = vrot.slane %v4431, 2
  %4617 = vrot.lane.b32.xlu0 %v4616, 64
  %v4618 = vpop.permute.xlu0 %4617
  %4620 = vst.msk [vmem:[#allocation2 + $0xa0] sm:$0x3] %vm4469, %v4618
  %v4621 = vrot.slane %v4431, 4
  %4623 = vst.msk [vmem:[#allocation2 + $0xa8] sm:$0x3] %vm4462, %v4621
  %v4624 = vrot.slane %v4431, 6
  %4625 = vrot.lane.b32.xlu0 %v4624, 64
  %v4626 = vpop.permute.xlu0 %4625
  %4628 = vst.msk [vmem:[#allocation2 + $0xa8] sm:$0x3] %vm4469, %v4626
  %4629 = vst.msk [vmem:[#allocation2 + $0xb0] sm:$0x3] %vm4462, %v4432
  %v4631 = vrot.slane %v4432, 2
  %4632 = vrot.lane.b32.xlu0 %v4631, 64
  %v4633 = vpop.permute.xlu0 %4632
  %4635 = vst.msk [vmem:[#allocation2 + $0xb0] sm:$0x3] %vm4469, %v4633
  %v4636 = vrot.slane %v4432, 4
  %4638 = vst.msk [vmem:[#allocation2 + $0xb8] sm:$0x3] %vm4462, %v4636
  %v4639 = vrot.slane %v4432, 6
  %4640 = vrot.lane.b32.xlu0 %v4639, 64
  %v4641 = vpop.permute.xlu0 %4640
  %4643 = vst.msk [vmem:[#allocation2 + $0xb8] sm:$0x3] %vm4469, %v4641
  %4644 = vst.msk [vmem:[#allocation2 + $0xc0] sm:$0x3] %vm4462, %v4433
  %v4645 = vld [vmem:[#allocation2] sm:$0xff]
  %v4646 = vld [vmem:[#allocation2 + $0x8] sm:$0xff]
  %v4647 = vld [vmem:[#allocation2 + $0x10] sm:$0xff]
  %v4648 = vld [vmem:[#allocation2 + $0x18] sm:$0xff]
  %v4649 = vld [vmem:[#allocation2 + $0x20] sm:$0xff]
  %v4650 = vld [vmem:[#allocation2 + $0x28] sm:$0xff]
  %v4651 = vld [vmem:[#allocation2 + $0x30] sm:$0xff]
  %v4652 = vld [vmem:[#allocation2 + $0x38] sm:$0xff]
  %v4653 = vld [vmem:[#allocation2 + $0x40] sm:$0xff]
  %v4654 = vld [vmem:[#allocation2 + $0x48] sm:$0xff]
  %v4655 = vld [vmem:[#allocation2 + $0x50] sm:$0xff]
  %v4656 = vld [vmem:[#allocation2 + $0x58] sm:$0xff]
  %v4657 = vld [vmem:[#allocation2 + $0x60] sm:$0xff]
  %v4658 = vld [vmem:[#allocation2 + $0x68] sm:$0xff]
  %v4659 = vld [vmem:[#allocation2 + $0x70] sm:$0xff]
  %v4660 = vld [vmem:[#allocation2 + $0x78] sm:$0xff]
  %v4661 = vld [vmem:[#allocation2 + $0x80] sm:$0xff]
  %v4662 = vld [vmem:[#allocation2 + $0x88] sm:$0xff]
  %v4663 = vld [vmem:[#allocation2 + $0x90] sm:$0xff]
  %v4664 = vld [vmem:[#allocation2 + $0x98] sm:$0xff]
  %v4665 = vld [vmem:[#allocation2 + $0xa0] sm:$0xff]
  %v4666 = vld [vmem:[#allocation2 + $0xa8] sm:$0xff]
  %v4667 = vld [vmem:[#allocation2 + $0xb0] sm:$0xff]
  %v4668 = vld [vmem:[#allocation2 + $0xb8] sm:$0xff]
  %v4669 = vld [vmem:[#allocation2 + $0xc0] sm:$0xff]
  %v4670 = vld [vmem:[#allocation2 + $0xc8] sm:$0xff]
  %v4671 = vld [vmem:[#allocation2 + $0xd0] sm:$0xff]
  %v4672 = vld [vmem:[#allocation2 + $0xd8] sm:$0xff]
  %v4673 = vpack.c.bf16 %v4645, %v4645
  %v4674 = vpack.c.bf16 %v4646, %v4646
  %v4675 = vpack.c.bf16 %v4647, %v4647
  %v4676 = vpack.c.bf16 %v4648, %v4648
  %v4677 = vpack.c.bf16 %v4649, %v4649
  %v4678 = vpack.c.bf16 %v4650, %v4650
  %v4679 = vpack.c.bf16 %v4651, %v4651
  %v4680 = vpack.c.bf16 %v4652, %v4652
  %v4681 = vpack.c.bf16 %v4653, %v4653
  %v4682 = vpack.c.bf16 %v4654, %v4654
  %v4683 = vpack.c.bf16 %v4655, %v4655
  %v4684 = vpack.c.bf16 %v4656, %v4656
  %v4685 = vpack.c.bf16 %v4657, %v4657
  %v4686 = vpack.c.bf16 %v4658, %v4658
  %v4687 = vpack.c.bf16 %v4659, %v4659
  %v4688 = vpack.c.bf16 %v4660, %v4660
  %v4689 = vpack.c.bf16 %v4661, %v4661
  %v4690 = vpack.c.bf16 %v4662, %v4662
  %v4691 = vpack.c.bf16 %v4663, %v4663
  %v4692 = vpack.c.bf16 %v4664, %v4664
  %v4693 = vpack.c.bf16 %v4665, %v4665
  %v4694 = vpack.c.bf16 %v4666, %v4666
  %v4695 = vpack.c.bf16 %v4667, %v4667
  %v4696 = vpack.c.bf16 %v4668, %v4668
  %v4697 = vpack.c.bf16 %v4669, %v4669
  %v4698 = vpack.c.bf16 %v4670, %v4670
  %v4699 = vpack.c.bf16 %v4671, %v4671
  %v4700 = vpack.c.bf16 %v4672, %v4672
  %v4701 = vld [vmem:[%s5] sm:$0xff]
  %v4702 = vld [vmem:[%s5 + $0x8] sm:$0xff]
  %v4703 = vld [vmem:[%s5 + $0x10] sm:$0xff]
  %v4704 = vld [vmem:[%s5 + $0x18] sm:$0xff]
  %v4705 = vld [vmem:[%s5 + $0x20] sm:$0xff]
  %v4706 = vld [vmem:[%s5 + $0x28] sm:$0xff]
  %v4707 = vld [vmem:[%s5 + $0x30] sm:$0xff]
  %v4708 = vld [vmem:[%s5 + $0x38] sm:$0xff]
  %v4709 = vld [vmem:[%s5 + $0x40] sm:$0xff]
  %v4710 = vld [vmem:[%s5 + $0x48] sm:$0xff]
  %v4711 = vld [vmem:[%s5 + $0x50] sm:$0xff]
  %v4712 = vld [vmem:[%s5 + $0x58] sm:$0xff]
  %v4713 = vld [vmem:[%s5 + $0x60] sm:$0xff]
  %v4714 = vld [vmem:[%s5 + $0x68] sm:$0xff]
  %v4715 = vld [vmem:[%s5 + $0x70] sm:$0xff]
  %v4716 = vld [vmem:[%s5 + $0x78] sm:$0xff]
  %v4717 = vld [vmem:[%s5 + $0x80] sm:$0xff]
  %v4718 = vld [vmem:[%s5 + $0x88] sm:$0xff]
  %v4719 = vld [vmem:[%s5 + $0x90] sm:$0xff]
  %v4720 = vld [vmem:[%s5 + $0x98] sm:$0xff]
  %v4721 = vld [vmem:[%s5 + $0xa0] sm:$0xff]
  %v4722 = vld [vmem:[%s5 + $0xa8] sm:$0xff]
  %v4723 = vld [vmem:[%s5 + $0xb0] sm:$0xff]
  %v4724 = vld [vmem:[%s5 + $0xb8] sm:$0xff]
  %v4725 = vld [vmem:[%s5 + $0xc0] sm:$0xff]
  %v4726 = vld [vmem:[%s5 + $0xc8] sm:$0xff]
  %v4727 = vld [vmem:[%s5 + $0xd0] sm:$0xff]
  %v4728 = vld [vmem:[%s5 + $0xd8] sm:$0xff]
  %v4729 = vld [vmem:[%s5 + $0xe0] sm:$0xff]
  %v4730 = vld [vmem:[%s5 + $0xe8] sm:$0xff]
  %v4731 = vld [vmem:[%s5 + $0xf0] sm:$0xff]
  %v4732 = vld [vmem:[%s5 + $0xf8] sm:$0xff]
  %v4733 = vld [vmem:[%s5 + $0x100] sm:$0xff]
  %v4734 = vld [vmem:[%s5 + $0x108] sm:$0xff]
  %v4735 = vld [vmem:[%s5 + $0x110] sm:$0xff]
  %v4736 = vld [vmem:[%s5 + $0x118] sm:$0xff]
  %v4737 = vld [vmem:[%s5 + $0x120] sm:$0xff]
  %v4738 = vld [vmem:[%s5 + $0x128] sm:$0xff]
  %v4739 = vld [vmem:[%s5 + $0x130] sm:$0xff]
  %v4740 = vld [vmem:[%s5 + $0x138] sm:$0xff]
  %v4741 = vld [vmem:[%s5 + $0x140] sm:$0xff]
  %v4742 = vld [vmem:[%s5 + $0x148] sm:$0xff]
  %v4743 = vld [vmem:[%s5 + $0x150] sm:$0xff]
  %v4744 = vld [vmem:[%s5 + $0x158] sm:$0xff]
  %v4745 = vld [vmem:[%s5 + $0x160] sm:$0xff]
  %v4746 = vld [vmem:[%s5 + $0x168] sm:$0xff]
  %v4747 = vld [vmem:[%s5 + $0x170] sm:$0xff]
  %v4748 = vld [vmem:[%s5 + $0x178] sm:$0xff]
  %v4749 = vld [vmem:[%s5 + $0x180] sm:$0xff]
  %v4750 = vld [vmem:[%s5 + $0x188] sm:$0xff]
  %v4751 = vld [vmem:[%s5 + $0x190] sm:$0xff]
  %v4752 = vld [vmem:[%s5 + $0x198] sm:$0xff]
  %v4753 = vld [vmem:[%s5 + $0x1a0] sm:$0xff]
  %v4754 = vld [vmem:[%s5 + $0x1a8] sm:$0xff]
  %v4755 = vld [vmem:[%s5 + $0x1b0] sm:$0xff]
  %v4756 = vld [vmem:[%s5 + $0x1b8] sm:$0xff]
  %v4757 = vld [vmem:[%s5 + $0x1c0] sm:$0xff]
  %v4758 = vld [vmem:[%s5 + $0x1c8] sm:$0xff]
  %v4759 = vld [vmem:[%s5 + $0x1d0] sm:$0xff]
  %v4760 = vld [vmem:[%s5 + $0x1d8] sm:$0xff]
  %v4761 = vld [vmem:[%s5 + $0x1e0] sm:$0xff]
  %v4762 = vld [vmem:[%s5 + $0x1e8] sm:$0xff]
  %v4763 = vld [vmem:[%s5 + $0x1f0] sm:$0xff]
  %v4764 = vld [vmem:[%s5 + $0x1f8] sm:$0xff]
  %v4765 = vld [vmem:[%s5 + $0x200] sm:$0xff]
  %v4766 = vld [vmem:[%s5 + $0x208] sm:$0xff]
  %v4767 = vld [vmem:[%s5 + $0x210] sm:$0xff]
  %v4768 = vld [vmem:[%s5 + $0x218] sm:$0xff]
  %v4769 = vld [vmem:[%s5 + $0x220] sm:$0xff]
  %v4770 = vld [vmem:[%s5 + $0x228] sm:$0xff]
  %v4771 = vld [vmem:[%s5 + $0x230] sm:$0xff]
  %v4772 = vld [vmem:[%s5 + $0x238] sm:$0xff]
  %v4773 = vld [vmem:[%s5 + $0x240] sm:$0xff]
  %v4774 = vld [vmem:[%s5 + $0x248] sm:$0xff]
  %v4775 = vld [vmem:[%s5 + $0x250] sm:$0xff]
  %v4776 = vld [vmem:[%s5 + $0x258] sm:$0xff]
  %v4777 = vld [vmem:[%s5 + $0x260] sm:$0xff]
  %v4778 = vld [vmem:[%s5 + $0x268] sm:$0xff]
  %v4779 = vld [vmem:[%s5 + $0x270] sm:$0xff]
  %v4780 = vld [vmem:[%s5 + $0x278] sm:$0xff]
  %v4781 = vld [vmem:[%s5 + $0x280] sm:$0xff]
  %v4782 = vld [vmem:[%s5 + $0x288] sm:$0xff]
  %v4783 = vld [vmem:[%s5 + $0x290] sm:$0xff]
  %v4784 = vld [vmem:[%s5 + $0x298] sm:$0xff]
  %v4785 = vld [vmem:[%s5 + $0x2a0] sm:$0xff]
  %v4786 = vld [vmem:[%s5 + $0x2a8] sm:$0xff]
  %v4787 = vld [vmem:[%s5 + $0x2b0] sm:$0xff]
  %v4788 = vld [vmem:[%s5 + $0x2b8] sm:$0xff]
  %v4789 = vld [vmem:[%s5 + $0x2c0] sm:$0xff]
  %v4790 = vld [vmem:[%s5 + $0x2c8] sm:$0xff]
  %v4791 = vld [vmem:[%s5 + $0x2d0] sm:$0xff]
  %v4792 = vld [vmem:[%s5 + $0x2d8] sm:$0xff]
  %v4793 = vld [vmem:[%s5 + $0x2e0] sm:$0xff]
  %v4794 = vld [vmem:[%s5 + $0x2e8] sm:$0xff]
  %v4795 = vld [vmem:[%s5 + $0x2f0] sm:$0xff]
  %v4796 = vld [vmem:[%s5 + $0x2f8] sm:$0xff]
  %v4797 = vld [vmem:[%s5 + $0x300] sm:$0xff]
  %v4798 = vld [vmem:[%s5 + $0x308] sm:$0xff]
  %v4799 = vld [vmem:[%s5 + $0x310] sm:$0xff]
  %v4800 = vld [vmem:[%s5 + $0x318] sm:$0xff]
  %v4801 = vld [vmem:[%s5 + $0x320] sm:$0xff]
  %v4802 = vld [vmem:[%s5 + $0x328] sm:$0xff]
  %v4803 = vld [vmem:[%s5 + $0x330] sm:$0xff]
  %v4804 = vld [vmem:[%s5 + $0x338] sm:$0xff]
  %v4805 = vld [vmem:[%s5 + $0x340] sm:$0xff]
  %v4806 = vld [vmem:[%s5 + $0x348] sm:$0xff]
  %v4807 = vld [vmem:[%s5 + $0x350] sm:$0xff]
  %v4808 = vld [vmem:[%s5 + $0x358] sm:$0xff]
  %v4809 = vld [vmem:[%s5 + $0x360] sm:$0xff]
  %v4810 = vld [vmem:[%s5 + $0x368] sm:$0xff]
  %v4811 = vld [vmem:[%s5 + $0x370] sm:$0xff]
  %v4812 = vld [vmem:[%s5 + $0x378] sm:$0xff]
  %v4813 = vld [vmem:[%s5 + $0x380] sm:$0xff]
  %v4814 = vld [vmem:[%s5 + $0x388] sm:$0xff]
  %v4815 = vld [vmem:[%s5 + $0x390] sm:$0xff]
  %v4816 = vld [vmem:[%s5 + $0x398] sm:$0xff]
  %v4817 = vld [vmem:[%s5 + $0x3a0] sm:$0xff]
  %v4818 = vld [vmem:[%s5 + $0x3a8] sm:$0xff]
  %v4819 = vld [vmem:[%s5 + $0x3b0] sm:$0xff]
  %v4820 = vld [vmem:[%s5 + $0x3b8] sm:$0xff]
  %v4821 = vld [vmem:[%s5 + $0x3c0] sm:$0xff]
  %v4822 = vld [vmem:[%s5 + $0x3c8] sm:$0xff]
  %v4823 = vld [vmem:[%s5 + $0x3d0] sm:$0xff]
  %v4824 = vld [vmem:[%s5 + $0x3d8] sm:$0xff]
  %v4825 = vld [vmem:[%s5 + $0x3e0] sm:$0xff]
  %v4826 = vld [vmem:[%s5 + $0x3e8] sm:$0xff]
  %v4827 = vld [vmem:[%s5 + $0x3f0] sm:$0xff]
  %v4828 = vld [vmem:[%s5 + $0x3f8] sm:$0xff]
  %v4829 = vld [vmem:[%s5 + $0x400] sm:$0xff]
  %v4830 = vld [vmem:[%s5 + $0x408] sm:$0xff]
  %v4831 = vld [vmem:[%s5 + $0x410] sm:$0xff]
  %v4832 = vld [vmem:[%s5 + $0x418] sm:$0xff]
  %v4833 = vld [vmem:[%s5 + $0x420] sm:$0xff]
  %v4834 = vld [vmem:[%s5 + $0x428] sm:$0xff]
  %v4835 = vld [vmem:[%s5 + $0x430] sm:$0xff]
  %v4836 = vld [vmem:[%s5 + $0x438] sm:$0xff]
  %v4837 = vld [vmem:[%s5 + $0x440] sm:$0xff]
  %v4838 = vld [vmem:[%s5 + $0x448] sm:$0xff]
  %v4839 = vld [vmem:[%s5 + $0x450] sm:$0xff]
  %v4840 = vld [vmem:[%s5 + $0x458] sm:$0xff]
  %v4841 = vld [vmem:[%s5 + $0x460] sm:$0xff]
  %v4842 = vld [vmem:[%s5 + $0x468] sm:$0xff]
  %v4843 = vld [vmem:[%s5 + $0x470] sm:$0xff]
  %v4844 = vld [vmem:[%s5 + $0x478] sm:$0xff]
  %v4845 = vld [vmem:[%s5 + $0x480] sm:$0xff]
  %v4846 = vld [vmem:[%s5 + $0x488] sm:$0xff]
  %v4847 = vld [vmem:[%s5 + $0x490] sm:$0xff]
  %v4848 = vld [vmem:[%s5 + $0x498] sm:$0xff]
  %v4849 = vld [vmem:[%s5 + $0x4a0] sm:$0xff]
  %v4850 = vld [vmem:[%s5 + $0x4a8] sm:$0xff]
  %v4851 = vld [vmem:[%s5 + $0x4b0] sm:$0xff]
  %v4852 = vld [vmem:[%s5 + $0x4b8] sm:$0xff]
  %v4853 = vld [vmem:[%s5 + $0x4c0] sm:$0xff]
  %v4854 = vld [vmem:[%s5 + $0x4c8] sm:$0xff]
  %v4855 = vld [vmem:[%s5 + $0x4d0] sm:$0xff]
  %v4856 = vld [vmem:[%s5 + $0x4d8] sm:$0xff]
  %v4857 = vld [vmem:[%s5 + $0x4e0] sm:$0xff]
  %v4858 = vld [vmem:[%s5 + $0x4e8] sm:$0xff]
  %v4859 = vld [vmem:[%s5 + $0x4f0] sm:$0xff]
  %v4860 = vld [vmem:[%s5 + $0x4f8] sm:$0xff]
  %v4861 = vld [vmem:[%s5 + $0x500] sm:$0xff]
  %v4862 = vld [vmem:[%s5 + $0x508] sm:$0xff]
  %v4863 = vld [vmem:[%s5 + $0x510] sm:$0xff]
  %v4864 = vld [vmem:[%s5 + $0x518] sm:$0xff]
  %v4865 = vld [vmem:[%s5 + $0x520] sm:$0xff]
  %v4866 = vld [vmem:[%s5 + $0x528] sm:$0xff]
  %v4867 = vld [vmem:[%s5 + $0x530] sm:$0xff]
  %v4868 = vld [vmem:[%s5 + $0x538] sm:$0xff]
  %v4869 = vld [vmem:[%s5 + $0x540] sm:$0xff]
  %v4870 = vld [vmem:[%s5 + $0x548] sm:$0xff]
  %v4871 = vld [vmem:[%s5 + $0x550] sm:$0xff]
  %v4872 = vld [vmem:[%s5 + $0x558] sm:$0xff]
  %v4873 = vld [vmem:[%s5 + $0x560] sm:$0xff]
  %v4874 = vld [vmem:[%s5 + $0x568] sm:$0xff]
  %v4875 = vld [vmem:[%s5 + $0x570] sm:$0xff]
  %v4876 = vld [vmem:[%s5 + $0x578] sm:$0xff]
  %v4877 = vld [vmem:[%s5 + $0x580] sm:$0xff]
  %v4878 = vld [vmem:[%s5 + $0x588] sm:$0xff]
  %v4879 = vld [vmem:[%s5 + $0x590] sm:$0xff]
  %v4880 = vld [vmem:[%s5 + $0x598] sm:$0xff]
  %v4881 = vld [vmem:[%s5 + $0x5a0] sm:$0xff]
  %v4882 = vld [vmem:[%s5 + $0x5a8] sm:$0xff]
  %v4883 = vld [vmem:[%s5 + $0x5b0] sm:$0xff]
  %v4884 = vld [vmem:[%s5 + $0x5b8] sm:$0xff]
  %v4885 = vld [vmem:[%s5 + $0x5c0] sm:$0xff]
  %v4886 = vld [vmem:[%s5 + $0x5c8] sm:$0xff]
  %v4887 = vld [vmem:[%s5 + $0x5d0] sm:$0xff]
  %v4888 = vld [vmem:[%s5 + $0x5d8] sm:$0xff]
  %v4889 = vld [vmem:[%s5 + $0x5e0] sm:$0xff]
  %v4890 = vld [vmem:[%s5 + $0x5e8] sm:$0xff]
  %v4891 = vld [vmem:[%s5 + $0x5f0] sm:$0xff]
  %v4892 = vld [vmem:[%s5 + $0x5f8] sm:$0xff]
  %v4893 = vld [vmem:[%s5 + $0x600] sm:$0xff]
  %v4894 = vld [vmem:[%s5 + $0x608] sm:$0xff]
  %v4895 = vld [vmem:[%s5 + $0x610] sm:$0xff]
  %v4896 = vld [vmem:[%s5 + $0x618] sm:$0xff]
  %v4897 = vld [vmem:[%s5 + $0x620] sm:$0xff]
  %v4898 = vld [vmem:[%s5 + $0x628] sm:$0xff]
  %v4899 = vld [vmem:[%s5 + $0x630] sm:$0xff]
  %v4900 = vld [vmem:[%s5 + $0x638] sm:$0xff]
  %v4901 = vld [vmem:[%s5 + $0x640] sm:$0xff]
  %v4902 = vld [vmem:[%s5 + $0x648] sm:$0xff]
  %v4903 = vld [vmem:[%s5 + $0x650] sm:$0xff]
  %v4904 = vld [vmem:[%s5 + $0x658] sm:$0xff]
  %v4905 = vld [vmem:[%s5 + $0x660] sm:$0xff]
  %v4906 = vld [vmem:[%s5 + $0x668] sm:$0xff]
  %v4907 = vld [vmem:[%s5 + $0x670] sm:$0xff]
  %v4908 = vld [vmem:[%s5 + $0x678] sm:$0xff]
  %v4909 = vld [vmem:[%s5 + $0x680] sm:$0xff]
  %v4910 = vld [vmem:[%s5 + $0x688] sm:$0xff]
  %v4911 = vld [vmem:[%s5 + $0x690] sm:$0xff]
  %v4912 = vld [vmem:[%s5 + $0x698] sm:$0xff]
  %v4913 = vld [vmem:[%s5 + $0x6a0] sm:$0xff]
  %v4914 = vld [vmem:[%s5 + $0x6a8] sm:$0xff]
  %v4915 = vld [vmem:[%s5 + $0x6b0] sm:$0xff]
  %v4916 = vld [vmem:[%s5 + $0x6b8] sm:$0xff]
  %v4917 = vld [vmem:[%s5 + $0x6c0] sm:$0xff]
  %v4918 = vld [vmem:[%s5 + $0x6c8] sm:$0xff]
  %v4919 = vld [vmem:[%s5 + $0x6d0] sm:$0xff]
  %v4920 = vld [vmem:[%s5 + $0x6d8] sm:$0xff]
  %v4921 = vld [vmem:[%s5 + $0x6e0] sm:$0xff]
  %v4922 = vld [vmem:[%s5 + $0x6e8] sm:$0xff]
  %v4923 = vld [vmem:[%s5 + $0x6f0] sm:$0xff]
  %v4924 = vld [vmem:[%s5 + $0x6f8] sm:$0xff]
  %v4925 = vld [vmem:[%s5 + $0x700] sm:$0xff]
  %v4926 = vld [vmem:[%s5 + $0x708] sm:$0xff]
  %v4927 = vld [vmem:[%s5 + $0x710] sm:$0xff]
  %v4928 = vld [vmem:[%s5 + $0x718] sm:$0xff]
  %v4929 = vld [vmem:[%s5 + $0x720] sm:$0xff]
  %v4930 = vld [vmem:[%s5 + $0x728] sm:$0xff]
  %v4931 = vld [vmem:[%s5 + $0x730] sm:$0xff]
  %v4932 = vld [vmem:[%s5 + $0x738] sm:$0xff]
  %v4933 = vld [vmem:[%s5 + $0x740] sm:$0xff]
  %v4934 = vld [vmem:[%s5 + $0x748] sm:$0xff]
  %v4935 = vld [vmem:[%s5 + $0x750] sm:$0xff]
  %v4936 = vld [vmem:[%s5 + $0x758] sm:$0xff]
  %v4937 = vld [vmem:[%s5 + $0x760] sm:$0xff]
  %v4938 = vld [vmem:[%s5 + $0x768] sm:$0xff]
  %v4939 = vld [vmem:[%s5 + $0x770] sm:$0xff]
  %v4940 = vld [vmem:[%s5 + $0x778] sm:$0xff]
  %v4941 = vld [vmem:[%s5 + $0x780] sm:$0xff]
  %v4942 = vld [vmem:[%s5 + $0x788] sm:$0xff]
  %v4943 = vld [vmem:[%s5 + $0x790] sm:$0xff]
  %v4944 = vld [vmem:[%s5 + $0x798] sm:$0xff]
  %v4945 = vld [vmem:[%s5 + $0x7a0] sm:$0xff]
  %v4946 = vld [vmem:[%s5 + $0x7a8] sm:$0xff]
  %v4947 = vld [vmem:[%s5 + $0x7b0] sm:$0xff]
  %v4948 = vld [vmem:[%s5 + $0x7b8] sm:$0xff]
  %v4949 = vld [vmem:[%s5 + $0x7c0] sm:$0xff]
  %v4950 = vld [vmem:[%s5 + $0x7c8] sm:$0xff]
  %v4951 = vld [vmem:[%s5 + $0x7d0] sm:$0xff]
  %v4952 = vld [vmem:[%s5 + $0x7d8] sm:$0xff]
  %v4953 = vld [vmem:[%s5 + $0x7e0] sm:$0xff]
  %v4954 = vld [vmem:[%s5 + $0x7e8] sm:$0xff]
  %v4955 = vld [vmem:[%s5 + $0x7f0] sm:$0xff]
  %v4956 = vld [vmem:[%s5 + $0x7f8] sm:$0xff]
  %v4957 = vld [vmem:[%s5 + $0x800] sm:$0xff]
  %v4958 = vld [vmem:[%s5 + $0x808] sm:$0xff]
  %v4959 = vld [vmem:[%s5 + $0x810] sm:$0xff]
  %v4960 = vld [vmem:[%s5 + $0x818] sm:$0xff]
  %v4961 = vld [vmem:[%s5 + $0x820] sm:$0xff]
  %v4962 = vld [vmem:[%s5 + $0x828] sm:$0xff]
  %v4963 = vld [vmem:[%s5 + $0x830] sm:$0xff]
  %v4964 = vld [vmem:[%s5 + $0x838] sm:$0xff]
  %v4965 = vld [vmem:[%s5 + $0x840] sm:$0xff]
  %v4966 = vld [vmem:[%s5 + $0x848] sm:$0xff]
  %v4967 = vld [vmem:[%s5 + $0x850] sm:$0xff]
  %v4968 = vld [vmem:[%s5 + $0x858] sm:$0xff]
  %v4969 = vld [vmem:[%s5 + $0x860] sm:$0xff]
  %v4970 = vld [vmem:[%s5 + $0x868] sm:$0xff]
  %v4971 = vld [vmem:[%s5 + $0x870] sm:$0xff]
  %v4972 = vld [vmem:[%s5 + $0x878] sm:$0xff]
  %v4973 = vld [vmem:[%s5 + $0x880] sm:$0xff]
  %v4974 = vld [vmem:[%s5 + $0x888] sm:$0xff]
  %v4975 = vld [vmem:[%s5 + $0x890] sm:$0xff]
  %v4976 = vld [vmem:[%s5 + $0x898] sm:$0xff]
  %v4977 = vld [vmem:[%s5 + $0x8a0] sm:$0xff]
  %v4978 = vld [vmem:[%s5 + $0x8a8] sm:$0xff]
  %v4979 = vld [vmem:[%s5 + $0x8b0] sm:$0xff]
  %v4980 = vld [vmem:[%s5 + $0x8b8] sm:$0xff]
  %v4981 = vld [vmem:[%s5 + $0x8c0] sm:$0xff]
  %v4982 = vld [vmem:[%s5 + $0x8c8] sm:$0xff]
  %v4983 = vld [vmem:[%s5 + $0x8d0] sm:$0xff]
  %v4984 = vld [vmem:[%s5 + $0x8d8] sm:$0xff]
  %v4985 = vld [vmem:[%s5 + $0x8e0] sm:$0xff]
  %v4986 = vld [vmem:[%s5 + $0x8e8] sm:$0xff]
  %v4987 = vld [vmem:[%s5 + $0x8f0] sm:$0xff]
  %v4988 = vld [vmem:[%s5 + $0x8f8] sm:$0xff]
  %v4989 = vld [vmem:[%s5 + $0x900] sm:$0xff]
  %v4990 = vld [vmem:[%s5 + $0x908] sm:$0xff]
  %v4991 = vld [vmem:[%s5 + $0x910] sm:$0xff]
  %v4992 = vld [vmem:[%s5 + $0x918] sm:$0xff]
  %v4993 = vld [vmem:[%s5 + $0x920] sm:$0xff]
  %v4994 = vld [vmem:[%s5 + $0x928] sm:$0xff]
  %v4995 = vld [vmem:[%s5 + $0x930] sm:$0xff]
  %v4996 = vld [vmem:[%s5 + $0x938] sm:$0xff]
  %v4997 = vld [vmem:[%s5 + $0x940] sm:$0xff]
  %v4998 = vld [vmem:[%s5 + $0x948] sm:$0xff]
  %v4999 = vld [vmem:[%s5 + $0x950] sm:$0xff]
  %v5000 = vld [vmem:[%s5 + $0x958] sm:$0xff]
  %v5001 = vld [vmem:[%s5 + $0x960] sm:$0xff]
  %v5002 = vld [vmem:[%s5 + $0x968] sm:$0xff]
  %v5003 = vld [vmem:[%s5 + $0x970] sm:$0xff]
  %v5004 = vld [vmem:[%s5 + $0x978] sm:$0xff]
  %v5005 = vld [vmem:[%s5 + $0x980] sm:$0xff]
  %v5006 = vld [vmem:[%s5 + $0x988] sm:$0xff]
  %v5007 = vld [vmem:[%s5 + $0x990] sm:$0xff]
  %v5008 = vld [vmem:[%s5 + $0x998] sm:$0xff]
  %v5009 = vld [vmem:[%s5 + $0x9a0] sm:$0xff]
  %v5010 = vld [vmem:[%s5 + $0x9a8] sm:$0xff]
  %v5011 = vld [vmem:[%s5 + $0x9b0] sm:$0xff]
  %v5012 = vld [vmem:[%s5 + $0x9b8] sm:$0xff]
  %v5013 = vld [vmem:[%s5 + $0x9c0] sm:$0xff]
  %v5014 = vld [vmem:[%s5 + $0x9c8] sm:$0xff]
  %v5015 = vld [vmem:[%s5 + $0x9d0] sm:$0xff]
  %v5016 = vld [vmem:[%s5 + $0x9d8] sm:$0xff]
  %v5017 = vld [vmem:[%s5 + $0x9e0] sm:$0xff]
  %v5018 = vld [vmem:[%s5 + $0x9e8] sm:$0xff]
  %v5019 = vld [vmem:[%s5 + $0x9f0] sm:$0xff]
  %v5020 = vld [vmem:[%s5 + $0x9f8] sm:$0xff]
  %v5021 = vld [vmem:[%s5 + $0xa00] sm:$0xff]
  %v5022 = vld [vmem:[%s5 + $0xa08] sm:$0xff]
  %v5023 = vld [vmem:[%s5 + $0xa10] sm:$0xff]
  %v5024 = vld [vmem:[%s5 + $0xa18] sm:$0xff]
  %v5025 = vld [vmem:[%s5 + $0xa20] sm:$0xff]
  %v5026 = vld [vmem:[%s5 + $0xa28] sm:$0xff]
  %v5027 = vld [vmem:[%s5 + $0xa30] sm:$0xff]
  %v5028 = vld [vmem:[%s5 + $0xa38] sm:$0xff]
  %v5029 = vld [vmem:[%s5 + $0xa40] sm:$0xff]
  %v5030 = vld [vmem:[%s5 + $0xa48] sm:$0xff]
  %v5031 = vld [vmem:[%s5 + $0xa50] sm:$0xff]
  %v5032 = vld [vmem:[%s5 + $0xa58] sm:$0xff]
  %v5033 = vld [vmem:[%s5 + $0xa60] sm:$0xff]
  %v5034 = vld [vmem:[%s5 + $0xa68] sm:$0xff]
  %v5035 = vld [vmem:[%s5 + $0xa70] sm:$0xff]
  %v5036 = vld [vmem:[%s5 + $0xa78] sm:$0xff]
  %v5037 = vld [vmem:[%s5 + $0xa80] sm:$0xff]
  %v5038 = vld [vmem:[%s5 + $0xa88] sm:$0xff]
  %v5039 = vld [vmem:[%s5 + $0xa90] sm:$0xff]
  %v5040 = vld [vmem:[%s5 + $0xa98] sm:$0xff]
  %v5041 = vld [vmem:[%s5 + $0xaa0] sm:$0xff]
  %v5042 = vld [vmem:[%s5 + $0xaa8] sm:$0xff]
  %v5043 = vld [vmem:[%s5 + $0xab0] sm:$0xff]
  %v5044 = vld [vmem:[%s5 + $0xab8] sm:$0xff]
  %v5045 = vld [vmem:[%s5 + $0xac0] sm:$0xff]
  %v5046 = vld [vmem:[%s5 + $0xac8] sm:$0xff]
  %v5047 = vld [vmem:[%s5 + $0xad0] sm:$0xff]
  %v5048 = vld [vmem:[%s5 + $0xad8] sm:$0xff]
  %v5049 = vld [vmem:[%s5 + $0xae0] sm:$0xff]
  %v5050 = vld [vmem:[%s5 + $0xae8] sm:$0xff]
  %v5051 = vld [vmem:[%s5 + $0xaf0] sm:$0xff]
  %v5052 = vld [vmem:[%s5 + $0xaf8] sm:$0xff]
  %v5053 = vld [vmem:[%s5 + $0xb00] sm:$0xff]
  %v5054 = vld [vmem:[%s5 + $0xb08] sm:$0xff]
  %v5055 = vld [vmem:[%s5 + $0xb10] sm:$0xff]
  %v5056 = vld [vmem:[%s5 + $0xb18] sm:$0xff]
  %v5057 = vld [vmem:[%s5 + $0xb20] sm:$0xff]
  %v5058 = vld [vmem:[%s5 + $0xb28] sm:$0xff]
  %v5059 = vld [vmem:[%s5 + $0xb30] sm:$0xff]
  %v5060 = vld [vmem:[%s5 + $0xb38] sm:$0xff]
  %v5061 = vld [vmem:[%s5 + $0xb40] sm:$0xff]
  %v5062 = vld [vmem:[%s5 + $0xb48] sm:$0xff]
  %v5063 = vld [vmem:[%s5 + $0xb50] sm:$0xff]
  %v5064 = vld [vmem:[%s5 + $0xb58] sm:$0xff]
  %v5065 = vld [vmem:[%s5 + $0xb60] sm:$0xff]
  %v5066 = vld [vmem:[%s5 + $0xb68] sm:$0xff]
  %v5067 = vld [vmem:[%s5 + $0xb70] sm:$0xff]
  %v5068 = vld [vmem:[%s5 + $0xb78] sm:$0xff]
  %v5069 = vld [vmem:[%s5 + $0xb80] sm:$0xff]
  %v5070 = vld [vmem:[%s5 + $0xb88] sm:$0xff]
  %v5071 = vld [vmem:[%s5 + $0xb90] sm:$0xff]
  %v5072 = vld [vmem:[%s5 + $0xb98] sm:$0xff]
  %v5073 = vld [vmem:[%s5 + $0xba0] sm:$0xff]
  %v5074 = vld [vmem:[%s5 + $0xba8] sm:$0xff]
  %v5075 = vld [vmem:[%s5 + $0xbb0] sm:$0xff]
  %v5076 = vld [vmem:[%s5 + $0xbb8] sm:$0xff]
  %v5077 = vld [vmem:[%s5 + $0xbc0] sm:$0xff]
  %v5078 = vld [vmem:[%s5 + $0xbc8] sm:$0xff]
  %v5079 = vld [vmem:[%s5 + $0xbd0] sm:$0xff]
  %v5080 = vld [vmem:[%s5 + $0xbd8] sm:$0xff]
  %v5081 = vld [vmem:[%s5 + $0xbe0] sm:$0xff]
  %v5082 = vld [vmem:[%s5 + $0xbe8] sm:$0xff]
  %v5083 = vld [vmem:[%s5 + $0xbf0] sm:$0xff]
  %v5084 = vld [vmem:[%s5 + $0xbf8] sm:$0xff]
  %v5085 = vld [vmem:[%s5 + $0xc00] sm:$0xff]
  %v5086 = vld [vmem:[%s5 + $0xc08] sm:$0xff]
  %v5087 = vld [vmem:[%s5 + $0xc10] sm:$0xff]
  %v5088 = vld [vmem:[%s5 + $0xc18] sm:$0xff]
  %v5089 = vld [vmem:[%s5 + $0xc20] sm:$0xff]
  %v5090 = vld [vmem:[%s5 + $0xc28] sm:$0xff]
  %v5091 = vld [vmem:[%s5 + $0xc30] sm:$0xff]
  %v5092 = vld [vmem:[%s5 + $0xc38] sm:$0xff]
  %v5093 = vld [vmem:[%s5 + $0xc40] sm:$0xff]
  %v5094 = vld [vmem:[%s5 + $0xc48] sm:$0xff]
  %v5095 = vld [vmem:[%s5 + $0xc50] sm:$0xff]
  %v5096 = vld [vmem:[%s5 + $0xc58] sm:$0xff]
  %v5097 = vld [vmem:[%s5 + $0xc60] sm:$0xff]
  %v5098 = vld [vmem:[%s5 + $0xc68] sm:$0xff]
  %v5099 = vld [vmem:[%s5 + $0xc70] sm:$0xff]
  %v5100 = vld [vmem:[%s5 + $0xc78] sm:$0xff]
  %v5101 = vld [vmem:[%s5 + $0xc80] sm:$0xff]
  %v5102 = vld [vmem:[%s5 + $0xc88] sm:$0xff]
  %v5103 = vld [vmem:[%s5 + $0xc90] sm:$0xff]
  %v5104 = vld [vmem:[%s5 + $0xc98] sm:$0xff]
  %v5105 = vld [vmem:[%s5 + $0xca0] sm:$0xff]
  %v5106 = vld [vmem:[%s5 + $0xca8] sm:$0xff]
  %v5107 = vld [vmem:[%s5 + $0xcb0] sm:$0xff]
  %v5108 = vld [vmem:[%s5 + $0xcb8] sm:$0xff]
  %v5109 = vld [vmem:[%s5 + $0xcc0] sm:$0xff]
  %v5110 = vld [vmem:[%s5 + $0xcc8] sm:$0xff]
  %v5111 = vld [vmem:[%s5 + $0xcd0] sm:$0xff]
  %v5112 = vld [vmem:[%s5 + $0xcd8] sm:$0xff]
  %v5113 = vld [vmem:[%s5 + $0xce0] sm:$0xff]
  %v5114 = vld [vmem:[%s5 + $0xce8] sm:$0xff]
  %v5115 = vld [vmem:[%s5 + $0xcf0] sm:$0xff]
  %v5116 = vld [vmem:[%s5 + $0xcf8] sm:$0xff]
  %v5117 = vld [vmem:[%s5 + $0xd00] sm:$0xff]
  %v5118 = vld [vmem:[%s5 + $0xd08] sm:$0xff]
  %v5119 = vld [vmem:[%s5 + $0xd10] sm:$0xff]
  %v5120 = vld [vmem:[%s5 + $0xd18] sm:$0xff]
  %v5121 = vld [vmem:[%s5 + $0xd20] sm:$0xff]
  %v5122 = vld [vmem:[%s5 + $0xd28] sm:$0xff]
  %v5123 = vld [vmem:[%s5 + $0xd30] sm:$0xff]
  %v5124 = vld [vmem:[%s5 + $0xd38] sm:$0xff]
  %v5125 = vld [vmem:[%s5 + $0xd40] sm:$0xff]
  %v5126 = vld [vmem:[%s5 + $0xd48] sm:$0xff]
  %v5127 = vld [vmem:[%s5 + $0xd50] sm:$0xff]
  %v5128 = vld [vmem:[%s5 + $0xd58] sm:$0xff]
  %v5129 = vld [vmem:[%s5 + $0xd60] sm:$0xff]
  %v5130 = vld [vmem:[%s5 + $0xd68] sm:$0xff]
  %v5131 = vld [vmem:[%s5 + $0xd70] sm:$0xff]
  %v5132 = vld [vmem:[%s5 + $0xd78] sm:$0xff]
  %v5133 = vld [vmem:[%s5 + $0xd80] sm:$0xff]
  %v5134 = vld [vmem:[%s5 + $0xd88] sm:$0xff]
  %v5135 = vld [vmem:[%s5 + $0xd90] sm:$0xff]
  %v5136 = vld [vmem:[%s5 + $0xd98] sm:$0xff]
  %v5137 = vld [vmem:[%s5 + $0xda0] sm:$0xff]
  %v5138 = vld [vmem:[%s5 + $0xda8] sm:$0xff]
  %v5139 = vld [vmem:[%s5 + $0xdb0] sm:$0xff]
  %v5140 = vld [vmem:[%s5 + $0xdb8] sm:$0xff]
  %v5141 = vld [vmem:[%s5 + $0xdc0] sm:$0xff]
  %v5142 = vld [vmem:[%s5 + $0xdc8] sm:$0xff]
  %v5143 = vld [vmem:[%s5 + $0xdd0] sm:$0xff]
  %v5144 = vld [vmem:[%s5 + $0xdd8] sm:$0xff]
  %v5145 = vld [vmem:[%s5 + $0xde0] sm:$0xff]
  %v5146 = vld [vmem:[%s5 + $0xde8] sm:$0xff]
  %v5147 = vld [vmem:[%s5 + $0xdf0] sm:$0xff]
  %v5148 = vld [vmem:[%s5 + $0xdf8] sm:$0xff]
  %v5149 = vld [vmem:[%s5 + $0xe00] sm:$0xff]
  %v5150 = vld [vmem:[%s5 + $0xe08] sm:$0xff]
  %v5151 = vld [vmem:[%s5 + $0xe10] sm:$0xff]
  %v5152 = vld [vmem:[%s5 + $0xe18] sm:$0xff]
  %v5153 = vld [vmem:[%s5 + $0xe20] sm:$0xff]
  %v5154 = vld [vmem:[%s5 + $0xe28] sm:$0xff]
  %v5155 = vld [vmem:[%s5 + $0xe30] sm:$0xff]
  %v5156 = vld [vmem:[%s5 + $0xe38] sm:$0xff]
  %v5157 = vld [vmem:[%s5 + $0xe40] sm:$0xff]
  %v5158 = vld [vmem:[%s5 + $0xe48] sm:$0xff]
  %v5159 = vld [vmem:[%s5 + $0xe50] sm:$0xff]
  %v5160 = vld [vmem:[%s5 + $0xe58] sm:$0xff]
  %v5161 = vld [vmem:[%s5 + $0xe60] sm:$0xff]
  %v5162 = vld [vmem:[%s5 + $0xe68] sm:$0xff]
  %v5163 = vld [vmem:[%s5 + $0xe70] sm:$0xff]
  %v5164 = vld [vmem:[%s5 + $0xe78] sm:$0xff]
  %v5165 = vld [vmem:[%s5 + $0xe80] sm:$0xff]
  %v5166 = vld [vmem:[%s5 + $0xe88] sm:$0xff]
  %v5167 = vld [vmem:[%s5 + $0xe90] sm:$0xff]
  %v5168 = vld [vmem:[%s5 + $0xe98] sm:$0xff]
  %v5169 = vld [vmem:[%s5 + $0xea0] sm:$0xff]
  %v5170 = vld [vmem:[%s5 + $0xea8] sm:$0xff]
  %v5171 = vld [vmem:[%s5 + $0xeb0] sm:$0xff]
  %v5172 = vld [vmem:[%s5 + $0xeb8] sm:$0xff]
  %v5173 = vld [vmem:[%s5 + $0xec0] sm:$0xff]
  %v5174 = vld [vmem:[%s5 + $0xec8] sm:$0xff]
  %v5175 = vld [vmem:[%s5 + $0xed0] sm:$0xff]
  %v5176 = vld [vmem:[%s5 + $0xed8] sm:$0xff]
  %v5177 = vld [vmem:[%s5 + $0xee0] sm:$0xff]
  %v5178 = vld [vmem:[%s5 + $0xee8] sm:$0xff]
  %v5179 = vld [vmem:[%s5 + $0xef0] sm:$0xff]
  %v5180 = vld [vmem:[%s5 + $0xef8] sm:$0xff]
  %v5181 = vld [vmem:[%s5 + $0xf00] sm:$0xff]
  %v5182 = vld [vmem:[%s5 + $0xf08] sm:$0xff]
  %v5183 = vld [vmem:[%s5 + $0xf10] sm:$0xff]
  %v5184 = vld [vmem:[%s5 + $0xf18] sm:$0xff]
  %v5185 = vld [vmem:[%s5 + $0xf20] sm:$0xff]
  %v5186 = vld [vmem:[%s5 + $0xf28] sm:$0xff]
  %v5187 = vld [vmem:[%s5 + $0xf30] sm:$0xff]
  %v5188 = vld [vmem:[%s5 + $0xf38] sm:$0xff]
  %v5189 = vld [vmem:[%s5 + $0xf40] sm:$0xff]
  %v5190 = vld [vmem:[%s5 + $0xf48] sm:$0xff]
  %v5191 = vld [vmem:[%s5 + $0xf50] sm:$0xff]
  %v5192 = vld [vmem:[%s5 + $0xf58] sm:$0xff]
  %v5193 = vld [vmem:[%s5 + $0xf60] sm:$0xff]
  %v5194 = vld [vmem:[%s5 + $0xf68] sm:$0xff]
  %v5195 = vld [vmem:[%s5 + $0xf70] sm:$0xff]
  %v5196 = vld [vmem:[%s5 + $0xf78] sm:$0xff]
  %v5197 = vld [vmem:[%s5 + $0xf80] sm:$0xff]
  %v5198 = vld [vmem:[%s5 + $0xf88] sm:$0xff]
  %v5199 = vld [vmem:[%s5 + $0xf90] sm:$0xff]
  %v5200 = vld [vmem:[%s5 + $0xf98] sm:$0xff]
  %v5201 = vld [vmem:[%s5 + $0xfa0] sm:$0xff]
  %v5202 = vld [vmem:[%s5 + $0xfa8] sm:$0xff]
  %v5203 = vld [vmem:[%s5 + $0xfb0] sm:$0xff]
  %v5204 = vld [vmem:[%s5 + $0xfb8] sm:$0xff]
  %v5205 = vld [vmem:[%s5 + $0xfc0] sm:$0xff]
  %v5206 = vld [vmem:[%s5 + $0xfc8] sm:$0xff]
  %v5207 = vld [vmem:[%s5 + $0xfd0] sm:$0xff]
  %v5208 = vld [vmem:[%s5 + $0xfd8] sm:$0xff]
  %v5209 = vld [vmem:[%s5 + $0xfe0] sm:$0xff]
  %v5210 = vld [vmem:[%s5 + $0xfe8] sm:$0xff]
  %v5211 = vld [vmem:[%s5 + $0xff0] sm:$0xff]
  %v5212 = vld [vmem:[%s5 + $0xff8] sm:$0xff]
  %v5213 = vld [vmem:[%s5 + $0x1000] sm:$0xff]
  %v5214 = vld [vmem:[%s5 + $0x1008] sm:$0xff]
  %v5215 = vld [vmem:[%s5 + $0x1010] sm:$0xff]
  %v5216 = vld [vmem:[%s5 + $0x1018] sm:$0xff]
  %v5217 = vld [vmem:[%s5 + $0x1020] sm:$0xff]
  %v5218 = vld [vmem:[%s5 + $0x1028] sm:$0xff]
  %v5219 = vld [vmem:[%s5 + $0x1030] sm:$0xff]
  %v5220 = vld [vmem:[%s5 + $0x1038] sm:$0xff]
  %v5221 = vld [vmem:[%s5 + $0x1040] sm:$0xff]
  %v5222 = vld [vmem:[%s5 + $0x1048] sm:$0xff]
  %v5223 = vld [vmem:[%s5 + $0x1050] sm:$0xff]
  %v5224 = vld [vmem:[%s5 + $0x1058] sm:$0xff]
  %v5225 = vld [vmem:[%s5 + $0x1060] sm:$0xff]
  %v5226 = vld [vmem:[%s5 + $0x1068] sm:$0xff]
  %v5227 = vld [vmem:[%s5 + $0x1070] sm:$0xff]
  %v5228 = vld [vmem:[%s5 + $0x1078] sm:$0xff]
  %v5229 = vld [vmem:[%s5 + $0x1080] sm:$0xff]
  %v5230 = vld [vmem:[%s5 + $0x1088] sm:$0xff]
  %v5231 = vld [vmem:[%s5 + $0x1090] sm:$0xff]
  %v5232 = vld [vmem:[%s5 + $0x1098] sm:$0xff]
  %v5233 = vld [vmem:[%s5 + $0x10a0] sm:$0xff]
  %v5234 = vld [vmem:[%s5 + $0x10a8] sm:$0xff]
  %v5235 = vld [vmem:[%s5 + $0x10b0] sm:$0xff]
  %v5236 = vld [vmem:[%s5 + $0x10b8] sm:$0xff]
  %v5237 = vld [vmem:[%s5 + $0x10c0] sm:$0xff]
  %v5238 = vld [vmem:[%s5 + $0x10c8] sm:$0xff]
  %v5239 = vld [vmem:[%s5 + $0x10d0] sm:$0xff]
  %v5240 = vld [vmem:[%s5 + $0x10d8] sm:$0xff]
  %v5241 = vld [vmem:[%s5 + $0x10e0] sm:$0xff]
  %v5242 = vld [vmem:[%s5 + $0x10e8] sm:$0xff]
  %v5243 = vld [vmem:[%s5 + $0x10f0] sm:$0xff]
  %v5244 = vld [vmem:[%s5 + $0x10f8] sm:$0xff]
  %v5245 = vld [vmem:[%s5 + $0x1100] sm:$0xff]
  %v5246 = vld [vmem:[%s5 + $0x1108] sm:$0xff]
  %v5247 = vld [vmem:[%s5 + $0x1110] sm:$0xff]
  %v5248 = vld [vmem:[%s5 + $0x1118] sm:$0xff]
  %v5249 = vld [vmem:[%s5 + $0x1120] sm:$0xff]
  %v5250 = vld [vmem:[%s5 + $0x1128] sm:$0xff]
  %v5251 = vld [vmem:[%s5 + $0x1130] sm:$0xff]
  %v5252 = vld [vmem:[%s5 + $0x1138] sm:$0xff]
  %v5253 = vld [vmem:[%s5 + $0x1140] sm:$0xff]
  %v5254 = vld [vmem:[%s5 + $0x1148] sm:$0xff]
  %v5255 = vld [vmem:[%s5 + $0x1150] sm:$0xff]
  %v5256 = vld [vmem:[%s5 + $0x1158] sm:$0xff]
  %v5257 = vld [vmem:[%s5 + $0x1160] sm:$0xff]
  %v5258 = vld [vmem:[%s5 + $0x1168] sm:$0xff]
  %v5259 = vld [vmem:[%s5 + $0x1170] sm:$0xff]
  %v5260 = vld [vmem:[%s5 + $0x1178] sm:$0xff]
  %v5261 = vld [vmem:[%s5 + $0x1180] sm:$0xff]
  %v5262 = vld [vmem:[%s5 + $0x1188] sm:$0xff]
  %v5263 = vld [vmem:[%s5 + $0x1190] sm:$0xff]
  %v5264 = vld [vmem:[%s5 + $0x1198] sm:$0xff]
  %v5265 = vld [vmem:[%s5 + $0x11a0] sm:$0xff]
  %v5266 = vld [vmem:[%s5 + $0x11a8] sm:$0xff]
  %v5267 = vld [vmem:[%s5 + $0x11b0] sm:$0xff]
  %v5268 = vld [vmem:[%s5 + $0x11b8] sm:$0xff]
  %v5269 = vld [vmem:[%s5 + $0x11c0] sm:$0xff]
  %v5270 = vld [vmem:[%s5 + $0x11c8] sm:$0xff]
  %v5271 = vld [vmem:[%s5 + $0x11d0] sm:$0xff]
  %v5272 = vld [vmem:[%s5 + $0x11d8] sm:$0xff]
  %v5273 = vld [vmem:[%s5 + $0x11e0] sm:$0xff]
  %v5274 = vld [vmem:[%s5 + $0x11e8] sm:$0xff]
  %v5275 = vld [vmem:[%s5 + $0x11f0] sm:$0xff]
  %v5276 = vld [vmem:[%s5 + $0x11f8] sm:$0xff]
  %v5277 = vld [vmem:[%s5 + $0x1200] sm:$0xff]
  %v5278 = vld [vmem:[%s5 + $0x1208] sm:$0xff]
  %v5279 = vld [vmem:[%s5 + $0x1210] sm:$0xff]
  %v5280 = vld [vmem:[%s5 + $0x1218] sm:$0xff]
  %v5281 = vld [vmem:[%s5 + $0x1220] sm:$0xff]
  %v5282 = vld [vmem:[%s5 + $0x1228] sm:$0xff]
  %v5283 = vld [vmem:[%s5 + $0x1230] sm:$0xff]
  %v5284 = vld [vmem:[%s5 + $0x1238] sm:$0xff]
  %v5285 = vld [vmem:[%s5 + $0x1240] sm:$0xff]
  %v5286 = vld [vmem:[%s5 + $0x1248] sm:$0xff]
  %v5287 = vld [vmem:[%s5 + $0x1250] sm:$0xff]
  %v5288 = vld [vmem:[%s5 + $0x1258] sm:$0xff]
  %v5289 = vld [vmem:[%s5 + $0x1260] sm:$0xff]
  %v5290 = vld [vmem:[%s5 + $0x1268] sm:$0xff]
  %v5291 = vld [vmem:[%s5 + $0x1270] sm:$0xff]
  %v5292 = vld [vmem:[%s5 + $0x1278] sm:$0xff]
  %v5293 = vld [vmem:[%s5 + $0x1280] sm:$0xff]
  %v5294 = vld [vmem:[%s5 + $0x1288] sm:$0xff]
  %v5295 = vld [vmem:[%s5 + $0x1290] sm:$0xff]
  %v5296 = vld [vmem:[%s5 + $0x1298] sm:$0xff]
  %v5297 = vld [vmem:[%s5 + $0x12a0] sm:$0xff]
  %v5298 = vld [vmem:[%s5 + $0x12a8] sm:$0xff]
  %v5299 = vld [vmem:[%s5 + $0x12b0] sm:$0xff]
  %v5300 = vld [vmem:[%s5 + $0x12b8] sm:$0xff]
  %v5301 = vld [vmem:[%s5 + $0x12c0] sm:$0xff]
  %v5302 = vld [vmem:[%s5 + $0x12c8] sm:$0xff]
  %v5303 = vld [vmem:[%s5 + $0x12d0] sm:$0xff]
  %v5304 = vld [vmem:[%s5 + $0x12d8] sm:$0xff]
  %v5305 = vld [vmem:[%s5 + $0x12e0] sm:$0xff]
  %v5306 = vld [vmem:[%s5 + $0x12e8] sm:$0xff]
  %v5307 = vld [vmem:[%s5 + $0x12f0] sm:$0xff]
  %v5308 = vld [vmem:[%s5 + $0x12f8] sm:$0xff]
  %v5309 = vld [vmem:[%s5 + $0x1300] sm:$0xff]
  %v5310 = vld [vmem:[%s5 + $0x1308] sm:$0xff]
  %v5311 = vld [vmem:[%s5 + $0x1310] sm:$0xff]
  %v5312 = vld [vmem:[%s5 + $0x1318] sm:$0xff]
  %v5313 = vld [vmem:[%s5 + $0x1320] sm:$0xff]
  %v5314 = vld [vmem:[%s5 + $0x1328] sm:$0xff]
  %v5315 = vld [vmem:[%s5 + $0x1330] sm:$0xff]
  %v5316 = vld [vmem:[%s5 + $0x1338] sm:$0xff]
  %v5317 = vld [vmem:[%s5 + $0x1340] sm:$0xff]
  %v5318 = vld [vmem:[%s5 + $0x1348] sm:$0xff]
  %v5319 = vld [vmem:[%s5 + $0x1350] sm:$0xff]
  %v5320 = vld [vmem:[%s5 + $0x1358] sm:$0xff]
  %v5321 = vld [vmem:[%s5 + $0x1360] sm:$0xff]
  %v5322 = vld [vmem:[%s5 + $0x1368] sm:$0xff]
  %v5323 = vld [vmem:[%s5 + $0x1370] sm:$0xff]
  %v5324 = vld [vmem:[%s5 + $0x1378] sm:$0xff]
  %v5325 = vld [vmem:[%s5 + $0x1380] sm:$0xff]
  %v5326 = vld [vmem:[%s5 + $0x1388] sm:$0xff]
  %v5327 = vld [vmem:[%s5 + $0x1390] sm:$0xff]
  %v5328 = vld [vmem:[%s5 + $0x1398] sm:$0xff]
  %v5329 = vld [vmem:[%s5 + $0x13a0] sm:$0xff]
  %v5330 = vld [vmem:[%s5 + $0x13a8] sm:$0xff]
  %v5331 = vld [vmem:[%s5 + $0x13b0] sm:$0xff]
  %v5332 = vld [vmem:[%s5 + $0x13b8] sm:$0xff]
  %v5333 = vld [vmem:[%s5 + $0x13c0] sm:$0xff]
  %v5334 = vld [vmem:[%s5 + $0x13c8] sm:$0xff]
  %v5335 = vld [vmem:[%s5 + $0x13d0] sm:$0xff]
  %v5336 = vld [vmem:[%s5 + $0x13d8] sm:$0xff]
  %v5337 = vld [vmem:[%s5 + $0x13e0] sm:$0xff]
  %v5338 = vld [vmem:[%s5 + $0x13e8] sm:$0xff]
  %v5339 = vld [vmem:[%s5 + $0x13f0] sm:$0xff]
  %v5340 = vld [vmem:[%s5 + $0x13f8] sm:$0xff]
  %v5341 = vld [vmem:[%s5 + $0x1400] sm:$0xff]
  %v5342 = vld [vmem:[%s5 + $0x1408] sm:$0xff]
  %v5343 = vld [vmem:[%s5 + $0x1410] sm:$0xff]
  %v5344 = vld [vmem:[%s5 + $0x1418] sm:$0xff]
  %v5345 = vld [vmem:[%s5 + $0x1420] sm:$0xff]
  %v5346 = vld [vmem:[%s5 + $0x1428] sm:$0xff]
  %v5347 = vld [vmem:[%s5 + $0x1430] sm:$0xff]
  %v5348 = vld [vmem:[%s5 + $0x1438] sm:$0xff]
  %v5349 = vld [vmem:[%s5 + $0x1440] sm:$0xff]
  %v5350 = vld [vmem:[%s5 + $0x1448] sm:$0xff]
  %v5351 = vld [vmem:[%s5 + $0x1450] sm:$0xff]
  %v5352 = vld [vmem:[%s5 + $0x1458] sm:$0xff]
  %v5353 = vld [vmem:[%s5 + $0x1460] sm:$0xff]
  %v5354 = vld [vmem:[%s5 + $0x1468] sm:$0xff]
  %v5355 = vld [vmem:[%s5 + $0x1470] sm:$0xff]
  %v5356 = vld [vmem:[%s5 + $0x1478] sm:$0xff]
  %v5357 = vld [vmem:[%s5 + $0x1480] sm:$0xff]
  %v5358 = vld [vmem:[%s5 + $0x1488] sm:$0xff]
  %v5359 = vld [vmem:[%s5 + $0x1490] sm:$0xff]
  %v5360 = vld [vmem:[%s5 + $0x1498] sm:$0xff]
  %v5361 = vld [vmem:[%s5 + $0x14a0] sm:$0xff]
  %v5362 = vld [vmem:[%s5 + $0x14a8] sm:$0xff]
  %v5363 = vld [vmem:[%s5 + $0x14b0] sm:$0xff]
  %v5364 = vld [vmem:[%s5 + $0x14b8] sm:$0xff]
  %v5365 = vld [vmem:[%s5 + $0x14c0] sm:$0xff]
  %v5366 = vld [vmem:[%s5 + $0x14c8] sm:$0xff]
  %v5367 = vld [vmem:[%s5 + $0x14d0] sm:$0xff]
  %v5368 = vld [vmem:[%s5 + $0x14d8] sm:$0xff]
  %v5369 = vld [vmem:[%s5 + $0x14e0] sm:$0xff]
  %v5370 = vld [vmem:[%s5 + $0x14e8] sm:$0xff]
  %v5371 = vld [vmem:[%s5 + $0x14f0] sm:$0xff]
  %v5372 = vld [vmem:[%s5 + $0x14f8] sm:$0xff]
  %v5373 = vld [vmem:[%s5 + $0x1500] sm:$0xff]
  %v5374 = vld [vmem:[%s5 + $0x1508] sm:$0xff]
  %v5375 = vld [vmem:[%s5 + $0x1510] sm:$0xff]
  %v5376 = vld [vmem:[%s5 + $0x1518] sm:$0xff]
  %v5377 = vld [vmem:[%s5 + $0x1520] sm:$0xff]
  %v5378 = vld [vmem:[%s5 + $0x1528] sm:$0xff]
  %v5379 = vld [vmem:[%s5 + $0x1530] sm:$0xff]
  %v5380 = vld [vmem:[%s5 + $0x1538] sm:$0xff]
  %v5381 = vld [vmem:[%s5 + $0x1540] sm:$0xff]
  %v5382 = vld [vmem:[%s5 + $0x1548] sm:$0xff]
  %v5383 = vld [vmem:[%s5 + $0x1550] sm:$0xff]
  %v5384 = vld [vmem:[%s5 + $0x1558] sm:$0xff]
  %v5385 = vld [vmem:[%s5 + $0x1560] sm:$0xff]
  %v5386 = vld [vmem:[%s5 + $0x1568] sm:$0xff]
  %v5387 = vld [vmem:[%s5 + $0x1570] sm:$0xff]
  %v5388 = vld [vmem:[%s5 + $0x1578] sm:$0xff]
  %v5389 = vld [vmem:[%s5 + $0x1580] sm:$0xff]
  %v5390 = vld [vmem:[%s5 + $0x1588] sm:$0xff]
  %v5391 = vld [vmem:[%s5 + $0x1590] sm:$0xff]
  %v5392 = vld [vmem:[%s5 + $0x1598] sm:$0xff]
  %v5393 = vld [vmem:[%s5 + $0x15a0] sm:$0xff]
  %v5394 = vld [vmem:[%s5 + $0x15a8] sm:$0xff]
  %v5395 = vld [vmem:[%s5 + $0x15b0] sm:$0xff]
  %v5396 = vld [vmem:[%s5 + $0x15b8] sm:$0xff]
  %v5397 = vld [vmem:[%s5 + $0x15c0] sm:$0xff]
  %v5398 = vld [vmem:[%s5 + $0x15c8] sm:$0xff]
  %v5399 = vld [vmem:[%s5 + $0x15d0] sm:$0xff]
  %v5400 = vld [vmem:[%s5 + $0x15d8] sm:$0xff]
  %v5401 = vld [vmem:[%s5 + $0x15e0] sm:$0xff]
  %v5402 = vld [vmem:[%s5 + $0x15e8] sm:$0xff]
  %v5403 = vld [vmem:[%s5 + $0x15f0] sm:$0xff]
  %v5404 = vld [vmem:[%s5 + $0x15f8] sm:$0xff]
  %v5405 = vld [vmem:[%s5 + $0x1600] sm:$0xff]
  %v5406 = vld [vmem:[%s5 + $0x1608] sm:$0xff]
  %v5407 = vld [vmem:[%s5 + $0x1610] sm:$0xff]
  %v5408 = vld [vmem:[%s5 + $0x1618] sm:$0xff]
  %v5409 = vld [vmem:[%s5 + $0x1620] sm:$0xff]
  %v5410 = vld [vmem:[%s5 + $0x1628] sm:$0xff]
  %v5411 = vld [vmem:[%s5 + $0x1630] sm:$0xff]
  %v5412 = vld [vmem:[%s5 + $0x1638] sm:$0xff]
  %v5413 = vld [vmem:[%s5 + $0x1640] sm:$0xff]
  %v5414 = vld [vmem:[%s5 + $0x1648] sm:$0xff]
  %v5415 = vld [vmem:[%s5 + $0x1650] sm:$0xff]
  %v5416 = vld [vmem:[%s5 + $0x1658] sm:$0xff]
  %v5417 = vld [vmem:[%s5 + $0x1660] sm:$0xff]
  %v5418 = vld [vmem:[%s5 + $0x1668] sm:$0xff]
  %v5419 = vld [vmem:[%s5 + $0x1670] sm:$0xff]
  %v5420 = vld [vmem:[%s5 + $0x1678] sm:$0xff]
  %v5421 = vld [vmem:[%s5 + $0x1680] sm:$0xff]
  %v5422 = vld [vmem:[%s5 + $0x1688] sm:$0xff]
  %v5423 = vld [vmem:[%s5 + $0x1690] sm:$0xff]
  %v5424 = vld [vmem:[%s5 + $0x1698] sm:$0xff]
  %v5425 = vld [vmem:[%s5 + $0x16a0] sm:$0xff]
  %v5426 = vld [vmem:[%s5 + $0x16a8] sm:$0xff]
  %v5427 = vld [vmem:[%s5 + $0x16b0] sm:$0xff]
  %v5428 = vld [vmem:[%s5 + $0x16b8] sm:$0xff]
  %v5429 = vld [vmem:[%s5 + $0x16c0] sm:$0xff]
  %v5430 = vld [vmem:[%s5 + $0x16c8] sm:$0xff]
  %v5431 = vld [vmem:[%s5 + $0x16d0] sm:$0xff]
  %v5432 = vld [vmem:[%s5 + $0x16d8] sm:$0xff]
  %v5433 = vld [vmem:[%s5 + $0x16e0] sm:$0xff]
  %v5434 = vld [vmem:[%s5 + $0x16e8] sm:$0xff]
  %v5435 = vld [vmem:[%s5 + $0x16f0] sm:$0xff]
  %v5436 = vld [vmem:[%s5 + $0x16f8] sm:$0xff]
  %v5437 = vld [vmem:[%s5 + $0x1700] sm:$0xff]
  %v5438 = vld [vmem:[%s5 + $0x1708] sm:$0xff]
  %v5439 = vld [vmem:[%s5 + $0x1710] sm:$0xff]
  %v5440 = vld [vmem:[%s5 + $0x1718] sm:$0xff]
  %v5441 = vld [vmem:[%s5 + $0x1720] sm:$0xff]
  %v5442 = vld [vmem:[%s5 + $0x1728] sm:$0xff]
  %v5443 = vld [vmem:[%s5 + $0x1730] sm:$0xff]
  %v5444 = vld [vmem:[%s5 + $0x1738] sm:$0xff]
  %v5445 = vld [vmem:[%s5 + $0x1740] sm:$0xff]
  %v5446 = vld [vmem:[%s5 + $0x1748] sm:$0xff]
  %v5447 = vld [vmem:[%s5 + $0x1750] sm:$0xff]
  %v5448 = vld [vmem:[%s5 + $0x1758] sm:$0xff]
  %v5449 = vld [vmem:[%s5 + $0x1760] sm:$0xff]
  %v5450 = vld [vmem:[%s5 + $0x1768] sm:$0xff]
  %v5451 = vld [vmem:[%s5 + $0x1770] sm:$0xff]
  %v5452 = vld [vmem:[%s5 + $0x1778] sm:$0xff]
  %v5453 = vld [vmem:[%s5 + $0x1780] sm:$0xff]
  %v5454 = vld [vmem:[%s5 + $0x1788] sm:$0xff]
  %v5455 = vld [vmem:[%s5 + $0x1790] sm:$0xff]
  %v5456 = vld [vmem:[%s5 + $0x1798] sm:$0xff]
  %v5457 = vld [vmem:[%s5 + $0x17a0] sm:$0xff]
  %v5458 = vld [vmem:[%s5 + $0x17a8] sm:$0xff]
  %v5459 = vld [vmem:[%s5 + $0x17b0] sm:$0xff]
  %v5460 = vld [vmem:[%s5 + $0x17b8] sm:$0xff]
  %v5461 = vld [vmem:[%s5 + $0x17c0] sm:$0xff]
  %v5462 = vld [vmem:[%s5 + $0x17c8] sm:$0xff]
  %v5463 = vld [vmem:[%s5 + $0x17d0] sm:$0xff]
  %v5464 = vld [vmem:[%s5 + $0x17d8] sm:$0xff]
  %v5465 = vld [vmem:[%s5 + $0x17e0] sm:$0xff]
  %v5466 = vld [vmem:[%s5 + $0x17e8] sm:$0xff]
  %v5467 = vld [vmem:[%s5 + $0x17f0] sm:$0xff]
  %v5468 = vld [vmem:[%s5 + $0x17f8] sm:$0xff]
  %v5469 = vld [vmem:[%s5 + $0x1800] sm:$0xff]
  %v5470 = vld [vmem:[%s5 + $0x1808] sm:$0xff]
  %v5471 = vld [vmem:[%s5 + $0x1810] sm:$0xff]
  %v5472 = vld [vmem:[%s5 + $0x1818] sm:$0xff]
  %v5473 = vld [vmem:[%s5 + $0x1820] sm:$0xff]
  %v5474 = vld [vmem:[%s5 + $0x1828] sm:$0xff]
  %v5475 = vld [vmem:[%s5 + $0x1830] sm:$0xff]
  %v5476 = vld [vmem:[%s5 + $0x1838] sm:$0xff]
  %v5477 = vld [vmem:[%s5 + $0x1840] sm:$0xff]
  %v5478 = vld [vmem:[%s5 + $0x1848] sm:$0xff]
  %v5479 = vld [vmem:[%s5 + $0x1850] sm:$0xff]
  %v5480 = vld [vmem:[%s5 + $0x1858] sm:$0xff]
  %v5481 = vld [vmem:[%s5 + $0x1860] sm:$0xff]
  %v5482 = vld [vmem:[%s5 + $0x1868] sm:$0xff]
  %v5483 = vld [vmem:[%s5 + $0x1870] sm:$0xff]
  %v5484 = vld [vmem:[%s5 + $0x1878] sm:$0xff]
  %v5485 = vld [vmem:[%s5 + $0x1880] sm:$0xff]
  %v5486 = vld [vmem:[%s5 + $0x1888] sm:$0xff]
  %v5487 = vld [vmem:[%s5 + $0x1890] sm:$0xff]
  %v5488 = vld [vmem:[%s5 + $0x1898] sm:$0xff]
  %v5489 = vld [vmem:[%s5 + $0x18a0] sm:$0xff]
  %v5490 = vld [vmem:[%s5 + $0x18a8] sm:$0xff]
  %v5491 = vld [vmem:[%s5 + $0x18b0] sm:$0xff]
  %v5492 = vld [vmem:[%s5 + $0x18b8] sm:$0xff]
  %v5493 = vld [vmem:[%s5 + $0x18c0] sm:$0xff]
  %v5494 = vld [vmem:[%s5 + $0x18c8] sm:$0xff]
  %v5495 = vld [vmem:[%s5 + $0x18d0] sm:$0xff]
  %v5496 = vld [vmem:[%s5 + $0x18d8] sm:$0xff]
  %v5497 = vld [vmem:[%s5 + $0x18e0] sm:$0xff]
  %v5498 = vld [vmem:[%s5 + $0x18e8] sm:$0xff]
  %v5499 = vld [vmem:[%s5 + $0x18f0] sm:$0xff]
  %v5500 = vld [vmem:[%s5 + $0x18f8] sm:$0xff]
  %v5501 = vld [vmem:[%s5 + $0x1900] sm:$0xff]
  %v5502 = vld [vmem:[%s5 + $0x1908] sm:$0xff]
  %v5503 = vld [vmem:[%s5 + $0x1910] sm:$0xff]
  %v5504 = vld [vmem:[%s5 + $0x1918] sm:$0xff]
  %v5505 = vld [vmem:[%s5 + $0x1920] sm:$0xff]
  %v5506 = vld [vmem:[%s5 + $0x1928] sm:$0xff]
  %v5507 = vld [vmem:[%s5 + $0x1930] sm:$0xff]
  %v5508 = vld [vmem:[%s5 + $0x1938] sm:$0xff]
  %v5509 = vld [vmem:[%s5 + $0x1940] sm:$0xff]
  %v5510 = vld [vmem:[%s5 + $0x1948] sm:$0xff]
  %v5511 = vld [vmem:[%s5 + $0x1950] sm:$0xff]
  %v5512 = vld [vmem:[%s5 + $0x1958] sm:$0xff]
  %v5513 = vld [vmem:[%s5 + $0x1960] sm:$0xff]
  %v5514 = vld [vmem:[%s5 + $0x1968] sm:$0xff]
  %v5515 = vld [vmem:[%s5 + $0x1970] sm:$0xff]
  %v5516 = vld [vmem:[%s5 + $0x1978] sm:$0xff]
  %v5517 = vld [vmem:[%s5 + $0x1980] sm:$0xff]
  %v5518 = vld [vmem:[%s5 + $0x1988] sm:$0xff]
  %v5519 = vld [vmem:[%s5 + $0x1990] sm:$0xff]
  %v5520 = vld [vmem:[%s5 + $0x1998] sm:$0xff]
  %v5521 = vld [vmem:[%s5 + $0x19a0] sm:$0xff]
  %v5522 = vld [vmem:[%s5 + $0x19a8] sm:$0xff]
  %v5523 = vld [vmem:[%s5 + $0x19b0] sm:$0xff]
  %v5524 = vld [vmem:[%s5 + $0x19b8] sm:$0xff]
  %v5525 = vld [vmem:[%s5 + $0x19c0] sm:$0xff]
  %v5526 = vld [vmem:[%s5 + $0x19c8] sm:$0xff]
  %v5527 = vld [vmem:[%s5 + $0x19d0] sm:$0xff]
  %v5528 = vld [vmem:[%s5 + $0x19d8] sm:$0xff]
  %v5529 = vld [vmem:[%s5 + $0x19e0] sm:$0xff]
  %v5530 = vld [vmem:[%s5 + $0x19e8] sm:$0xff]
  %v5531 = vld [vmem:[%s5 + $0x19f0] sm:$0xff]
  %v5532 = vld [vmem:[%s5 + $0x19f8] sm:$0xff]
  %v5533 = vld [vmem:[%s5 + $0x1a00] sm:$0xff]
  %v5534 = vld [vmem:[%s5 + $0x1a08] sm:$0xff]
  %v5535 = vld [vmem:[%s5 + $0x1a10] sm:$0xff]
  %v5536 = vld [vmem:[%s5 + $0x1a18] sm:$0xff]
  %v5537 = vld [vmem:[%s5 + $0x1a20] sm:$0xff]
  %v5538 = vld [vmem:[%s5 + $0x1a28] sm:$0xff]
  %v5539 = vld [vmem:[%s5 + $0x1a30] sm:$0xff]
  %v5540 = vld [vmem:[%s5 + $0x1a38] sm:$0xff]
  %v5541 = vld [vmem:[%s5 + $0x1a40] sm:$0xff]
  %v5542 = vld [vmem:[%s5 + $0x1a48] sm:$0xff]
  %v5543 = vld [vmem:[%s5 + $0x1a50] sm:$0xff]
  %v5544 = vld [vmem:[%s5 + $0x1a58] sm:$0xff]
  %v5545 = vld [vmem:[%s5 + $0x1a60] sm:$0xff]
  %v5546 = vld [vmem:[%s5 + $0x1a68] sm:$0xff]
  %v5547 = vld [vmem:[%s5 + $0x1a70] sm:$0xff]
  %v5548 = vld [vmem:[%s5 + $0x1a78] sm:$0xff]
  %v5549 = vld [vmem:[%s5 + $0x1a80] sm:$0xff]
  %v5550 = vld [vmem:[%s5 + $0x1a88] sm:$0xff]
  %v5551 = vld [vmem:[%s5 + $0x1a90] sm:$0xff]
  %v5552 = vld [vmem:[%s5 + $0x1a98] sm:$0xff]
  %v5553 = vld [vmem:[%s5 + $0x1aa0] sm:$0xff]
  %v5554 = vld [vmem:[%s5 + $0x1aa8] sm:$0xff]
  %v5555 = vld [vmem:[%s5 + $0x1ab0] sm:$0xff]
  %v5556 = vld [vmem:[%s5 + $0x1ab8] sm:$0xff]
  %v5557 = vld [vmem:[%s5 + $0x1ac0] sm:$0xff]
  %v5558 = vld [vmem:[%s5 + $0x1ac8] sm:$0xff]
  %v5559 = vld [vmem:[%s5 + $0x1ad0] sm:$0xff]
  %v5560 = vld [vmem:[%s5 + $0x1ad8] sm:$0xff]
  %v5561 = vld [vmem:[%s5 + $0x1ae0] sm:$0xff]
  %v5562 = vld [vmem:[%s5 + $0x1ae8] sm:$0xff]
  %v5563 = vld [vmem:[%s5 + $0x1af0] sm:$0xff]
  %v5564 = vld [vmem:[%s5 + $0x1af8] sm:$0xff]
  %v5565 = vld [vmem:[%s5 + $0x1b00] sm:$0xff]
  %v5566 = vld [vmem:[%s5 + $0x1b08] sm:$0xff]
  %v5567 = vld [vmem:[%s5 + $0x1b10] sm:$0xff]
  %v5568 = vld [vmem:[%s5 + $0x1b18] sm:$0xff]
  %v5569 = vld [vmem:[%s5 + $0x1b20] sm:$0xff]
  %v5570 = vld [vmem:[%s5 + $0x1b28] sm:$0xff]
  %v5571 = vld [vmem:[%s5 + $0x1b30] sm:$0xff]
  %v5572 = vld [vmem:[%s5 + $0x1b38] sm:$0xff]
  %v5573 = vld [vmem:[%s5 + $0x1b40] sm:$0xff]
  %v5574 = vld [vmem:[%s5 + $0x1b48] sm:$0xff]
  %v5575 = vld [vmem:[%s5 + $0x1b50] sm:$0xff]
  %v5576 = vld [vmem:[%s5 + $0x1b58] sm:$0xff]
  %v5577 = vld [vmem:[%s5 + $0x1b60] sm:$0xff]
  %v5578 = vld [vmem:[%s5 + $0x1b68] sm:$0xff]
  %v5579 = vld [vmem:[%s5 + $0x1b70] sm:$0xff]
  %v5580 = vld [vmem:[%s5 + $0x1b78] sm:$0xff]
  %v5581 = vld [vmem:[%s5 + $0x1b80] sm:$0xff]
  %v5582 = vld [vmem:[%s5 + $0x1b88] sm:$0xff]
  %v5583 = vld [vmem:[%s5 + $0x1b90] sm:$0xff]
  %v5584 = vld [vmem:[%s5 + $0x1b98] sm:$0xff]
  %v5585 = vld [vmem:[%s5 + $0x1ba0] sm:$0xff]
  %v5586 = vld [vmem:[%s5 + $0x1ba8] sm:$0xff]
  %v5587 = vld [vmem:[%s5 + $0x1bb0] sm:$0xff]
  %v5588 = vld [vmem:[%s5 + $0x1bb8] sm:$0xff]
  %v5589 = vld [vmem:[%s5 + $0x1bc0] sm:$0xff]
  %v5590 = vld [vmem:[%s5 + $0x1bc8] sm:$0xff]
  %v5591 = vld [vmem:[%s5 + $0x1bd0] sm:$0xff]
  %v5592 = vld [vmem:[%s5 + $0x1bd8] sm:$0xff]
  %v5593 = vld [vmem:[%s5 + $0x1be0] sm:$0xff]
  %v5594 = vld [vmem:[%s5 + $0x1be8] sm:$0xff]
  %v5595 = vld [vmem:[%s5 + $0x1bf0] sm:$0xff]
  %v5596 = vld [vmem:[%s5 + $0x1bf8] sm:$0xff]
  %v5597 = vld [vmem:[%s6] sm:$0xf]
  %v5599 = vlaneseq
  %v5600 = vshrl.u32 %v5599, 7
  %v5601 = vsub.s32 0, %v5600
  %v5602 = vrot.slane %v5597, %v5601
  %v5603 = vlaneseq
  %v5604 = vshrl.u32 %v5603, 7
  %v5605 = vsub.s32 1, %v5604
  %v5606 = vrot.slane %v5597, %v5605
  %v5607 = vlaneseq
  %v5608 = vshrl.u32 %v5607, 7
  %v5609 = vsub.s32 2, %v5608
  %v5610 = vrot.slane %v5597, %v5609
  %v5611 = vlaneseq
  %v5612 = vshrl.u32 %v5611, 7
  %v5613 = vsub.s32 3, %v5612
  %v5614 = vrot.slane %v5597, %v5613
  %v6515 = vunpack.c.l.b16 %v4701
  %v6516 = vunpack.c.h.b16 %v4701
  %v6517 = vunpack.c.l.b16 %v4702
  %v6518 = vunpack.c.h.b16 %v4702
  %v6519 = vunpack.c.l.b16 %v4703
  %v6520 = vunpack.c.h.b16 %v4703
  %v6521 = vunpack.c.l.b16 %v4704
  %v6522 = vunpack.c.h.b16 %v4704
  %v6523 = vunpack.c.l.b16 %v4705
  %v6524 = vunpack.c.h.b16 %v4705
  %v6525 = vunpack.c.l.b16 %v4706
  %v6526 = vunpack.c.h.b16 %v4706
  %v6527 = vunpack.c.l.b16 %v4707
  %v6528 = vunpack.c.h.b16 %v4707
  %v6529 = vunpack.c.l.b16 %v4708
  %v6530 = vunpack.c.h.b16 %v4708
  %v6531 = vunpack.c.l.b16 %v4709
  %v6532 = vunpack.c.h.b16 %v4709
  %v6533 = vunpack.c.l.b16 %v4710
  %v6534 = vunpack.c.h.b16 %v4710
  %v6535 = vunpack.c.l.b16 %v4711
  %v6536 = vunpack.c.h.b16 %v4711
  %v6537 = vunpack.c.l.b16 %v4712
  %v6538 = vunpack.c.h.b16 %v4712
  %v6539 = vunpack.c.l.b16 %v4713
  %v6540 = vunpack.c.h.b16 %v4713
  %v6541 = vunpack.c.l.b16 %v4714
  %v6542 = vunpack.c.h.b16 %v4714
  %v6543 = vunpack.c.l.b16 %v4715
  %v6544 = vunpack.c.h.b16 %v4715
  %v6545 = vunpack.c.l.b16 %v4716
  %v6546 = vunpack.c.h.b16 %v4716
  %v6547 = vunpack.c.l.b16 %v4717
  %v6548 = vunpack.c.h.b16 %v4717
  %v6549 = vunpack.c.l.b16 %v4718
  %v6550 = vunpack.c.h.b16 %v4718
  %v6551 = vunpack.c.l.b16 %v4719
  %v6552 = vunpack.c.h.b16 %v4719
  %v6553 = vunpack.c.l.b16 %v4720
  %v6554 = vunpack.c.h.b16 %v4720
  %v6555 = vunpack.c.l.b16 %v4721
  %v6556 = vunpack.c.h.b16 %v4721
  %v6557 = vunpack.c.l.b16 %v4722
  %v6558 = vunpack.c.h.b16 %v4722
  %v6559 = vunpack.c.l.b16 %v4723
  %v6560 = vunpack.c.h.b16 %v4723
  %v6561 = vunpack.c.l.b16 %v4724
  %v6562 = vunpack.c.h.b16 %v4724
  %v6563 = vunpack.c.l.b16 %v4725
  %v6564 = vunpack.c.h.b16 %v4725
  %v6565 = vunpack.c.l.b16 %v4726
  %v6566 = vunpack.c.h.b16 %v4726
  %v6567 = vunpack.c.l.b16 %v4727
  %v6568 = vunpack.c.h.b16 %v4727
  %v6569 = vunpack.c.l.b16 %v4728
  %v6570 = vunpack.c.h.b16 %v4728
  %v6571 = vunpack.c.l.b16 %v4729
  %v6572 = vunpack.c.h.b16 %v4729
  %v6573 = vunpack.c.l.b16 %v4730
  %v6574 = vunpack.c.h.b16 %v4730
  %v6575 = vunpack.c.l.b16 %v4731
  %v6576 = vunpack.c.h.b16 %v4731
  %v6577 = vunpack.c.l.b16 %v4732
  %v6578 = vunpack.c.h.b16 %v4732
  %v6579 = vunpack.c.l.b16 %v4733
  %v6580 = vunpack.c.h.b16 %v4733
  %v6581 = vunpack.c.l.b16 %v4734
  %v6582 = vunpack.c.h.b16 %v4734
  %v6583 = vunpack.c.l.b16 %v4735
  %v6584 = vunpack.c.h.b16 %v4735
  %v6585 = vunpack.c.l.b16 %v4736
  %v6586 = vunpack.c.h.b16 %v4736
  %v6587 = vunpack.c.l.b16 %v4737
  %v6588 = vunpack.c.h.b16 %v4737
  %v6589 = vunpack.c.l.b16 %v4738
  %v6590 = vunpack.c.h.b16 %v4738
  %v6591 = vunpack.c.l.b16 %v4739
  %v6592 = vunpack.c.h.b16 %v4739
  %v6593 = vunpack.c.l.b16 %v4740
  %v6594 = vunpack.c.h.b16 %v4740
  %v6595 = vunpack.c.l.b16 %v4741
  %v6596 = vunpack.c.h.b16 %v4741
  %v6597 = vunpack.c.l.b16 %v4742
  %v6598 = vunpack.c.h.b16 %v4742
  %v6599 = vunpack.c.l.b16 %v4743
  %v6600 = vunpack.c.h.b16 %v4743
  %v6601 = vunpack.c.l.b16 %v4744
  %v6602 = vunpack.c.h.b16 %v4744
  %v6603 = vunpack.c.l.b16 %v4745
  %v6604 = vunpack.c.h.b16 %v4745
  %v6605 = vunpack.c.l.b16 %v4746
  %v6606 = vunpack.c.h.b16 %v4746
  %v6607 = vunpack.c.l.b16 %v4747
  %v6608 = vunpack.c.h.b16 %v4747
  %v6609 = vunpack.c.l.b16 %v4748
  %v6610 = vunpack.c.h.b16 %v4748
  %v6611 = vunpack.c.l.b16 %v4749
  %v6612 = vunpack.c.h.b16 %v4749
  %v6613 = vunpack.c.l.b16 %v4750
  %v6614 = vunpack.c.h.b16 %v4750
  %v6615 = vunpack.c.l.b16 %v4751
  %v6616 = vunpack.c.h.b16 %v4751
  %v6617 = vunpack.c.l.b16 %v4752
  %v6618 = vunpack.c.h.b16 %v4752
  %v6619 = vunpack.c.l.b16 %v4753
  %v6620 = vunpack.c.h.b16 %v4753
  %v6621 = vunpack.c.l.b16 %v4754
  %v6622 = vunpack.c.h.b16 %v4754
  %v6623 = vunpack.c.l.b16 %v4755
  %v6624 = vunpack.c.h.b16 %v4755
  %v6625 = vunpack.c.l.b16 %v4756
  %v6626 = vunpack.c.h.b16 %v4756
  %v6627 = vunpack.c.l.b16 %v4757
  %v6628 = vunpack.c.h.b16 %v4757
  %v6629 = vunpack.c.l.b16 %v4758
  %v6630 = vunpack.c.h.b16 %v4758
  %v6631 = vunpack.c.l.b16 %v4759
  %v6632 = vunpack.c.h.b16 %v4759
  %v6633 = vunpack.c.l.b16 %v4760
  %v6634 = vunpack.c.h.b16 %v4760
  %v6635 = vunpack.c.l.b16 %v4761
  %v6636 = vunpack.c.h.b16 %v4761
  %v6637 = vunpack.c.l.b16 %v4762
  %v6638 = vunpack.c.h.b16 %v4762
  %v6639 = vunpack.c.l.b16 %v4763
  %v6640 = vunpack.c.h.b16 %v4763
  %v6641 = vunpack.c.l.b16 %v4764
  %v6642 = vunpack.c.h.b16 %v4764
  %v6643 = vunpack.c.l.b16 %v4765
  %v6644 = vunpack.c.h.b16 %v4765
  %v6645 = vunpack.c.l.b16 %v4766
  %v6646 = vunpack.c.h.b16 %v4766
  %v6647 = vunpack.c.l.b16 %v4767
  %v6648 = vunpack.c.h.b16 %v4767
  %v6649 = vunpack.c.l.b16 %v4768
  %v6650 = vunpack.c.h.b16 %v4768
  %v6651 = vunpack.c.l.b16 %v4769
  %v6652 = vunpack.c.h.b16 %v4769
  %v6653 = vunpack.c.l.b16 %v4770
  %v6654 = vunpack.c.h.b16 %v4770
  %v6655 = vunpack.c.l.b16 %v4771
  %v6656 = vunpack.c.h.b16 %v4771
  %v6657 = vunpack.c.l.b16 %v4772
  %v6658 = vunpack.c.h.b16 %v4772
  %v6659 = vunpack.c.l.b16 %v4773
  %v6660 = vunpack.c.h.b16 %v4773
  %v6661 = vunpack.c.l.b16 %v4774
  %v6662 = vunpack.c.h.b16 %v4774
  %v6663 = vunpack.c.l.b16 %v4775
  %v6664 = vunpack.c.h.b16 %v4775
  %v6665 = vunpack.c.l.b16 %v4776
  %v6666 = vunpack.c.h.b16 %v4776
  %v6667 = vunpack.c.l.b16 %v4777
  %v6668 = vunpack.c.h.b16 %v4777
  %v6669 = vunpack.c.l.b16 %v4778
  %v6670 = vunpack.c.h.b16 %v4778
  %v6671 = vunpack.c.l.b16 %v4779
  %v6672 = vunpack.c.h.b16 %v4779
  %v6673 = vunpack.c.l.b16 %v4780
  %v6674 = vunpack.c.h.b16 %v4780
  %v6675 = vunpack.c.l.b16 %v4781
  %v6676 = vunpack.c.h.b16 %v4781
  %v6677 = vunpack.c.l.b16 %v4782
  %v6678 = vunpack.c.h.b16 %v4782
  %v6679 = vunpack.c.l.b16 %v4783
  %v6680 = vunpack.c.h.b16 %v4783
  %v6681 = vunpack.c.l.b16 %v4784
  %v6682 = vunpack.c.h.b16 %v4784
  %v6683 = vunpack.c.l.b16 %v4785
  %v6684 = vunpack.c.h.b16 %v4785
  %v6685 = vunpack.c.l.b16 %v4786
  %v6686 = vunpack.c.h.b16 %v4786
  %v6687 = vunpack.c.l.b16 %v4787
  %v6688 = vunpack.c.h.b16 %v4787
  %v6689 = vunpack.c.l.b16 %v4788
  %v6690 = vunpack.c.h.b16 %v4788
  %v6691 = vunpack.c.l.b16 %v4789
  %v6692 = vunpack.c.h.b16 %v4789
  %v6693 = vunpack.c.l.b16 %v4790
  %v6694 = vunpack.c.h.b16 %v4790
  %v6695 = vunpack.c.l.b16 %v4791
  %v6696 = vunpack.c.h.b16 %v4791
  %v6697 = vunpack.c.l.b16 %v4792
  %v6698 = vunpack.c.h.b16 %v4792
  %v6699 = vunpack.c.l.b16 %v4793
  %v6700 = vunpack.c.h.b16 %v4793
  %v6701 = vunpack.c.l.b16 %v4794
  %v6702 = vunpack.c.h.b16 %v4794
  %v6703 = vunpack.c.l.b16 %v4795
  %v6704 = vunpack.c.h.b16 %v4795
  %v6705 = vunpack.c.l.b16 %v4796
  %v6706 = vunpack.c.h.b16 %v4796
  %v6707 = vunpack.c.l.b16 %v4797
  %v6708 = vunpack.c.h.b16 %v4797
  %v6709 = vunpack.c.l.b16 %v4798
  %v6710 = vunpack.c.h.b16 %v4798
  %v6711 = vunpack.c.l.b16 %v4799
  %v6712 = vunpack.c.h.b16 %v4799
  %v6713 = vunpack.c.l.b16 %v4800
  %v6714 = vunpack.c.h.b16 %v4800
  %v6715 = vunpack.c.l.b16 %v4801
  %v6716 = vunpack.c.h.b16 %v4801
  %v6717 = vunpack.c.l.b16 %v4802
  %v6718 = vunpack.c.h.b16 %v4802
  %v6719 = vunpack.c.l.b16 %v4803
  %v6720 = vunpack.c.h.b16 %v4803
  %v6721 = vunpack.c.l.b16 %v4804
  %v6722 = vunpack.c.h.b16 %v4804
  %v6723 = vunpack.c.l.b16 %v4805
  %v6724 = vunpack.c.h.b16 %v4805
  %v6725 = vunpack.c.l.b16 %v4806
  %v6726 = vunpack.c.h.b16 %v4806
  %v6727 = vunpack.c.l.b16 %v4807
  %v6728 = vunpack.c.h.b16 %v4807
  %v6729 = vunpack.c.l.b16 %v4808
  %v6730 = vunpack.c.h.b16 %v4808
  %v6731 = vunpack.c.l.b16 %v4809
  %v6732 = vunpack.c.h.b16 %v4809
  %v6733 = vunpack.c.l.b16 %v4810
  %v6734 = vunpack.c.h.b16 %v4810
  %v6735 = vunpack.c.l.b16 %v4811
  %v6736 = vunpack.c.h.b16 %v4811
  %v6737 = vunpack.c.l.b16 %v4812
  %v6738 = vunpack.c.h.b16 %v4812
  %v6739 = vunpack.c.l.b16 %v4813
  %v6740 = vunpack.c.h.b16 %v4813
  %v6741 = vunpack.c.l.b16 %v4814
  %v6742 = vunpack.c.h.b16 %v4814
  %v6743 = vunpack.c.l.b16 %v4815
  %v6744 = vunpack.c.h.b16 %v4815
  %v6745 = vunpack.c.l.b16 %v4816
  %v6746 = vunpack.c.h.b16 %v4816
  %v6747 = vunpack.c.l.b16 %v4817
  %v6748 = vunpack.c.h.b16 %v4817
  %v6749 = vunpack.c.l.b16 %v4818
  %v6750 = vunpack.c.h.b16 %v4818
  %v6751 = vunpack.c.l.b16 %v4819
  %v6752 = vunpack.c.h.b16 %v4819
  %v6753 = vunpack.c.l.b16 %v4820
  %v6754 = vunpack.c.h.b16 %v4820
  %v6755 = vunpack.c.l.b16 %v4821
  %v6756 = vunpack.c.h.b16 %v4821
  %v6757 = vunpack.c.l.b16 %v4822
  %v6758 = vunpack.c.h.b16 %v4822
  %v6759 = vunpack.c.l.b16 %v4823
  %v6760 = vunpack.c.h.b16 %v4823
  %v6761 = vunpack.c.l.b16 %v4824
  %v6762 = vunpack.c.h.b16 %v4824
  %v6763 = vunpack.c.l.b16 %v4825
  %v6764 = vunpack.c.h.b16 %v4825
  %v6765 = vunpack.c.l.b16 %v4826
  %v6766 = vunpack.c.h.b16 %v4826
  %v6767 = vunpack.c.l.b16 %v4827
  %v6768 = vunpack.c.h.b16 %v4827
  %v6769 = vunpack.c.l.b16 %v4828
  %v6770 = vunpack.c.h.b16 %v4828
  %v6771 = vunpack.c.l.b16 %v4829
  %v6772 = vunpack.c.h.b16 %v4829
  %v6773 = vunpack.c.l.b16 %v4830
  %v6774 = vunpack.c.h.b16 %v4830
  %v6775 = vunpack.c.l.b16 %v4831
  %v6776 = vunpack.c.h.b16 %v4831
  %v6777 = vunpack.c.l.b16 %v4832
  %v6778 = vunpack.c.h.b16 %v4832
  %v6779 = vunpack.c.l.b16 %v4833
  %v6780 = vunpack.c.h.b16 %v4833
  %v6781 = vunpack.c.l.b16 %v4834
  %v6782 = vunpack.c.h.b16 %v4834
  %v6783 = vunpack.c.l.b16 %v4835
  %v6784 = vunpack.c.h.b16 %v4835
  %v6785 = vunpack.c.l.b16 %v4836
  %v6786 = vunpack.c.h.b16 %v4836
  %v6787 = vunpack.c.l.b16 %v4837
  %v6788 = vunpack.c.h.b16 %v4837
  %v6789 = vunpack.c.l.b16 %v4838
  %v6790 = vunpack.c.h.b16 %v4838
  %v6791 = vunpack.c.l.b16 %v4839
  %v6792 = vunpack.c.h.b16 %v4839
  %v6793 = vunpack.c.l.b16 %v4840
  %v6794 = vunpack.c.h.b16 %v4840
  %v6795 = vunpack.c.l.b16 %v4841
  %v6796 = vunpack.c.h.b16 %v4841
  %v6797 = vunpack.c.l.b16 %v4842
  %v6798 = vunpack.c.h.b16 %v4842
  %v6799 = vunpack.c.l.b16 %v4843
  %v6800 = vunpack.c.h.b16 %v4843
  %v6801 = vunpack.c.l.b16 %v4844
  %v6802 = vunpack.c.h.b16 %v4844
  %v6803 = vunpack.c.l.b16 %v4845
  %v6804 = vunpack.c.h.b16 %v4845
  %v6805 = vunpack.c.l.b16 %v4846
  %v6806 = vunpack.c.h.b16 %v4846
  %v6807 = vunpack.c.l.b16 %v4847
  %v6808 = vunpack.c.h.b16 %v4847
  %v6809 = vunpack.c.l.b16 %v4848
  %v6810 = vunpack.c.h.b16 %v4848
  %v6811 = vunpack.c.l.b16 %v4849
  %v6812 = vunpack.c.h.b16 %v4849
  %v6813 = vunpack.c.l.b16 %v4850
  %v6814 = vunpack.c.h.b16 %v4850
  %v6815 = vunpack.c.l.b16 %v4851
  %v6816 = vunpack.c.h.b16 %v4851
  %v6817 = vunpack.c.l.b16 %v4852
  %v6818 = vunpack.c.h.b16 %v4852
  %v6819 = vunpack.c.l.b16 %v4853
  %v6820 = vunpack.c.h.b16 %v4853
  %v6821 = vunpack.c.l.b16 %v4854
  %v6822 = vunpack.c.h.b16 %v4854
  %v6823 = vunpack.c.l.b16 %v4855
  %v6824 = vunpack.c.h.b16 %v4855
  %v6825 = vunpack.c.l.b16 %v4856
  %v6826 = vunpack.c.h.b16 %v4856
  %v6827 = vunpack.c.l.b16 %v4857
  %v6828 = vunpack.c.h.b16 %v4857
  %v6829 = vunpack.c.l.b16 %v4858
  %v6830 = vunpack.c.h.b16 %v4858
  %v6831 = vunpack.c.l.b16 %v4859
  %v6832 = vunpack.c.h.b16 %v4859
  %v6833 = vunpack.c.l.b16 %v4860
  %v6834 = vunpack.c.h.b16 %v4860
  %v6835 = vunpack.c.l.b16 %v4861
  %v6836 = vunpack.c.h.b16 %v4861
  %v6837 = vunpack.c.l.b16 %v4862
  %v6838 = vunpack.c.h.b16 %v4862
  %v6839 = vunpack.c.l.b16 %v4863
  %v6840 = vunpack.c.h.b16 %v4863
  %v6841 = vunpack.c.l.b16 %v4864
  %v6842 = vunpack.c.h.b16 %v4864
  %v6843 = vunpack.c.l.b16 %v4865
  %v6844 = vunpack.c.h.b16 %v4865
  %v6845 = vunpack.c.l.b16 %v4866
  %v6846 = vunpack.c.h.b16 %v4866
  %v6847 = vunpack.c.l.b16 %v4867
  %v6848 = vunpack.c.h.b16 %v4867
  %v6849 = vunpack.c.l.b16 %v4868
  %v6850 = vunpack.c.h.b16 %v4868
  %v6851 = vunpack.c.l.b16 %v4869
  %v6852 = vunpack.c.h.b16 %v4869
  %v6853 = vunpack.c.l.b16 %v4870
  %v6854 = vunpack.c.h.b16 %v4870
  %v6855 = vunpack.c.l.b16 %v4871
  %v6856 = vunpack.c.h.b16 %v4871
  %v6857 = vunpack.c.l.b16 %v4872
  %v6858 = vunpack.c.h.b16 %v4872
  %v6859 = vunpack.c.l.b16 %v4873
  %v6860 = vunpack.c.h.b16 %v4873
  %v6861 = vunpack.c.l.b16 %v4874
  %v6862 = vunpack.c.h.b16 %v4874
  %v6863 = vunpack.c.l.b16 %v4875
  %v6864 = vunpack.c.h.b16 %v4875
  %v6865 = vunpack.c.l.b16 %v4876
  %v6866 = vunpack.c.h.b16 %v4876
  %v6867 = vunpack.c.l.b16 %v4877
  %v6868 = vunpack.c.h.b16 %v4877
  %v6869 = vunpack.c.l.b16 %v4878
  %v6870 = vunpack.c.h.b16 %v4878
  %v6871 = vunpack.c.l.b16 %v4879
  %v6872 = vunpack.c.h.b16 %v4879
  %v6873 = vunpack.c.l.b16 %v4880
  %v6874 = vunpack.c.h.b16 %v4880
  %v6875 = vunpack.c.l.b16 %v4881
  %v6876 = vunpack.c.h.b16 %v4881
  %v6877 = vunpack.c.l.b16 %v4882
  %v6878 = vunpack.c.h.b16 %v4882
  %v6879 = vunpack.c.l.b16 %v4883
  %v6880 = vunpack.c.h.b16 %v4883
  %v6881 = vunpack.c.l.b16 %v4884
  %v6882 = vunpack.c.h.b16 %v4884
  %v6883 = vunpack.c.l.b16 %v4885
  %v6884 = vunpack.c.h.b16 %v4885
  %v6885 = vunpack.c.l.b16 %v4886
  %v6886 = vunpack.c.h.b16 %v4886
  %v6887 = vunpack.c.l.b16 %v4887
  %v6888 = vunpack.c.h.b16 %v4887
  %v6889 = vunpack.c.l.b16 %v4888
  %v6890 = vunpack.c.h.b16 %v4888
  %v6891 = vunpack.c.l.b16 %v4889
  %v6892 = vunpack.c.h.b16 %v4889
  %v6893 = vunpack.c.l.b16 %v4890
  %v6894 = vunpack.c.h.b16 %v4890
  %v6895 = vunpack.c.l.b16 %v4891
  %v6896 = vunpack.c.h.b16 %v4891
  %v6897 = vunpack.c.l.b16 %v4892
  %v6898 = vunpack.c.h.b16 %v4892
  %v6899 = vunpack.c.l.b16 %v4893
  %v6900 = vunpack.c.h.b16 %v4893
  %v6901 = vunpack.c.l.b16 %v4894
  %v6902 = vunpack.c.h.b16 %v4894
  %v6903 = vunpack.c.l.b16 %v4895
  %v6904 = vunpack.c.h.b16 %v4895
  %v6905 = vunpack.c.l.b16 %v4896
  %v6906 = vunpack.c.h.b16 %v4896
  %v6907 = vunpack.c.l.b16 %v4897
  %v6908 = vunpack.c.h.b16 %v4897
  %v6909 = vunpack.c.l.b16 %v4898
  %v6910 = vunpack.c.h.b16 %v4898
  %v6911 = vunpack.c.l.b16 %v4899
  %v6912 = vunpack.c.h.b16 %v4899
  %v6913 = vunpack.c.l.b16 %v4900
  %v6914 = vunpack.c.h.b16 %v4900
  %v6915 = vunpack.c.l.b16 %v4901
  %v6916 = vunpack.c.h.b16 %v4901
  %v6917 = vunpack.c.l.b16 %v4902
  %v6918 = vunpack.c.h.b16 %v4902
  %v6919 = vunpack.c.l.b16 %v4903
  %v6920 = vunpack.c.h.b16 %v4903
  %v6921 = vunpack.c.l.b16 %v4904
  %v6922 = vunpack.c.h.b16 %v4904
  %v6923 = vunpack.c.l.b16 %v4905
  %v6924 = vunpack.c.h.b16 %v4905
  %v6925 = vunpack.c.l.b16 %v4906
  %v6926 = vunpack.c.h.b16 %v4906
  %v6927 = vunpack.c.l.b16 %v4907
  %v6928 = vunpack.c.h.b16 %v4907
  %v6929 = vunpack.c.l.b16 %v4908
  %v6930 = vunpack.c.h.b16 %v4908
  %v6931 = vunpack.c.l.b16 %v4909
  %v6932 = vunpack.c.h.b16 %v4909
  %v6933 = vunpack.c.l.b16 %v4910
  %v6934 = vunpack.c.h.b16 %v4910
  %v6935 = vunpack.c.l.b16 %v4911
  %v6936 = vunpack.c.h.b16 %v4911
  %v6937 = vunpack.c.l.b16 %v4912
  %v6938 = vunpack.c.h.b16 %v4912
  %v6939 = vunpack.c.l.b16 %v4913
  %v6940 = vunpack.c.h.b16 %v4913
  %v6941 = vunpack.c.l.b16 %v4914
  %v6942 = vunpack.c.h.b16 %v4914
  %v6943 = vunpack.c.l.b16 %v4915
  %v6944 = vunpack.c.h.b16 %v4915
  %v6945 = vunpack.c.l.b16 %v4916
  %v6946 = vunpack.c.h.b16 %v4916
  %v6947 = vunpack.c.l.b16 %v4917
  %v6948 = vunpack.c.h.b16 %v4917
  %v6949 = vunpack.c.l.b16 %v4918
  %v6950 = vunpack.c.h.b16 %v4918
  %v6951 = vunpack.c.l.b16 %v4919
  %v6952 = vunpack.c.h.b16 %v4919
  %v6953 = vunpack.c.l.b16 %v4920
  %v6954 = vunpack.c.h.b16 %v4920
  %v6955 = vunpack.c.l.b16 %v4921
  %v6956 = vunpack.c.h.b16 %v4921
  %v6957 = vunpack.c.l.b16 %v4922
  %v6958 = vunpack.c.h.b16 %v4922
  %v6959 = vunpack.c.l.b16 %v4923
  %v6960 = vunpack.c.h.b16 %v4923
  %v6961 = vunpack.c.l.b16 %v4924
  %v6962 = vunpack.c.h.b16 %v4924
  %v6963 = vunpack.c.l.b16 %v4925
  %v6964 = vunpack.c.h.b16 %v4925
  %v6965 = vunpack.c.l.b16 %v4926
  %v6966 = vunpack.c.h.b16 %v4926
  %v6967 = vunpack.c.l.b16 %v4927
  %v6968 = vunpack.c.h.b16 %v4927
  %v6969 = vunpack.c.l.b16 %v4928
  %v6970 = vunpack.c.h.b16 %v4928
  %v6971 = vunpack.c.l.b16 %v4929
  %v6972 = vunpack.c.h.b16 %v4929
  %v6973 = vunpack.c.l.b16 %v4930
  %v6974 = vunpack.c.h.b16 %v4930
  %v6975 = vunpack.c.l.b16 %v4931
  %v6976 = vunpack.c.h.b16 %v4931
  %v6977 = vunpack.c.l.b16 %v4932
  %v6978 = vunpack.c.h.b16 %v4932
  %v6979 = vunpack.c.l.b16 %v4933
  %v6980 = vunpack.c.h.b16 %v4933
  %v6981 = vunpack.c.l.b16 %v4934
  %v6982 = vunpack.c.h.b16 %v4934
  %v6983 = vunpack.c.l.b16 %v4935
  %v6984 = vunpack.c.h.b16 %v4935
  %v6985 = vunpack.c.l.b16 %v4936
  %v6986 = vunpack.c.h.b16 %v4936
  %v6987 = vunpack.c.l.b16 %v4937
  %v6988 = vunpack.c.h.b16 %v4937
  %v6989 = vunpack.c.l.b16 %v4938
  %v6990 = vunpack.c.h.b16 %v4938
  %v6991 = vunpack.c.l.b16 %v4939
  %v6992 = vunpack.c.h.b16 %v4939
  %v6993 = vunpack.c.l.b16 %v4940
  %v6994 = vunpack.c.h.b16 %v4940
  %v6995 = vunpack.c.l.b16 %v4941
  %v6996 = vunpack.c.h.b16 %v4941
  %v6997 = vunpack.c.l.b16 %v4942
  %v6998 = vunpack.c.h.b16 %v4942
  %v6999 = vunpack.c.l.b16 %v4943
  %v7000 = vunpack.c.h.b16 %v4943
  %v7001 = vunpack.c.l.b16 %v4944
  %v7002 = vunpack.c.h.b16 %v4944
  %v7003 = vunpack.c.l.b16 %v4945
  %v7004 = vunpack.c.h.b16 %v4945
  %v7005 = vunpack.c.l.b16 %v4946
  %v7006 = vunpack.c.h.b16 %v4946
  %v7007 = vunpack.c.l.b16 %v4947
  %v7008 = vunpack.c.h.b16 %v4947
  %v7009 = vunpack.c.l.b16 %v4948
  %v7010 = vunpack.c.h.b16 %v4948
  %v7011 = vunpack.c.l.b16 %v4949
  %v7012 = vunpack.c.h.b16 %v4949
  %v7013 = vunpack.c.l.b16 %v4950
  %v7014 = vunpack.c.h.b16 %v4950
  %v7015 = vunpack.c.l.b16 %v4951
  %v7016 = vunpack.c.h.b16 %v4951
  %v7017 = vunpack.c.l.b16 %v4952
  %v7018 = vunpack.c.h.b16 %v4952
  %v7019 = vunpack.c.l.b16 %v4953
  %v7020 = vunpack.c.h.b16 %v4953
  %v7021 = vunpack.c.l.b16 %v4954
  %v7022 = vunpack.c.h.b16 %v4954
  %v7023 = vunpack.c.l.b16 %v4955
  %v7024 = vunpack.c.h.b16 %v4955
  %v7025 = vunpack.c.l.b16 %v4956
  %v7026 = vunpack.c.h.b16 %v4956
  %v7027 = vunpack.c.l.b16 %v4957
  %v7028 = vunpack.c.h.b16 %v4957
  %v7029 = vunpack.c.l.b16 %v4958
  %v7030 = vunpack.c.h.b16 %v4958
  %v7031 = vunpack.c.l.b16 %v4959
  %v7032 = vunpack.c.h.b16 %v4959
  %v7033 = vunpack.c.l.b16 %v4960
  %v7034 = vunpack.c.h.b16 %v4960
  %v7035 = vunpack.c.l.b16 %v4961
  %v7036 = vunpack.c.h.b16 %v4961
  %v7037 = vunpack.c.l.b16 %v4962
  %v7038 = vunpack.c.h.b16 %v4962
  %v7039 = vunpack.c.l.b16 %v4963
  %v7040 = vunpack.c.h.b16 %v4963
  %v7041 = vunpack.c.l.b16 %v4964
  %v7042 = vunpack.c.h.b16 %v4964
  %v7043 = vunpack.c.l.b16 %v4965
  %v7044 = vunpack.c.h.b16 %v4965
  %v7045 = vunpack.c.l.b16 %v4966
  %v7046 = vunpack.c.h.b16 %v4966
  %v7047 = vunpack.c.l.b16 %v4967
  %v7048 = vunpack.c.h.b16 %v4967
  %v7049 = vunpack.c.l.b16 %v4968
  %v7050 = vunpack.c.h.b16 %v4968
  %v7051 = vunpack.c.l.b16 %v4969
  %v7052 = vunpack.c.h.b16 %v4969
  %v7053 = vunpack.c.l.b16 %v4970
  %v7054 = vunpack.c.h.b16 %v4970
  %v7055 = vunpack.c.l.b16 %v4971
  %v7056 = vunpack.c.h.b16 %v4971
  %v7057 = vunpack.c.l.b16 %v4972
  %v7058 = vunpack.c.h.b16 %v4972
  %v7059 = vunpack.c.l.b16 %v4973
  %v7060 = vunpack.c.h.b16 %v4973
  %v7061 = vunpack.c.l.b16 %v4974
  %v7062 = vunpack.c.h.b16 %v4974
  %v7063 = vunpack.c.l.b16 %v4975
  %v7064 = vunpack.c.h.b16 %v4975
  %v7065 = vunpack.c.l.b16 %v4976
  %v7066 = vunpack.c.h.b16 %v4976
  %v7067 = vunpack.c.l.b16 %v4977
  %v7068 = vunpack.c.h.b16 %v4977
  %v7069 = vunpack.c.l.b16 %v4978
  %v7070 = vunpack.c.h.b16 %v4978
  %v7071 = vunpack.c.l.b16 %v4979
  %v7072 = vunpack.c.h.b16 %v4979
  %v7073 = vunpack.c.l.b16 %v4980
  %v7074 = vunpack.c.h.b16 %v4980
  %v7075 = vunpack.c.l.b16 %v4981
  %v7076 = vunpack.c.h.b16 %v4981
  %v7077 = vunpack.c.l.b16 %v4982
  %v7078 = vunpack.c.h.b16 %v4982
  %v7079 = vunpack.c.l.b16 %v4983
  %v7080 = vunpack.c.h.b16 %v4983
  %v7081 = vunpack.c.l.b16 %v4984
  %v7082 = vunpack.c.h.b16 %v4984
  %v7083 = vunpack.c.l.b16 %v4985
  %v7084 = vunpack.c.h.b16 %v4985
  %v7085 = vunpack.c.l.b16 %v4986
  %v7086 = vunpack.c.h.b16 %v4986
  %v7087 = vunpack.c.l.b16 %v4987
  %v7088 = vunpack.c.h.b16 %v4987
  %v7089 = vunpack.c.l.b16 %v4988
  %v7090 = vunpack.c.h.b16 %v4988
  %v7091 = vunpack.c.l.b16 %v4989
  %v7092 = vunpack.c.h.b16 %v4989
  %v7093 = vunpack.c.l.b16 %v4990
  %v7094 = vunpack.c.h.b16 %v4990
  %v7095 = vunpack.c.l.b16 %v4991
  %v7096 = vunpack.c.h.b16 %v4991
  %v7097 = vunpack.c.l.b16 %v4992
  %v7098 = vunpack.c.h.b16 %v4992
  %v7099 = vunpack.c.l.b16 %v4993
  %v7100 = vunpack.c.h.b16 %v4993
  %v7101 = vunpack.c.l.b16 %v4994
  %v7102 = vunpack.c.h.b16 %v4994
  %v7103 = vunpack.c.l.b16 %v4995
  %v7104 = vunpack.c.h.b16 %v4995
  %v7105 = vunpack.c.l.b16 %v4996
  %v7106 = vunpack.c.h.b16 %v4996
  %v7107 = vunpack.c.l.b16 %v4997
  %v7108 = vunpack.c.h.b16 %v4997
  %v7109 = vunpack.c.l.b16 %v4998
  %v7110 = vunpack.c.h.b16 %v4998
  %v7111 = vunpack.c.l.b16 %v4999
  %v7112 = vunpack.c.h.b16 %v4999
  %v7113 = vunpack.c.l.b16 %v5000
  %v7114 = vunpack.c.h.b16 %v5000
  %v7115 = vunpack.c.l.b16 %v5001
  %v7116 = vunpack.c.h.b16 %v5001
  %v7117 = vunpack.c.l.b16 %v5002
  %v7118 = vunpack.c.h.b16 %v5002
  %v7119 = vunpack.c.l.b16 %v5003
  %v7120 = vunpack.c.h.b16 %v5003
  %v7121 = vunpack.c.l.b16 %v5004
  %v7122 = vunpack.c.h.b16 %v5004
  %v7123 = vunpack.c.l.b16 %v5005
  %v7124 = vunpack.c.h.b16 %v5005
  %v7125 = vunpack.c.l.b16 %v5006
  %v7126 = vunpack.c.h.b16 %v5006
  %v7127 = vunpack.c.l.b16 %v5007
  %v7128 = vunpack.c.h.b16 %v5007
  %v7129 = vunpack.c.l.b16 %v5008
  %v7130 = vunpack.c.h.b16 %v5008
  %v7131 = vunpack.c.l.b16 %v5009
  %v7132 = vunpack.c.h.b16 %v5009
  %v7133 = vunpack.c.l.b16 %v5010
  %v7134 = vunpack.c.h.b16 %v5010
  %v7135 = vunpack.c.l.b16 %v5011
  %v7136 = vunpack.c.h.b16 %v5011
  %v7137 = vunpack.c.l.b16 %v5012
  %v7138 = vunpack.c.h.b16 %v5012
  %v7139 = vunpack.c.l.b16 %v5013
  %v7140 = vunpack.c.h.b16 %v5013
  %v7141 = vunpack.c.l.b16 %v5014
  %v7142 = vunpack.c.h.b16 %v5014
  %v7143 = vunpack.c.l.b16 %v5015
  %v7144 = vunpack.c.h.b16 %v5015
  %v7145 = vunpack.c.l.b16 %v5016
  %v7146 = vunpack.c.h.b16 %v5016
  %v7147 = vunpack.c.l.b16 %v5017
  %v7148 = vunpack.c.h.b16 %v5017
  %v7149 = vunpack.c.l.b16 %v5018
  %v7150 = vunpack.c.h.b16 %v5018
  %v7151 = vunpack.c.l.b16 %v5019
  %v7152 = vunpack.c.h.b16 %v5019
  %v7153 = vunpack.c.l.b16 %v5020
  %v7154 = vunpack.c.h.b16 %v5020
  %v7155 = vunpack.c.l.b16 %v5021
  %v7156 = vunpack.c.h.b16 %v5021
  %v7157 = vunpack.c.l.b16 %v5022
  %v7158 = vunpack.c.h.b16 %v5022
  %v7159 = vunpack.c.l.b16 %v5023
  %v7160 = vunpack.c.h.b16 %v5023
  %v7161 = vunpack.c.l.b16 %v5024
  %v7162 = vunpack.c.h.b16 %v5024
  %v7163 = vunpack.c.l.b16 %v5025
  %v7164 = vunpack.c.h.b16 %v5025
  %v7165 = vunpack.c.l.b16 %v5026
  %v7166 = vunpack.c.h.b16 %v5026
  %v7167 = vunpack.c.l.b16 %v5027
  %v7168 = vunpack.c.h.b16 %v5027
  %v7169 = vunpack.c.l.b16 %v5028
  %v7170 = vunpack.c.h.b16 %v5028
  %v7171 = vunpack.c.l.b16 %v5029
  %v7172 = vunpack.c.h.b16 %v5029
  %v7173 = vunpack.c.l.b16 %v5030
  %v7174 = vunpack.c.h.b16 %v5030
  %v7175 = vunpack.c.l.b16 %v5031
  %v7176 = vunpack.c.h.b16 %v5031
  %v7177 = vunpack.c.l.b16 %v5032
  %v7178 = vunpack.c.h.b16 %v5032
  %v7179 = vunpack.c.l.b16 %v5033
  %v7180 = vunpack.c.h.b16 %v5033
  %v7181 = vunpack.c.l.b16 %v5034
  %v7182 = vunpack.c.h.b16 %v5034
  %v7183 = vunpack.c.l.b16 %v5035
  %v7184 = vunpack.c.h.b16 %v5035
  %v7185 = vunpack.c.l.b16 %v5036
  %v7186 = vunpack.c.h.b16 %v5036
  %v7187 = vunpack.c.l.b16 %v5037
  %v7188 = vunpack.c.h.b16 %v5037
  %v7189 = vunpack.c.l.b16 %v5038
  %v7190 = vunpack.c.h.b16 %v5038
  %v7191 = vunpack.c.l.b16 %v5039
  %v7192 = vunpack.c.h.b16 %v5039
  %v7193 = vunpack.c.l.b16 %v5040
  %v7194 = vunpack.c.h.b16 %v5040
  %v7195 = vunpack.c.l.b16 %v5041
  %v7196 = vunpack.c.h.b16 %v5041
  %v7197 = vunpack.c.l.b16 %v5042
  %v7198 = vunpack.c.h.b16 %v5042
  %v7199 = vunpack.c.l.b16 %v5043
  %v7200 = vunpack.c.h.b16 %v5043
  %v7201 = vunpack.c.l.b16 %v5044
  %v7202 = vunpack.c.h.b16 %v5044
  %v7203 = vunpack.c.l.b16 %v5045
  %v7204 = vunpack.c.h.b16 %v5045
  %v7205 = vunpack.c.l.b16 %v5046
  %v7206 = vunpack.c.h.b16 %v5046
  %v7207 = vunpack.c.l.b16 %v5047
  %v7208 = vunpack.c.h.b16 %v5047
  %v7209 = vunpack.c.l.b16 %v5048
  %v7210 = vunpack.c.h.b16 %v5048
  %v7211 = vunpack.c.l.b16 %v5049
  %v7212 = vunpack.c.h.b16 %v5049
  %v7213 = vunpack.c.l.b16 %v5050
  %v7214 = vunpack.c.h.b16 %v5050
  %v7215 = vunpack.c.l.b16 %v5051
  %v7216 = vunpack.c.h.b16 %v5051
  %v7217 = vunpack.c.l.b16 %v5052
  %v7218 = vunpack.c.h.b16 %v5052
  %v7219 = vunpack.c.l.b16 %v5053
  %v7220 = vunpack.c.h.b16 %v5053
  %v7221 = vunpack.c.l.b16 %v5054
  %v7222 = vunpack.c.h.b16 %v5054
  %v7223 = vunpack.c.l.b16 %v5055
  %v7224 = vunpack.c.h.b16 %v5055
  %v7225 = vunpack.c.l.b16 %v5056
  %v7226 = vunpack.c.h.b16 %v5056
  %v7227 = vunpack.c.l.b16 %v5057
  %v7228 = vunpack.c.h.b16 %v5057
  %v7229 = vunpack.c.l.b16 %v5058
  %v7230 = vunpack.c.h.b16 %v5058
  %v7231 = vunpack.c.l.b16 %v5059
  %v7232 = vunpack.c.h.b16 %v5059
  %v7233 = vunpack.c.l.b16 %v5060
  %v7234 = vunpack.c.h.b16 %v5060
  %v7235 = vunpack.c.l.b16 %v5061
  %v7236 = vunpack.c.h.b16 %v5061
  %v7237 = vunpack.c.l.b16 %v5062
  %v7238 = vunpack.c.h.b16 %v5062
  %v7239 = vunpack.c.l.b16 %v5063
  %v7240 = vunpack.c.h.b16 %v5063
  %v7241 = vunpack.c.l.b16 %v5064
  %v7242 = vunpack.c.h.b16 %v5064
  %v7243 = vunpack.c.l.b16 %v5065
  %v7244 = vunpack.c.h.b16 %v5065
  %v7245 = vunpack.c.l.b16 %v5066
  %v7246 = vunpack.c.h.b16 %v5066
  %v7247 = vunpack.c.l.b16 %v5067
  %v7248 = vunpack.c.h.b16 %v5067
  %v7249 = vunpack.c.l.b16 %v5068
  %v7250 = vunpack.c.h.b16 %v5068
  %v7251 = vunpack.c.l.b16 %v5069
  %v7252 = vunpack.c.h.b16 %v5069
  %v7253 = vunpack.c.l.b16 %v5070
  %v7254 = vunpack.c.h.b16 %v5070
  %v7255 = vunpack.c.l.b16 %v5071
  %v7256 = vunpack.c.h.b16 %v5071
  %v7257 = vunpack.c.l.b16 %v5072
  %v7258 = vunpack.c.h.b16 %v5072
  %v7259 = vunpack.c.l.b16 %v5073
  %v7260 = vunpack.c.h.b16 %v5073
  %v7261 = vunpack.c.l.b16 %v5074
  %v7262 = vunpack.c.h.b16 %v5074
  %v7263 = vunpack.c.l.b16 %v5075
  %v7264 = vunpack.c.h.b16 %v5075
  %v7265 = vunpack.c.l.b16 %v5076
  %v7266 = vunpack.c.h.b16 %v5076
  %v7267 = vunpack.c.l.b16 %v5077
  %v7268 = vunpack.c.h.b16 %v5077
  %v7269 = vunpack.c.l.b16 %v5078
  %v7270 = vunpack.c.h.b16 %v5078
  %v7271 = vunpack.c.l.b16 %v5079
  %v7272 = vunpack.c.h.b16 %v5079
  %v7273 = vunpack.c.l.b16 %v5080
  %v7274 = vunpack.c.h.b16 %v5080
  %v7275 = vunpack.c.l.b16 %v5081
  %v7276 = vunpack.c.h.b16 %v5081
  %v7277 = vunpack.c.l.b16 %v5082
  %v7278 = vunpack.c.h.b16 %v5082
  %v7279 = vunpack.c.l.b16 %v5083
  %v7280 = vunpack.c.h.b16 %v5083
  %v7281 = vunpack.c.l.b16 %v5084
  %v7282 = vunpack.c.h.b16 %v5084
  %v7283 = vunpack.c.l.b16 %v5085
  %v7284 = vunpack.c.h.b16 %v5085
  %v7285 = vunpack.c.l.b16 %v5086
  %v7286 = vunpack.c.h.b16 %v5086
  %v7287 = vunpack.c.l.b16 %v5087
  %v7288 = vunpack.c.h.b16 %v5087
  %v7289 = vunpack.c.l.b16 %v5088
  %v7290 = vunpack.c.h.b16 %v5088
  %v7291 = vunpack.c.l.b16 %v5089
  %v7292 = vunpack.c.h.b16 %v5089
  %v7293 = vunpack.c.l.b16 %v5090
  %v7294 = vunpack.c.h.b16 %v5090
  %v7295 = vunpack.c.l.b16 %v5091
  %v7296 = vunpack.c.h.b16 %v5091
  %v7297 = vunpack.c.l.b16 %v5092
  %v7298 = vunpack.c.h.b16 %v5092
  %v7299 = vunpack.c.l.b16 %v5093
  %v7300 = vunpack.c.h.b16 %v5093
  %v7301 = vunpack.c.l.b16 %v5094
  %v7302 = vunpack.c.h.b16 %v5094
  %v7303 = vunpack.c.l.b16 %v5095
  %v7304 = vunpack.c.h.b16 %v5095
  %v7305 = vunpack.c.l.b16 %v5096
  %v7306 = vunpack.c.h.b16 %v5096
  %v7307 = vunpack.c.l.b16 %v5097
  %v7308 = vunpack.c.h.b16 %v5097
  %v7309 = vunpack.c.l.b16 %v5098
  %v7310 = vunpack.c.h.b16 %v5098
  %v7311 = vunpack.c.l.b16 %v5099
  %v7312 = vunpack.c.h.b16 %v5099
  %v7313 = vunpack.c.l.b16 %v5100
  %v7314 = vunpack.c.h.b16 %v5100
  %v7315 = vunpack.c.l.b16 %v5101
  %v7316 = vunpack.c.h.b16 %v5101
  %v7317 = vunpack.c.l.b16 %v5102
  %v7318 = vunpack.c.h.b16 %v5102
  %v7319 = vunpack.c.l.b16 %v5103
  %v7320 = vunpack.c.h.b16 %v5103
  %v7321 = vunpack.c.l.b16 %v5104
  %v7322 = vunpack.c.h.b16 %v5104
  %v7323 = vunpack.c.l.b16 %v5105
  %v7324 = vunpack.c.h.b16 %v5105
  %v7325 = vunpack.c.l.b16 %v5106
  %v7326 = vunpack.c.h.b16 %v5106
  %v7327 = vunpack.c.l.b16 %v5107
  %v7328 = vunpack.c.h.b16 %v5107
  %v7329 = vunpack.c.l.b16 %v5108
  %v7330 = vunpack.c.h.b16 %v5108
  %v7331 = vunpack.c.l.b16 %v5109
  %v7332 = vunpack.c.h.b16 %v5109
  %v7333 = vunpack.c.l.b16 %v5110
  %v7334 = vunpack.c.h.b16 %v5110
  %v7335 = vunpack.c.l.b16 %v5111
  %v7336 = vunpack.c.h.b16 %v5111
  %v7337 = vunpack.c.l.b16 %v5112
  %v7338 = vunpack.c.h.b16 %v5112
  %v7339 = vunpack.c.l.b16 %v5113
  %v7340 = vunpack.c.h.b16 %v5113
  %v7341 = vunpack.c.l.b16 %v5114
  %v7342 = vunpack.c.h.b16 %v5114
  %v7343 = vunpack.c.l.b16 %v5115
  %v7344 = vunpack.c.h.b16 %v5115
  %v7345 = vunpack.c.l.b16 %v5116
  %v7346 = vunpack.c.h.b16 %v5116
  %v7347 = vunpack.c.l.b16 %v5117
  %v7348 = vunpack.c.h.b16 %v5117
  %v7349 = vunpack.c.l.b16 %v5118
  %v7350 = vunpack.c.h.b16 %v5118
  %v7351 = vunpack.c.l.b16 %v5119
  %v7352 = vunpack.c.h.b16 %v5119
  %v7353 = vunpack.c.l.b16 %v5120
  %v7354 = vunpack.c.h.b16 %v5120
  %v7355 = vunpack.c.l.b16 %v5121
  %v7356 = vunpack.c.h.b16 %v5121
  %v7357 = vunpack.c.l.b16 %v5122
  %v7358 = vunpack.c.h.b16 %v5122
  %v7359 = vunpack.c.l.b16 %v5123
  %v7360 = vunpack.c.h.b16 %v5123
  %v7361 = vunpack.c.l.b16 %v5124
  %v7362 = vunpack.c.h.b16 %v5124
  %v7363 = vunpack.c.l.b16 %v5125
  %v7364 = vunpack.c.h.b16 %v5125
  %v7365 = vunpack.c.l.b16 %v5126
  %v7366 = vunpack.c.h.b16 %v5126
  %v7367 = vunpack.c.l.b16 %v5127
  %v7368 = vunpack.c.h.b16 %v5127
  %v7369 = vunpack.c.l.b16 %v5128
  %v7370 = vunpack.c.h.b16 %v5128
  %v7371 = vunpack.c.l.b16 %v5129
  %v7372 = vunpack.c.h.b16 %v5129
  %v7373 = vunpack.c.l.b16 %v5130
  %v7374 = vunpack.c.h.b16 %v5130
  %v7375 = vunpack.c.l.b16 %v5131
  %v7376 = vunpack.c.h.b16 %v5131
  %v7377 = vunpack.c.l.b16 %v5132
  %v7378 = vunpack.c.h.b16 %v5132
  %v7379 = vunpack.c.l.b16 %v5133
  %v7380 = vunpack.c.h.b16 %v5133
  %v7381 = vunpack.c.l.b16 %v5134
  %v7382 = vunpack.c.h.b16 %v5134
  %v7383 = vunpack.c.l.b16 %v5135
  %v7384 = vunpack.c.h.b16 %v5135
  %v7385 = vunpack.c.l.b16 %v5136
  %v7386 = vunpack.c.h.b16 %v5136
  %v7387 = vunpack.c.l.b16 %v5137
  %v7388 = vunpack.c.h.b16 %v5137
  %v7389 = vunpack.c.l.b16 %v5138
  %v7390 = vunpack.c.h.b16 %v5138
  %v7391 = vunpack.c.l.b16 %v5139
  %v7392 = vunpack.c.h.b16 %v5139
  %v7393 = vunpack.c.l.b16 %v5140
  %v7394 = vunpack.c.h.b16 %v5140
  %v7395 = vunpack.c.l.b16 %v5141
  %v7396 = vunpack.c.h.b16 %v5141
  %v7397 = vunpack.c.l.b16 %v5142
  %v7398 = vunpack.c.h.b16 %v5142
  %v7399 = vunpack.c.l.b16 %v5143
  %v7400 = vunpack.c.h.b16 %v5143
  %v7401 = vunpack.c.l.b16 %v5144
  %v7402 = vunpack.c.h.b16 %v5144
  %v7403 = vunpack.c.l.b16 %v5145
  %v7404 = vunpack.c.h.b16 %v5145
  %v7405 = vunpack.c.l.b16 %v5146
  %v7406 = vunpack.c.h.b16 %v5146
  %v7407 = vunpack.c.l.b16 %v5147
  %v7408 = vunpack.c.h.b16 %v5147
  %v7409 = vunpack.c.l.b16 %v5148
  %v7410 = vunpack.c.h.b16 %v5148
  %v7411 = vunpack.c.l.b16 %v5149
  %v7412 = vunpack.c.h.b16 %v5149
  %v7413 = vunpack.c.l.b16 %v5150
  %v7414 = vunpack.c.h.b16 %v5150
  %v7415 = vunpack.c.l.b16 %v5151
  %v7416 = vunpack.c.h.b16 %v5151
  %v7417 = vunpack.c.l.b16 %v5152
  %v7418 = vunpack.c.h.b16 %v5152
  %v7419 = vunpack.c.l.b16 %v5153
  %v7420 = vunpack.c.h.b16 %v5153
  %v7421 = vunpack.c.l.b16 %v5154
  %v7422 = vunpack.c.h.b16 %v5154
  %v7423 = vunpack.c.l.b16 %v5155
  %v7424 = vunpack.c.h.b16 %v5155
  %v7425 = vunpack.c.l.b16 %v5156
  %v7426 = vunpack.c.h.b16 %v5156
  %v7427 = vunpack.c.l.b16 %v5157
  %v7428 = vunpack.c.h.b16 %v5157
  %v7429 = vunpack.c.l.b16 %v5158
  %v7430 = vunpack.c.h.b16 %v5158
  %v7431 = vunpack.c.l.b16 %v5159
  %v7432 = vunpack.c.h.b16 %v5159
  %v7433 = vunpack.c.l.b16 %v5160
  %v7434 = vunpack.c.h.b16 %v5160
  %v7435 = vunpack.c.l.b16 %v5161
  %v7436 = vunpack.c.h.b16 %v5161
  %v7437 = vunpack.c.l.b16 %v5162
  %v7438 = vunpack.c.h.b16 %v5162
  %v7439 = vunpack.c.l.b16 %v5163
  %v7440 = vunpack.c.h.b16 %v5163
  %v7441 = vunpack.c.l.b16 %v5164
  %v7442 = vunpack.c.h.b16 %v5164
  %v7443 = vunpack.c.l.b16 %v5165
  %v7444 = vunpack.c.h.b16 %v5165
  %v7445 = vunpack.c.l.b16 %v5166
  %v7446 = vunpack.c.h.b16 %v5166
  %v7447 = vunpack.c.l.b16 %v5167
  %v7448 = vunpack.c.h.b16 %v5167
  %v7449 = vunpack.c.l.b16 %v5168
  %v7450 = vunpack.c.h.b16 %v5168
  %v7451 = vunpack.c.l.b16 %v5169
  %v7452 = vunpack.c.h.b16 %v5169
  %v7453 = vunpack.c.l.b16 %v5170
  %v7454 = vunpack.c.h.b16 %v5170
  %v7455 = vunpack.c.l.b16 %v5171
  %v7456 = vunpack.c.h.b16 %v5171
  %v7457 = vunpack.c.l.b16 %v5172
  %v7458 = vunpack.c.h.b16 %v5172
  %v7459 = vunpack.c.l.b16 %v5173
  %v7460 = vunpack.c.h.b16 %v5173
  %v7461 = vunpack.c.l.b16 %v5174
  %v7462 = vunpack.c.h.b16 %v5174
  %v7463 = vunpack.c.l.b16 %v5175
  %v7464 = vunpack.c.h.b16 %v5175
  %v7465 = vunpack.c.l.b16 %v5176
  %v7466 = vunpack.c.h.b16 %v5176
  %v7467 = vunpack.c.l.b16 %v5177
  %v7468 = vunpack.c.h.b16 %v5177
  %v7469 = vunpack.c.l.b16 %v5178
  %v7470 = vunpack.c.h.b16 %v5178
  %v7471 = vunpack.c.l.b16 %v5179
  %v7472 = vunpack.c.h.b16 %v5179
  %v7473 = vunpack.c.l.b16 %v5180
  %v7474 = vunpack.c.h.b16 %v5180
  %v7475 = vunpack.c.l.b16 %v5181
  %v7476 = vunpack.c.h.b16 %v5181
  %v7477 = vunpack.c.l.b16 %v5182
  %v7478 = vunpack.c.h.b16 %v5182
  %v7479 = vunpack.c.l.b16 %v5183
  %v7480 = vunpack.c.h.b16 %v5183
  %v7481 = vunpack.c.l.b16 %v5184
  %v7482 = vunpack.c.h.b16 %v5184
  %v7483 = vunpack.c.l.b16 %v5185
  %v7484 = vunpack.c.h.b16 %v5185
  %v7485 = vunpack.c.l.b16 %v5186
  %v7486 = vunpack.c.h.b16 %v5186
  %v7487 = vunpack.c.l.b16 %v5187
  %v7488 = vunpack.c.h.b16 %v5187
  %v7489 = vunpack.c.l.b16 %v5188
  %v7490 = vunpack.c.h.b16 %v5188
  %v7491 = vunpack.c.l.b16 %v5189
  %v7492 = vunpack.c.h.b16 %v5189
  %v7493 = vunpack.c.l.b16 %v5190
  %v7494 = vunpack.c.h.b16 %v5190
  %v7495 = vunpack.c.l.b16 %v5191
  %v7496 = vunpack.c.h.b16 %v5191
  %v7497 = vunpack.c.l.b16 %v5192
  %v7498 = vunpack.c.h.b16 %v5192
  %v7499 = vunpack.c.l.b16 %v5193
  %v7500 = vunpack.c.h.b16 %v5193
  %v7501 = vunpack.c.l.b16 %v5194
  %v7502 = vunpack.c.h.b16 %v5194
  %v7503 = vunpack.c.l.b16 %v5195
  %v7504 = vunpack.c.h.b16 %v5195
  %v7505 = vunpack.c.l.b16 %v5196
  %v7506 = vunpack.c.h.b16 %v5196
  %v7507 = vunpack.c.l.b16 %v5197
  %v7508 = vunpack.c.h.b16 %v5197
  %v7509 = vunpack.c.l.b16 %v5198
  %v7510 = vunpack.c.h.b16 %v5198
  %v7511 = vunpack.c.l.b16 %v5199
  %v7512 = vunpack.c.h.b16 %v5199
  %v7513 = vunpack.c.l.b16 %v5200
  %v7514 = vunpack.c.h.b16 %v5200
  %v7515 = vunpack.c.l.b16 %v5201
  %v7516 = vunpack.c.h.b16 %v5201
  %v7517 = vunpack.c.l.b16 %v5202
  %v7518 = vunpack.c.h.b16 %v5202
  %v7519 = vunpack.c.l.b16 %v5203
  %v7520 = vunpack.c.h.b16 %v5203
  %v7521 = vunpack.c.l.b16 %v5204
  %v7522 = vunpack.c.h.b16 %v5204
  %v7523 = vunpack.c.l.b16 %v5205
  %v7524 = vunpack.c.h.b16 %v5205
  %v7525 = vunpack.c.l.b16 %v5206
  %v7526 = vunpack.c.h.b16 %v5206
  %v7527 = vunpack.c.l.b16 %v5207
  %v7528 = vunpack.c.h.b16 %v5207
  %v7529 = vunpack.c.l.b16 %v5208
  %v7530 = vunpack.c.h.b16 %v5208
  %v7531 = vunpack.c.l.b16 %v5209
  %v7532 = vunpack.c.h.b16 %v5209
  %v7533 = vunpack.c.l.b16 %v5210
  %v7534 = vunpack.c.h.b16 %v5210
  %v7535 = vunpack.c.l.b16 %v5211
  %v7536 = vunpack.c.h.b16 %v5211
  %v7537 = vunpack.c.l.b16 %v5212
  %v7538 = vunpack.c.h.b16 %v5212
  %v7539 = vunpack.c.l.b16 %v5213
  %v7540 = vunpack.c.h.b16 %v5213
  %v7541 = vunpack.c.l.b16 %v5214
  %v7542 = vunpack.c.h.b16 %v5214
  %v7543 = vunpack.c.l.b16 %v5215
  %v7544 = vunpack.c.h.b16 %v5215
  %v7545 = vunpack.c.l.b16 %v5216
  %v7546 = vunpack.c.h.b16 %v5216
  %v7547 = vunpack.c.l.b16 %v5217
  %v7548 = vunpack.c.h.b16 %v5217
  %v7549 = vunpack.c.l.b16 %v5218
  %v7550 = vunpack.c.h.b16 %v5218
  %v7551 = vunpack.c.l.b16 %v5219
  %v7552 = vunpack.c.h.b16 %v5219
  %v7553 = vunpack.c.l.b16 %v5220
  %v7554 = vunpack.c.h.b16 %v5220
  %v7555 = vunpack.c.l.b16 %v5221
  %v7556 = vunpack.c.h.b16 %v5221
  %v7557 = vunpack.c.l.b16 %v5222
  %v7558 = vunpack.c.h.b16 %v5222
  %v7559 = vunpack.c.l.b16 %v5223
  %v7560 = vunpack.c.h.b16 %v5223
  %v7561 = vunpack.c.l.b16 %v5224
  %v7562 = vunpack.c.h.b16 %v5224
  %v7563 = vunpack.c.l.b16 %v5225
  %v7564 = vunpack.c.h.b16 %v5225
  %v7565 = vunpack.c.l.b16 %v5226
  %v7566 = vunpack.c.h.b16 %v5226
  %v7567 = vunpack.c.l.b16 %v5227
  %v7568 = vunpack.c.h.b16 %v5227
  %v7569 = vunpack.c.l.b16 %v5228
  %v7570 = vunpack.c.h.b16 %v5228
  %v7571 = vunpack.c.l.b16 %v5229
  %v7572 = vunpack.c.h.b16 %v5229
  %v7573 = vunpack.c.l.b16 %v5230
  %v7574 = vunpack.c.h.b16 %v5230
  %v7575 = vunpack.c.l.b16 %v5231
  %v7576 = vunpack.c.h.b16 %v5231
  %v7577 = vunpack.c.l.b16 %v5232
  %v7578 = vunpack.c.h.b16 %v5232
  %v7579 = vunpack.c.l.b16 %v5233
  %v7580 = vunpack.c.h.b16 %v5233
  %v7581 = vunpack.c.l.b16 %v5234
  %v7582 = vunpack.c.h.b16 %v5234
  %v7583 = vunpack.c.l.b16 %v5235
  %v7584 = vunpack.c.h.b16 %v5235
  %v7585 = vunpack.c.l.b16 %v5236
  %v7586 = vunpack.c.h.b16 %v5236
  %v7587 = vunpack.c.l.b16 %v5237
  %v7588 = vunpack.c.h.b16 %v5237
  %v7589 = vunpack.c.l.b16 %v5238
  %v7590 = vunpack.c.h.b16 %v5238
  %v7591 = vunpack.c.l.b16 %v5239
  %v7592 = vunpack.c.h.b16 %v5239
  %v7593 = vunpack.c.l.b16 %v5240
  %v7594 = vunpack.c.h.b16 %v5240
  %v7595 = vunpack.c.l.b16 %v5241
  %v7596 = vunpack.c.h.b16 %v5241
  %v7597 = vunpack.c.l.b16 %v5242
  %v7598 = vunpack.c.h.b16 %v5242
  %v7599 = vunpack.c.l.b16 %v5243
  %v7600 = vunpack.c.h.b16 %v5243
  %v7601 = vunpack.c.l.b16 %v5244
  %v7602 = vunpack.c.h.b16 %v5244
  %v7603 = vunpack.c.l.b16 %v5245
  %v7604 = vunpack.c.h.b16 %v5245
  %v7605 = vunpack.c.l.b16 %v5246
  %v7606 = vunpack.c.h.b16 %v5246
  %v7607 = vunpack.c.l.b16 %v5247
  %v7608 = vunpack.c.h.b16 %v5247
  %v7609 = vunpack.c.l.b16 %v5248
  %v7610 = vunpack.c.h.b16 %v5248
  %v7611 = vunpack.c.l.b16 %v5249
  %v7612 = vunpack.c.h.b16 %v5249
  %v7613 = vunpack.c.l.b16 %v5250
  %v7614 = vunpack.c.h.b16 %v5250
  %v7615 = vunpack.c.l.b16 %v5251
  %v7616 = vunpack.c.h.b16 %v5251
  %v7617 = vunpack.c.l.b16 %v5252
  %v7618 = vunpack.c.h.b16 %v5252
  %v7619 = vunpack.c.l.b16 %v5253
  %v7620 = vunpack.c.h.b16 %v5253
  %v7621 = vunpack.c.l.b16 %v5254
  %v7622 = vunpack.c.h.b16 %v5254
  %v7623 = vunpack.c.l.b16 %v5255
  %v7624 = vunpack.c.h.b16 %v5255
  %v7625 = vunpack.c.l.b16 %v5256
  %v7626 = vunpack.c.h.b16 %v5256
  %v7627 = vunpack.c.l.b16 %v5257
  %v7628 = vunpack.c.h.b16 %v5257
  %v7629 = vunpack.c.l.b16 %v5258
  %v7630 = vunpack.c.h.b16 %v5258
  %v7631 = vunpack.c.l.b16 %v5259
  %v7632 = vunpack.c.h.b16 %v5259
  %v7633 = vunpack.c.l.b16 %v5260
  %v7634 = vunpack.c.h.b16 %v5260
  %v7635 = vunpack.c.l.b16 %v5261
  %v7636 = vunpack.c.h.b16 %v5261
  %v7637 = vunpack.c.l.b16 %v5262
  %v7638 = vunpack.c.h.b16 %v5262
  %v7639 = vunpack.c.l.b16 %v5263
  %v7640 = vunpack.c.h.b16 %v5263
  %v7641 = vunpack.c.l.b16 %v5264
  %v7642 = vunpack.c.h.b16 %v5264
  %v7643 = vunpack.c.l.b16 %v5265
  %v7644 = vunpack.c.h.b16 %v5265
  %v7645 = vunpack.c.l.b16 %v5266
  %v7646 = vunpack.c.h.b16 %v5266
  %v7647 = vunpack.c.l.b16 %v5267
  %v7648 = vunpack.c.h.b16 %v5267
  %v7649 = vunpack.c.l.b16 %v5268
  %v7650 = vunpack.c.h.b16 %v5268
  %v7651 = vunpack.c.l.b16 %v5269
  %v7652 = vunpack.c.h.b16 %v5269
  %v7653 = vunpack.c.l.b16 %v5270
  %v7654 = vunpack.c.h.b16 %v5270
  %v7655 = vunpack.c.l.b16 %v5271
  %v7656 = vunpack.c.h.b16 %v5271
  %v7657 = vunpack.c.l.b16 %v5272
  %v7658 = vunpack.c.h.b16 %v5272
  %v7659 = vunpack.c.l.b16 %v5273
  %v7660 = vunpack.c.h.b16 %v5273
  %v7661 = vunpack.c.l.b16 %v5274
  %v7662 = vunpack.c.h.b16 %v5274
  %v7663 = vunpack.c.l.b16 %v5275
  %v7664 = vunpack.c.h.b16 %v5275
  %v7665 = vunpack.c.l.b16 %v5276
  %v7666 = vunpack.c.h.b16 %v5276
  %v7667 = vunpack.c.l.b16 %v5277
  %v7668 = vunpack.c.h.b16 %v5277
  %v7669 = vunpack.c.l.b16 %v5278
  %v7670 = vunpack.c.h.b16 %v5278
  %v7671 = vunpack.c.l.b16 %v5279
  %v7672 = vunpack.c.h.b16 %v5279
  %v7673 = vunpack.c.l.b16 %v5280
  %v7674 = vunpack.c.h.b16 %v5280
  %v7675 = vunpack.c.l.b16 %v5281
  %v7676 = vunpack.c.h.b16 %v5281
  %v7677 = vunpack.c.l.b16 %v5282
  %v7678 = vunpack.c.h.b16 %v5282
  %v7679 = vunpack.c.l.b16 %v5283
  %v7680 = vunpack.c.h.b16 %v5283
  %v7681 = vunpack.c.l.b16 %v5284
  %v7682 = vunpack.c.h.b16 %v5284
  %v7683 = vunpack.c.l.b16 %v5285
  %v7684 = vunpack.c.h.b16 %v5285
  %v7685 = vunpack.c.l.b16 %v5286
  %v7686 = vunpack.c.h.b16 %v5286
  %v7687 = vunpack.c.l.b16 %v5287
  %v7688 = vunpack.c.h.b16 %v5287
  %v7689 = vunpack.c.l.b16 %v5288
  %v7690 = vunpack.c.h.b16 %v5288
  %v7691 = vunpack.c.l.b16 %v5289
  %v7692 = vunpack.c.h.b16 %v5289
  %v7693 = vunpack.c.l.b16 %v5290
  %v7694 = vunpack.c.h.b16 %v5290
  %v7695 = vunpack.c.l.b16 %v5291
  %v7696 = vunpack.c.h.b16 %v5291
  %v7697 = vunpack.c.l.b16 %v5292
  %v7698 = vunpack.c.h.b16 %v5292
  %v7699 = vunpack.c.l.b16 %v5293
  %v7700 = vunpack.c.h.b16 %v5293
  %v7701 = vunpack.c.l.b16 %v5294
  %v7702 = vunpack.c.h.b16 %v5294
  %v7703 = vunpack.c.l.b16 %v5295
  %v7704 = vunpack.c.h.b16 %v5295
  %v7705 = vunpack.c.l.b16 %v5296
  %v7706 = vunpack.c.h.b16 %v5296
  %v7707 = vunpack.c.l.b16 %v5297
  %v7708 = vunpack.c.h.b16 %v5297
  %v7709 = vunpack.c.l.b16 %v5298
  %v7710 = vunpack.c.h.b16 %v5298
  %v7711 = vunpack.c.l.b16 %v5299
  %v7712 = vunpack.c.h.b16 %v5299
  %v7713 = vunpack.c.l.b16 %v5300
  %v7714 = vunpack.c.h.b16 %v5300
  %v7715 = vunpack.c.l.b16 %v5301
  %v7716 = vunpack.c.h.b16 %v5301
  %v7717 = vunpack.c.l.b16 %v5302
  %v7718 = vunpack.c.h.b16 %v5302
  %v7719 = vunpack.c.l.b16 %v5303
  %v7720 = vunpack.c.h.b16 %v5303
  %v7721 = vunpack.c.l.b16 %v5304
  %v7722 = vunpack.c.h.b16 %v5304
  %v7723 = vunpack.c.l.b16 %v5305
  %v7724 = vunpack.c.h.b16 %v5305
  %v7725 = vunpack.c.l.b16 %v5306
  %v7726 = vunpack.c.h.b16 %v5306
  %v7727 = vunpack.c.l.b16 %v5307
  %v7728 = vunpack.c.h.b16 %v5307
  %v7729 = vunpack.c.l.b16 %v5308
  %v7730 = vunpack.c.h.b16 %v5308
  %v7731 = vunpack.c.l.b16 %v5309
  %v7732 = vunpack.c.h.b16 %v5309
  %v7733 = vunpack.c.l.b16 %v5310
  %v7734 = vunpack.c.h.b16 %v5310
  %v7735 = vunpack.c.l.b16 %v5311
  %v7736 = vunpack.c.h.b16 %v5311
  %v7737 = vunpack.c.l.b16 %v5312
  %v7738 = vunpack.c.h.b16 %v5312
  %v7739 = vunpack.c.l.b16 %v5313
  %v7740 = vunpack.c.h.b16 %v5313
  %v7741 = vunpack.c.l.b16 %v5314
  %v7742 = vunpack.c.h.b16 %v5314
  %v7743 = vunpack.c.l.b16 %v5315
  %v7744 = vunpack.c.h.b16 %v5315
  %v7745 = vunpack.c.l.b16 %v5316
  %v7746 = vunpack.c.h.b16 %v5316
  %v7747 = vunpack.c.l.b16 %v5317
  %v7748 = vunpack.c.h.b16 %v5317
  %v7749 = vunpack.c.l.b16 %v5318
  %v7750 = vunpack.c.h.b16 %v5318
  %v7751 = vunpack.c.l.b16 %v5319
  %v7752 = vunpack.c.h.b16 %v5319
  %v7753 = vunpack.c.l.b16 %v5320
  %v7754 = vunpack.c.h.b16 %v5320
  %v7755 = vunpack.c.l.b16 %v5321
  %v7756 = vunpack.c.h.b16 %v5321
  %v7757 = vunpack.c.l.b16 %v5322
  %v7758 = vunpack.c.h.b16 %v5322
  %v7759 = vunpack.c.l.b16 %v5323
  %v7760 = vunpack.c.h.b16 %v5323
  %v7761 = vunpack.c.l.b16 %v5324
  %v7762 = vunpack.c.h.b16 %v5324
  %v7763 = vunpack.c.l.b16 %v5325
  %v7764 = vunpack.c.h.b16 %v5325
  %v7765 = vunpack.c.l.b16 %v5326
  %v7766 = vunpack.c.h.b16 %v5326
  %v7767 = vunpack.c.l.b16 %v5327
  %v7768 = vunpack.c.h.b16 %v5327
  %v7769 = vunpack.c.l.b16 %v5328
  %v7770 = vunpack.c.h.b16 %v5328
  %v7771 = vunpack.c.l.b16 %v5329
  %v7772 = vunpack.c.h.b16 %v5329
  %v7773 = vunpack.c.l.b16 %v5330
  %v7774 = vunpack.c.h.b16 %v5330
  %v7775 = vunpack.c.l.b16 %v5331
  %v7776 = vunpack.c.h.b16 %v5331
  %v7777 = vunpack.c.l.b16 %v5332
  %v7778 = vunpack.c.h.b16 %v5332
  %v7779 = vunpack.c.l.b16 %v5333
  %v7780 = vunpack.c.h.b16 %v5333
  %v7781 = vunpack.c.l.b16 %v5334
  %v7782 = vunpack.c.h.b16 %v5334
  %v7783 = vunpack.c.l.b16 %v5335
  %v7784 = vunpack.c.h.b16 %v5335
  %v7785 = vunpack.c.l.b16 %v5336
  %v7786 = vunpack.c.h.b16 %v5336
  %v7787 = vunpack.c.l.b16 %v5337
  %v7788 = vunpack.c.h.b16 %v5337
  %v7789 = vunpack.c.l.b16 %v5338
  %v7790 = vunpack.c.h.b16 %v5338
  %v7791 = vunpack.c.l.b16 %v5339
  %v7792 = vunpack.c.h.b16 %v5339
  %v7793 = vunpack.c.l.b16 %v5340
  %v7794 = vunpack.c.h.b16 %v5340
  %v7795 = vunpack.c.l.b16 %v5341
  %v7796 = vunpack.c.h.b16 %v5341
  %v7797 = vunpack.c.l.b16 %v5342
  %v7798 = vunpack.c.h.b16 %v5342
  %v7799 = vunpack.c.l.b16 %v5343
  %v7800 = vunpack.c.h.b16 %v5343
  %v7801 = vunpack.c.l.b16 %v5344
  %v7802 = vunpack.c.h.b16 %v5344
  %v7803 = vunpack.c.l.b16 %v5345
  %v7804 = vunpack.c.h.b16 %v5345
  %v7805 = vunpack.c.l.b16 %v5346
  %v7806 = vunpack.c.h.b16 %v5346
  %v7807 = vunpack.c.l.b16 %v5347
  %v7808 = vunpack.c.h.b16 %v5347
  %v7809 = vunpack.c.l.b16 %v5348
  %v7810 = vunpack.c.h.b16 %v5348
  %v7811 = vunpack.c.l.b16 %v5349
  %v7812 = vunpack.c.h.b16 %v5349
  %v7813 = vunpack.c.l.b16 %v5350
  %v7814 = vunpack.c.h.b16 %v5350
  %v7815 = vunpack.c.l.b16 %v5351
  %v7816 = vunpack.c.h.b16 %v5351
  %v7817 = vunpack.c.l.b16 %v5352
  %v7818 = vunpack.c.h.b16 %v5352
  %v7819 = vunpack.c.l.b16 %v5353
  %v7820 = vunpack.c.h.b16 %v5353
  %v7821 = vunpack.c.l.b16 %v5354
  %v7822 = vunpack.c.h.b16 %v5354
  %v7823 = vunpack.c.l.b16 %v5355
  %v7824 = vunpack.c.h.b16 %v5355
  %v7825 = vunpack.c.l.b16 %v5356
  %v7826 = vunpack.c.h.b16 %v5356
  %v7827 = vunpack.c.l.b16 %v5357
  %v7828 = vunpack.c.h.b16 %v5357
  %v7829 = vunpack.c.l.b16 %v5358
  %v7830 = vunpack.c.h.b16 %v5358
  %v7831 = vunpack.c.l.b16 %v5359
  %v7832 = vunpack.c.h.b16 %v5359
  %v7833 = vunpack.c.l.b16 %v5360
  %v7834 = vunpack.c.h.b16 %v5360
  %v7835 = vunpack.c.l.b16 %v5361
  %v7836 = vunpack.c.h.b16 %v5361
  %v7837 = vunpack.c.l.b16 %v5362
  %v7838 = vunpack.c.h.b16 %v5362
  %v7839 = vunpack.c.l.b16 %v5363
  %v7840 = vunpack.c.h.b16 %v5363
  %v7841 = vunpack.c.l.b16 %v5364
  %v7842 = vunpack.c.h.b16 %v5364
  %v7843 = vunpack.c.l.b16 %v5365
  %v7844 = vunpack.c.h.b16 %v5365
  %v7845 = vunpack.c.l.b16 %v5366
  %v7846 = vunpack.c.h.b16 %v5366
  %v7847 = vunpack.c.l.b16 %v5367
  %v7848 = vunpack.c.h.b16 %v5367
  %v7849 = vunpack.c.l.b16 %v5368
  %v7850 = vunpack.c.h.b16 %v5368
  %v7851 = vunpack.c.l.b16 %v5369
  %v7852 = vunpack.c.h.b16 %v5369
  %v7853 = vunpack.c.l.b16 %v5370
  %v7854 = vunpack.c.h.b16 %v5370
  %v7855 = vunpack.c.l.b16 %v5371
  %v7856 = vunpack.c.h.b16 %v5371
  %v7857 = vunpack.c.l.b16 %v5372
  %v7858 = vunpack.c.h.b16 %v5372
  %v7859 = vunpack.c.l.b16 %v5373
  %v7860 = vunpack.c.h.b16 %v5373
  %v7861 = vunpack.c.l.b16 %v5374
  %v7862 = vunpack.c.h.b16 %v5374
  %v7863 = vunpack.c.l.b16 %v5375
  %v7864 = vunpack.c.h.b16 %v5375
  %v7865 = vunpack.c.l.b16 %v5376
  %v7866 = vunpack.c.h.b16 %v5376
  %v7867 = vunpack.c.l.b16 %v5377
  %v7868 = vunpack.c.h.b16 %v5377
  %v7869 = vunpack.c.l.b16 %v5378
  %v7870 = vunpack.c.h.b16 %v5378
  %v7871 = vunpack.c.l.b16 %v5379
  %v7872 = vunpack.c.h.b16 %v5379
  %v7873 = vunpack.c.l.b16 %v5380
  %v7874 = vunpack.c.h.b16 %v5380
  %v7875 = vunpack.c.l.b16 %v5381
  %v7876 = vunpack.c.h.b16 %v5381
  %v7877 = vunpack.c.l.b16 %v5382
  %v7878 = vunpack.c.h.b16 %v5382
  %v7879 = vunpack.c.l.b16 %v5383
  %v7880 = vunpack.c.h.b16 %v5383
  %v7881 = vunpack.c.l.b16 %v5384
  %v7882 = vunpack.c.h.b16 %v5384
  %v7883 = vunpack.c.l.b16 %v5385
  %v7884 = vunpack.c.h.b16 %v5385
  %v7885 = vunpack.c.l.b16 %v5386
  %v7886 = vunpack.c.h.b16 %v5386
  %v7887 = vunpack.c.l.b16 %v5387
  %v7888 = vunpack.c.h.b16 %v5387
  %v7889 = vunpack.c.l.b16 %v5388
  %v7890 = vunpack.c.h.b16 %v5388
  %v7891 = vunpack.c.l.b16 %v5389
  %v7892 = vunpack.c.h.b16 %v5389
  %v7893 = vunpack.c.l.b16 %v5390
  %v7894 = vunpack.c.h.b16 %v5390
  %v7895 = vunpack.c.l.b16 %v5391
  %v7896 = vunpack.c.h.b16 %v5391
  %v7897 = vunpack.c.l.b16 %v5392
  %v7898 = vunpack.c.h.b16 %v5392
  %v7899 = vunpack.c.l.b16 %v5393
  %v7900 = vunpack.c.h.b16 %v5393
  %v7901 = vunpack.c.l.b16 %v5394
  %v7902 = vunpack.c.h.b16 %v5394
  %v7903 = vunpack.c.l.b16 %v5395
  %v7904 = vunpack.c.h.b16 %v5395
  %v7905 = vunpack.c.l.b16 %v5396
  %v7906 = vunpack.c.h.b16 %v5396
  %v7907 = vunpack.c.l.b16 %v5397
  %v7908 = vunpack.c.h.b16 %v5397
  %v7909 = vunpack.c.l.b16 %v5398
  %v7910 = vunpack.c.h.b16 %v5398
  %v7911 = vunpack.c.l.b16 %v5399
  %v7912 = vunpack.c.h.b16 %v5399
  %v7913 = vunpack.c.l.b16 %v5400
  %v7914 = vunpack.c.h.b16 %v5400
  %v7915 = vunpack.c.l.b16 %v5401
  %v7916 = vunpack.c.h.b16 %v5401
  %v7917 = vunpack.c.l.b16 %v5402
  %v7918 = vunpack.c.h.b16 %v5402
  %v7919 = vunpack.c.l.b16 %v5403
  %v7920 = vunpack.c.h.b16 %v5403
  %v7921 = vunpack.c.l.b16 %v5404
  %v7922 = vunpack.c.h.b16 %v5404
  %v7923 = vunpack.c.l.b16 %v5405
  %v7924 = vunpack.c.h.b16 %v5405
  %v7925 = vunpack.c.l.b16 %v5406
  %v7926 = vunpack.c.h.b16 %v5406
  %v7927 = vunpack.c.l.b16 %v5407
  %v7928 = vunpack.c.h.b16 %v5407
  %v7929 = vunpack.c.l.b16 %v5408
  %v7930 = vunpack.c.h.b16 %v5408
  %v7931 = vunpack.c.l.b16 %v5409
  %v7932 = vunpack.c.h.b16 %v5409
  %v7933 = vunpack.c.l.b16 %v5410
  %v7934 = vunpack.c.h.b16 %v5410
  %v7935 = vunpack.c.l.b16 %v5411
  %v7936 = vunpack.c.h.b16 %v5411
  %v7937 = vunpack.c.l.b16 %v5412
  %v7938 = vunpack.c.h.b16 %v5412
  %v7939 = vunpack.c.l.b16 %v5413
  %v7940 = vunpack.c.h.b16 %v5413
  %v7941 = vunpack.c.l.b16 %v5414
  %v7942 = vunpack.c.h.b16 %v5414
  %v7943 = vunpack.c.l.b16 %v5415
  %v7944 = vunpack.c.h.b16 %v5415
  %v7945 = vunpack.c.l.b16 %v5416
  %v7946 = vunpack.c.h.b16 %v5416
  %v7947 = vunpack.c.l.b16 %v5417
  %v7948 = vunpack.c.h.b16 %v5417
  %v7949 = vunpack.c.l.b16 %v5418
  %v7950 = vunpack.c.h.b16 %v5418
  %v7951 = vunpack.c.l.b16 %v5419
  %v7952 = vunpack.c.h.b16 %v5419
  %v7953 = vunpack.c.l.b16 %v5420
  %v7954 = vunpack.c.h.b16 %v5420
  %v7955 = vunpack.c.l.b16 %v5421
  %v7956 = vunpack.c.h.b16 %v5421
  %v7957 = vunpack.c.l.b16 %v5422
  %v7958 = vunpack.c.h.b16 %v5422
  %v7959 = vunpack.c.l.b16 %v5423
  %v7960 = vunpack.c.h.b16 %v5423
  %v7961 = vunpack.c.l.b16 %v5424
  %v7962 = vunpack.c.h.b16 %v5424
  %v7963 = vunpack.c.l.b16 %v5425
  %v7964 = vunpack.c.h.b16 %v5425
  %v7965 = vunpack.c.l.b16 %v5426
  %v7966 = vunpack.c.h.b16 %v5426
  %v7967 = vunpack.c.l.b16 %v5427
  %v7968 = vunpack.c.h.b16 %v5427
  %v7969 = vunpack.c.l.b16 %v5428
  %v7970 = vunpack.c.h.b16 %v5428
  %v7971 = vunpack.c.l.b16 %v5429
  %v7972 = vunpack.c.h.b16 %v5429
  %v7973 = vunpack.c.l.b16 %v5430
  %v7974 = vunpack.c.h.b16 %v5430
  %v7975 = vunpack.c.l.b16 %v5431
  %v7976 = vunpack.c.h.b16 %v5431
  %v7977 = vunpack.c.l.b16 %v5432
  %v7978 = vunpack.c.h.b16 %v5432
  %v7979 = vunpack.c.l.b16 %v5433
  %v7980 = vunpack.c.h.b16 %v5433
  %v7981 = vunpack.c.l.b16 %v5434
  %v7982 = vunpack.c.h.b16 %v5434
  %v7983 = vunpack.c.l.b16 %v5435
  %v7984 = vunpack.c.h.b16 %v5435
  %v7985 = vunpack.c.l.b16 %v5436
  %v7986 = vunpack.c.h.b16 %v5436
  %v7987 = vunpack.c.l.b16 %v5437
  %v7988 = vunpack.c.h.b16 %v5437
  %v7989 = vunpack.c.l.b16 %v5438
  %v7990 = vunpack.c.h.b16 %v5438
  %v7991 = vunpack.c.l.b16 %v5439
  %v7992 = vunpack.c.h.b16 %v5439
  %v7993 = vunpack.c.l.b16 %v5440
  %v7994 = vunpack.c.h.b16 %v5440
  %v7995 = vunpack.c.l.b16 %v5441
  %v7996 = vunpack.c.h.b16 %v5441
  %v7997 = vunpack.c.l.b16 %v5442
  %v7998 = vunpack.c.h.b16 %v5442
  %v7999 = vunpack.c.l.b16 %v5443
  %v8000 = vunpack.c.h.b16 %v5443
  %v8001 = vunpack.c.l.b16 %v5444
  %v8002 = vunpack.c.h.b16 %v5444
  %v8003 = vunpack.c.l.b16 %v5445
  %v8004 = vunpack.c.h.b16 %v5445
  %v8005 = vunpack.c.l.b16 %v5446
  %v8006 = vunpack.c.h.b16 %v5446
  %v8007 = vunpack.c.l.b16 %v5447
  %v8008 = vunpack.c.h.b16 %v5447
  %v8009 = vunpack.c.l.b16 %v5448
  %v8010 = vunpack.c.h.b16 %v5448
  %v8011 = vunpack.c.l.b16 %v5449
  %v8012 = vunpack.c.h.b16 %v5449
  %v8013 = vunpack.c.l.b16 %v5450
  %v8014 = vunpack.c.h.b16 %v5450
  %v8015 = vunpack.c.l.b16 %v5451
  %v8016 = vunpack.c.h.b16 %v5451
  %v8017 = vunpack.c.l.b16 %v5452
  %v8018 = vunpack.c.h.b16 %v5452
  %v8019 = vunpack.c.l.b16 %v5453
  %v8020 = vunpack.c.h.b16 %v5453
  %v8021 = vunpack.c.l.b16 %v5454
  %v8022 = vunpack.c.h.b16 %v5454
  %v8023 = vunpack.c.l.b16 %v5455
  %v8024 = vunpack.c.h.b16 %v5455
  %v8025 = vunpack.c.l.b16 %v5456
  %v8026 = vunpack.c.h.b16 %v5456
  %v8027 = vunpack.c.l.b16 %v5457
  %v8028 = vunpack.c.h.b16 %v5457
  %v8029 = vunpack.c.l.b16 %v5458
  %v8030 = vunpack.c.h.b16 %v5458
  %v8031 = vunpack.c.l.b16 %v5459
  %v8032 = vunpack.c.h.b16 %v5459
  %v8033 = vunpack.c.l.b16 %v5460
  %v8034 = vunpack.c.h.b16 %v5460
  %v8035 = vunpack.c.l.b16 %v5461
  %v8036 = vunpack.c.h.b16 %v5461
  %v8037 = vunpack.c.l.b16 %v5462
  %v8038 = vunpack.c.h.b16 %v5462
  %v8039 = vunpack.c.l.b16 %v5463
  %v8040 = vunpack.c.h.b16 %v5463
  %v8041 = vunpack.c.l.b16 %v5464
  %v8042 = vunpack.c.h.b16 %v5464
  %v8043 = vunpack.c.l.b16 %v5465
  %v8044 = vunpack.c.h.b16 %v5465
  %v8045 = vunpack.c.l.b16 %v5466
  %v8046 = vunpack.c.h.b16 %v5466
  %v8047 = vunpack.c.l.b16 %v5467
  %v8048 = vunpack.c.h.b16 %v5467
  %v8049 = vunpack.c.l.b16 %v5468
  %v8050 = vunpack.c.h.b16 %v5468
  %v8051 = vunpack.c.l.b16 %v5469
  %v8052 = vunpack.c.h.b16 %v5469
  %v8053 = vunpack.c.l.b16 %v5470
  %v8054 = vunpack.c.h.b16 %v5470
  %v8055 = vunpack.c.l.b16 %v5471
  %v8056 = vunpack.c.h.b16 %v5471
  %v8057 = vunpack.c.l.b16 %v5472
  %v8058 = vunpack.c.h.b16 %v5472
  %v8059 = vunpack.c.l.b16 %v5473
  %v8060 = vunpack.c.h.b16 %v5473
  %v8061 = vunpack.c.l.b16 %v5474
  %v8062 = vunpack.c.h.b16 %v5474
  %v8063 = vunpack.c.l.b16 %v5475
  %v8064 = vunpack.c.h.b16 %v5475
  %v8065 = vunpack.c.l.b16 %v5476
  %v8066 = vunpack.c.h.b16 %v5476
  %v8067 = vunpack.c.l.b16 %v5477
  %v8068 = vunpack.c.h.b16 %v5477
  %v8069 = vunpack.c.l.b16 %v5478
  %v8070 = vunpack.c.h.b16 %v5478
  %v8071 = vunpack.c.l.b16 %v5479
  %v8072 = vunpack.c.h.b16 %v5479
  %v8073 = vunpack.c.l.b16 %v5480
  %v8074 = vunpack.c.h.b16 %v5480
  %v8075 = vunpack.c.l.b16 %v5481
  %v8076 = vunpack.c.h.b16 %v5481
  %v8077 = vunpack.c.l.b16 %v5482
  %v8078 = vunpack.c.h.b16 %v5482
  %v8079 = vunpack.c.l.b16 %v5483
  %v8080 = vunpack.c.h.b16 %v5483
  %v8081 = vunpack.c.l.b16 %v5484
  %v8082 = vunpack.c.h.b16 %v5484
  %v8083 = vunpack.c.l.b16 %v5485
  %v8084 = vunpack.c.h.b16 %v5485
  %v8085 = vunpack.c.l.b16 %v5486
  %v8086 = vunpack.c.h.b16 %v5486
  %v8087 = vunpack.c.l.b16 %v5487
  %v8088 = vunpack.c.h.b16 %v5487
  %v8089 = vunpack.c.l.b16 %v5488
  %v8090 = vunpack.c.h.b16 %v5488
  %v8091 = vunpack.c.l.b16 %v5489
  %v8092 = vunpack.c.h.b16 %v5489
  %v8093 = vunpack.c.l.b16 %v5490
  %v8094 = vunpack.c.h.b16 %v5490
  %v8095 = vunpack.c.l.b16 %v5491
  %v8096 = vunpack.c.h.b16 %v5491
  %v8097 = vunpack.c.l.b16 %v5492
  %v8098 = vunpack.c.h.b16 %v5492
  %v8099 = vunpack.c.l.b16 %v5493
  %v8100 = vunpack.c.h.b16 %v5493
  %v8101 = vunpack.c.l.b16 %v5494
  %v8102 = vunpack.c.h.b16 %v5494
  %v8103 = vunpack.c.l.b16 %v5495
  %v8104 = vunpack.c.h.b16 %v5495
  %v8105 = vunpack.c.l.b16 %v5496
  %v8106 = vunpack.c.h.b16 %v5496
  %v8107 = vunpack.c.l.b16 %v5497
  %v8108 = vunpack.c.h.b16 %v5497
  %v8109 = vunpack.c.l.b16 %v5498
  %v8110 = vunpack.c.h.b16 %v5498
  %v8111 = vunpack.c.l.b16 %v5499
  %v8112 = vunpack.c.h.b16 %v5499
  %v8113 = vunpack.c.l.b16 %v5500
  %v8114 = vunpack.c.h.b16 %v5500
  %v8115 = vunpack.c.l.b16 %v5501
  %v8116 = vunpack.c.h.b16 %v5501
  %v8117 = vunpack.c.l.b16 %v5502
  %v8118 = vunpack.c.h.b16 %v5502
  %v8119 = vunpack.c.l.b16 %v5503
  %v8120 = vunpack.c.h.b16 %v5503
  %v8121 = vunpack.c.l.b16 %v5504
  %v8122 = vunpack.c.h.b16 %v5504
  %v8123 = vunpack.c.l.b16 %v5505
  %v8124 = vunpack.c.h.b16 %v5505
  %v8125 = vunpack.c.l.b16 %v5506
  %v8126 = vunpack.c.h.b16 %v5506
  %v8127 = vunpack.c.l.b16 %v5507
  %v8128 = vunpack.c.h.b16 %v5507
  %v8129 = vunpack.c.l.b16 %v5508
  %v8130 = vunpack.c.h.b16 %v5508
  %v8131 = vunpack.c.l.b16 %v5509
  %v8132 = vunpack.c.h.b16 %v5509
  %v8133 = vunpack.c.l.b16 %v5510
  %v8134 = vunpack.c.h.b16 %v5510
  %v8135 = vunpack.c.l.b16 %v5511
  %v8136 = vunpack.c.h.b16 %v5511
  %v8137 = vunpack.c.l.b16 %v5512
  %v8138 = vunpack.c.h.b16 %v5512
  %v8139 = vunpack.c.l.b16 %v5513
  %v8140 = vunpack.c.h.b16 %v5513
  %v8141 = vunpack.c.l.b16 %v5514
  %v8142 = vunpack.c.h.b16 %v5514
  %v8143 = vunpack.c.l.b16 %v5515
  %v8144 = vunpack.c.h.b16 %v5515
  %v8145 = vunpack.c.l.b16 %v5516
  %v8146 = vunpack.c.h.b16 %v5516
  %v8147 = vunpack.c.l.b16 %v5517
  %v8148 = vunpack.c.h.b16 %v5517
  %v8149 = vunpack.c.l.b16 %v5518
  %v8150 = vunpack.c.h.b16 %v5518
  %v8151 = vunpack.c.l.b16 %v5519
  %v8152 = vunpack.c.h.b16 %v5519
  %v8153 = vunpack.c.l.b16 %v5520
  %v8154 = vunpack.c.h.b16 %v5520
  %v8155 = vunpack.c.l.b16 %v5521
  %v8156 = vunpack.c.h.b16 %v5521
  %v8157 = vunpack.c.l.b16 %v5522
  %v8158 = vunpack.c.h.b16 %v5522
  %v8159 = vunpack.c.l.b16 %v5523
  %v8160 = vunpack.c.h.b16 %v5523
  %v8161 = vunpack.c.l.b16 %v5524
  %v8162 = vunpack.c.h.b16 %v5524
  %v8163 = vunpack.c.l.b16 %v5525
  %v8164 = vunpack.c.h.b16 %v5525
  %v8165 = vunpack.c.l.b16 %v5526
  %v8166 = vunpack.c.h.b16 %v5526
  %v8167 = vunpack.c.l.b16 %v5527
  %v8168 = vunpack.c.h.b16 %v5527
  %v8169 = vunpack.c.l.b16 %v5528
  %v8170 = vunpack.c.h.b16 %v5528
  %v8171 = vunpack.c.l.b16 %v5529
  %v8172 = vunpack.c.h.b16 %v5529
  %v8173 = vunpack.c.l.b16 %v5530
  %v8174 = vunpack.c.h.b16 %v5530
  %v8175 = vunpack.c.l.b16 %v5531
  %v8176 = vunpack.c.h.b16 %v5531
  %v8177 = vunpack.c.l.b16 %v5532
  %v8178 = vunpack.c.h.b16 %v5532
  %v8179 = vunpack.c.l.b16 %v5533
  %v8180 = vunpack.c.h.b16 %v5533
  %v8181 = vunpack.c.l.b16 %v5534
  %v8182 = vunpack.c.h.b16 %v5534
  %v8183 = vunpack.c.l.b16 %v5535
  %v8184 = vunpack.c.h.b16 %v5535
  %v8185 = vunpack.c.l.b16 %v5536
  %v8186 = vunpack.c.h.b16 %v5536
  %v8187 = vunpack.c.l.b16 %v5537
  %v8188 = vunpack.c.h.b16 %v5537
  %v8189 = vunpack.c.l.b16 %v5538
  %v8190 = vunpack.c.h.b16 %v5538
  %v8191 = vunpack.c.l.b16 %v5539
  %v8192 = vunpack.c.h.b16 %v5539
  %v8193 = vunpack.c.l.b16 %v5540
  %v8194 = vunpack.c.h.b16 %v5540
  %v8195 = vunpack.c.l.b16 %v5541
  %v8196 = vunpack.c.h.b16 %v5541
  %v8197 = vunpack.c.l.b16 %v5542
  %v8198 = vunpack.c.h.b16 %v5542
  %v8199 = vunpack.c.l.b16 %v5543
  %v8200 = vunpack.c.h.b16 %v5543
  %v8201 = vunpack.c.l.b16 %v5544
  %v8202 = vunpack.c.h.b16 %v5544
  %v8203 = vunpack.c.l.b16 %v5545
  %v8204 = vunpack.c.h.b16 %v5545
  %v8205 = vunpack.c.l.b16 %v5546
  %v8206 = vunpack.c.h.b16 %v5546
  %v8207 = vunpack.c.l.b16 %v5547
  %v8208 = vunpack.c.h.b16 %v5547
  %v8209 = vunpack.c.l.b16 %v5548
  %v8210 = vunpack.c.h.b16 %v5548
  %v8211 = vunpack.c.l.b16 %v5549
  %v8212 = vunpack.c.h.b16 %v5549
  %v8213 = vunpack.c.l.b16 %v5550
  %v8214 = vunpack.c.h.b16 %v5550
  %v8215 = vunpack.c.l.b16 %v5551
  %v8216 = vunpack.c.h.b16 %v5551
  %v8217 = vunpack.c.l.b16 %v5552
  %v8218 = vunpack.c.h.b16 %v5552
  %v8219 = vunpack.c.l.b16 %v5553
  %v8220 = vunpack.c.h.b16 %v5553
  %v8221 = vunpack.c.l.b16 %v5554
  %v8222 = vunpack.c.h.b16 %v5554
  %v8223 = vunpack.c.l.b16 %v5555
  %v8224 = vunpack.c.h.b16 %v5555
  %v8225 = vunpack.c.l.b16 %v5556
  %v8226 = vunpack.c.h.b16 %v5556
  %v8227 = vunpack.c.l.b16 %v5557
  %v8228 = vunpack.c.h.b16 %v5557
  %v8229 = vunpack.c.l.b16 %v5558
  %v8230 = vunpack.c.h.b16 %v5558
  %v8231 = vunpack.c.l.b16 %v5559
  %v8232 = vunpack.c.h.b16 %v5559
  %v8233 = vunpack.c.l.b16 %v5560
  %v8234 = vunpack.c.h.b16 %v5560
  %v8235 = vunpack.c.l.b16 %v5561
  %v8236 = vunpack.c.h.b16 %v5561
  %v8237 = vunpack.c.l.b16 %v5562
  %v8238 = vunpack.c.h.b16 %v5562
  %v8239 = vunpack.c.l.b16 %v5563
  %v8240 = vunpack.c.h.b16 %v5563
  %v8241 = vunpack.c.l.b16 %v5564
  %v8242 = vunpack.c.h.b16 %v5564
  %v8243 = vunpack.c.l.b16 %v5565
  %v8244 = vunpack.c.h.b16 %v5565
  %v8245 = vunpack.c.l.b16 %v5566
  %v8246 = vunpack.c.h.b16 %v5566
  %v8247 = vunpack.c.l.b16 %v5567
  %v8248 = vunpack.c.h.b16 %v5567
  %v8249 = vunpack.c.l.b16 %v5568
  %v8250 = vunpack.c.h.b16 %v5568
  %v8251 = vunpack.c.l.b16 %v5569
  %v8252 = vunpack.c.h.b16 %v5569
  %v8253 = vunpack.c.l.b16 %v5570
  %v8254 = vunpack.c.h.b16 %v5570
  %v8255 = vunpack.c.l.b16 %v5571
  %v8256 = vunpack.c.h.b16 %v5571
  %v8257 = vunpack.c.l.b16 %v5572
  %v8258 = vunpack.c.h.b16 %v5572
  %v8259 = vunpack.c.l.b16 %v5573
  %v8260 = vunpack.c.h.b16 %v5573
  %v8261 = vunpack.c.l.b16 %v5574
  %v8262 = vunpack.c.h.b16 %v5574
  %v8263 = vunpack.c.l.b16 %v5575
  %v8264 = vunpack.c.h.b16 %v5575
  %v8265 = vunpack.c.l.b16 %v5576
  %v8266 = vunpack.c.h.b16 %v5576
  %v8267 = vunpack.c.l.b16 %v5577
  %v8268 = vunpack.c.h.b16 %v5577
  %v8269 = vunpack.c.l.b16 %v5578
  %v8270 = vunpack.c.h.b16 %v5578
  %v8271 = vunpack.c.l.b16 %v5579
  %v8272 = vunpack.c.h.b16 %v5579
  %v8273 = vunpack.c.l.b16 %v5580
  %v8274 = vunpack.c.h.b16 %v5580
  %v8275 = vunpack.c.l.b16 %v5581
  %v8276 = vunpack.c.h.b16 %v5581
  %v8277 = vunpack.c.l.b16 %v5582
  %v8278 = vunpack.c.h.b16 %v5582
  %v8279 = vunpack.c.l.b16 %v5583
  %v8280 = vunpack.c.h.b16 %v5583
  %v8281 = vunpack.c.l.b16 %v5584
  %v8282 = vunpack.c.h.b16 %v5584
  %v8283 = vunpack.c.l.b16 %v5585
  %v8284 = vunpack.c.h.b16 %v5585
  %v8285 = vunpack.c.l.b16 %v5586
  %v8286 = vunpack.c.h.b16 %v5586
  %v8287 = vunpack.c.l.b16 %v5587
  %v8288 = vunpack.c.h.b16 %v5587
  %v8289 = vunpack.c.l.b16 %v5588
  %v8290 = vunpack.c.h.b16 %v5588
  %v8291 = vunpack.c.l.b16 %v5589
  %v8292 = vunpack.c.h.b16 %v5589
  %v8293 = vunpack.c.l.b16 %v5590
  %v8294 = vunpack.c.h.b16 %v5590
  %v8295 = vunpack.c.l.b16 %v5591
  %v8296 = vunpack.c.h.b16 %v5591
  %v8297 = vunpack.c.l.b16 %v5592
  %v8298 = vunpack.c.h.b16 %v5592
  %v8299 = vunpack.c.l.b16 %v5593
  %v8300 = vunpack.c.h.b16 %v5593
  %v8301 = vunpack.c.l.b16 %v5594
  %v8302 = vunpack.c.h.b16 %v5594
  %v8303 = vunpack.c.l.b16 %v5595
  %v8304 = vunpack.c.h.b16 %v5595
  %v8305 = vunpack.c.l.b16 %v5596
  %v8306 = vunpack.c.h.b16 %v5596
  %v8307 = vpack.c.b16 %v6519, %v6515
  %v8308 = vpack.c.b16 %v6520, %v6516
  %v8309 = vpack.c.b16 %v6521, %v6517
  %v8310 = vpack.c.b16 %v6522, %v6518
  %v8311 = vpack.c.b16 %v6527, %v6523
  %v8312 = vpack.c.b16 %v6528, %v6524
  %v8313 = vpack.c.b16 %v6529, %v6525
  %v8314 = vpack.c.b16 %v6530, %v6526
  %v8315 = vpack.c.b16 %v6535, %v6531
  %v8316 = vpack.c.b16 %v6536, %v6532
  %v8317 = vpack.c.b16 %v6537, %v6533
  %v8318 = vpack.c.b16 %v6538, %v6534
  %v8319 = vpack.c.b16 %v6543, %v6539
  %v8320 = vpack.c.b16 %v6544, %v6540
  %v8321 = vpack.c.b16 %v6545, %v6541
  %v8322 = vpack.c.b16 %v6546, %v6542
  %v8323 = vpack.c.b16 %v6551, %v6547
  %v8324 = vpack.c.b16 %v6552, %v6548
  %v8325 = vpack.c.b16 %v6553, %v6549
  %v8326 = vpack.c.b16 %v6554, %v6550
  %v8327 = vpack.c.b16 %v6559, %v6555
  %v8328 = vpack.c.b16 %v6560, %v6556
  %v8329 = vpack.c.b16 %v6561, %v6557
  %v8330 = vpack.c.b16 %v6562, %v6558
  %v8331 = vpack.c.b16 %v6567, %v6563
  %v8332 = vpack.c.b16 %v6568, %v6564
  %v8333 = vpack.c.b16 %v6569, %v6565
  %v8334 = vpack.c.b16 %v6570, %v6566
  %v8335 = vpack.c.b16 %v6575, %v6571
  %v8336 = vpack.c.b16 %v6576, %v6572
  %v8337 = vpack.c.b16 %v6577, %v6573
  %v8338 = vpack.c.b16 %v6578, %v6574
  %v8339 = vpack.c.b16 %v6583, %v6579
  %v8340 = vpack.c.b16 %v6584, %v6580
  %v8341 = vpack.c.b16 %v6585, %v6581
  %v8342 = vpack.c.b16 %v6586, %v6582
  %v8343 = vpack.c.b16 %v6591, %v6587
  %v8344 = vpack.c.b16 %v6592, %v6588
  %v8345 = vpack.c.b16 %v6593, %v6589
  %v8346 = vpack.c.b16 %v6594, %v6590
  %v8347 = vpack.c.b16 %v6599, %v6595
  %v8348 = vpack.c.b16 %v6600, %v6596
  %v8349 = vpack.c.b16 %v6601, %v6597
  %v8350 = vpack.c.b16 %v6602, %v6598
  %v8351 = vpack.c.b16 %v6607, %v6603
  %v8352 = vpack.c.b16 %v6608, %v6604
  %v8353 = vpack.c.b16 %v6609, %v6605
  %v8354 = vpack.c.b16 %v6610, %v6606
  %v8355 = vpack.c.b16 %v6615, %v6611
  %v8356 = vpack.c.b16 %v6616, %v6612
  %v8357 = vpack.c.b16 %v6617, %v6613
  %v8358 = vpack.c.b16 %v6618, %v6614
  %v8359 = vpack.c.b16 %v6623, %v6619
  %v8360 = vpack.c.b16 %v6624, %v6620
  %v8361 = vpack.c.b16 %v6625, %v6621
  %v8362 = vpack.c.b16 %v6626, %v6622
  %v8363 = vpack.c.b16 %v6631, %v6627
  %v8364 = vpack.c.b16 %v6632, %v6628
  %v8365 = vpack.c.b16 %v6633, %v6629
  %v8366 = vpack.c.b16 %v6634, %v6630
  %v8367 = vpack.c.b16 %v6639, %v6635
  %v8368 = vpack.c.b16 %v6640, %v6636
  %v8369 = vpack.c.b16 %v6641, %v6637
  %v8370 = vpack.c.b16 %v6642, %v6638
  %v8371 = vpack.c.b16 %v6647, %v6643
  %v8372 = vpack.c.b16 %v6648, %v6644
  %v8373 = vpack.c.b16 %v6649, %v6645
  %v8374 = vpack.c.b16 %v6650, %v6646
  %v8375 = vpack.c.b16 %v6655, %v6651
  %v8376 = vpack.c.b16 %v6656, %v6652
  %v8377 = vpack.c.b16 %v6657, %v6653
  %v8378 = vpack.c.b16 %v6658, %v6654
  %v8379 = vpack.c.b16 %v6663, %v6659
  %v8380 = vpack.c.b16 %v6664, %v6660
  %v8381 = vpack.c.b16 %v6665, %v6661
  %v8382 = vpack.c.b16 %v6666, %v6662
  %v8383 = vpack.c.b16 %v6671, %v6667
  %v8384 = vpack.c.b16 %v6672, %v6668
  %v8385 = vpack.c.b16 %v6673, %v6669
  %v8386 = vpack.c.b16 %v6674, %v6670
  %v8387 = vpack.c.b16 %v6679, %v6675
  %v8388 = vpack.c.b16 %v6680, %v6676
  %v8389 = vpack.c.b16 %v6681, %v6677
  %v8390 = vpack.c.b16 %v6682, %v6678
  %v8391 = vpack.c.b16 %v6687, %v6683
  %v8392 = vpack.c.b16 %v6688, %v6684
  %v8393 = vpack.c.b16 %v6689, %v6685
  %v8394 = vpack.c.b16 %v6690, %v6686
  %v8395 = vpack.c.b16 %v6695, %v6691
  %v8396 = vpack.c.b16 %v6696, %v6692
  %v8397 = vpack.c.b16 %v6697, %v6693
  %v8398 = vpack.c.b16 %v6698, %v6694
  %v8399 = vpack.c.b16 %v6703, %v6699
  %v8400 = vpack.c.b16 %v6704, %v6700
  %v8401 = vpack.c.b16 %v6705, %v6701
  %v8402 = vpack.c.b16 %v6706, %v6702
  %v8403 = vpack.c.b16 %v6711, %v6707
  %v8404 = vpack.c.b16 %v6712, %v6708
  %v8405 = vpack.c.b16 %v6713, %v6709
  %v8406 = vpack.c.b16 %v6714, %v6710
  %v8407 = vpack.c.b16 %v6719, %v6715
  %v8408 = vpack.c.b16 %v6720, %v6716
  %v8409 = vpack.c.b16 %v6721, %v6717
  %v8410 = vpack.c.b16 %v6722, %v6718
  %v8411 = vpack.c.b16 %v6727, %v6723
  %v8412 = vpack.c.b16 %v6728, %v6724
  %v8413 = vpack.c.b16 %v6729, %v6725
  %v8414 = vpack.c.b16 %v6730, %v6726
  %v8415 = vpack.c.b16 %v6735, %v6731
  %v8416 = vpack.c.b16 %v6736, %v6732
  %v8417 = vpack.c.b16 %v6737, %v6733
  %v8418 = vpack.c.b16 %v6738, %v6734
  %v8419 = vpack.c.b16 %v6743, %v6739
  %v8420 = vpack.c.b16 %v6744, %v6740
  %v8421 = vpack.c.b16 %v6745, %v6741
  %v8422 = vpack.c.b16 %v6746, %v6742
  %v8423 = vpack.c.b16 %v6751, %v6747
  %v8424 = vpack.c.b16 %v6752, %v6748
  %v8425 = vpack.c.b16 %v6753, %v6749
  %v8426 = vpack.c.b16 %v6754, %v6750
  %v8427 = vpack.c.b16 %v6759, %v6755
  %v8428 = vpack.c.b16 %v6760, %v6756
  %v8429 = vpack.c.b16 %v6761, %v6757
  %v8430 = vpack.c.b16 %v6762, %v6758
  %v8431 = vpack.c.b16 %v6767, %v6763
  %v8432 = vpack.c.b16 %v6768, %v6764
  %v8433 = vpack.c.b16 %v6769, %v6765
  %v8434 = vpack.c.b16 %v6770, %v6766
  %v8435 = vpack.c.b16 %v6775, %v6771
  %v8436 = vpack.c.b16 %v6776, %v6772
  %v8437 = vpack.c.b16 %v6777, %v6773
  %v8438 = vpack.c.b16 %v6778, %v6774
  %v8439 = vpack.c.b16 %v6783, %v6779
  %v8440 = vpack.c.b16 %v6784, %v6780
  %v8441 = vpack.c.b16 %v6785, %v6781
  %v8442 = vpack.c.b16 %v6786, %v6782
  %v8443 = vpack.c.b16 %v6791, %v6787
  %v8444 = vpack.c.b16 %v6792, %v6788
  %v8445 = vpack.c.b16 %v6793, %v6789
  %v8446 = vpack.c.b16 %v6794, %v6790
  %v8447 = vpack.c.b16 %v6799, %v6795
  %v8448 = vpack.c.b16 %v6800, %v6796
  %v8449 = vpack.c.b16 %v6801, %v6797
  %v8450 = vpack.c.b16 %v6802, %v6798
  %v8451 = vpack.c.b16 %v6807, %v6803
  %v8452 = vpack.c.b16 %v6808, %v6804
  %v8453 = vpack.c.b16 %v6809, %v6805
  %v8454 = vpack.c.b16 %v6810, %v6806
  %v8455 = vpack.c.b16 %v6815, %v6811
  %v8456 = vpack.c.b16 %v6816, %v6812
  %v8457 = vpack.c.b16 %v6817, %v6813
  %v8458 = vpack.c.b16 %v6818, %v6814
  %v8459 = vpack.c.b16 %v6823, %v6819
  %v8460 = vpack.c.b16 %v6824, %v6820
  %v8461 = vpack.c.b16 %v6825, %v6821
  %v8462 = vpack.c.b16 %v6826, %v6822
  %v8463 = vpack.c.b16 %v6831, %v6827
  %v8464 = vpack.c.b16 %v6832, %v6828
  %v8465 = vpack.c.b16 %v6833, %v6829
  %v8466 = vpack.c.b16 %v6834, %v6830
  %v8467 = vpack.c.b16 %v6839, %v6835
  %v8468 = vpack.c.b16 %v6840, %v6836
  %v8469 = vpack.c.b16 %v6841, %v6837
  %v8470 = vpack.c.b16 %v6842, %v6838
  %v8471 = vpack.c.b16 %v6847, %v6843
  %v8472 = vpack.c.b16 %v6848, %v6844
  %v8473 = vpack.c.b16 %v6849, %v6845
  %v8474 = vpack.c.b16 %v6850, %v6846
  %v8475 = vpack.c.b16 %v6855, %v6851
  %v8476 = vpack.c.b16 %v6856, %v6852
  %v8477 = vpack.c.b16 %v6857, %v6853
  %v8478 = vpack.c.b16 %v6858, %v6854
  %v8479 = vpack.c.b16 %v6863, %v6859
  %v8480 = vpack.c.b16 %v6864, %v6860
  %v8481 = vpack.c.b16 %v6865, %v6861
  %v8482 = vpack.c.b16 %v6866, %v6862
  %v8483 = vpack.c.b16 %v6871, %v6867
  %v8484 = vpack.c.b16 %v6872, %v6868
  %v8485 = vpack.c.b16 %v6873, %v6869
  %v8486 = vpack.c.b16 %v6874, %v6870
  %v8487 = vpack.c.b16 %v6879, %v6875
  %v8488 = vpack.c.b16 %v6880, %v6876
  %v8489 = vpack.c.b16 %v6881, %v6877
  %v8490 = vpack.c.b16 %v6882, %v6878
  %v8491 = vpack.c.b16 %v6887, %v6883
  %v8492 = vpack.c.b16 %v6888, %v6884
  %v8493 = vpack.c.b16 %v6889, %v6885
  %v8494 = vpack.c.b16 %v6890, %v6886
  %v8495 = vpack.c.b16 %v6895, %v6891
  %v8496 = vpack.c.b16 %v6896, %v6892
  %v8497 = vpack.c.b16 %v6897, %v6893
  %v8498 = vpack.c.b16 %v6898, %v6894
  %v8499 = vpack.c.b16 %v6903, %v6899
  %v8500 = vpack.c.b16 %v6904, %v6900
  %v8501 = vpack.c.b16 %v6905, %v6901
  %v8502 = vpack.c.b16 %v6906, %v6902
  %v8503 = vpack.c.b16 %v6911, %v6907
  %v8504 = vpack.c.b16 %v6912, %v6908
  %v8505 = vpack.c.b16 %v6913, %v6909
  %v8506 = vpack.c.b16 %v6914, %v6910
  %v8507 = vpack.c.b16 %v6919, %v6915
  %v8508 = vpack.c.b16 %v6920, %v6916
  %v8509 = vpack.c.b16 %v6921, %v6917
  %v8510 = vpack.c.b16 %v6922, %v6918
  %v8511 = vpack.c.b16 %v6927, %v6923
  %v8512 = vpack.c.b16 %v6928, %v6924
  %v8513 = vpack.c.b16 %v6929, %v6925
  %v8514 = vpack.c.b16 %v6930, %v6926
  %v8515 = vpack.c.b16 %v6935, %v6931
  %v8516 = vpack.c.b16 %v6936, %v6932
  %v8517 = vpack.c.b16 %v6937, %v6933
  %v8518 = vpack.c.b16 %v6938, %v6934
  %v8519 = vpack.c.b16 %v6943, %v6939
  %v8520 = vpack.c.b16 %v6944, %v6940
  %v8521 = vpack.c.b16 %v6945, %v6941
  %v8522 = vpack.c.b16 %v6946, %v6942
  %v8523 = vpack.c.b16 %v6951, %v6947
  %v8524 = vpack.c.b16 %v6952, %v6948
  %v8525 = vpack.c.b16 %v6953, %v6949
  %v8526 = vpack.c.b16 %v6954, %v6950
  %v8527 = vpack.c.b16 %v6959, %v6955
  %v8528 = vpack.c.b16 %v6960, %v6956
  %v8529 = vpack.c.b16 %v6961, %v6957
  %v8530 = vpack.c.b16 %v6962, %v6958
  %v8531 = vpack.c.b16 %v6967, %v6963
  %v8532 = vpack.c.b16 %v6968, %v6964
  %v8533 = vpack.c.b16 %v6969, %v6965
  %v8534 = vpack.c.b16 %v6970, %v6966
  %v8535 = vpack.c.b16 %v6975, %v6971
  %v8536 = vpack.c.b16 %v6976, %v6972
  %v8537 = vpack.c.b16 %v6977, %v6973
  %v8538 = vpack.c.b16 %v6978, %v6974
  %v8539 = vpack.c.b16 %v6983, %v6979
  %v8540 = vpack.c.b16 %v6984, %v6980
  %v8541 = vpack.c.b16 %v6985, %v6981
  %v8542 = vpack.c.b16 %v6986, %v6982
  %v8543 = vpack.c.b16 %v6991, %v6987
  %v8544 = vpack.c.b16 %v6992, %v6988
  %v8545 = vpack.c.b16 %v6993, %v6989
  %v8546 = vpack.c.b16 %v6994, %v6990
  %v8547 = vpack.c.b16 %v6999, %v6995
  %v8548 = vpack.c.b16 %v7000, %v6996
  %v8549 = vpack.c.b16 %v7001, %v6997
  %v8550 = vpack.c.b16 %v7002, %v6998
  %v8551 = vpack.c.b16 %v7007, %v7003
  %v8552 = vpack.c.b16 %v7008, %v7004
  %v8553 = vpack.c.b16 %v7009, %v7005
  %v8554 = vpack.c.b16 %v7010, %v7006
  %v8555 = vpack.c.b16 %v7015, %v7011
  %v8556 = vpack.c.b16 %v7016, %v7012
  %v8557 = vpack.c.b16 %v7017, %v7013
  %v8558 = vpack.c.b16 %v7018, %v7014
  %v8559 = vpack.c.b16 %v7023, %v7019
  %v8560 = vpack.c.b16 %v7024, %v7020
  %v8561 = vpack.c.b16 %v7025, %v7021
  %v8562 = vpack.c.b16 %v7026, %v7022
  %v8563 = vpack.c.b16 %v7031, %v7027
  %v8564 = vpack.c.b16 %v7032, %v7028
  %v8565 = vpack.c.b16 %v7033, %v7029
  %v8566 = vpack.c.b16 %v7034, %v7030
  %v8567 = vpack.c.b16 %v7039, %v7035
  %v8568 = vpack.c.b16 %v7040, %v7036
  %v8569 = vpack.c.b16 %v7041, %v7037
  %v8570 = vpack.c.b16 %v7042, %v7038
  %v8571 = vpack.c.b16 %v7047, %v7043
  %v8572 = vpack.c.b16 %v7048, %v7044
  %v8573 = vpack.c.b16 %v7049, %v7045
  %v8574 = vpack.c.b16 %v7050, %v7046
  %v8575 = vpack.c.b16 %v7055, %v7051
  %v8576 = vpack.c.b16 %v7056, %v7052
  %v8577 = vpack.c.b16 %v7057, %v7053
  %v8578 = vpack.c.b16 %v7058, %v7054
  %v8579 = vpack.c.b16 %v7063, %v7059
  %v8580 = vpack.c.b16 %v7064, %v7060
  %v8581 = vpack.c.b16 %v7065, %v7061
  %v8582 = vpack.c.b16 %v7066, %v7062
  %v8583 = vpack.c.b16 %v7071, %v7067
  %v8584 = vpack.c.b16 %v7072, %v7068
  %v8585 = vpack.c.b16 %v7073, %v7069
  %v8586 = vpack.c.b16 %v7074, %v7070
  %v8587 = vpack.c.b16 %v7079, %v7075
  %v8588 = vpack.c.b16 %v7080, %v7076
  %v8589 = vpack.c.b16 %v7081, %v7077
  %v8590 = vpack.c.b16 %v7082, %v7078
  %v8591 = vpack.c.b16 %v7087, %v7083
  %v8592 = vpack.c.b16 %v7088, %v7084
  %v8593 = vpack.c.b16 %v7089, %v7085
  %v8594 = vpack.c.b16 %v7090, %v7086
  %v8595 = vpack.c.b16 %v7095, %v7091
  %v8596 = vpack.c.b16 %v7096, %v7092
  %v8597 = vpack.c.b16 %v7097, %v7093
  %v8598 = vpack.c.b16 %v7098, %v7094
  %v8599 = vpack.c.b16 %v7103, %v7099
  %v8600 = vpack.c.b16 %v7104, %v7100
  %v8601 = vpack.c.b16 %v7105, %v7101
  %v8602 = vpack.c.b16 %v7106, %v7102
  %v8603 = vpack.c.b16 %v7111, %v7107
  %v8604 = vpack.c.b16 %v7112, %v7108
  %v8605 = vpack.c.b16 %v7113, %v7109
  %v8606 = vpack.c.b16 %v7114, %v7110
  %v8607 = vpack.c.b16 %v7119, %v7115
  %v8608 = vpack.c.b16 %v7120, %v7116
  %v8609 = vpack.c.b16 %v7121, %v7117
  %v8610 = vpack.c.b16 %v7122, %v7118
  %v8611 = vpack.c.b16 %v7127, %v7123
  %v8612 = vpack.c.b16 %v7128, %v7124
  %v8613 = vpack.c.b16 %v7129, %v7125
  %v8614 = vpack.c.b16 %v7130, %v7126
  %v8615 = vpack.c.b16 %v7135, %v7131
  %v8616 = vpack.c.b16 %v7136, %v7132
  %v8617 = vpack.c.b16 %v7137, %v7133
  %v8618 = vpack.c.b16 %v7138, %v7134
  %v8619 = vpack.c.b16 %v7143, %v7139
  %v8620 = vpack.c.b16 %v7144, %v7140
  %v8621 = vpack.c.b16 %v7145, %v7141
  %v8622 = vpack.c.b16 %v7146, %v7142
  %v8623 = vpack.c.b16 %v7151, %v7147
  %v8624 = vpack.c.b16 %v7152, %v7148
  %v8625 = vpack.c.b16 %v7153, %v7149
  %v8626 = vpack.c.b16 %v7154, %v7150
  %v8627 = vpack.c.b16 %v7159, %v7155
  %v8628 = vpack.c.b16 %v7160, %v7156
  %v8629 = vpack.c.b16 %v7161, %v7157
  %v8630 = vpack.c.b16 %v7162, %v7158
  %v8631 = vpack.c.b16 %v7167, %v7163
  %v8632 = vpack.c.b16 %v7168, %v7164
  %v8633 = vpack.c.b16 %v7169, %v7165
  %v8634 = vpack.c.b16 %v7170, %v7166
  %v8635 = vpack.c.b16 %v7175, %v7171
  %v8636 = vpack.c.b16 %v7176, %v7172
  %v8637 = vpack.c.b16 %v7177, %v7173
  %v8638 = vpack.c.b16 %v7178, %v7174
  %v8639 = vpack.c.b16 %v7183, %v7179
  %v8640 = vpack.c.b16 %v7184, %v7180
  %v8641 = vpack.c.b16 %v7185, %v7181
  %v8642 = vpack.c.b16 %v7186, %v7182
  %v8643 = vpack.c.b16 %v7191, %v7187
  %v8644 = vpack.c.b16 %v7192, %v7188
  %v8645 = vpack.c.b16 %v7193, %v7189
  %v8646 = vpack.c.b16 %v7194, %v7190
  %v8647 = vpack.c.b16 %v7199, %v7195
  %v8648 = vpack.c.b16 %v7200, %v7196
  %v8649 = vpack.c.b16 %v7201, %v7197
  %v8650 = vpack.c.b16 %v7202, %v7198
  %v8651 = vpack.c.b16 %v7207, %v7203
  %v8652 = vpack.c.b16 %v7208, %v7204
  %v8653 = vpack.c.b16 %v7209, %v7205
  %v8654 = vpack.c.b16 %v7210, %v7206
  %v8655 = vpack.c.b16 %v7215, %v7211
  %v8656 = vpack.c.b16 %v7216, %v7212
  %v8657 = vpack.c.b16 %v7217, %v7213
  %v8658 = vpack.c.b16 %v7218, %v7214
  %v8659 = vpack.c.b16 %v7223, %v7219
  %v8660 = vpack.c.b16 %v7224, %v7220
  %v8661 = vpack.c.b16 %v7225, %v7221
  %v8662 = vpack.c.b16 %v7226, %v7222
  %v8663 = vpack.c.b16 %v7231, %v7227
  %v8664 = vpack.c.b16 %v7232, %v7228
  %v8665 = vpack.c.b16 %v7233, %v7229
  %v8666 = vpack.c.b16 %v7234, %v7230
  %v8667 = vpack.c.b16 %v7239, %v7235
  %v8668 = vpack.c.b16 %v7240, %v7236
  %v8669 = vpack.c.b16 %v7241, %v7237
  %v8670 = vpack.c.b16 %v7242, %v7238
  %v8671 = vpack.c.b16 %v7247, %v7243
  %v8672 = vpack.c.b16 %v7248, %v7244
  %v8673 = vpack.c.b16 %v7249, %v7245
  %v8674 = vpack.c.b16 %v7250, %v7246
  %v8675 = vpack.c.b16 %v7255, %v7251
  %v8676 = vpack.c.b16 %v7256, %v7252
  %v8677 = vpack.c.b16 %v7257, %v7253
  %v8678 = vpack.c.b16 %v7258, %v7254
  %v8679 = vpack.c.b16 %v7263, %v7259
  %v8680 = vpack.c.b16 %v7264, %v7260
  %v8681 = vpack.c.b16 %v7265, %v7261
  %v8682 = vpack.c.b16 %v7266, %v7262
  %v8683 = vpack.c.b16 %v7271, %v7267
  %v8684 = vpack.c.b16 %v7272, %v7268
  %v8685 = vpack.c.b16 %v7273, %v7269
  %v8686 = vpack.c.b16 %v7274, %v7270
  %v8687 = vpack.c.b16 %v7279, %v7275
  %v8688 = vpack.c.b16 %v7280, %v7276
  %v8689 = vpack.c.b16 %v7281, %v7277
  %v8690 = vpack.c.b16 %v7282, %v7278
  %v8691 = vpack.c.b16 %v7287, %v7283
  %v8692 = vpack.c.b16 %v7288, %v7284
  %v8693 = vpack.c.b16 %v7289, %v7285
  %v8694 = vpack.c.b16 %v7290, %v7286
  %v8695 = vpack.c.b16 %v7295, %v7291
  %v8696 = vpack.c.b16 %v7296, %v7292
  %v8697 = vpack.c.b16 %v7297, %v7293
  %v8698 = vpack.c.b16 %v7298, %v7294
  %v8699 = vpack.c.b16 %v7303, %v7299
  %v8700 = vpack.c.b16 %v7304, %v7300
  %v8701 = vpack.c.b16 %v7305, %v7301
  %v8702 = vpack.c.b16 %v7306, %v7302
  %v8703 = vpack.c.b16 %v7311, %v7307
  %v8704 = vpack.c.b16 %v7312, %v7308
  %v8705 = vpack.c.b16 %v7313, %v7309
  %v8706 = vpack.c.b16 %v7314, %v7310
  %v8707 = vpack.c.b16 %v7319, %v7315
  %v8708 = vpack.c.b16 %v7320, %v7316
  %v8709 = vpack.c.b16 %v7321, %v7317
  %v8710 = vpack.c.b16 %v7322, %v7318
  %v8711 = vpack.c.b16 %v7327, %v7323
  %v8712 = vpack.c.b16 %v7328, %v7324
  %v8713 = vpack.c.b16 %v7329, %v7325
  %v8714 = vpack.c.b16 %v7330, %v7326
  %v8715 = vpack.c.b16 %v7335, %v7331
  %v8716 = vpack.c.b16 %v7336, %v7332
  %v8717 = vpack.c.b16 %v7337, %v7333
  %v8718 = vpack.c.b16 %v7338, %v7334
  %v8719 = vpack.c.b16 %v7343, %v7339
  %v8720 = vpack.c.b16 %v7344, %v7340
  %v8721 = vpack.c.b16 %v7345, %v7341
  %v8722 = vpack.c.b16 %v7346, %v7342
  %v8723 = vpack.c.b16 %v7351, %v7347
  %v8724 = vpack.c.b16 %v7352, %v7348
  %v8725 = vpack.c.b16 %v7353, %v7349
  %v8726 = vpack.c.b16 %v7354, %v7350
  %v8727 = vpack.c.b16 %v7359, %v7355
  %v8728 = vpack.c.b16 %v7360, %v7356
  %v8729 = vpack.c.b16 %v7361, %v7357
  %v8730 = vpack.c.b16 %v7362, %v7358
  %v8731 = vpack.c.b16 %v7367, %v7363
  %v8732 = vpack.c.b16 %v7368, %v7364
  %v8733 = vpack.c.b16 %v7369, %v7365
  %v8734 = vpack.c.b16 %v7370, %v7366
  %v8735 = vpack.c.b16 %v7375, %v7371
  %v8736 = vpack.c.b16 %v7376, %v7372
  %v8737 = vpack.c.b16 %v7377, %v7373
  %v8738 = vpack.c.b16 %v7378, %v7374
  %v8739 = vpack.c.b16 %v7383, %v7379
  %v8740 = vpack.c.b16 %v7384, %v7380
  %v8741 = vpack.c.b16 %v7385, %v7381
  %v8742 = vpack.c.b16 %v7386, %v7382
  %v8743 = vpack.c.b16 %v7391, %v7387
  %v8744 = vpack.c.b16 %v7392, %v7388
  %v8745 = vpack.c.b16 %v7393, %v7389
  %v8746 = vpack.c.b16 %v7394, %v7390
  %v8747 = vpack.c.b16 %v7399, %v7395
  %v8748 = vpack.c.b16 %v7400, %v7396
  %v8749 = vpack.c.b16 %v7401, %v7397
  %v8750 = vpack.c.b16 %v7402, %v7398
  %v8751 = vpack.c.b16 %v7407, %v7403
  %v8752 = vpack.c.b16 %v7408, %v7404
  %v8753 = vpack.c.b16 %v7409, %v7405
  %v8754 = vpack.c.b16 %v7410, %v7406
  %v8755 = vpack.c.b16 %v7415, %v7411
  %v8756 = vpack.c.b16 %v7416, %v7412
  %v8757 = vpack.c.b16 %v7417, %v7413
  %v8758 = vpack.c.b16 %v7418, %v7414
  %v8759 = vpack.c.b16 %v7423, %v7419
  %v8760 = vpack.c.b16 %v7424, %v7420
  %v8761 = vpack.c.b16 %v7425, %v7421
  %v8762 = vpack.c.b16 %v7426, %v7422
  %v8763 = vpack.c.b16 %v7431, %v7427
  %v8764 = vpack.c.b16 %v7432, %v7428
  %v8765 = vpack.c.b16 %v7433, %v7429
  %v8766 = vpack.c.b16 %v7434, %v7430
  %v8767 = vpack.c.b16 %v7439, %v7435
  %v8768 = vpack.c.b16 %v7440, %v7436
  %v8769 = vpack.c.b16 %v7441, %v7437
  %v8770 = vpack.c.b16 %v7442, %v7438
  %v8771 = vpack.c.b16 %v7447, %v7443
  %v8772 = vpack.c.b16 %v7448, %v7444
  %v8773 = vpack.c.b16 %v7449, %v7445
  %v8774 = vpack.c.b16 %v7450, %v7446
  %v8775 = vpack.c.b16 %v7455, %v7451
  %v8776 = vpack.c.b16 %v7456, %v7452
  %v8777 = vpack.c.b16 %v7457, %v7453
  %v8778 = vpack.c.b16 %v7458, %v7454
  %v8779 = vpack.c.b16 %v7463, %v7459
  %v8780 = vpack.c.b16 %v7464, %v7460
  %v8781 = vpack.c.b16 %v7465, %v7461
  %v8782 = vpack.c.b16 %v7466, %v7462
  %v8783 = vpack.c.b16 %v7471, %v7467
  %v8784 = vpack.c.b16 %v7472, %v7468
  %v8785 = vpack.c.b16 %v7473, %v7469
  %v8786 = vpack.c.b16 %v7474, %v7470
  %v8787 = vpack.c.b16 %v7479, %v7475
  %v8788 = vpack.c.b16 %v7480, %v7476
  %v8789 = vpack.c.b16 %v7481, %v7477
  %v8790 = vpack.c.b16 %v7482, %v7478
  %v8791 = vpack.c.b16 %v7487, %v7483
  %v8792 = vpack.c.b16 %v7488, %v7484
  %v8793 = vpack.c.b16 %v7489, %v7485
  %v8794 = vpack.c.b16 %v7490, %v7486
  %v8795 = vpack.c.b16 %v7495, %v7491
  %v8796 = vpack.c.b16 %v7496, %v7492
  %v8797 = vpack.c.b16 %v7497, %v7493
  %v8798 = vpack.c.b16 %v7498, %v7494
  %v8799 = vpack.c.b16 %v7503, %v7499
  %v8800 = vpack.c.b16 %v7504, %v7500
  %v8801 = vpack.c.b16 %v7505, %v7501
  %v8802 = vpack.c.b16 %v7506, %v7502
  %v8803 = vpack.c.b16 %v7511, %v7507
  %v8804 = vpack.c.b16 %v7512, %v7508
  %v8805 = vpack.c.b16 %v7513, %v7509
  %v8806 = vpack.c.b16 %v7514, %v7510
  %v8807 = vpack.c.b16 %v7519, %v7515
  %v8808 = vpack.c.b16 %v7520, %v7516
  %v8809 = vpack.c.b16 %v7521, %v7517
  %v8810 = vpack.c.b16 %v7522, %v7518
  %v8811 = vpack.c.b16 %v7527, %v7523
  %v8812 = vpack.c.b16 %v7528, %v7524
  %v8813 = vpack.c.b16 %v7529, %v7525
  %v8814 = vpack.c.b16 %v7530, %v7526
  %v8815 = vpack.c.b16 %v7535, %v7531
  %v8816 = vpack.c.b16 %v7536, %v7532
  %v8817 = vpack.c.b16 %v7537, %v7533
  %v8818 = vpack.c.b16 %v7538, %v7534
  %v8819 = vpack.c.b16 %v7543, %v7539
  %v8820 = vpack.c.b16 %v7544, %v7540
  %v8821 = vpack.c.b16 %v7545, %v7541
  %v8822 = vpack.c.b16 %v7546, %v7542
  %v8823 = vpack.c.b16 %v7551, %v7547
  %v8824 = vpack.c.b16 %v7552, %v7548
  %v8825 = vpack.c.b16 %v7553, %v7549
  %v8826 = vpack.c.b16 %v7554, %v7550
  %v8827 = vpack.c.b16 %v7559, %v7555
  %v8828 = vpack.c.b16 %v7560, %v7556
  %v8829 = vpack.c.b16 %v7561, %v7557
  %v8830 = vpack.c.b16 %v7562, %v7558
  %v8831 = vpack.c.b16 %v7567, %v7563
  %v8832 = vpack.c.b16 %v7568, %v7564
  %v8833 = vpack.c.b16 %v7569, %v7565
  %v8834 = vpack.c.b16 %v7570, %v7566
  %v8835 = vpack.c.b16 %v7575, %v7571
  %v8836 = vpack.c.b16 %v7576, %v7572
  %v8837 = vpack.c.b16 %v7577, %v7573
  %v8838 = vpack.c.b16 %v7578, %v7574
  %v8839 = vpack.c.b16 %v7583, %v7579
  %v8840 = vpack.c.b16 %v7584, %v7580
  %v8841 = vpack.c.b16 %v7585, %v7581
  %v8842 = vpack.c.b16 %v7586, %v7582
  %v8843 = vpack.c.b16 %v7591, %v7587
  %v8844 = vpack.c.b16 %v7592, %v7588
  %v8845 = vpack.c.b16 %v7593, %v7589
  %v8846 = vpack.c.b16 %v7594, %v7590
  %v8847 = vpack.c.b16 %v7599, %v7595
  %v8848 = vpack.c.b16 %v7600, %v7596
  %v8849 = vpack.c.b16 %v7601, %v7597
  %v8850 = vpack.c.b16 %v7602, %v7598
  %v8851 = vpack.c.b16 %v7607, %v7603
  %v8852 = vpack.c.b16 %v7608, %v7604
  %v8853 = vpack.c.b16 %v7609, %v7605
  %v8854 = vpack.c.b16 %v7610, %v7606
  %v8855 = vpack.c.b16 %v7615, %v7611
  %v8856 = vpack.c.b16 %v7616, %v7612
  %v8857 = vpack.c.b16 %v7617, %v7613
  %v8858 = vpack.c.b16 %v7618, %v7614
  %v8859 = vpack.c.b16 %v7623, %v7619
  %v8860 = vpack.c.b16 %v7624, %v7620
  %v8861 = vpack.c.b16 %v7625, %v7621
  %v8862 = vpack.c.b16 %v7626, %v7622
  %v8863 = vpack.c.b16 %v7631, %v7627
  %v8864 = vpack.c.b16 %v7632, %v7628
  %v8865 = vpack.c.b16 %v7633, %v7629
  %v8866 = vpack.c.b16 %v7634, %v7630
  %v8867 = vpack.c.b16 %v7639, %v7635
  %v8868 = vpack.c.b16 %v7640, %v7636
  %v8869 = vpack.c.b16 %v7641, %v7637
  %v8870 = vpack.c.b16 %v7642, %v7638
  %v8871 = vpack.c.b16 %v7647, %v7643
  %v8872 = vpack.c.b16 %v7648, %v7644
  %v8873 = vpack.c.b16 %v7649, %v7645
  %v8874 = vpack.c.b16 %v7650, %v7646
  %v8875 = vpack.c.b16 %v7655, %v7651
  %v8876 = vpack.c.b16 %v7656, %v7652
  %v8877 = vpack.c.b16 %v7657, %v7653
  %v8878 = vpack.c.b16 %v7658, %v7654
  %v8879 = vpack.c.b16 %v7663, %v7659
  %v8880 = vpack.c.b16 %v7664, %v7660
  %v8881 = vpack.c.b16 %v7665, %v7661
  %v8882 = vpack.c.b16 %v7666, %v7662
  %v8883 = vpack.c.b16 %v7671, %v7667
  %v8884 = vpack.c.b16 %v7672, %v7668
  %v8885 = vpack.c.b16 %v7673, %v7669
  %v8886 = vpack.c.b16 %v7674, %v7670
  %v8887 = vpack.c.b16 %v7679, %v7675
  %v8888 = vpack.c.b16 %v7680, %v7676
  %v8889 = vpack.c.b16 %v7681, %v7677
  %v8890 = vpack.c.b16 %v7682, %v7678
  %v8891 = vpack.c.b16 %v7687, %v7683
  %v8892 = vpack.c.b16 %v7688, %v7684
  %v8893 = vpack.c.b16 %v7689, %v7685
  %v8894 = vpack.c.b16 %v7690, %v7686
  %v8895 = vpack.c.b16 %v7695, %v7691
  %v8896 = vpack.c.b16 %v7696, %v7692
  %v8897 = vpack.c.b16 %v7697, %v7693
  %v8898 = vpack.c.b16 %v7698, %v7694
  %v8899 = vpack.c.b16 %v7703, %v7699
  %v8900 = vpack.c.b16 %v7704, %v7700
  %v8901 = vpack.c.b16 %v7705, %v7701
  %v8902 = vpack.c.b16 %v7706, %v7702
  %v8903 = vpack.c.b16 %v7711, %v7707
  %v8904 = vpack.c.b16 %v7712, %v7708
  %v8905 = vpack.c.b16 %v7713, %v7709
  %v8906 = vpack.c.b16 %v7714, %v7710
  %v8907 = vpack.c.b16 %v7719, %v7715
  %v8908 = vpack.c.b16 %v7720, %v7716
  %v8909 = vpack.c.b16 %v7721, %v7717
  %v8910 = vpack.c.b16 %v7722, %v7718
  %v8911 = vpack.c.b16 %v7727, %v7723
  %v8912 = vpack.c.b16 %v7728, %v7724
  %v8913 = vpack.c.b16 %v7729, %v7725
  %v8914 = vpack.c.b16 %v7730, %v7726
  %v8915 = vpack.c.b16 %v7735, %v7731
  %v8916 = vpack.c.b16 %v7736, %v7732
  %v8917 = vpack.c.b16 %v7737, %v7733
  %v8918 = vpack.c.b16 %v7738, %v7734
  %v8919 = vpack.c.b16 %v7743, %v7739
  %v8920 = vpack.c.b16 %v7744, %v7740
  %v8921 = vpack.c.b16 %v7745, %v7741
  %v8922 = vpack.c.b16 %v7746, %v7742
  %v8923 = vpack.c.b16 %v7751, %v7747
  %v8924 = vpack.c.b16 %v7752, %v7748
  %v8925 = vpack.c.b16 %v7753, %v7749
  %v8926 = vpack.c.b16 %v7754, %v7750
  %v8927 = vpack.c.b16 %v7759, %v7755
  %v8928 = vpack.c.b16 %v7760, %v7756
  %v8929 = vpack.c.b16 %v7761, %v7757
  %v8930 = vpack.c.b16 %v7762, %v7758
  %v8931 = vpack.c.b16 %v7767, %v7763
  %v8932 = vpack.c.b16 %v7768, %v7764
  %v8933 = vpack.c.b16 %v7769, %v7765
  %v8934 = vpack.c.b16 %v7770, %v7766
  %v8935 = vpack.c.b16 %v7775, %v7771
  %v8936 = vpack.c.b16 %v7776, %v7772
  %v8937 = vpack.c.b16 %v7777, %v7773
  %v8938 = vpack.c.b16 %v7778, %v7774
  %v8939 = vpack.c.b16 %v7783, %v7779
  %v8940 = vpack.c.b16 %v7784, %v7780
  %v8941 = vpack.c.b16 %v7785, %v7781
  %v8942 = vpack.c.b16 %v7786, %v7782
  %v8943 = vpack.c.b16 %v7791, %v7787
  %v8944 = vpack.c.b16 %v7792, %v7788
  %v8945 = vpack.c.b16 %v7793, %v7789
  %v8946 = vpack.c.b16 %v7794, %v7790
  %v8947 = vpack.c.b16 %v7799, %v7795
  %v8948 = vpack.c.b16 %v7800, %v7796
  %v8949 = vpack.c.b16 %v7801, %v7797
  %v8950 = vpack.c.b16 %v7802, %v7798
  %v8951 = vpack.c.b16 %v7807, %v7803
  %v8952 = vpack.c.b16 %v7808, %v7804
  %v8953 = vpack.c.b16 %v7809, %v7805
  %v8954 = vpack.c.b16 %v7810, %v7806
  %v8955 = vpack.c.b16 %v7815, %v7811
  %v8956 = vpack.c.b16 %v7816, %v7812
  %v8957 = vpack.c.b16 %v7817, %v7813
  %v8958 = vpack.c.b16 %v7818, %v7814
  %v8959 = vpack.c.b16 %v7823, %v7819
  %v8960 = vpack.c.b16 %v7824, %v7820
  %v8961 = vpack.c.b16 %v7825, %v7821
  %v8962 = vpack.c.b16 %v7826, %v7822
  %v8963 = vpack.c.b16 %v7831, %v7827
  %v8964 = vpack.c.b16 %v7832, %v7828
  %v8965 = vpack.c.b16 %v7833, %v7829
  %v8966 = vpack.c.b16 %v7834, %v7830
  %v8967 = vpack.c.b16 %v7839, %v7835
  %v8968 = vpack.c.b16 %v7840, %v7836
  %v8969 = vpack.c.b16 %v7841, %v7837
  %v8970 = vpack.c.b16 %v7842, %v7838
  %v8971 = vpack.c.b16 %v7847, %v7843
  %v8972 = vpack.c.b16 %v7848, %v7844
  %v8973 = vpack.c.b16 %v7849, %v7845
  %v8974 = vpack.c.b16 %v7850, %v7846
  %v8975 = vpack.c.b16 %v7855, %v7851
  %v8976 = vpack.c.b16 %v7856, %v7852
  %v8977 = vpack.c.b16 %v7857, %v7853
  %v8978 = vpack.c.b16 %v7858, %v7854
  %v8979 = vpack.c.b16 %v7863, %v7859
  %v8980 = vpack.c.b16 %v7864, %v7860
  %v8981 = vpack.c.b16 %v7865, %v7861
  %v8982 = vpack.c.b16 %v7866, %v7862
  %v8983 = vpack.c.b16 %v7871, %v7867
  %v8984 = vpack.c.b16 %v7872, %v7868
  %v8985 = vpack.c.b16 %v7873, %v7869
  %v8986 = vpack.c.b16 %v7874, %v7870
  %v8987 = vpack.c.b16 %v7879, %v7875
  %v8988 = vpack.c.b16 %v7880, %v7876
  %v8989 = vpack.c.b16 %v7881, %v7877
  %v8990 = vpack.c.b16 %v7882, %v7878
  %v8991 = vpack.c.b16 %v7887, %v7883
  %v8992 = vpack.c.b16 %v7888, %v7884
  %v8993 = vpack.c.b16 %v7889, %v7885
  %v8994 = vpack.c.b16 %v7890, %v7886
  %v8995 = vpack.c.b16 %v7895, %v7891
  %v8996 = vpack.c.b16 %v7896, %v7892
  %v8997 = vpack.c.b16 %v7897, %v7893
  %v8998 = vpack.c.b16 %v7898, %v7894
  %v8999 = vpack.c.b16 %v7903, %v7899
  %v9000 = vpack.c.b16 %v7904, %v7900
  %v9001 = vpack.c.b16 %v7905, %v7901
  %v9002 = vpack.c.b16 %v7906, %v7902
  %v9003 = vpack.c.b16 %v7911, %v7907
  %v9004 = vpack.c.b16 %v7912, %v7908
  %v9005 = vpack.c.b16 %v7913, %v7909
  %v9006 = vpack.c.b16 %v7914, %v7910
  %v9007 = vpack.c.b16 %v7919, %v7915
  %v9008 = vpack.c.b16 %v7920, %v7916
  %v9009 = vpack.c.b16 %v7921, %v7917
  %v9010 = vpack.c.b16 %v7922, %v7918
  %v9011 = vpack.c.b16 %v7927, %v7923
  %v9012 = vpack.c.b16 %v7928, %v7924
  %v9013 = vpack.c.b16 %v7929, %v7925
  %v9014 = vpack.c.b16 %v7930, %v7926
  %v9015 = vpack.c.b16 %v7935, %v7931
  %v9016 = vpack.c.b16 %v7936, %v7932
  %v9017 = vpack.c.b16 %v7937, %v7933
  %v9018 = vpack.c.b16 %v7938, %v7934
  %v9019 = vpack.c.b16 %v7943, %v7939
  %v9020 = vpack.c.b16 %v7944, %v7940
  %v9021 = vpack.c.b16 %v7945, %v7941
  %v9022 = vpack.c.b16 %v7946, %v7942
  %v9023 = vpack.c.b16 %v7951, %v7947
  %v9024 = vpack.c.b16 %v7952, %v7948
  %v9025 = vpack.c.b16 %v7953, %v7949
  %v9026 = vpack.c.b16 %v7954, %v7950
  %v9027 = vpack.c.b16 %v7959, %v7955
  %v9028 = vpack.c.b16 %v7960, %v7956
  %v9029 = vpack.c.b16 %v7961, %v7957
  %v9030 = vpack.c.b16 %v7962, %v7958
  %v9031 = vpack.c.b16 %v7967, %v7963
  %v9032 = vpack.c.b16 %v7968, %v7964
  %v9033 = vpack.c.b16 %v7969, %v7965
  %v9034 = vpack.c.b16 %v7970, %v7966
  %v9035 = vpack.c.b16 %v7975, %v7971
  %v9036 = vpack.c.b16 %v7976, %v7972
  %v9037 = vpack.c.b16 %v7977, %v7973
  %v9038 = vpack.c.b16 %v7978, %v7974
  %v9039 = vpack.c.b16 %v7983, %v7979
  %v9040 = vpack.c.b16 %v7984, %v7980
  %v9041 = vpack.c.b16 %v7985, %v7981
  %v9042 = vpack.c.b16 %v7986, %v7982
  %v9043 = vpack.c.b16 %v7991, %v7987
  %v9044 = vpack.c.b16 %v7992, %v7988
  %v9045 = vpack.c.b16 %v7993, %v7989
  %v9046 = vpack.c.b16 %v7994, %v7990
  %v9047 = vpack.c.b16 %v7999, %v7995
  %v9048 = vpack.c.b16 %v8000, %v7996
  %v9049 = vpack.c.b16 %v8001, %v7997
  %v9050 = vpack.c.b16 %v8002, %v7998
  %v9051 = vpack.c.b16 %v8007, %v8003
  %v9052 = vpack.c.b16 %v8008, %v8004
  %v9053 = vpack.c.b16 %v8009, %v8005
  %v9054 = vpack.c.b16 %v8010, %v8006
  %v9055 = vpack.c.b16 %v8015, %v8011
  %v9056 = vpack.c.b16 %v8016, %v8012
  %v9057 = vpack.c.b16 %v8017, %v8013
  %v9058 = vpack.c.b16 %v8018, %v8014
  %v9059 = vpack.c.b16 %v8023, %v8019
  %v9060 = vpack.c.b16 %v8024, %v8020
  %v9061 = vpack.c.b16 %v8025, %v8021
  %v9062 = vpack.c.b16 %v8026, %v8022
  %v9063 = vpack.c.b16 %v8031, %v8027
  %v9064 = vpack.c.b16 %v8032, %v8028
  %v9065 = vpack.c.b16 %v8033, %v8029
  %v9066 = vpack.c.b16 %v8034, %v8030
  %v9067 = vpack.c.b16 %v8039, %v8035
  %v9068 = vpack.c.b16 %v8040, %v8036
  %v9069 = vpack.c.b16 %v8041, %v8037
  %v9070 = vpack.c.b16 %v8042, %v8038
  %v9071 = vpack.c.b16 %v8047, %v8043
  %v9072 = vpack.c.b16 %v8048, %v8044
  %v9073 = vpack.c.b16 %v8049, %v8045
  %v9074 = vpack.c.b16 %v8050, %v8046
  %v9075 = vpack.c.b16 %v8055, %v8051
  %v9076 = vpack.c.b16 %v8056, %v8052
  %v9077 = vpack.c.b16 %v8057, %v8053
  %v9078 = vpack.c.b16 %v8058, %v8054
  %v9079 = vpack.c.b16 %v8063, %v8059
  %v9080 = vpack.c.b16 %v8064, %v8060
  %v9081 = vpack.c.b16 %v8065, %v8061
  %v9082 = vpack.c.b16 %v8066, %v8062
  %v9083 = vpack.c.b16 %v8071, %v8067
  %v9084 = vpack.c.b16 %v8072, %v8068
  %v9085 = vpack.c.b16 %v8073, %v8069
  %v9086 = vpack.c.b16 %v8074, %v8070
  %v9087 = vpack.c.b16 %v8079, %v8075
  %v9088 = vpack.c.b16 %v8080, %v8076
  %v9089 = vpack.c.b16 %v8081, %v8077
  %v9090 = vpack.c.b16 %v8082, %v8078
  %v9091 = vpack.c.b16 %v8087, %v8083
  %v9092 = vpack.c.b16 %v8088, %v8084
  %v9093 = vpack.c.b16 %v8089, %v8085
  %v9094 = vpack.c.b16 %v8090, %v8086
  %v9095 = vpack.c.b16 %v8095, %v8091
  %v9096 = vpack.c.b16 %v8096, %v8092
  %v9097 = vpack.c.b16 %v8097, %v8093
  %v9098 = vpack.c.b16 %v8098, %v8094
  %v9099 = vpack.c.b16 %v8103, %v8099
  %v9100 = vpack.c.b16 %v8104, %v8100
  %v9101 = vpack.c.b16 %v8105, %v8101
  %v9102 = vpack.c.b16 %v8106, %v8102
  %v9103 = vpack.c.b16 %v8111, %v8107
  %v9104 = vpack.c.b16 %v8112, %v8108
  %v9105 = vpack.c.b16 %v8113, %v8109
  %v9106 = vpack.c.b16 %v8114, %v8110
  %v9107 = vpack.c.b16 %v8119, %v8115
  %v9108 = vpack.c.b16 %v8120, %v8116
  %v9109 = vpack.c.b16 %v8121, %v8117
  %v9110 = vpack.c.b16 %v8122, %v8118
  %v9111 = vpack.c.b16 %v8127, %v8123
  %v9112 = vpack.c.b16 %v8128, %v8124
  %v9113 = vpack.c.b16 %v8129, %v8125
  %v9114 = vpack.c.b16 %v8130, %v8126
  %v9115 = vpack.c.b16 %v8135, %v8131
  %v9116 = vpack.c.b16 %v8136, %v8132
  %v9117 = vpack.c.b16 %v8137, %v8133
  %v9118 = vpack.c.b16 %v8138, %v8134
  %v9119 = vpack.c.b16 %v8143, %v8139
  %v9120 = vpack.c.b16 %v8144, %v8140
  %v9121 = vpack.c.b16 %v8145, %v8141
  %v9122 = vpack.c.b16 %v8146, %v8142
  %v9123 = vpack.c.b16 %v8151, %v8147
  %v9124 = vpack.c.b16 %v8152, %v8148
  %v9125 = vpack.c.b16 %v8153, %v8149
  %v9126 = vpack.c.b16 %v8154, %v8150
  %v9127 = vpack.c.b16 %v8159, %v8155
  %v9128 = vpack.c.b16 %v8160, %v8156
  %v9129 = vpack.c.b16 %v8161, %v8157
  %v9130 = vpack.c.b16 %v8162, %v8158
  %v9131 = vpack.c.b16 %v8167, %v8163
  %v9132 = vpack.c.b16 %v8168, %v8164
  %v9133 = vpack.c.b16 %v8169, %v8165
  %v9134 = vpack.c.b16 %v8170, %v8166
  %v9135 = vpack.c.b16 %v8175, %v8171
  %v9136 = vpack.c.b16 %v8176, %v8172
  %v9137 = vpack.c.b16 %v8177, %v8173
  %v9138 = vpack.c.b16 %v8178, %v8174
  %v9139 = vpack.c.b16 %v8183, %v8179
  %v9140 = vpack.c.b16 %v8184, %v8180
  %v9141 = vpack.c.b16 %v8185, %v8181
  %v9142 = vpack.c.b16 %v8186, %v8182
  %v9143 = vpack.c.b16 %v8191, %v8187
  %v9144 = vpack.c.b16 %v8192, %v8188
  %v9145 = vpack.c.b16 %v8193, %v8189
  %v9146 = vpack.c.b16 %v8194, %v8190
  %v9147 = vpack.c.b16 %v8199, %v8195
  %v9148 = vpack.c.b16 %v8200, %v8196
  %v9149 = vpack.c.b16 %v8201, %v8197
  %v9150 = vpack.c.b16 %v8202, %v8198
  %v9151 = vpack.c.b16 %v8207, %v8203
  %v9152 = vpack.c.b16 %v8208, %v8204
  %v9153 = vpack.c.b16 %v8209, %v8205
  %v9154 = vpack.c.b16 %v8210, %v8206
  %v9155 = vpack.c.b16 %v8215, %v8211
  %v9156 = vpack.c.b16 %v8216, %v8212
  %v9157 = vpack.c.b16 %v8217, %v8213
  %v9158 = vpack.c.b16 %v8218, %v8214
  %v9159 = vpack.c.b16 %v8223, %v8219
  %v9160 = vpack.c.b16 %v8224, %v8220
  %v9161 = vpack.c.b16 %v8225, %v8221
  %v9162 = vpack.c.b16 %v8226, %v8222
  %v9163 = vpack.c.b16 %v8231, %v8227
  %v9164 = vpack.c.b16 %v8232, %v8228
  %v9165 = vpack.c.b16 %v8233, %v8229
  %v9166 = vpack.c.b16 %v8234, %v8230
  %v9167 = vpack.c.b16 %v8239, %v8235
  %v9168 = vpack.c.b16 %v8240, %v8236
  %v9169 = vpack.c.b16 %v8241, %v8237
  %v9170 = vpack.c.b16 %v8242, %v8238
  %v9171 = vpack.c.b16 %v8247, %v8243
  %v9172 = vpack.c.b16 %v8248, %v8244
  %v9173 = vpack.c.b16 %v8249, %v8245
  %v9174 = vpack.c.b16 %v8250, %v8246
  %v9175 = vpack.c.b16 %v8255, %v8251
  %v9176 = vpack.c.b16 %v8256, %v8252
  %v9177 = vpack.c.b16 %v8257, %v8253
  %v9178 = vpack.c.b16 %v8258, %v8254
  %v9179 = vpack.c.b16 %v8263, %v8259
  %v9180 = vpack.c.b16 %v8264, %v8260
  %v9181 = vpack.c.b16 %v8265, %v8261
  %v9182 = vpack.c.b16 %v8266, %v8262
  %v9183 = vpack.c.b16 %v8271, %v8267
  %v9184 = vpack.c.b16 %v8272, %v8268
  %v9185 = vpack.c.b16 %v8273, %v8269
  %v9186 = vpack.c.b16 %v8274, %v8270
  %v9187 = vpack.c.b16 %v8279, %v8275
  %v9188 = vpack.c.b16 %v8280, %v8276
  %v9189 = vpack.c.b16 %v8281, %v8277
  %v9190 = vpack.c.b16 %v8282, %v8278
  %v9191 = vpack.c.b16 %v8287, %v8283
  %v9192 = vpack.c.b16 %v8288, %v8284
  %v9193 = vpack.c.b16 %v8289, %v8285
  %v9194 = vpack.c.b16 %v8290, %v8286
  %v9195 = vpack.c.b16 %v8295, %v8291
  %v9196 = vpack.c.b16 %v8296, %v8292
  %v9197 = vpack.c.b16 %v8297, %v8293
  %v9198 = vpack.c.b16 %v8298, %v8294
  %v9199 = vpack.c.b16 %v8303, %v8299
  %v9200 = vpack.c.b16 %v8304, %v8300
  %v9201 = vpack.c.b16 %v8305, %v8301
  %v9202 = vpack.c.b16 %v8306, %v8302
  %10099 = vmatprep.subr.bf16.mxu0 %v8308
  %10100 = vmatpush1.bf16.msra.mxu0 %v8307
  %10101 = vmatprep.subr.bf16.mxu0 %v8312
  %10102 = vmatpush1.bf16.msra.mxu0 %v8311
  %10103 = vmatprep.subr.bf16.mxu0 %v8316
  %10104 = vmatpush1.bf16.msra.mxu0 %v8315
  %10105 = vmatprep.subr.bf16.mxu0 %v8320
  %10106 = vmatpush1.bf16.msra.mxu0 %v8319
  %10107 = vmatprep.subr.bf16.mxu0 %v8324
  %10108 = vmatpush1.bf16.msra.mxu0 %v8323
  %10109 = vmatprep.subr.bf16.mxu0 %v8328
  %10110 = vmatpush1.bf16.msra.mxu0 %v8327
  %10111 = vmatprep.subr.bf16.mxu0 %v8332
  %10112 = vmatpush1.bf16.msra.mxu0 %v8331
  %10113 = vmatprep.subr.bf16.mxu0 %v8336
  %10114 = vmatpush1.bf16.msra.mxu0 %v8335
  %10115 = vmatprep.subr.bf16.mxu0 %v8340
  %10116 = vmatpush1.bf16.msra.mxu0 %v8339
  %10117 = vmatprep.subr.bf16.mxu0 %v8344
  %10118 = vmatpush1.bf16.msra.mxu0 %v8343
  %10119 = vmatprep.subr.bf16.mxu0 %v8348
  %10120 = vmatpush1.bf16.msra.mxu0 %v8347
  %10121 = vmatprep.subr.bf16.mxu0 %v8352
  %10122 = vmatpush1.bf16.msra.mxu0 %v8351
  %10123 = vmatprep.subr.bf16.mxu0 %v8356
  %10124 = vmatpush1.bf16.msra.mxu0 %v8355
  %10125 = vmatprep.subr.bf16.mxu0 %v8360
  %10126 = vmatpush1.bf16.msra.mxu0 %v8359
  %10127 = vmatprep.subr.bf16.mxu0 %v8364
  %10128 = vmatpush1.bf16.msra.mxu0 %v8363
  %10129 = vmatprep.subr.bf16.mxu0 %v8368
  %10130 = vmatpush1.bf16.msra.mxu0 %v8367
  %10131 = vmatprep.mubr.bf16.mxu0 %v4674
  %10132 = vmatmul.mubr.bf16.gmra.mrb[0].mxu0 %v4673
  %v10133 = vpop.f32.mrb[0].mxu0
  %v10134 = vadd.f32 %v5602, %v10133
  %v10135 = vpop.f32.mrb[0].mxu0
  %v10136 = vadd.f32 %v5606, %v10135
  %v10137 = vpop.f32.mrb[0].mxu0
  %v10138 = vpop.f32.mrb[0].mxu0
  %10139 = vdwg.mxu0
  %10140 = vmatprep.subr.bf16.mxu0 %v8372
  %10141 = vmatpush1.bf16.msra.mxu0 %v8371
  %10142 = vmatprep.subr.bf16.mxu0 %v8376
  %10143 = vmatpush1.bf16.msra.mxu0 %v8375
  %10144 = vmatprep.subr.bf16.mxu0 %v8380
  %10145 = vmatpush1.bf16.msra.mxu0 %v8379
  %10146 = vmatprep.subr.bf16.mxu0 %v8384
  %10147 = vmatpush1.bf16.msra.mxu0 %v8383
  %10148 = vmatprep.subr.bf16.mxu0 %v8388
  %10149 = vmatpush1.bf16.msra.mxu0 %v8387
  %10150 = vmatprep.subr.bf16.mxu0 %v8392
  %10151 = vmatpush1.bf16.msra.mxu0 %v8391
  %10152 = vmatprep.subr.bf16.mxu0 %v8396
  %10153 = vmatpush1.bf16.msra.mxu0 %v8395
  %10154 = vmatprep.subr.bf16.mxu0 %v8400
  %10155 = vmatpush1.bf16.msra.mxu0 %v8399
  %10156 = vmatprep.subr.bf16.mxu0 %v8404
  %10157 = vmatpush1.bf16.msra.mxu0 %v8403
  %10158 = vmatprep.subr.bf16.mxu0 %v8408
  %10159 = vmatpush1.bf16.msra.mxu0 %v8407
  %10160 = vmatprep.subr.bf16.mxu0 %v8412
  %10161 = vmatpush1.bf16.msra.mxu0 %v8411
  %10162 = vmatprep.subr.bf16.mxu0 %v8416
  %10163 = vmatpush1.bf16.msra.mxu0 %v8415
  %10164 = vmatprep.subr.bf16.mxu0 %v8420
  %10165 = vmatpush1.bf16.msra.mxu0 %v8419
  %10166 = vmatprep.subr.bf16.mxu0 %v8424
  %10167 = vmatpush1.bf16.msra.mxu0 %v8423
  %10168 = vmatprep.subr.bf16.mxu0 %v8428
  %10169 = vmatpush1.bf16.msra.mxu0 %v8427
  %10170 = vmatprep.subr.bf16.mxu0 %v8432
  %10171 = vmatpush1.bf16.msra.mxu0 %v8431
  %10172 = vmatprep.mubr.bf16.mxu0 %v4676
  %10173 = vmatmul.mubr.bf16.gmra.mrb[0].mxu0 %v4675
  %v10174 = vpop.f32.mrb[0].mxu0
  %v10175 = vadd.f32 %v10134, %v10174
  %v10176 = vpop.f32.mrb[0].mxu0
  %v10177 = vadd.f32 %v10136, %v10176
  %v10178 = vpop.f32.mrb[0].mxu0
  %v10179 = vpop.f32.mrb[0].mxu0
  %10180 = vdwg.mxu0
  %10181 = vmatprep.subr.bf16.mxu0 %v8436
  %10182 = vmatpush1.bf16.msra.mxu0 %v8435
  %10183 = vmatprep.subr.bf16.mxu0 %v8440
  %10184 = vmatpush1.bf16.msra.mxu0 %v8439
  %10185 = vmatprep.subr.bf16.mxu0 %v8444
  %10186 = vmatpush1.bf16.msra.mxu0 %v8443
  %10187 = vmatprep.subr.bf16.mxu0 %v8448
  %10188 = vmatpush1.bf16.msra.mxu0 %v8447
  %10189 = vmatprep.subr.bf16.mxu0 %v8452
  %10190 = vmatpush1.bf16.msra.mxu0 %v8451
  %10191 = vmatprep.subr.bf16.mxu0 %v8456
  %10192 = vmatpush1.bf16.msra.mxu0 %v8455
  %10193 = vmatprep.subr.bf16.mxu0 %v8460
  %10194 = vmatpush1.bf16.msra.mxu0 %v8459
  %10195 = vmatprep.subr.bf16.mxu0 %v8464
  %10196 = vmatpush1.bf16.msra.mxu0 %v8463
  %10197 = vmatprep.subr.bf16.mxu0 %v8468
  %10198 = vmatpush1.bf16.msra.mxu0 %v8467
  %10199 = vmatprep.subr.bf16.mxu0 %v8472
  %10200 = vmatpush1.bf16.msra.mxu0 %v8471
  %10201 = vmatprep.subr.bf16.mxu0 %v8476
  %10202 = vmatpush1.bf16.msra.mxu0 %v8475
  %10203 = vmatprep.subr.bf16.mxu0 %v8480
  %10204 = vmatpush1.bf16.msra.mxu0 %v8479
  %10205 = vmatprep.subr.bf16.mxu0 %v8484
  %10206 = vmatpush1.bf16.msra.mxu0 %v8483
  %10207 = vmatprep.subr.bf16.mxu0 %v8488
  %10208 = vmatpush1.bf16.msra.mxu0 %v8487
  %10209 = vmatprep.subr.bf16.mxu0 %v8492
  %10210 = vmatpush1.bf16.msra.mxu0 %v8491
  %10211 = vmatprep.subr.bf16.mxu0 %v8496
  %10212 = vmatpush1.bf16.msra.mxu0 %v8495
  %10213 = vmatprep.mubr.bf16.mxu0 %v4678
  %10214 = vmatmul.mubr.bf16.gmra.mrb[0].mxu0 %v4677
  %v10215 = vpop.f32.mrb[0].mxu0
  %v10216 = vadd.f32 %v10175, %v10215
  %v10217 = vpop.f32.mrb[0].mxu0
  %v10218 = vadd.f32 %v10177, %v10217
  %v10219 = vpop.f32.mrb[0].mxu0
  %v10220 = vpop.f32.mrb[0].mxu0
  %10221 = vdwg.mxu0
  %10222 = vmatprep.subr.bf16.mxu0 %v8500
  %10223 = vmatpush1.bf16.msra.mxu0 %v8499
  %10224 = vmatprep.subr.bf16.mxu0 %v8504
  %10225 = vmatpush1.bf16.msra.mxu0 %v8503
  %10226 = vmatprep.subr.bf16.mxu0 %v8508
  %10227 = vmatpush1.bf16.msra.mxu0 %v8507
  %10228 = vmatprep.subr.bf16.mxu0 %v8512
  %10229 = vmatpush1.bf16.msra.mxu0 %v8511
  %10230 = vmatprep.subr.bf16.mxu0 %v8516
  %10231 = vmatpush1.bf16.msra.mxu0 %v8515
  %10232 = vmatprep.subr.bf16.mxu0 %v8520
  %10233 = vmatpush1.bf16.msra.mxu0 %v8519
  %10234 = vmatprep.subr.bf16.mxu0 %v8524
  %10235 = vmatpush1.bf16.msra.mxu0 %v8523
  %10236 = vmatprep.subr.bf16.mxu0 %v8528
  %10237 = vmatpush1.bf16.msra.mxu0 %v8527
  %10238 = vmatprep.subr.bf16.mxu0 %v8532
  %10239 = vmatpush1.bf16.msra.mxu0 %v8531
  %10240 = vmatprep.subr.bf16.mxu0 %v8536
  %10241 = vmatpush1.bf16.msra.mxu0 %v8535
  %10242 = vmatprep.subr.bf16.mxu0 %v8540
  %10243 = vmatpush1.bf16.msra.mxu0 %v8539
  %10244 = vmatprep.subr.bf16.mxu0 %v8544
  %10245 = vmatpush1.bf16.msra.mxu0 %v8543
  %10246 = vmatprep.subr.bf16.mxu0 %v8548
  %10247 = vmatpush1.bf16.msra.mxu0 %v8547
  %10248 = vmatprep.subr.bf16.mxu0 %v8552
  %10249 = vmatpush1.bf16.msra.mxu0 %v8551
  %10250 = vmatprep.subr.bf16.mxu0 %v8556
  %10251 = vmatpush1.bf16.msra.mxu0 %v8555
  %10252 = vmatprep.subr.bf16.mxu0 %v8560
  %10253 = vmatpush1.bf16.msra.mxu0 %v8559
  %10254 = vmatprep.mubr.bf16.mxu0 %v4680
  %10255 = vmatmul.mubr.bf16.gmra.mrb[0].mxu0 %v4679
  %v10256 = vpop.f32.mrb[0].mxu0
  %v10257 = vadd.f32 %v10216, %v10256
  %v10258 = vpop.f32.mrb[0].mxu0
  %v10259 = vadd.f32 %v10218, %v10258
  %v10260 = vpop.f32.mrb[0].mxu0
  %v10261 = vpop.f32.mrb[0].mxu0
  %10262 = vdwg.mxu0
  %10263 = vmatprep.subr.bf16.mxu0 %v8564
  %10264 = vmatpush1.bf16.msra.mxu0 %v8563
  %10265 = vmatprep.subr.bf16.mxu0 %v8568
  %10266 = vmatpush1.bf16.msra.mxu0 %v8567
  %10267 = vmatprep.subr.bf16.mxu0 %v8572
  %10268 = vmatpush1.bf16.msra.mxu0 %v8571
  %10269 = vmatprep.subr.bf16.mxu0 %v8576
  %10270 = vmatpush1.bf16.msra.mxu0 %v8575
  %10271 = vmatprep.subr.bf16.mxu0 %v8580
  %10272 = vmatpush1.bf16.msra.mxu0 %v8579
  %10273 = vmatprep.subr.bf16.mxu0 %v8584
  %10274 = vmatpush1.bf16.msra.mxu0 %v8583
  %10275 = vmatprep.subr.bf16.mxu0 %v8588
  %10276 = vmatpush1.bf16.msra.mxu0 %v8587
  %10277 = vmatprep.subr.bf16.mxu0 %v8592
  %10278 = vmatpush1.bf16.msra.mxu0 %v8591
  %10279 = vmatprep.subr.bf16.mxu0 %v8596
  %10280 = vmatpush1.bf16.msra.mxu0 %v8595
  %10281 = vmatprep.subr.bf16.mxu0 %v8600
  %10282 = vmatpush1.bf16.msra.mxu0 %v8599
  %10283 = vmatprep.subr.bf16.mxu0 %v8604
  %10284 = vmatpush1.bf16.msra.mxu0 %v8603
  %10285 = vmatprep.subr.bf16.mxu0 %v8608
  %10286 = vmatpush1.bf16.msra.mxu0 %v8607
  %10287 = vmatprep.subr.bf16.mxu0 %v8612
  %10288 = vmatpush1.bf16.msra.mxu0 %v8611
  %10289 = vmatprep.subr.bf16.mxu0 %v8616
  %10290 = vmatpush1.bf16.msra.mxu0 %v8615
  %10291 = vmatprep.subr.bf16.mxu0 %v8620
  %10292 = vmatpush1.bf16.msra.mxu0 %v8619
  %10293 = vmatprep.subr.bf16.mxu0 %v8624
  %10294 = vmatpush1.bf16.msra.mxu0 %v8623
  %10295 = vmatprep.mubr.bf16.mxu0 %v4682
  %10296 = vmatmul.mubr.bf16.gmra.mrb[0].mxu0 %v4681
  %v10297 = vpop.f32.mrb[0].mxu0
  %v10298 = vadd.f32 %v10257, %v10297
  %v10299 = vpop.f32.mrb[0].mxu0
  %v10300 = vadd.f32 %v10259, %v10299
  %v10301 = vpop.f32.mrb[0].mxu0
  %v10302 = vpop.f32.mrb[0].mxu0
  %10303 = vdwg.mxu0
  %10304 = vmatprep.subr.bf16.mxu0 %v8628
  %10305 = vmatpush1.bf16.msra.mxu0 %v8627
  %10306 = vmatprep.subr.bf16.mxu0 %v8632
  %10307 = vmatpush1.bf16.msra.mxu0 %v8631
  %10308 = vmatprep.subr.bf16.mxu0 %v8636
  %10309 = vmatpush1.bf16.msra.mxu0 %v8635
  %10310 = vmatprep.subr.bf16.mxu0 %v8640
  %10311 = vmatpush1.bf16.msra.mxu0 %v8639
  %10312 = vmatprep.subr.bf16.mxu0 %v8644
  %10313 = vmatpush1.bf16.msra.mxu0 %v8643
  %10314 = vmatprep.subr.bf16.mxu0 %v8648
  %10315 = vmatpush1.bf16.msra.mxu0 %v8647
  %10316 = vmatprep.subr.bf16.mxu0 %v8652
  %10317 = vmatpush1.bf16.msra.mxu0 %v8651
  %10318 = vmatprep.subr.bf16.mxu0 %v8656
  %10319 = vmatpush1.bf16.msra.mxu0 %v8655
  %10320 = vmatprep.subr.bf16.mxu0 %v8660
  %10321 = vmatpush1.bf16.msra.mxu0 %v8659
  %10322 = vmatprep.subr.bf16.mxu0 %v8664
  %10323 = vmatpush1.bf16.msra.mxu0 %v8663
  %10324 = vmatprep.subr.bf16.mxu0 %v8668
  %10325 = vmatpush1.bf16.msra.mxu0 %v8667
  %10326 = vmatprep.subr.bf16.mxu0 %v8672
  %10327 = vmatpush1.bf16.msra.mxu0 %v8671
  %10328 = vmatprep.subr.bf16.mxu0 %v8676
  %10329 = vmatpush1.bf16.msra.mxu0 %v8675
  %10330 = vmatprep.subr.bf16.mxu0 %v8680
  %10331 = vmatpush1.bf16.msra.mxu0 %v8679
  %10332 = vmatprep.subr.bf16.mxu0 %v8684
  %10333 = vmatpush1.bf16.msra.mxu0 %v8683
  %10334 = vmatprep.subr.bf16.mxu0 %v8688
  %10335 = vmatpush1.bf16.msra.mxu0 %v8687
  %10336 = vmatprep.mubr.bf16.mxu0 %v4684
  %10337 = vmatmul.mubr.bf16.gmra.mrb[0].mxu0 %v4683
  %v10338 = vpop.f32.mrb[0].mxu0
  %v10339 = vadd.f32 %v10298, %v10338
  %v10340 = vpop.f32.mrb[0].mxu0
  %v10341 = vadd.f32 %v10300, %v10340
  %v10342 = vpop.f32.mrb[0].mxu0
  %v10343 = vpop.f32.mrb[0].mxu0
  %10344 = vdwg.mxu0
  %10345 = vmatprep.subr.bf16.mxu0 %v8692
  %10346 = vmatpush1.bf16.msra.mxu0 %v8691
  %10347 = vmatprep.subr.bf16.mxu0 %v8696
  %10348 = vmatpush1.bf16.msra.mxu0 %v8695
  %10349 = vmatprep.subr.bf16.mxu0 %v8700
  %10350 = vmatpush1.bf16.msra.mxu0 %v8699
  %10351 = vmatprep.subr.bf16.mxu0 %v8704
  %10352 = vmatpush1.bf16.msra.mxu0 %v8703
  %10353 = vmatprep.subr.bf16.mxu0 %v8708
  %10354 = vmatpush1.bf16.msra.mxu0 %v8707
  %10355 = vmatprep.subr.bf16.mxu0 %v8712
  %10356 = vmatpush1.bf16.msra.mxu0 %v8711
  %10357 = vmatprep.subr.bf16.mxu0 %v8716
  %10358 = vmatpush1.bf16.msra.mxu0 %v8715
  %10359 = vmatprep.subr.bf16.mxu0 %v8720
  %10360 = vmatpush1.bf16.msra.mxu0 %v8719
  %10361 = vmatprep.subr.bf16.mxu0 %v8724
  %10362 = vmatpush1.bf16.msra.mxu0 %v8723
  %10363 = vmatprep.subr.bf16.mxu0 %v8728
  %10364 = vmatpush1.bf16.msra.mxu0 %v8727
  %10365 = vmatprep.subr.bf16.mxu0 %v8732
  %10366 = vmatpush1.bf16.msra.mxu0 %v8731
  %10367 = vmatprep.subr.bf16.mxu0 %v8736
  %10368 = vmatpush1.bf16.msra.mxu0 %v8735
  %10369 = vmatprep.subr.bf16.mxu0 %v8740
  %10370 = vmatpush1.bf16.msra.mxu0 %v8739
  %10371 = vmatprep.subr.bf16.mxu0 %v8744
  %10372 = vmatpush1.bf16.msra.mxu0 %v8743
  %10373 = vmatprep.subr.bf16.mxu0 %v8748
  %10374 = vmatpush1.bf16.msra.mxu0 %v8747
  %10375 = vmatprep.subr.bf16.mxu0 %v8752
  %10376 = vmatpush1.bf16.msra.mxu0 %v8751
  %10377 = vmatprep.mubr.bf16.mxu0 %v4686
  %10378 = vmatmul.mubr.bf16.gmra.mrb[0].mxu0 %v4685
  %v10379 = vpop.f32.mrb[0].mxu0
  %v10380 = vadd.f32 %v10339, %v10379
  %v10381 = vpop.f32.mrb[0].mxu0
  %v10382 = vadd.f32 %v10341, %v10381
  %v10383 = vpop.f32.mrb[0].mxu0
  %v10384 = vpop.f32.mrb[0].mxu0
  %10385 = vdwg.mxu0
  %10386 = vmatprep.subr.bf16.mxu0 %v8756
  %10387 = vmatpush1.bf16.msra.mxu0 %v8755
  %10388 = vmatprep.subr.bf16.mxu0 %v8760
  %10389 = vmatpush1.bf16.msra.mxu0 %v8759
  %10390 = vmatprep.subr.bf16.mxu0 %v8764
  %10391 = vmatpush1.bf16.msra.mxu0 %v8763
  %10392 = vmatprep.subr.bf16.mxu0 %v8768
  %10393 = vmatpush1.bf16.msra.mxu0 %v8767
  %10394 = vmatprep.subr.bf16.mxu0 %v8772
  %10395 = vmatpush1.bf16.msra.mxu0 %v8771
  %10396 = vmatprep.subr.bf16.mxu0 %v8776
  %10397 = vmatpush1.bf16.msra.mxu0 %v8775
  %10398 = vmatprep.subr.bf16.mxu0 %v8780
  %10399 = vmatpush1.bf16.msra.mxu0 %v8779
  %10400 = vmatprep.subr.bf16.mxu0 %v8784
  %10401 = vmatpush1.bf16.msra.mxu0 %v8783
  %10402 = vmatprep.subr.bf16.mxu0 %v8788
  %10403 = vmatpush1.bf16.msra.mxu0 %v8787
  %10404 = vmatprep.subr.bf16.mxu0 %v8792
  %10405 = vmatpush1.bf16.msra.mxu0 %v8791
  %10406 = vmatprep.subr.bf16.mxu0 %v8796
  %10407 = vmatpush1.bf16.msra.mxu0 %v8795
  %10408 = vmatprep.subr.bf16.mxu0 %v8800
  %10409 = vmatpush1.bf16.msra.mxu0 %v8799
  %10410 = vmatprep.subr.bf16.mxu0 %v8804
  %10411 = vmatpush1.bf16.msra.mxu0 %v8803
  %10412 = vmatprep.subr.bf16.mxu0 %v8808
  %10413 = vmatpush1.bf16.msra.mxu0 %v8807
  %10414 = vmatprep.subr.bf16.mxu0 %v8812
  %10415 = vmatpush1.bf16.msra.mxu0 %v8811
  %10416 = vmatprep.subr.bf16.mxu0 %v8816
  %10417 = vmatpush1.bf16.msra.mxu0 %v8815
  %10418 = vmatprep.mubr.bf16.mxu0 %v4688
  %10419 = vmatmul.mubr.bf16.gmra.mrb[0].mxu0 %v4687
  %v10420 = vpop.f32.mrb[0].mxu0
  %v10421 = vadd.f32 %v10380, %v10420
  %v10422 = vpop.f32.mrb[0].mxu0
  %v10423 = vadd.f32 %v10382, %v10422
  %v10424 = vpop.f32.mrb[0].mxu0
  %v10425 = vpop.f32.mrb[0].mxu0
  %10426 = vdwg.mxu0
  %10427 = vmatprep.subr.bf16.mxu0 %v8820
  %10428 = vmatpush1.bf16.msra.mxu0 %v8819
  %10429 = vmatprep.subr.bf16.mxu0 %v8824
  %10430 = vmatpush1.bf16.msra.mxu0 %v8823
  %10431 = vmatprep.subr.bf16.mxu0 %v8828
  %10432 = vmatpush1.bf16.msra.mxu0 %v8827
  %10433 = vmatprep.subr.bf16.mxu0 %v8832
  %10434 = vmatpush1.bf16.msra.mxu0 %v8831
  %10435 = vmatprep.subr.bf16.mxu0 %v8836
  %10436 = vmatpush1.bf16.msra.mxu0 %v8835
  %10437 = vmatprep.subr.bf16.mxu0 %v8840
  %10438 = vmatpush1.bf16.msra.mxu0 %v8839
  %10439 = vmatprep.subr.bf16.mxu0 %v8844
  %10440 = vmatpush1.bf16.msra.mxu0 %v8843
  %10441 = vmatprep.subr.bf16.mxu0 %v8848
  %10442 = vmatpush1.bf16.msra.mxu0 %v8847
  %10443 = vmatprep.subr.bf16.mxu0 %v8852
  %10444 = vmatpush1.bf16.msra.mxu0 %v8851
  %10445 = vmatprep.subr.bf16.mxu0 %v8856
  %10446 = vmatpush1.bf16.msra.mxu0 %v8855
  %10447 = vmatprep.subr.bf16.mxu0 %v8860
  %10448 = vmatpush1.bf16.msra.mxu0 %v8859
  %10449 = vmatprep.subr.bf16.mxu0 %v8864
  %10450 = vmatpush1.bf16.msra.mxu0 %v8863
  %10451 = vmatprep.subr.bf16.mxu0 %v8868
  %10452 = vmatpush1.bf16.msra.mxu0 %v8867
  %10453 = vmatprep.subr.bf16.mxu0 %v8872
  %10454 = vmatpush1.bf16.msra.mxu0 %v8871
  %10455 = vmatprep.subr.bf16.mxu0 %v8876
  %10456 = vmatpush1.bf16.msra.mxu0 %v8875
  %10457 = vmatprep.subr.bf16.mxu0 %v8880
  %10458 = vmatpush1.bf16.msra.mxu0 %v8879
  %10459 = vmatprep.mubr.bf16.mxu0 %v4690
  %10460 = vmatmul.mubr.bf16.gmra.mrb[0].mxu0 %v4689
  %v10461 = vpop.f32.mrb[0].mxu0
  %v10462 = vadd.f32 %v10421, %v10461
  %v10463 = vpop.f32.mrb[0].mxu0
  %v10464 = vadd.f32 %v10423, %v10463
  %v10465 = vpop.f32.mrb[0].mxu0
  %v10466 = vpop.f32.mrb[0].mxu0
  %10467 = vdwg.mxu0
  %10468 = vmatprep.subr.bf16.mxu0 %v8884
  %10469 = vmatpush1.bf16.msra.mxu0 %v8883
  %10470 = vmatprep.subr.bf16.mxu0 %v8888
  %10471 = vmatpush1.bf16.msra.mxu0 %v8887
  %10472 = vmatprep.subr.bf16.mxu0 %v8892
  %10473 = vmatpush1.bf16.msra.mxu0 %v8891
  %10474 = vmatprep.subr.bf16.mxu0 %v8896
  %10475 = vmatpush1.bf16.msra.mxu0 %v8895
  %10476 = vmatprep.subr.bf16.mxu0 %v8900
  %10477 = vmatpush1.bf16.msra.mxu0 %v8899
  %10478 = vmatprep.subr.bf16.mxu0 %v8904
  %10479 = vmatpush1.bf16.msra.mxu0 %v8903
  %10480 = vmatprep.subr.bf16.mxu0 %v8908
  %10481 = vmatpush1.bf16.msra.mxu0 %v8907
  %10482 = vmatprep.subr.bf16.mxu0 %v8912
  %10483 = vmatpush1.bf16.msra.mxu0 %v8911
  %10484 = vmatprep.subr.bf16.mxu0 %v8916
  %10485 = vmatpush1.bf16.msra.mxu0 %v8915
  %10486 = vmatprep.subr.bf16.mxu0 %v8920
  %10487 = vmatpush1.bf16.msra.mxu0 %v8919
  %10488 = vmatprep.subr.bf16.mxu0 %v8924
  %10489 = vmatpush1.bf16.msra.mxu0 %v8923
  %10490 = vmatprep.subr.bf16.mxu0 %v8928
  %10491 = vmatpush1.bf16.msra.mxu0 %v8927
  %10492 = vmatprep.subr.bf16.mxu0 %v8932
  %10493 = vmatpush1.bf16.msra.mxu0 %v8931
  %10494 = vmatprep.subr.bf16.mxu0 %v8936
  %10495 = vmatpush1.bf16.msra.mxu0 %v8935
  %10496 = vmatprep.subr.bf16.mxu0 %v8940
  %10497 = vmatpush1.bf16.msra.mxu0 %v8939
  %10498 = vmatprep.subr.bf16.mxu0 %v8944
  %10499 = vmatpush1.bf16.msra.mxu0 %v8943
  %10500 = vmatprep.mubr.bf16.mxu0 %v4692
  %10501 = vmatmul.mubr.bf16.gmra.mrb[0].mxu0 %v4691
  %v10502 = vpop.f32.mrb[0].mxu0
  %v10503 = vadd.f32 %v10462, %v10502
  %v10504 = vpop.f32.mrb[0].mxu0
  %v10505 = vadd.f32 %v10464, %v10504
  %v10506 = vpop.f32.mrb[0].mxu0
  %v10507 = vpop.f32.mrb[0].mxu0
  %10508 = vdwg.mxu0
  %10509 = vmatprep.subr.bf16.mxu0 %v8948
  %10510 = vmatpush1.bf16.msra.mxu0 %v8947
  %10511 = vmatprep.subr.bf16.mxu0 %v8952
  %10512 = vmatpush1.bf16.msra.mxu0 %v8951
  %10513 = vmatprep.subr.bf16.mxu0 %v8956
  %10514 = vmatpush1.bf16.msra.mxu0 %v8955
  %10515 = vmatprep.subr.bf16.mxu0 %v8960
  %10516 = vmatpush1.bf16.msra.mxu0 %v8959
  %10517 = vmatprep.subr.bf16.mxu0 %v8964
  %10518 = vmatpush1.bf16.msra.mxu0 %v8963
  %10519 = vmatprep.subr.bf16.mxu0 %v8968
  %10520 = vmatpush1.bf16.msra.mxu0 %v8967
  %10521 = vmatprep.subr.bf16.mxu0 %v8972
  %10522 = vmatpush1.bf16.msra.mxu0 %v8971
  %10523 = vmatprep.subr.bf16.mxu0 %v8976
  %10524 = vmatpush1.bf16.msra.mxu0 %v8975
  %10525 = vmatprep.subr.bf16.mxu0 %v8980
  %10526 = vmatpush1.bf16.msra.mxu0 %v8979
  %10527 = vmatprep.subr.bf16.mxu0 %v8984
  %10528 = vmatpush1.bf16.msra.mxu0 %v8983
  %10529 = vmatprep.subr.bf16.mxu0 %v8988
  %10530 = vmatpush1.bf16.msra.mxu0 %v8987
  %10531 = vmatprep.subr.bf16.mxu0 %v8992
  %10532 = vmatpush1.bf16.msra.mxu0 %v8991
  %10533 = vmatprep.subr.bf16.mxu0 %v8996
  %10534 = vmatpush1.bf16.msra.mxu0 %v8995
  %10535 = vmatprep.subr.bf16.mxu0 %v9000
  %10536 = vmatpush1.bf16.msra.mxu0 %v8999
  %10537 = vmatprep.subr.bf16.mxu0 %v9004
  %10538 = vmatpush1.bf16.msra.mxu0 %v9003
  %10539 = vmatprep.subr.bf16.mxu0 %v9008
  %10540 = vmatpush1.bf16.msra.mxu0 %v9007
  %10541 = vmatprep.mubr.bf16.mxu0 %v4694
  %10542 = vmatmul.mubr.bf16.gmra.mrb[0].mxu0 %v4693
  %v10543 = vpop.f32.mrb[0].mxu0
  %v10544 = vadd.f32 %v10503, %v10543
  %v10545 = vpop.f32.mrb[0].mxu0
  %v10546 = vadd.f32 %v10505, %v10545
  %v10547 = vpop.f32.mrb[0].mxu0
  %v10548 = vpop.f32.mrb[0].mxu0
  %10549 = vdwg.mxu0
  %10550 = vmatprep.subr.bf16.mxu0 %v9012
  %10551 = vmatpush1.bf16.msra.mxu0 %v9011
  %10552 = vmatprep.subr.bf16.mxu0 %v9016
  %10553 = vmatpush1.bf16.msra.mxu0 %v9015
  %10554 = vmatprep.subr.bf16.mxu0 %v9020
  %10555 = vmatpush1.bf16.msra.mxu0 %v9019
  %10556 = vmatprep.subr.bf16.mxu0 %v9024
  %10557 = vmatpush1.bf16.msra.mxu0 %v9023
  %10558 = vmatprep.subr.bf16.mxu0 %v9028
  %10559 = vmatpush1.bf16.msra.mxu0 %v9027
  %10560 = vmatprep.subr.bf16.mxu0 %v9032
  %10561 = vmatpush1.bf16.msra.mxu0 %v9031
  %10562 = vmatprep.subr.bf16.mxu0 %v9036
  %10563 = vmatpush1.bf16.msra.mxu0 %v9035
  %10564 = vmatprep.subr.bf16.mxu0 %v9040
  %10565 = vmatpush1.bf16.msra.mxu0 %v9039
  %10566 = vmatprep.subr.bf16.mxu0 %v9044
  %10567 = vmatpush1.bf16.msra.mxu0 %v9043
  %10568 = vmatprep.subr.bf16.mxu0 %v9048
  %10569 = vmatpush1.bf16.msra.mxu0 %v9047
  %10570 = vmatprep.subr.bf16.mxu0 %v9052
  %10571 = vmatpush1.bf16.msra.mxu0 %v9051
  %10572 = vmatprep.subr.bf16.mxu0 %v9056
  %10573 = vmatpush1.bf16.msra.mxu0 %v9055
  %10574 = vmatprep.subr.bf16.mxu0 %v9060
  %10575 = vmatpush1.bf16.msra.mxu0 %v9059
  %10576 = vmatprep.subr.bf16.mxu0 %v9064
  %10577 = vmatpush1.bf16.msra.mxu0 %v9063
  %10578 = vmatprep.subr.bf16.mxu0 %v9068
  %10579 = vmatpush1.bf16.msra.mxu0 %v9067
  %10580 = vmatprep.subr.bf16.mxu0 %v9072
  %10581 = vmatpush1.bf16.msra.mxu0 %v9071
  %10582 = vmatprep.mubr.bf16.mxu0 %v4696
  %10583 = vmatmul.mubr.bf16.gmra.mrb[0].mxu0 %v4695
  %v10584 = vpop.f32.mrb[0].mxu0
  %v10585 = vadd.f32 %v10544, %v10584
  %v10586 = vpop.f32.mrb[0].mxu0
  %v10587 = vadd.f32 %v10546, %v10586
  %v10588 = vpop.f32.mrb[0].mxu0
  %v10589 = vpop.f32.mrb[0].mxu0
  %10590 = vdwg.mxu0
  %10591 = vmatprep.subr.bf16.mxu0 %v9076
  %10592 = vmatpush1.bf16.msra.mxu0 %v9075
  %10593 = vmatprep.subr.bf16.mxu0 %v9080
  %10594 = vmatpush1.bf16.msra.mxu0 %v9079
  %10595 = vmatprep.subr.bf16.mxu0 %v9084
  %10596 = vmatpush1.bf16.msra.mxu0 %v9083
  %10597 = vmatprep.subr.bf16.mxu0 %v9088
  %10598 = vmatpush1.bf16.msra.mxu0 %v9087
  %10599 = vmatprep.subr.bf16.mxu0 %v9092
  %10600 = vmatpush1.bf16.msra.mxu0 %v9091
  %10601 = vmatprep.subr.bf16.mxu0 %v9096
  %10602 = vmatpush1.bf16.msra.mxu0 %v9095
  %10603 = vmatprep.subr.bf16.mxu0 %v9100
  %10604 = vmatpush1.bf16.msra.mxu0 %v9099
  %10605 = vmatprep.subr.bf16.mxu0 %v9104
  %10606 = vmatpush1.bf16.msra.mxu0 %v9103
  %10607 = vmatprep.subr.bf16.mxu0 %v9108
  %10608 = vmatpush1.bf16.msra.mxu0 %v9107
  %10609 = vmatprep.subr.bf16.mxu0 %v9112
  %10610 = vmatpush1.bf16.msra.mxu0 %v9111
  %10611 = vmatprep.subr.bf16.mxu0 %v9116
  %10612 = vmatpush1.bf16.msra.mxu0 %v9115
  %10613 = vmatprep.subr.bf16.mxu0 %v9120
  %10614 = vmatpush1.bf16.msra.mxu0 %v9119
  %10615 = vmatprep.subr.bf16.mxu0 %v9124
  %10616 = vmatpush1.bf16.msra.mxu0 %v9123
  %10617 = vmatprep.subr.bf16.mxu0 %v9128
  %10618 = vmatpush1.bf16.msra.mxu0 %v9127
  %10619 = vmatprep.subr.bf16.mxu0 %v9132
  %10620 = vmatpush1.bf16.msra.mxu0 %v9131
  %10621 = vmatprep.subr.bf16.mxu0 %v9136
  %10622 = vmatpush1.bf16.msra.mxu0 %v9135
  %10623 = vmatprep.mubr.bf16.mxu0 %v4698
  %10624 = vmatmul.mubr.bf16.gmra.mrb[0].mxu0 %v4697
  %v10625 = vpop.f32.mrb[0].mxu0
  %v10626 = vadd.f32 %v10585, %v10625
  %v10627 = vpop.f32.mrb[0].mxu0
  %v10628 = vadd.f32 %v10587, %v10627
  %v10629 = vpop.f32.mrb[0].mxu0
  %v10630 = vpop.f32.mrb[0].mxu0
  %10631 = vdwg.mxu0
  %10632 = vmatprep.subr.bf16.mxu0 %v9140
  %10633 = vmatpush1.bf16.msra.mxu0 %v9139
  %10634 = vmatprep.subr.bf16.mxu0 %v9144
  %10635 = vmatpush1.bf16.msra.mxu0 %v9143
  %10636 = vmatprep.subr.bf16.mxu0 %v9148
  %10637 = vmatpush1.bf16.msra.mxu0 %v9147
  %10638 = vmatprep.subr.bf16.mxu0 %v9152
  %10639 = vmatpush1.bf16.msra.mxu0 %v9151
  %10640 = vmatprep.subr.bf16.mxu0 %v9156
  %10641 = vmatpush1.bf16.msra.mxu0 %v9155
  %10642 = vmatprep.subr.bf16.mxu0 %v9160
  %10643 = vmatpush1.bf16.msra.mxu0 %v9159
  %10644 = vmatprep.subr.bf16.mxu0 %v9164
  %10645 = vmatpush1.bf16.msra.mxu0 %v9163
  %10646 = vmatprep.subr.bf16.mxu0 %v9168
  %10647 = vmatpush1.bf16.msra.mxu0 %v9167
  %10648 = vmatprep.subr.bf16.mxu0 %v9172
  %10649 = vmatpush1.bf16.msra.mxu0 %v9171
  %10650 = vmatprep.subr.bf16.mxu0 %v9176
  %10651 = vmatpush1.bf16.msra.mxu0 %v9175
  %10652 = vmatprep.subr.bf16.mxu0 %v9180
  %10653 = vmatpush1.bf16.msra.mxu0 %v9179
  %10654 = vmatprep.subr.bf16.mxu0 %v9184
  %10655 = vmatpush1.bf16.msra.mxu0 %v9183
  %10656 = vmatprep.subr.bf16.mxu0 %v9188
  %10657 = vmatpush1.bf16.msra.mxu0 %v9187
  %10658 = vmatprep.subr.bf16.mxu0 %v9192
  %10659 = vmatpush1.bf16.msra.mxu0 %v9191
  %10660 = vmatprep.subr.bf16.mxu0 %v9196
  %10661 = vmatpush1.bf16.msra.mxu0 %v9195
  %10662 = vmatprep.subr.bf16.mxu0 %v9200
  %10663 = vmatpush1.bf16.msra.mxu0 %v9199
  %10664 = vmatprep.mubr.bf16.mxu0 %v4700
  %10665 = vmatmul.mubr.bf16.gmra.mrb[0].mxu0 %v4699
  %v10666 = vpop.f32.mrb[0].mxu0
  %v10667 = vadd.f32 %v10626, %v10666
  %v10668 = vpop.f32.mrb[0].mxu0
  %v10669 = vadd.f32 %v10628, %v10668
  %v10670 = vpop.f32.mrb[0].mxu0
  %v10671 = vpop.f32.mrb[0].mxu0
  %10672 = vdwg.mxu0
  %10673 = vmatprep.subr.bf16.mxu0 %v8310
  %10674 = vmatpush1.bf16.msra.mxu0 %v8309
  %10675 = vmatprep.subr.bf16.mxu0 %v8314
  %10676 = vmatpush1.bf16.msra.mxu0 %v8313
  %10677 = vmatprep.subr.bf16.mxu0 %v8318
  %10678 = vmatpush1.bf16.msra.mxu0 %v8317
  %10679 = vmatprep.subr.bf16.mxu0 %v8322
  %10680 = vmatpush1.bf16.msra.mxu0 %v8321
  %10681 = vmatprep.subr.bf16.mxu0 %v8326
  %10682 = vmatpush1.bf16.msra.mxu0 %v8325
  %10683 = vmatprep.subr.bf16.mxu0 %v8330
  %10684 = vmatpush1.bf16.msra.mxu0 %v8329
  %10685 = vmatprep.subr.bf16.mxu0 %v8334
  %10686 = vmatpush1.bf16.msra.mxu0 %v8333
  %10687 = vmatprep.subr.bf16.mxu0 %v8338
  %10688 = vmatpush1.bf16.msra.mxu0 %v8337
  %10689 = vmatprep.subr.bf16.mxu0 %v8342
  %10690 = vmatpush1.bf16.msra.mxu0 %v8341
  %10691 = vmatprep.subr.bf16.mxu0 %v8346
  %10692 = vmatpush1.bf16.msra.mxu0 %v8345
  %10693 = vmatprep.subr.bf16.mxu0 %v8350
  %10694 = vmatpush1.bf16.msra.mxu0 %v8349
  %10695 = vmatprep.subr.bf16.mxu0 %v8354
  %10696 = vmatpush1.bf16.msra.mxu0 %v8353
  %10697 = vmatprep.subr.bf16.mxu0 %v8358
  %10698 = vmatpush1.bf16.msra.mxu0 %v8357
  %10699 = vmatprep.subr.bf16.mxu0 %v8362
  %10700 = vmatpush1.bf16.msra.mxu0 %v8361
  %10701 = vmatprep.subr.bf16.mxu0 %v8366
  %10702 = vmatpush1.bf16.msra.mxu0 %v8365
  %10703 = vmatprep.subr.bf16.mxu0 %v8370
  %10704 = vmatpush1.bf16.msra.mxu0 %v8369
  %10705 = vmatprep.mubr.bf16.mxu0 %v4674
  %10706 = vmatmul.mubr.bf16.gmra.mrb[0].mxu0 %v4673
  %v10707 = vpop.f32.mrb[0].mxu0
  %v10708 = vadd.f32 %v5610, %v10707
  %v10709 = vpop.f32.mrb[0].mxu0
  %v10710 = vadd.f32 %v5614, %v10709
  %v10711 = vpop.f32.mrb[0].mxu0
  %v10712 = vpop.f32.mrb[0].mxu0
  %10713 = vdwg.mxu0
  %10714 = vmatprep.subr.bf16.mxu0 %v8374
  %10715 = vmatpush1.bf16.msra.mxu0 %v8373
  %10716 = vmatprep.subr.bf16.mxu0 %v8378
  %10717 = vmatpush1.bf16.msra.mxu0 %v8377
  %10718 = vmatprep.subr.bf16.mxu0 %v8382
  %10719 = vmatpush1.bf16.msra.mxu0 %v8381
  %10720 = vmatprep.subr.bf16.mxu0 %v8386
  %10721 = vmatpush1.bf16.msra.mxu0 %v8385
  %10722 = vmatprep.subr.bf16.mxu0 %v8390
  %10723 = vmatpush1.bf16.msra.mxu0 %v8389
  %10724 = vmatprep.subr.bf16.mxu0 %v8394
  %10725 = vmatpush1.bf16.msra.mxu0 %v8393
  %10726 = vmatprep.subr.bf16.mxu0 %v8398
  %10727 = vmatpush1.bf16.msra.mxu0 %v8397
  %10728 = vmatprep.subr.bf16.mxu0 %v8402
  %10729 = vmatpush1.bf16.msra.mxu0 %v8401
  %10730 = vmatprep.subr.bf16.mxu0 %v8406
  %10731 = vmatpush1.bf16.msra.mxu0 %v8405
  %10732 = vmatprep.subr.bf16.mxu0 %v8410
  %10733 = vmatpush1.bf16.msra.mxu0 %v8409
  %10734 = vmatprep.subr.bf16.mxu0 %v8414
  %10735 = vmatpush1.bf16.msra.mxu0 %v8413
  %10736 = vmatprep.subr.bf16.mxu0 %v8418
  %10737 = vmatpush1.bf16.msra.mxu0 %v8417
  %10738 = vmatprep.subr.bf16.mxu0 %v8422
  %10739 = vmatpush1.bf16.msra.mxu0 %v8421
  %10740 = vmatprep.subr.bf16.mxu0 %v8426
  %10741 = vmatpush1.bf16.msra.mxu0 %v8425
  %10742 = vmatprep.subr.bf16.mxu0 %v8430
  %10743 = vmatpush1.bf16.msra.mxu0 %v8429
  %10744 = vmatprep.subr.bf16.mxu0 %v8434
  %10745 = vmatpush1.bf16.msra.mxu0 %v8433
  %10746 = vmatprep.mubr.bf16.mxu0 %v4676
  %10747 = vmatmul.mubr.bf16.gmra.mrb[0].mxu0 %v4675
  %v10748 = vpop.f32.mrb[0].mxu0
  %v10749 = vadd.f32 %v10708, %v10748
  %v10750 = vpop.f32.mrb[0].mxu0
  %v10751 = vadd.f32 %v10710, %v10750
  %v10752 = vpop.f32.mrb[0].mxu0
  %v10753 = vpop.f32.mrb[0].mxu0
  %10754 = vdwg.mxu0
  %10755 = vmatprep.subr.bf16.mxu0 %v8438
  %10756 = vmatpush1.bf16.msra.mxu0 %v8437
  %10757 = vmatprep.subr.bf16.mxu0 %v8442
  %10758 = vmatpush1.bf16.msra.mxu0 %v8441
  %10759 = vmatprep.subr.bf16.mxu0 %v8446
  %10760 = vmatpush1.bf16.msra.mxu0 %v8445
  %10761 = vmatprep.subr.bf16.mxu0 %v8450
  %10762 = vmatpush1.bf16.msra.mxu0 %v8449
  %10763 = vmatprep.subr.bf16.mxu0 %v8454
  %10764 = vmatpush1.bf16.msra.mxu0 %v8453
  %10765 = vmatprep.subr.bf16.mxu0 %v8458
  %10766 = vmatpush1.bf16.msra.mxu0 %v8457
  %10767 = vmatprep.subr.bf16.mxu0 %v8462
  %10768 = vmatpush1.bf16.msra.mxu0 %v8461
  %10769 = vmatprep.subr.bf16.mxu0 %v8466
  %10770 = vmatpush1.bf16.msra.mxu0 %v8465
  %10771 = vmatprep.subr.bf16.mxu0 %v8470
  %10772 = vmatpush1.bf16.msra.mxu0 %v8469
  %10773 = vmatprep.subr.bf16.mxu0 %v8474
  %10774 = vmatpush1.bf16.msra.mxu0 %v8473
  %10775 = vmatprep.subr.bf16.mxu0 %v8478
  %10776 = vmatpush1.bf16.msra.mxu0 %v8477
  %10777 = vmatprep.subr.bf16.mxu0 %v8482
  %10778 = vmatpush1.bf16.msra.mxu0 %v8481
  %10779 = vmatprep.subr.bf16.mxu0 %v8486
  %10780 = vmatpush1.bf16.msra.mxu0 %v8485
  %10781 = vmatprep.subr.bf16.mxu0 %v8490
  %10782 = vmatpush1.bf16.msra.mxu0 %v8489
  %10783 = vmatprep.subr.bf16.mxu0 %v8494
  %10784 = vmatpush1.bf16.msra.mxu0 %v8493
  %10785 = vmatprep.subr.bf16.mxu0 %v8498
  %10786 = vmatpush1.bf16.msra.mxu0 %v8497
  %10787 = vmatprep.mubr.bf16.mxu0 %v4678
  %10788 = vmatmul.mubr.bf16.gmra.mrb[0].mxu0 %v4677
  %v10789 = vpop.f32.mrb[0].mxu0
  %v10790 = vadd.f32 %v10749, %v10789
  %v10791 = vpop.f32.mrb[0].mxu0
  %v10792 = vadd.f32 %v10751, %v10791
  %v10793 = vpop.f32.mrb[0].mxu0
  %v10794 = vpop.f32.mrb[0].mxu0
  %10795 = vdwg.mxu0
  %10796 = vmatprep.subr.bf16.mxu0 %v8502
  %10797 = vmatpush1.bf16.msra.mxu0 %v8501
  %10798 = vmatprep.subr.bf16.mxu0 %v8506
  %10799 = vmatpush1.bf16.msra.mxu0 %v8505
  %10800 = vmatprep.subr.bf16.mxu0 %v8510
  %10801 = vmatpush1.bf16.msra.mxu0 %v8509
  %10802 = vmatprep.subr.bf16.mxu0 %v8514
  %10803 = vmatpush1.bf16.msra.mxu0 %v8513
  %10804 = vmatprep.subr.bf16.mxu0 %v8518
  %10805 = vmatpush1.bf16.msra.mxu0 %v8517
  %10806 = vmatprep.subr.bf16.mxu0 %v8522
  %10807 = vmatpush1.bf16.msra.mxu0 %v8521
  %10808 = vmatprep.subr.bf16.mxu0 %v8526
  %10809 = vmatpush1.bf16.msra.mxu0 %v8525
  %10810 = vmatprep.subr.bf16.mxu0 %v8530
  %10811 = vmatpush1.bf16.msra.mxu0 %v8529
  %10812 = vmatprep.subr.bf16.mxu0 %v8534
  %10813 = vmatpush1.bf16.msra.mxu0 %v8533
  %10814 = vmatprep.subr.bf16.mxu0 %v8538
  %10815 = vmatpush1.bf16.msra.mxu0 %v8537
  %10816 = vmatprep.subr.bf16.mxu0 %v8542
  %10817 = vmatpush1.bf16.msra.mxu0 %v8541
  %10818 = vmatprep.subr.bf16.mxu0 %v8546
  %10819 = vmatpush1.bf16.msra.mxu0 %v8545
  %10820 = vmatprep.subr.bf16.mxu0 %v8550
  %10821 = vmatpush1.bf16.msra.mxu0 %v8549
  %10822 = vmatprep.subr.bf16.mxu0 %v8554
  %10823 = vmatpush1.bf16.msra.mxu0 %v8553
  %10824 = vmatprep.subr.bf16.mxu0 %v8558
  %10825 = vmatpush1.bf16.msra.mxu0 %v8557
  %10826 = vmatprep.subr.bf16.mxu0 %v8562
  %10827 = vmatpush1.bf16.msra.mxu0 %v8561
  %10828 = vmatprep.mubr.bf16.mxu0 %v4680
  %10829 = vmatmul.mubr.bf16.gmra.mrb[0].mxu0 %v4679
  %v10830 = vpop.f32.mrb[0].mxu0
  %v10831 = vadd.f32 %v10790, %v10830
  %v10832 = vpop.f32.mrb[0].mxu0
  %v10833 = vadd.f32 %v10792, %v10832
  %v10834 = vpop.f32.mrb[0].mxu0
  %v10835 = vpop.f32.mrb[0].mxu0
  %10836 = vdwg.mxu0
  %10837 = vmatprep.subr.bf16.mxu0 %v8566
  %10838 = vmatpush1.bf16.msra.mxu0 %v8565
  %10839 = vmatprep.subr.bf16.mxu0 %v8570
  %10840 = vmatpush1.bf16.msra.mxu0 %v8569
  %10841 = vmatprep.subr.bf16.mxu0 %v8574
  %10842 = vmatpush1.bf16.msra.mxu0 %v8573
  %10843 = vmatprep.subr.bf16.mxu0 %v8578
  %10844 = vmatpush1.bf16.msra.mxu0 %v8577
  %10845 = vmatprep.subr.bf16.mxu0 %v8582
  %10846 = vmatpush1.bf16.msra.mxu0 %v8581
  %10847 = vmatprep.subr.bf16.mxu0 %v8586
  %10848 = vmatpush1.bf16.msra.mxu0 %v8585
  %10849 = vmatprep.subr.bf16.mxu0 %v8590
  %10850 = vmatpush1.bf16.msra.mxu0 %v8589
  %10851 = vmatprep.subr.bf16.mxu0 %v8594
  %10852 = vmatpush1.bf16.msra.mxu0 %v8593
  %10853 = vmatprep.subr.bf16.mxu0 %v8598
  %10854 = vmatpush1.bf16.msra.mxu0 %v8597
  %10855 = vmatprep.subr.bf16.mxu0 %v8602
  %10856 = vmatpush1.bf16.msra.mxu0 %v8601
  %10857 = vmatprep.subr.bf16.mxu0 %v8606
  %10858 = vmatpush1.bf16.msra.mxu0 %v8605
  %10859 = vmatprep.subr.bf16.mxu0 %v8610
  %10860 = vmatpush1.bf16.msra.mxu0 %v8609
  %10861 = vmatprep.subr.bf16.mxu0 %v8614
  %10862 = vmatpush1.bf16.msra.mxu0 %v8613
  %10863 = vmatprep.subr.bf16.mxu0 %v8618
  %10864 = vmatpush1.bf16.msra.mxu0 %v8617
  %10865 = vmatprep.subr.bf16.mxu0 %v8622
  %10866 = vmatpush1.bf16.msra.mxu0 %v8621
  %10867 = vmatprep.subr.bf16.mxu0 %v8626
  %10868 = vmatpush1.bf16.msra.mxu0 %v8625
  %10869 = vmatprep.mubr.bf16.mxu0 %v4682
  %10870 = vmatmul.mubr.bf16.gmra.mrb[0].mxu0 %v4681
  %v10871 = vpop.f32.mrb[0].mxu0
  %v10872 = vadd.f32 %v10831, %v10871
  %v10873 = vpop.f32.mrb[0].mxu0
  %v10874 = vadd.f32 %v10833, %v10873
  %v10875 = vpop.f32.mrb[0].mxu0
  %v10876 = vpop.f32.mrb[0].mxu0
  %10877 = vdwg.mxu0
  %10878 = vmatprep.subr.bf16.mxu0 %v8630
  %10879 = vmatpush1.bf16.msra.mxu0 %v8629
  %10880 = vmatprep.subr.bf16.mxu0 %v8634
  %10881 = vmatpush1.bf16.msra.mxu0 %v8633
  %10882 = vmatprep.subr.bf16.mxu0 %v8638
  %10883 = vmatpush1.bf16.msra.mxu0 %v8637
  %10884 = vmatprep.subr.bf16.mxu0 %v8642
  %10885 = vmatpush1.bf16.msra.mxu0 %v8641
  %10886 = vmatprep.subr.bf16.mxu0 %v8646
  %10887 = vmatpush1.bf16.msra.mxu0 %v8645
  %10888 = vmatprep.subr.bf16.mxu0 %v8650
  %10889 = vmatpush1.bf16.msra.mxu0 %v8649
  %10890 = vmatprep.subr.bf16.mxu0 %v8654
  %10891 = vmatpush1.bf16.msra.mxu0 %v8653
  %10892 = vmatprep.subr.bf16.mxu0 %v8658
  %10893 = vmatpush1.bf16.msra.mxu0 %v8657
  %10894 = vmatprep.subr.bf16.mxu0 %v8662
  %10895 = vmatpush1.bf16.msra.mxu0 %v8661
  %10896 = vmatprep.subr.bf16.mxu0 %v8666
  %10897 = vmatpush1.bf16.msra.mxu0 %v8665
  %10898 = vmatprep.subr.bf16.mxu0 %v8670
  %10899 = vmatpush1.bf16.msra.mxu0 %v8669
  %10900 = vmatprep.subr.bf16.mxu0 %v8674
  %10901 = vmatpush1.bf16.msra.mxu0 %v8673
  %10902 = vmatprep.subr.bf16.mxu0 %v8678
  %10903 = vmatpush1.bf16.msra.mxu0 %v8677
  %10904 = vmatprep.subr.bf16.mxu0 %v8682
  %10905 = vmatpush1.bf16.msra.mxu0 %v8681
  %10906 = vmatprep.subr.bf16.mxu0 %v8686
  %10907 = vmatpush1.bf16.msra.mxu0 %v8685
  %10908 = vmatprep.subr.bf16.mxu0 %v8690
  %10909 = vmatpush1.bf16.msra.mxu0 %v8689
  %10910 = vmatprep.mubr.bf16.mxu0 %v4684
  %10911 = vmatmul.mubr.bf16.gmra.mrb[0].mxu0 %v4683
  %v10912 = vpop.f32.mrb[0].mxu0
  %v10913 = vadd.f32 %v10872, %v10912
  %v10914 = vpop.f32.mrb[0].mxu0
  %v10915 = vadd.f32 %v10874, %v10914
  %v10916 = vpop.f32.mrb[0].mxu0
  %v10917 = vpop.f32.mrb[0].mxu0
  %10918 = vdwg.mxu0
  %10919 = vmatprep.subr.bf16.mxu0 %v8694
  %10920 = vmatpush1.bf16.msra.mxu0 %v8693
  %10921 = vmatprep.subr.bf16.mxu0 %v8698
  %10922 = vmatpush1.bf16.msra.mxu0 %v8697
  %10923 = vmatprep.subr.bf16.mxu0 %v8702
  %10924 = vmatpush1.bf16.msra.mxu0 %v8701
  %10925 = vmatprep.subr.bf16.mxu0 %v8706
  %10926 = vmatpush1.bf16.msra.mxu0 %v8705
  %10927 = vmatprep.subr.bf16.mxu0 %v8710
  %10928 = vmatpush1.bf16.msra.mxu0 %v8709
  %10929 = vmatprep.subr.bf16.mxu0 %v8714
  %10930 = vmatpush1.bf16.msra.mxu0 %v8713
  %10931 = vmatprep.subr.bf16.mxu0 %v8718
  %10932 = vmatpush1.bf16.msra.mxu0 %v8717
  %10933 = vmatprep.subr.bf16.mxu0 %v8722
  %10934 = vmatpush1.bf16.msra.mxu0 %v8721
  %10935 = vmatprep.subr.bf16.mxu0 %v8726
  %10936 = vmatpush1.bf16.msra.mxu0 %v8725
  %10937 = vmatprep.subr.bf16.mxu0 %v8730
  %10938 = vmatpush1.bf16.msra.mxu0 %v8729
  %10939 = vmatprep.subr.bf16.mxu0 %v8734
  %10940 = vmatpush1.bf16.msra.mxu0 %v8733
  %10941 = vmatprep.subr.bf16.mxu0 %v8738
  %10942 = vmatpush1.bf16.msra.mxu0 %v8737
  %10943 = vmatprep.subr.bf16.mxu0 %v8742
  %10944 = vmatpush1.bf16.msra.mxu0 %v8741
  %10945 = vmatprep.subr.bf16.mxu0 %v8746
  %10946 = vmatpush1.bf16.msra.mxu0 %v8745
  %10947 = vmatprep.subr.bf16.mxu0 %v8750
  %10948 = vmatpush1.bf16.msra.mxu0 %v8749
  %10949 = vmatprep.subr.bf16.mxu0 %v8754
  %10950 = vmatpush1.bf16.msra.mxu0 %v8753
  %10951 = vmatprep.mubr.bf16.mxu0 %v4686
  %10952 = vmatmul.mubr.bf16.gmra.mrb[0].mxu0 %v4685
  %v10953 = vpop.f32.mrb[0].mxu0
  %v10954 = vadd.f32 %v10913, %v10953
  %v10955 = vpop.f32.mrb[0].mxu0
  %v10956 = vadd.f32 %v10915, %v10955
  %v10957 = vpop.f32.mrb[0].mxu0
  %v10958 = vpop.f32.mrb[0].mxu0
  %10959 = vdwg.mxu0
  %10960 = vmatprep.subr.bf16.mxu0 %v8758
  %10961 = vmatpush1.bf16.msra.mxu0 %v8757
  %10962 = vmatprep.subr.bf16.mxu0 %v8762
  %10963 = vmatpush1.bf16.msra.mxu0 %v8761
  %10964 = vmatprep.subr.bf16.mxu0 %v8766
  %10965 = vmatpush1.bf16.msra.mxu0 %v8765
  %10966 = vmatprep.subr.bf16.mxu0 %v8770
  %10967 = vmatpush1.bf16.msra.mxu0 %v8769
  %10968 = vmatprep.subr.bf16.mxu0 %v8774
  %10969 = vmatpush1.bf16.msra.mxu0 %v8773
  %10970 = vmatprep.subr.bf16.mxu0 %v8778
  %10971 = vmatpush1.bf16.msra.mxu0 %v8777
  %10972 = vmatprep.subr.bf16.mxu0 %v8782
  %10973 = vmatpush1.bf16.msra.mxu0 %v8781
  %10974 = vmatprep.subr.bf16.mxu0 %v8786
  %10975 = vmatpush1.bf16.msra.mxu0 %v8785
  %10976 = vmatprep.subr.bf16.mxu0 %v8790
  %10977 = vmatpush1.bf16.msra.mxu0 %v8789
  %10978 = vmatprep.subr.bf16.mxu0 %v8794
  %10979 = vmatpush1.bf16.msra.mxu0 %v8793
  %10980 = vmatprep.subr.bf16.mxu0 %v8798
  %10981 = vmatpush1.bf16.msra.mxu0 %v8797
  %10982 = vmatprep.subr.bf16.mxu0 %v8802
  %10983 = vmatpush1.bf16.msra.mxu0 %v8801
  %10984 = vmatprep.subr.bf16.mxu0 %v8806
  %10985 = vmatpush1.bf16.msra.mxu0 %v8805
  %10986 = vmatprep.subr.bf16.mxu0 %v8810
  %10987 = vmatpush1.bf16.msra.mxu0 %v8809
  %10988 = vmatprep.subr.bf16.mxu0 %v8814
  %10989 = vmatpush1.bf16.msra.mxu0 %v8813
  %10990 = vmatprep.subr.bf16.mxu0 %v8818
  %10991 = vmatpush1.bf16.msra.mxu0 %v8817
  %10992 = vmatprep.mubr.bf16.mxu0 %v4688
  %10993 = vmatmul.mubr.bf16.gmra.mrb[0].mxu0 %v4687
  %v10994 = vpop.f32.mrb[0].mxu0
  %v10995 = vadd.f32 %v10954, %v10994
  %v10996 = vpop.f32.mrb[0].mxu0
  %v10997 = vadd.f32 %v10956, %v10996
  %v10998 = vpop.f32.mrb[0].mxu0
  %v10999 = vpop.f32.mrb[0].mxu0
  %11000 = vdwg.mxu0
  %11001 = vmatprep.subr.bf16.mxu0 %v8822
  %11002 = vmatpush1.bf16.msra.mxu0 %v8821
  %11003 = vmatprep.subr.bf16.mxu0 %v8826
  %11004 = vmatpush1.bf16.msra.mxu0 %v8825
  %11005 = vmatprep.subr.bf16.mxu0 %v8830
  %11006 = vmatpush1.bf16.msra.mxu0 %v8829
  %11007 = vmatprep.subr.bf16.mxu0 %v8834
  %11008 = vmatpush1.bf16.msra.mxu0 %v8833
  %11009 = vmatprep.subr.bf16.mxu0 %v8838
  %11010 = vmatpush1.bf16.msra.mxu0 %v8837
  %11011 = vmatprep.subr.bf16.mxu0 %v8842
  %11012 = vmatpush1.bf16.msra.mxu0 %v8841
  %11013 = vmatprep.subr.bf16.mxu0 %v8846
  %11014 = vmatpush1.bf16.msra.mxu0 %v8845
  %11015 = vmatprep.subr.bf16.mxu0 %v8850
  %11016 = vmatpush1.bf16.msra.mxu0 %v8849
  %11017 = vmatprep.subr.bf16.mxu0 %v8854
  %11018 = vmatpush1.bf16.msra.mxu0 %v8853
  %11019 = vmatprep.subr.bf16.mxu0 %v8858
  %11020 = vmatpush1.bf16.msra.mxu0 %v8857
  %11021 = vmatprep.subr.bf16.mxu0 %v8862
  %11022 = vmatpush1.bf16.msra.mxu0 %v8861
  %11023 = vmatprep.subr.bf16.mxu0 %v8866
  %11024 = vmatpush1.bf16.msra.mxu0 %v8865
  %11025 = vmatprep.subr.bf16.mxu0 %v8870
  %11026 = vmatpush1.bf16.msra.mxu0 %v8869
  %11027 = vmatprep.subr.bf16.mxu0 %v8874
  %11028 = vmatpush1.bf16.msra.mxu0 %v8873
  %11029 = vmatprep.subr.bf16.mxu0 %v8878
  %11030 = vmatpush1.bf16.msra.mxu0 %v8877
  %11031 = vmatprep.subr.bf16.mxu0 %v8882
  %11032 = vmatpush1.bf16.msra.mxu0 %v8881
  %11033 = vmatprep.mubr.bf16.mxu0 %v4690
  %11034 = vmatmul.mubr.bf16.gmra.mrb[0].mxu0 %v4689
  %v11035 = vpop.f32.mrb[0].mxu0
  %v11036 = vadd.f32 %v10995, %v11035
  %v11037 = vpop.f32.mrb[0].mxu0
  %v11038 = vadd.f32 %v10997, %v11037
  %v11039 = vpop.f32.mrb[0].mxu0
  %v11040 = vpop.f32.mrb[0].mxu0
  %11041 = vdwg.mxu0
  %11042 = vmatprep.subr.bf16.mxu0 %v8886
  %11043 = vmatpush1.bf16.msra.mxu0 %v8885
  %11044 = vmatprep.subr.bf16.mxu0 %v8890
  %11045 = vmatpush1.bf16.msra.mxu0 %v8889
  %11046 = vmatprep.subr.bf16.mxu0 %v8894
  %11047 = vmatpush1.bf16.msra.mxu0 %v8893
  %11048 = vmatprep.subr.bf16.mxu0 %v8898
  %11049 = vmatpush1.bf16.msra.mxu0 %v8897
  %11050 = vmatprep.subr.bf16.mxu0 %v8902
  %11051 = vmatpush1.bf16.msra.mxu0 %v8901
  %11052 = vmatprep.subr.bf16.mxu0 %v8906
  %11053 = vmatpush1.bf16.msra.mxu0 %v8905
  %11054 = vmatprep.subr.bf16.mxu0 %v8910
  %11055 = vmatpush1.bf16.msra.mxu0 %v8909
  %11056 = vmatprep.subr.bf16.mxu0 %v8914
  %11057 = vmatpush1.bf16.msra.mxu0 %v8913
  %11058 = vmatprep.subr.bf16.mxu0 %v8918
  %11059 = vmatpush1.bf16.msra.mxu0 %v8917
  %11060 = vmatprep.subr.bf16.mxu0 %v8922
  %11061 = vmatpush1.bf16.msra.mxu0 %v8921
  %11062 = vmatprep.subr.bf16.mxu0 %v8926
  %11063 = vmatpush1.bf16.msra.mxu0 %v8925
  %11064 = vmatprep.subr.bf16.mxu0 %v8930
  %11065 = vmatpush1.bf16.msra.mxu0 %v8929
  %11066 = vmatprep.subr.bf16.mxu0 %v8934
  %11067 = vmatpush1.bf16.msra.mxu0 %v8933
  %11068 = vmatprep.subr.bf16.mxu0 %v8938
  %11069 = vmatpush1.bf16.msra.mxu0 %v8937
  %11070 = vmatprep.subr.bf16.mxu0 %v8942
  %11071 = vmatpush1.bf16.msra.mxu0 %v8941
  %11072 = vmatprep.subr.bf16.mxu0 %v8946
  %11073 = vmatpush1.bf16.msra.mxu0 %v8945
  %11074 = vmatprep.mubr.bf16.mxu0 %v4692
  %11075 = vmatmul.mubr.bf16.gmra.mrb[0].mxu0 %v4691
  %v11076 = vpop.f32.mrb[0].mxu0
  %v11077 = vadd.f32 %v11036, %v11076
  %v11078 = vpop.f32.mrb[0].mxu0
  %v11079 = vadd.f32 %v11038, %v11078
  %v11080 = vpop.f32.mrb[0].mxu0
  %v11081 = vpop.f32.mrb[0].mxu0
  %11082 = vdwg.mxu0
  %11083 = vmatprep.subr.bf16.mxu0 %v8950
  %11084 = vmatpush1.bf16.msra.mxu0 %v8949
  %11085 = vmatprep.subr.bf16.mxu0 %v8954
  %11086 = vmatpush1.bf16.msra.mxu0 %v8953
  %11087 = vmatprep.subr.bf16.mxu0 %v8958
  %11088 = vmatpush1.bf16.msra.mxu0 %v8957
  %11089 = vmatprep.subr.bf16.mxu0 %v8962
  %11090 = vmatpush1.bf16.msra.mxu0 %v8961
  %11091 = vmatprep.subr.bf16.mxu0 %v8966
  %11092 = vmatpush1.bf16.msra.mxu0 %v8965
  %11093 = vmatprep.subr.bf16.mxu0 %v8970
  %11094 = vmatpush1.bf16.msra.mxu0 %v8969
  %11095 = vmatprep.subr.bf16.mxu0 %v8974
  %11096 = vmatpush1.bf16.msra.mxu0 %v8973
  %11097 = vmatprep.subr.bf16.mxu0 %v8978
  %11098 = vmatpush1.bf16.msra.mxu0 %v8977
  %11099 = vmatprep.subr.bf16.mxu0 %v8982
  %11100 = vmatpush1.bf16.msra.mxu0 %v8981
  %11101 = vmatprep.subr.bf16.mxu0 %v8986
  %11102 = vmatpush1.bf16.msra.mxu0 %v8985
  %11103 = vmatprep.subr.bf16.mxu0 %v8990
  %11104 = vmatpush1.bf16.msra.mxu0 %v8989
  %11105 = vmatprep.subr.bf16.mxu0 %v8994
  %11106 = vmatpush1.bf16.msra.mxu0 %v8993
  %11107 = vmatprep.subr.bf16.mxu0 %v8998
  %11108 = vmatpush1.bf16.msra.mxu0 %v8997
  %11109 = vmatprep.subr.bf16.mxu0 %v9002
  %11110 = vmatpush1.bf16.msra.mxu0 %v9001
  %11111 = vmatprep.subr.bf16.mxu0 %v9006
  %11112 = vmatpush1.bf16.msra.mxu0 %v9005
  %11113 = vmatprep.subr.bf16.mxu0 %v9010
  %11114 = vmatpush1.bf16.msra.mxu0 %v9009
  %11115 = vmatprep.mubr.bf16.mxu0 %v4694
  %11116 = vmatmul.mubr.bf16.gmra.mrb[0].mxu0 %v4693
  %v11117 = vpop.f32.mrb[0].mxu0
  %v11118 = vadd.f32 %v11077, %v11117
  %v11119 = vpop.f32.mrb[0].mxu0
  %v11120 = vadd.f32 %v11079, %v11119
  %v11121 = vpop.f32.mrb[0].mxu0
  %v11122 = vpop.f32.mrb[0].mxu0
  %11123 = vdwg.mxu0
  %11124 = vmatprep.subr.bf16.mxu0 %v9014
  %11125 = vmatpush1.bf16.msra.mxu0 %v9013
  %11126 = vmatprep.subr.bf16.mxu0 %v9018
  %11127 = vmatpush1.bf16.msra.mxu0 %v9017
  %11128 = vmatprep.subr.bf16.mxu0 %v9022
  %11129 = vmatpush1.bf16.msra.mxu0 %v9021
  %11130 = vmatprep.subr.bf16.mxu0 %v9026
  %11131 = vmatpush1.bf16.msra.mxu0 %v9025
  %11132 = vmatprep.subr.bf16.mxu0 %v9030
  %11133 = vmatpush1.bf16.msra.mxu0 %v9029
  %11134 = vmatprep.subr.bf16.mxu0 %v9034
  %11135 = vmatpush1.bf16.msra.mxu0 %v9033
  %11136 = vmatprep.subr.bf16.mxu0 %v9038
  %11137 = vmatpush1.bf16.msra.mxu0 %v9037
  %11138 = vmatprep.subr.bf16.mxu0 %v9042
  %11139 = vmatpush1.bf16.msra.mxu0 %v9041
  %11140 = vmatprep.subr.bf16.mxu0 %v9046
  %11141 = vmatpush1.bf16.msra.mxu0 %v9045
  %11142 = vmatprep.subr.bf16.mxu0 %v9050
  %11143 = vmatpush1.bf16.msra.mxu0 %v9049
  %11144 = vmatprep.subr.bf16.mxu0 %v9054
  %11145 = vmatpush1.bf16.msra.mxu0 %v9053
  %11146 = vmatprep.subr.bf16.mxu0 %v9058
  %11147 = vmatpush1.bf16.msra.mxu0 %v9057
  %11148 = vmatprep.subr.bf16.mxu0 %v9062
  %11149 = vmatpush1.bf16.msra.mxu0 %v9061
  %11150 = vmatprep.subr.bf16.mxu0 %v9066
  %11151 = vmatpush1.bf16.msra.mxu0 %v9065
  %11152 = vmatprep.subr.bf16.mxu0 %v9070
  %11153 = vmatpush1.bf16.msra.mxu0 %v9069
  %11154 = vmatprep.subr.bf16.mxu0 %v9074
  %11155 = vmatpush1.bf16.msra.mxu0 %v9073
  %11156 = vmatprep.mubr.bf16.mxu0 %v4696
  %11157 = vmatmul.mubr.bf16.gmra.mrb[0].mxu0 %v4695
  %v11158 = vpop.f32.mrb[0].mxu0
  %v11159 = vadd.f32 %v11118, %v11158
  %v11160 = vpop.f32.mrb[0].mxu0
  %v11161 = vadd.f32 %v11120, %v11160
  %v11162 = vpop.f32.mrb[0].mxu0
  %v11163 = vpop.f32.mrb[0].mxu0
  %11164 = vdwg.mxu0
  %11165 = vmatprep.subr.bf16.mxu0 %v9078
  %11166 = vmatpush1.bf16.msra.mxu0 %v9077
  %11167 = vmatprep.subr.bf16.mxu0 %v9082
  %11168 = vmatpush1.bf16.msra.mxu0 %v9081
  %11169 = vmatprep.subr.bf16.mxu0 %v9086
  %11170 = vmatpush1.bf16.msra.mxu0 %v9085
  %11171 = vmatprep.subr.bf16.mxu0 %v9090
  %11172 = vmatpush1.bf16.msra.mxu0 %v9089
  %11173 = vmatprep.subr.bf16.mxu0 %v9094
  %11174 = vmatpush1.bf16.msra.mxu0 %v9093
  %11175 = vmatprep.subr.bf16.mxu0 %v9098
  %11176 = vmatpush1.bf16.msra.mxu0 %v9097
  %11177 = vmatprep.subr.bf16.mxu0 %v9102
  %11178 = vmatpush1.bf16.msra.mxu0 %v9101
  %11179 = vmatprep.subr.bf16.mxu0 %v9106
  %11180 = vmatpush1.bf16.msra.mxu0 %v9105
  %11181 = vmatprep.subr.bf16.mxu0 %v9110
  %11182 = vmatpush1.bf16.msra.mxu0 %v9109
  %11183 = vmatprep.subr.bf16.mxu0 %v9114
  %11184 = vmatpush1.bf16.msra.mxu0 %v9113
  %11185 = vmatprep.subr.bf16.mxu0 %v9118
  %11186 = vmatpush1.bf16.msra.mxu0 %v9117
  %11187 = vmatprep.subr.bf16.mxu0 %v9122
  %11188 = vmatpush1.bf16.msra.mxu0 %v9121
  %11189 = vmatprep.subr.bf16.mxu0 %v9126
  %11190 = vmatpush1.bf16.msra.mxu0 %v9125
  %11191 = vmatprep.subr.bf16.mxu0 %v9130
  %11192 = vmatpush1.bf16.msra.mxu0 %v9129
  %11193 = vmatprep.subr.bf16.mxu0 %v9134
  %11194 = vmatpush1.bf16.msra.mxu0 %v9133
  %11195 = vmatprep.subr.bf16.mxu0 %v9138
  %11196 = vmatpush1.bf16.msra.mxu0 %v9137
  %11197 = vmatprep.mubr.bf16.mxu0 %v4698
  %11198 = vmatmul.mubr.bf16.gmra.mrb[0].mxu0 %v4697
  %v11199 = vpop.f32.mrb[0].mxu0
  %v11200 = vadd.f32 %v11159, %v11199
  %v11201 = vpop.f32.mrb[0].mxu0
  %v11202 = vadd.f32 %v11161, %v11201
  %v11203 = vpop.f32.mrb[0].mxu0
  %v11204 = vpop.f32.mrb[0].mxu0
  %11205 = vdwg.mxu0
  %11206 = vmatprep.subr.bf16.mxu0 %v9142
  %11207 = vmatpush1.bf16.msra.mxu0 %v9141
  %11208 = vmatprep.subr.bf16.mxu0 %v9146
  %11209 = vmatpush1.bf16.msra.mxu0 %v9145
  %11210 = vmatprep.subr.bf16.mxu0 %v9150
  %11211 = vmatpush1.bf16.msra.mxu0 %v9149
  %11212 = vmatprep.subr.bf16.mxu0 %v9154
  %11213 = vmatpush1.bf16.msra.mxu0 %v9153
  %11214 = vmatprep.subr.bf16.mxu0 %v9158
  %11215 = vmatpush1.bf16.msra.mxu0 %v9157
  %11216 = vmatprep.subr.bf16.mxu0 %v9162
  %11217 = vmatpush1.bf16.msra.mxu0 %v9161
  %11218 = vmatprep.subr.bf16.mxu0 %v9166
  %11219 = vmatpush1.bf16.msra.mxu0 %v9165
  %11220 = vmatprep.subr.bf16.mxu0 %v9170
  %11221 = vmatpush1.bf16.msra.mxu0 %v9169
  %11222 = vmatprep.subr.bf16.mxu0 %v9174
  %11223 = vmatpush1.bf16.msra.mxu0 %v9173
  %11224 = vmatprep.subr.bf16.mxu0 %v9178
  %11225 = vmatpush1.bf16.msra.mxu0 %v9177
  %11226 = vmatprep.subr.bf16.mxu0 %v9182
  %11227 = vmatpush1.bf16.msra.mxu0 %v9181
  %11228 = vmatprep.subr.bf16.mxu0 %v9186
  %11229 = vmatpush1.bf16.msra.mxu0 %v9185
  %11230 = vmatprep.subr.bf16.mxu0 %v9190
  %11231 = vmatpush1.bf16.msra.mxu0 %v9189
  %11232 = vmatprep.subr.bf16.mxu0 %v9194
  %11233 = vmatpush1.bf16.msra.mxu0 %v9193
  %11234 = vmatprep.subr.bf16.mxu0 %v9198
  %11235 = vmatpush1.bf16.msra.mxu0 %v9197
  %11236 = vmatprep.subr.bf16.mxu0 %v9202
  %11237 = vmatpush1.bf16.msra.mxu0 %v9201
  %11238 = vmatprep.mubr.bf16.mxu0 %v4700
  %11239 = vmatmul.mubr.bf16.gmra.mrb[0].mxu0 %v4699
  %v11240 = vpop.f32.mrb[0].mxu0
  %v11241 = vadd.f32 %v11200, %v11240
  %v11242 = vpop.f32.mrb[0].mxu0
  %v11243 = vadd.f32 %v11202, %v11242
  %v11244 = vpop.f32.mrb[0].mxu0
  %v11245 = vpop.f32.mrb[0].mxu0
  %11246 = vdwg.mxu0
  %v11247 = vmax.f32 %v10667, 0.0
  %v11248 = vmax.f32 %v10669, 0.0
  %v11249 = vmax.f32 %v11241, 0.0
  %v11250 = vmax.f32 %v11243, 0.0
  %v11251 = vpack.c.bf16 %v11247, %v11247
  %v11252 = vpack.c.bf16 %v11248, %v11248
  %v11253 = vpack.c.bf16 %v11249, %v11249
  %v11254 = vpack.c.bf16 %v11250, %v11250
  %v11255 = vld [vmem:[%s7] sm:$0xf]
  %v11256 = vld [vmem:[%s7 + $0x4] sm:$0xf]
  %v11257 = vld [vmem:[%s7 + $0x8] sm:$0xf]
  %v11258 = vld [vmem:[%s7 + $0xc] sm:$0xf]
  %v11259 = vld [vmem:[%s7 + $0x10] sm:$0xf]
  %v11260 = vld [vmem:[%s7 + $0x14] sm:$0xf]
  %v11261 = vld [vmem:[%s7 + $0x18] sm:$0xf]
  %v11262 = vld [vmem:[%s7 + $0x1c] sm:$0xf]
  %v11263 = vld [vmem:[%s7 + $0x20] sm:$0xf]
  %v11264 = vld [vmem:[%s7 + $0x24] sm:$0xf]
  %v11265 = vld [vmem:[%s7 + $0x28] sm:$0xf]
  %v11266 = vld [vmem:[%s7 + $0x2c] sm:$0xf]
  %v11267 = vld [vmem:[%s7 + $0x30] sm:$0xf]
  %v11268 = vld [vmem:[%s7 + $0x34] sm:$0xf]
  %v11269 = vld [vmem:[%s7 + $0x38] sm:$0xf]
  %v11270 = vld [vmem:[%s7 + $0x3c] sm:$0xf]
  %v11271 = vld [vmem:[%s7 + $0x40] sm:$0xf]
  %v11272 = vld [vmem:[%s7 + $0x44] sm:$0xf]
  %v11273 = vld [vmem:[%s7 + $0x48] sm:$0xf]
  %v11274 = vld [vmem:[%s7 + $0x4c] sm:$0xf]
  %v11275 = vld [vmem:[%s7 + $0x50] sm:$0xf]
  %v11276 = vld [vmem:[%s7 + $0x54] sm:$0xf]
  %v11277 = vld [vmem:[%s7 + $0x58] sm:$0xf]
  %v11278 = vld [vmem:[%s7 + $0x5c] sm:$0xf]
  %v11279 = vld [vmem:[%s7 + $0x60] sm:$0xf]
  %v11280 = vld [vmem:[%s7 + $0x64] sm:$0xf]
  %v11281 = vld [vmem:[%s7 + $0x68] sm:$0xf]
  %v11282 = vld [vmem:[%s7 + $0x6c] sm:$0xf]
  %v11283 = vld [vmem:[%s7 + $0x70] sm:$0xf]
  %v11284 = vld [vmem:[%s7 + $0x74] sm:$0xf]
  %v11285 = vld [vmem:[%s7 + $0x78] sm:$0xf]
  %v11286 = vld [vmem:[%s7 + $0x7c] sm:$0xf]
  %v11287 = vld [vmem:[%s7 + $0x80] sm:$0xf]
  %v11288 = vld [vmem:[%s7 + $0x84] sm:$0xf]
  %v11289 = vld [vmem:[%s7 + $0x88] sm:$0xf]
  %v11290 = vld [vmem:[%s7 + $0x8c] sm:$0xf]
  %v11291 = vld [vmem:[%s7 + $0x90] sm:$0xf]
  %v11292 = vld [vmem:[%s7 + $0x94] sm:$0xf]
  %v11293 = vld [vmem:[%s7 + $0x98] sm:$0xf]
  %v11294 = vld [vmem:[%s7 + $0x9c] sm:$0xf]
  %v11295 = vld [vmem:[%s7 + $0xa0] sm:$0xf]
  %v11296 = vld [vmem:[%s7 + $0xa4] sm:$0xf]
  %v11297 = vld [vmem:[%s7 + $0xa8] sm:$0xf]
  %v11298 = vld [vmem:[%s7 + $0xac] sm:$0xf]
  %v11299 = vld [vmem:[%s7 + $0xb0] sm:$0xf]
  %v11300 = vld [vmem:[%s7 + $0xb4] sm:$0xf]
  %v11301 = vld [vmem:[%s7 + $0xb8] sm:$0xf]
  %v11302 = vld [vmem:[%s7 + $0xbc] sm:$0xf]
  %v11303 = vld [vmem:[%s7 + $0xc0] sm:$0xf]
  %v11304 = vld [vmem:[%s7 + $0xc4] sm:$0xf]
  %v11305 = vld [vmem:[%s7 + $0xc8] sm:$0xf]
  %v11306 = vld [vmem:[%s7 + $0xcc] sm:$0xf]
  %v11307 = vld [vmem:[%s7 + $0xd0] sm:$0xf]
  %v11308 = vld [vmem:[%s7 + $0xd4] sm:$0xf]
  %v11309 = vld [vmem:[%s7 + $0xd8] sm:$0xf]
  %v11310 = vld [vmem:[%s7 + $0xdc] sm:$0xf]
  %v11311 = vld [vmem:[%s7 + $0xe0] sm:$0xf]
  %v11312 = vld [vmem:[%s7 + $0xe4] sm:$0xf]
  %v11313 = vld [vmem:[%s7 + $0xe8] sm:$0xf]
  %v11314 = vld [vmem:[%s7 + $0xec] sm:$0xf]
  %v11315 = vld [vmem:[%s7 + $0xf0] sm:$0xf]
  %v11316 = vld [vmem:[%s7 + $0xf4] sm:$0xf]
  %v11317 = vld [vmem:[%s7 + $0xf8] sm:$0xf]
  %v11318 = vld [vmem:[%s7 + $0xfc] sm:$0xf]
  %v11319 = vld [vmem:[%s8] sm:$0x1]
  %v11321 = vlaneseq
  %v11322 = vshrl.u32 %v11321, 7
  %v11323 = vsub.s32 0, %v11322
  %v11324 = vrot.slane %v11319, %v11323
  %v11390 = vunpack.c.l.b16 %v11255
  %v11391 = vunpack.c.l.b16 %v11256
  %v11392 = vunpack.c.l.b16 %v11257
  %v11393 = vunpack.c.l.b16 %v11258
  %v11394 = vunpack.c.l.b16 %v11259
  %v11395 = vunpack.c.l.b16 %v11260
  %v11396 = vunpack.c.l.b16 %v11261
  %v11397 = vunpack.c.l.b16 %v11262
  %v11398 = vunpack.c.l.b16 %v11263
  %v11399 = vunpack.c.l.b16 %v11264
  %v11400 = vunpack.c.l.b16 %v11265
  %v11401 = vunpack.c.l.b16 %v11266
  %v11402 = vunpack.c.l.b16 %v11267
  %v11403 = vunpack.c.l.b16 %v11268
  %v11404 = vunpack.c.l.b16 %v11269
  %v11405 = vunpack.c.l.b16 %v11270
  %v11406 = vunpack.c.l.b16 %v11271
  %v11407 = vunpack.c.l.b16 %v11272
  %v11408 = vunpack.c.l.b16 %v11273
  %v11409 = vunpack.c.l.b16 %v11274
  %v11410 = vunpack.c.l.b16 %v11275
  %v11411 = vunpack.c.l.b16 %v11276
  %v11412 = vunpack.c.l.b16 %v11277
  %v11413 = vunpack.c.l.b16 %v11278
  %v11414 = vunpack.c.l.b16 %v11279
  %v11415 = vunpack.c.l.b16 %v11280
  %v11416 = vunpack.c.l.b16 %v11281
  %v11417 = vunpack.c.l.b16 %v11282
  %v11418 = vunpack.c.l.b16 %v11283
  %v11419 = vunpack.c.l.b16 %v11284
  %v11420 = vunpack.c.l.b16 %v11285
  %v11421 = vunpack.c.l.b16 %v11286
  %v11422 = vunpack.c.l.b16 %v11287
  %v11423 = vunpack.c.l.b16 %v11288
  %v11424 = vunpack.c.l.b16 %v11289
  %v11425 = vunpack.c.l.b16 %v11290
  %v11426 = vunpack.c.l.b16 %v11291
  %v11427 = vunpack.c.l.b16 %v11292
  %v11428 = vunpack.c.l.b16 %v11293
  %v11429 = vunpack.c.l.b16 %v11294
  %v11430 = vunpack.c.l.b16 %v11295
  %v11431 = vunpack.c.l.b16 %v11296
  %v11432 = vunpack.c.l.b16 %v11297
  %v11433 = vunpack.c.l.b16 %v11298
  %v11434 = vunpack.c.l.b16 %v11299
  %v11435 = vunpack.c.l.b16 %v11300
  %v11436 = vunpack.c.l.b16 %v11301
  %v11437 = vunpack.c.l.b16 %v11302
  %v11438 = vunpack.c.l.b16 %v11303
  %v11439 = vunpack.c.l.b16 %v11304
  %v11440 = vunpack.c.l.b16 %v11305
  %v11441 = vunpack.c.l.b16 %v11306
  %v11442 = vunpack.c.l.b16 %v11307
  %v11443 = vunpack.c.l.b16 %v11308
  %v11444 = vunpack.c.l.b16 %v11309
  %v11445 = vunpack.c.l.b16 %v11310
  %v11446 = vunpack.c.l.b16 %v11311
  %v11447 = vunpack.c.l.b16 %v11312
  %v11448 = vunpack.c.l.b16 %v11313
  %v11449 = vunpack.c.l.b16 %v11314
  %v11450 = vunpack.c.l.b16 %v11315
  %v11451 = vunpack.c.l.b16 %v11316
  %v11452 = vunpack.c.l.b16 %v11317
  %v11453 = vunpack.c.l.b16 %v11318
  %v11454 = vpack.c.b16 %v11391, %v11390
  %v11455 = vpack.c.b16 %v11393, %v11392
  %v11456 = vpack.c.b16 %v11395, %v11394
  %v11457 = vpack.c.b16 %v11397, %v11396
  %v11458 = vpack.c.b16 %v11399, %v11398
  %v11459 = vpack.c.b16 %v11401, %v11400
  %v11460 = vpack.c.b16 %v11403, %v11402
  %v11461 = vpack.c.b16 %v11405, %v11404
  %v11462 = vpack.c.b16 %v11407, %v11406
  %v11463 = vpack.c.b16 %v11409, %v11408
  %v11464 = vpack.c.b16 %v11411, %v11410
  %v11465 = vpack.c.b16 %v11413, %v11412
  %v11466 = vpack.c.b16 %v11415, %v11414
  %v11467 = vpack.c.b16 %v11417, %v11416
  %v11468 = vpack.c.b16 %v11419, %v11418
  %v11469 = vpack.c.b16 %v11421, %v11420
  %v11470 = vpack.c.b16 %v11423, %v11422
  %v11471 = vpack.c.b16 %v11425, %v11424
  %v11472 = vpack.c.b16 %v11427, %v11426
  %v11473 = vpack.c.b16 %v11429, %v11428
  %v11474 = vpack.c.b16 %v11431, %v11430
  %v11475 = vpack.c.b16 %v11433, %v11432
  %v11476 = vpack.c.b16 %v11435, %v11434
  %v11477 = vpack.c.b16 %v11437, %v11436
  %v11478 = vpack.c.b16 %v11439, %v11438
  %v11479 = vpack.c.b16 %v11441, %v11440
  %v11480 = vpack.c.b16 %v11443, %v11442
  %v11481 = vpack.c.b16 %v11445, %v11444
  %v11482 = vpack.c.b16 %v11447, %v11446
  %v11483 = vpack.c.b16 %v11449, %v11448
  %v11484 = vpack.c.b16 %v11451, %v11450
  %v11485 = vpack.c.b16 %v11453, %v11452
  %11518 = vmatprep.subr.bf16.mxu0 0
  %11519 = vmatpush1.bf16.msra.mxu0 %v11454
  %11520 = vmatprep.subr.bf16.mxu0 0
  %11521 = vmatpush1.bf16.msra.mxu0 %v11455
  %11522 = vmatprep.subr.bf16.mxu0 0
  %11523 = vmatpush1.bf16.msra.mxu0 %v11456
  %11524 = vmatprep.subr.bf16.mxu0 0
  %11525 = vmatpush1.bf16.msra.mxu0 %v11457
  %11526 = vmatprep.subr.bf16.mxu0 0
  %11527 = vmatpush1.bf16.msra.mxu0 %v11458
  %11528 = vmatprep.subr.bf16.mxu0 0
  %11529 = vmatpush1.bf16.msra.mxu0 %v11459
  %11530 = vmatprep.subr.bf16.mxu0 0
  %11531 = vmatpush1.bf16.msra.mxu0 %v11460
  %11532 = vmatprep.subr.bf16.mxu0 0
  %11533 = vmatpush1.bf16.msra.mxu0 %v11461
  %11534 = vmatprep.subr.bf16.mxu0 0
  %11535 = vmatpush1.bf16.msra.mxu0 %v11462
  %11536 = vmatprep.subr.bf16.mxu0 0
  %11537 = vmatpush1.bf16.msra.mxu0 %v11463
  %11538 = vmatprep.subr.bf16.mxu0 0
  %11539 = vmatpush1.bf16.msra.mxu0 %v11464
  %11540 = vmatprep.subr.bf16.mxu0 0
  %11541 = vmatpush1.bf16.msra.mxu0 %v11465
  %11542 = vmatprep.subr.bf16.mxu0 0
  %11543 = vmatpush1.bf16.msra.mxu0 %v11466
  %11544 = vmatprep.subr.bf16.mxu0 0
  %11545 = vmatpush1.bf16.msra.mxu0 %v11467
  %11546 = vmatprep.subr.bf16.mxu0 0
  %11547 = vmatpush1.bf16.msra.mxu0 %v11468
  %11548 = vmatprep.subr.bf16.mxu0 0
  %11549 = vmatpush1.bf16.msra.mxu0 %v11469
  %11550 = vmatprep.mubr.bf16.mxu0 %v11252
  %11551 = vmatmul.mubr.bf16.gmra.mrb[0].mxu0 %v11251
  %v11552 = vpop.f32.mrb[0].mxu0
  %v11553 = vadd.f32 %v11324, %v11552
  %v11554 = vpop.f32.mrb[0].mxu0
  %v11555 = vpop.f32.mrb[0].mxu0
  %v11556 = vpop.f32.mrb[0].mxu0
  %11557 = vdwg.mxu0
  %11558 = vmatprep.subr.bf16.mxu0 0
  %11559 = vmatpush1.bf16.msra.mxu0 %v11470
  %11560 = vmatprep.subr.bf16.mxu0 0
  %11561 = vmatpush1.bf16.msra.mxu0 %v11471
  %11562 = vmatprep.subr.bf16.mxu0 0
  %11563 = vmatpush1.bf16.msra.mxu0 %v11472
  %11564 = vmatprep.subr.bf16.mxu0 0
  %11565 = vmatpush1.bf16.msra.mxu0 %v11473
  %11566 = vmatprep.subr.bf16.mxu0 0
  %11567 = vmatpush1.bf16.msra.mxu0 %v11474
  %11568 = vmatprep.subr.bf16.mxu0 0
  %11569 = vmatpush1.bf16.msra.mxu0 %v11475
  %11570 = vmatprep.subr.bf16.mxu0 0
  %11571 = vmatpush1.bf16.msra.mxu0 %v11476
  %11572 = vmatprep.subr.bf16.mxu0 0
  %11573 = vmatpush1.bf16.msra.mxu0 %v11477
  %11574 = vmatprep.subr.bf16.mxu0 0
  %11575 = vmatpush1.bf16.msra.mxu0 %v11478
  %11576 = vmatprep.subr.bf16.mxu0 0
  %11577 = vmatpush1.bf16.msra.mxu0 %v11479
  %11578 = vmatprep.subr.bf16.mxu0 0
  %11579 = vmatpush1.bf16.msra.mxu0 %v11480
  %11580 = vmatprep.subr.bf16.mxu0 0
  %11581 = vmatpush1.bf16.msra.mxu0 %v11481
  %11582 = vmatprep.subr.bf16.mxu0 0
  %11583 = vmatpush1.bf16.msra.mxu0 %v11482
  %11584 = vmatprep.subr.bf16.mxu0 0
  %11585 = vmatpush1.bf16.msra.mxu0 %v11483
  %11586 = vmatprep.subr.bf16.mxu0 0
  %11587 = vmatpush1.bf16.msra.mxu0 %v11484
  %11588 = vmatprep.subr.bf16.mxu0 0
  %11589 = vmatpush1.bf16.msra.mxu0 %v11485
  %11590 = vmatprep.mubr.bf16.mxu0 %v11254
  %11591 = vmatmul.mubr.bf16.gmra.mrb[0].mxu0 %v11253
  %v11592 = vpop.f32.mrb[0].mxu0
  %v11593 = vadd.f32 %v11553, %v11592
  %v11594 = vpop.f32.mrb[0].mxu0
  %v11595 = vpop.f32.mrb[0].mxu0
  %v11596 = vpop.f32.mrb[0].mxu0
  %11597 = vdwg.mxu0
  %11598 = vst [vmem:[%s9] sm:$0xff] %v11593
  // Predicated region
  $region38: #{qnet_forward.1} parent=0 // pred_check
    _
  $region39: #{qnet_forward.1} parent=0 // pred_check_branch
    %11600 = sbr.rel (0) target = $region41
  $region40: #{qnet_forward.1} parent=0 // pred_region
    _
  $region41: #{qnet_forward.1} parent=0 // pred_fallthru
    _
  // Predicated region
  $region42: #{qnet_forward.1} parent=0 // pred_check
    _
  $region43: #{qnet_forward.1} parent=0 // pred_check_branch
    %11602 = sbr.rel (0) target = $region45
  $region44: #{qnet_forward.1} parent=0 // pred_region
    _
  $region45: #{qnet_forward.1} parent=0 // pred_fallthru
    _

</llo_original>
